<compile_context>
chip_gen: v6e
topology: v6e:2x2x1
jax: 0.10.0
libtpu: 0.0.40
codegen_flags: <defaults>
</compile_context>

<pallas_src>
import numpy as np
import jax
import jax.numpy as jnp
from jax.experimental import pallas as pl
from jax.experimental.pallas import tpu as pltpu


# ----------------------------------------------------------------------------
# Fused kernel: conv1+bias+lrelu -> conv2+IN+lrelu -> conv3+IN+lrelu -> conv4
# ----------------------------------------------------------------------------
def _disc_fused_kernel(x_ref,
                       s1_ref, w1_ref, b1_ref,
                       s2_ref, w2_ref, g2_ref, be2_ref,
                       s3_ref, w3_ref, g3_ref, be3_ref,
                       w4_ref, b4_ref,
                       o_ref, *, eps=1e-5, slope=0.2):
    def conv(a, s_ref, w_ref):
        # a:     (P_in, Cin)          flattened activation (row-major H*W, C)
        # s_ref: (16, P_out, P_in)    0/1 gather matrix per 4x4 tap (padding
        #                             rows are all-zero)
        # w_ref: (16, Cin, Cout)      conv weights per tap
        p_out = s_ref.shape[1]
        cout = w_ref.shape[2]
        acc = jnp.zeros((p_out, cout), jnp.float32)
        for t in range(16):                                    # static unroll
            patch = jnp.dot(s_ref[t], a, preferred_element_type=jnp.float32)
            acc = acc + jnp.dot(patch, w_ref[t],
                                preferred_element_type=jnp.float32)
        return acc

    def inorm(y, g, be):
        # InstanceNorm2d: per-channel stats over the spatial (row) axis.
        mean = jnp.mean(y, axis=0, keepdims=True)
        var = jnp.mean((y - mean) ** 2, axis=0, keepdims=True)
        return (y - mean) * jax.lax.rsqrt(var + eps) * g + be

    lrelu = lambda v: jnp.where(v > 0, v, slope * v)

    a = x_ref[0]                                               # (H*W, C0)
    a = lrelu(conv(a, s1_ref, w1_ref) + b1_ref[...])           # (64,  fd)
    a = lrelu(inorm(conv(a, s2_ref, w2_ref), g2_ref[...], be2_ref[...]))
    a = lrelu(inorm(conv(a, s3_ref, w3_ref), g3_ref[...], be3_ref[...]))
    # Layer 4: Conv2d(4fd, 1, 4, 2, 1) on a 2x2 map -> only the centre 2x2 of
    # the kernel hits real data, so it's a plain VPU multiply + reduce.
    prod = a * w4_ref[...]                                     # (4, 4fd)
    y = jnp.sum(jnp.sum(prod, axis=1, keepdims=True), axis=0, keepdims=True)
    o_ref[0] = y + b4_ref[...]                                 # (1, 1)


def _build_tap_selectors(H, W):
    """0/1 row-gather matrices for Conv2d(k=4, s=2, p=1) on an (H, W) map.

    S[t, i*OW + j, h*W + w] = 1 with h = 2i + di - 1, w = 2j + dj - 1 and
    t = di*4 + dj; rows that fall into the zero padding stay all-zero.
    """
    OH, OW = H // 2, W // 2
    S = np.zeros((16, OH * OW, H * W), np.float32)
    for di in range(4):
        for dj in range(4):
            t = di * 4 + dj
            for i in range(OH):
                h = 2 * i + di - 1
                if not 0 <= h < H:
                    continue
                for j in range(OW):
                    w = 2 * j + dj - 1
                    if 0 <= w < W:
                        S[t, i * OW + j, h * W + w] = 1.0
    return jnp.asarray(S)


def _fused_forward(x_flat, kp):
    """x_flat: (B, H*W, C0) float32 -> (B, 1, 1) critic scores."""
    B, P0, C0 = x_flat.shape
    return pl.pallas_call(
        _disc_fused_kernel,
        out_shape=jax.ShapeDtypeStruct((B, 1, 1), jnp.float32),
        grid_spec=pltpu.PrefetchScalarGridSpec(
            num_scalar_prefetch=0,
            grid=(B,),
            in_specs=[
                pl.BlockSpec((1, P0, C0), lambda b: (b, 0, 0)),        # x
                pl.BlockSpec(kp["s1"].shape, lambda b: (0, 0, 0)),     # S1
                pl.BlockSpec(kp["w1"].shape, lambda b: (0, 0, 0)),     # W1
                pl.BlockSpec(kp["b1"].shape, lambda b: (0, 0)),        # b1
                pl.BlockSpec(kp["s2"].shape, lambda b: (0, 0, 0)),     # S2
                pl.BlockSpec(kp["w2"].shape, lambda b: (0, 0, 0)),     # W2
                pl.BlockSpec(kp["g2"].shape, lambda b: (0, 0)),        # gamma2
                pl.BlockSpec(kp["be2"].shape, lambda b: (0, 0)),       # beta2
                pl.BlockSpec(kp["s3"].shape, lambda b: (0, 0, 0)),     # S3
                pl.BlockSpec(kp["w3"].shape, lambda b: (0, 0, 0)),     # W3
                pl.BlockSpec(kp["g3"].shape, lambda b: (0, 0)),        # gamma3
                pl.BlockSpec(kp["be3"].shape, lambda b: (0, 0)),       # beta3
                pl.BlockSpec(kp["w4c"].shape, lambda b: (0, 0)),       # W4 ctr
                pl.BlockSpec(kp["b4"].shape, lambda b: (0, 0)),        # b4
            ],
            out_specs=pl.BlockSpec((1, 1, 1), lambda b: (b, 0, 0)),
        ),
        compiler_params=pltpu.CompilerParams(
            dimension_semantics=("parallel",),
            vmem_limit_bytes=32 * 1024 * 1024),
    )(x_flat, kp["s1"], kp["w1"], kp["b1"],
      kp["s2"], kp["w2"], kp["g2"], kp["be2"],
      kp["s3"], kp["w3"], kp["g3"], kp["be3"],
      kp["w4c"], kp["b4"])


# ----------------------------------------------------------------------------
# Model wrapper (parameter setup + host-side glue)
# ----------------------------------------------------------------------------
class DiscriminatorPallas:
    def __init__(self, channels_img, features_d, num_classes, img_size, key):
        # The fused epilogue assumes the last conv sees a 2x2 map (the standard
        # config where the critic outputs a single 1x1 score).
        assert img_size == 16, "fused kernel assumes img_size == 16"
        self.img_size = img_size
        fd = features_d
        ks = jax.random.split(key, 11)
        wscale = 0.05

        def wconv(k, cout, cin):
            return wscale * jax.random.normal(k, (cout, cin, 4, 4), jnp.float32)

        def vec(k, n, base=0.0, scale=0.1):
            return base + scale * jax.random.normal(k, (n,), jnp.float32)

        self.params = {
            # nn.Embedding(num_classes, img_size*img_size): N(0,1) init
            "embed": jax.random.normal(
                ks[0], (num_classes, img_size * img_size), jnp.float32),
            # Conv2d(channels_img+1, fd, 4, 2, 1)  (with bias) + LeakyReLU
            "w1": wconv(ks[1], fd, channels_img + 1),
            "b1": vec(ks[2], fd),
            # _block(fd, 2fd): Conv(no bias) + InstanceNorm(affine) + LeakyReLU
            "w2": wconv(ks[3], 2 * fd, fd),
            "g2": vec(ks[4], 2 * fd, base=1.0),
            "be2": vec(ks[5], 2 * fd),
            # _block(2fd, 4fd)
            "w3": wconv(ks[6], 4 * fd, 2 * fd),
            "g3": vec(ks[7], 4 * fd, base=1.0),
            "be3": vec(ks[8], 4 * fd),
            # Conv2d(4fd, 1, 4, 2, 1) (with bias)
            "w4": wconv(ks[9], 1, 4 * fd),
            "b4": vec(ks[10], 1),
        }
        self.kparams = self._prepare_kernel_params()

    def _prepare_kernel_params(self):
        p = self.params
        img = self.img_size

        def stack_w(w):               # (Cout, Cin, 4, 4) -> (16, Cin, Cout)
            cout, cin = w.shape[0], w.shape[1]
            return jnp.transpose(w, (2, 3, 1, 0)).reshape(16, cin, cout)

        return {
            "s1": _build_tap_selectors(img, img),              # (16, 64, 256)
            "s2": _build_tap_selectors(img // 2, img // 2),    # (16, 16,  64)
            "s3": _build_tap_selectors(img // 4, img // 4),    # (16,  4,  16)
            "w1": stack_w(p["w1"]), "b1": p["b1"].reshape(1, -1),
            "w2": stack_w(p["w2"]),
            "g2": p["g2"].reshape(1, -1), "be2": p["be2"].reshape(1, -1),
            "w3": stack_w(p["w3"]),
            "g3": p["g3"].reshape(1, -1), "be3": p["be3"].reshape(1, -1),
            # centre 2x2 taps of the last 4x4 kernel, laid out to match the
            # (row-major 2x2, channel) layer-3 activation
            "w4c": jnp.transpose(p["w4"][0, :, 1:3, 1:3],
                                 (1, 2, 0)).reshape(4, -1),
            "b4": p["b4"].reshape(1, 1),
        }

    def __call__(self, x_nchw, labels):
        B = x_nchw.shape[0]
        emb = self.params["embed"][labels].reshape(
            B, 1, self.img_size, self.img_size)
        x = jnp.concatenate([x_nchw, emb], axis=1)            # (B, C+1, H, W)
        x = jnp.transpose(x, (0, 2, 3, 1)).reshape(
            B, self.img_size * self.img_size, -1)             # (B, H*W, C+1)
        out = _fused_forward(x, self.kparams)                 # (B, 1, 1)
        return out.reshape(B, 1, 1, 1)                        # NCHW


# ----------------------------------------------------------------------------
# Pure-JAX reference (high-precision conv) for a numerical sanity check
# ----------------------------------------------------------------------------
def ref_forward(params, x_nchw, labels, img_size):
    hp = jax.lax.Precision.HIGHEST

    def conv(x, w, b, stride, pad):
        y = jax.lax.conv_general_dilated(
            x, w, (stride, stride), [(pad, pad), (pad, pad)],
            dimension_numbers=("NCHW", "OIHW", "NCHW"), precision=hp)
        if b is not None:
            y = y + b[None, :, None, None]
        return y

    def inorm(x, g, b, eps=1e-5):
        mean = x.mean(axis=(2, 3), keepdims=True)
        var = ((x - mean) ** 2).mean(axis=(2, 3), keepdims=True)
        return ((x - mean) * jax.lax.rsqrt(var + eps)
                * g[None, :, None, None] + b[None, :, None, None])

    lrelu = lambda v: jnp.where(v > 0, v, 0.2 * v)

    B = x_nchw.shape[0]
    emb = params["embed"][labels].reshape(B, 1, img_size, img_size)
    x = jnp.concatenate([x_nchw, emb], axis=1)
    x = lrelu(conv(x, params["w1"], params["b1"], 2, 1))
    x = lrelu(inorm(conv(x, params["w2"], None, 2, 1),
                    params["g2"], params["be2"]))
    x = lrelu(inorm(conv(x, params["w3"], None, 2, 1),
                    params["g3"], params["be3"]))
    x = conv(x, params["w4"], params["b4"], 2, 1)
    return x


if __name__ == "__main__":
    key = jax.random.PRNGKey(0)
    B, C_IMG, IMG = 2, 4, 16
    FEATURES_D, NUM_CLASSES = 8, 10

    k_model, k_x, k_lbl = jax.random.split(key, 3)
    model = DiscriminatorPallas(C_IMG, FEATURES_D, NUM_CLASSES, IMG, k_model)

    x = jax.random.normal(k_x, (B, C_IMG, IMG, IMG), jnp.float32)
    labels = jax.random.randint(k_lbl, (B,), 0, NUM_CLASSES, dtype=jnp.int32)

    out = jax.block_until_ready(model(x, labels))
    assert out.shape == (B, 1, 1, 1), out.shape

    ref = ref_forward(model.params, x, labels, IMG)
    max_err = float(jnp.max(jnp.abs(out - ref)))
    assert max_err < 2e-3, f"max abs err {max_err}"

    print("KERNEL_OK")
</pallas_src>

<mosaic_0001>
module attributes {stable_mosaic.version = 11 : i64} {
  func.func @_disc_fused_kernel(%arg0: i32, %arg1: memref<1x256x5xf32, #tpu.memory_space<vmem>>, %arg2: memref<16x64x256xf32, #tpu.memory_space<vmem>>, %arg3: memref<16x5x8xf32, #tpu.memory_space<vmem>>, %arg4: memref<1x8xf32, #tpu.memory_space<vmem>>, %arg5: memref<16x16x64xf32, #tpu.memory_space<vmem>>, %arg6: memref<16x8x16xf32, #tpu.memory_space<vmem>>, %arg7: memref<1x16xf32, #tpu.memory_space<vmem>>, %arg8: memref<1x16xf32, #tpu.memory_space<vmem>>, %arg9: memref<16x4x16xf32, #tpu.memory_space<vmem>>, %arg10: memref<16x16x32xf32, #tpu.memory_space<vmem>>, %arg11: memref<1x32xf32, #tpu.memory_space<vmem>>, %arg12: memref<1x32xf32, #tpu.memory_space<vmem>>, %arg13: memref<4x32xf32, #tpu.memory_space<vmem>>, %arg14: memref<1x1xf32, #tpu.memory_space<vmem>>, %arg15: memref<1x1x1xf32, #tpu.memory_space<vmem>>) attributes {dimension_semantics = [#tpu.dimension_semantics<parallel>], iteration_bounds = array<i64: 2>, scalar_prefetch = 0 : i64, scratch_operands = 0 : i64, tpu.core_type = #tpu.core_type<tc>, window_params = [{transform_indices = @transform_0, window_bounds = array<i64: 1, 256, 5>}, {pipeline_mode = #tpu.pipeline_mode<synchronous>, transform_indices = @transform_1, window_bounds = array<i64: 16, 64, 256>}, {pipeline_mode = #tpu.pipeline_mode<synchronous>, transform_indices = @transform_2, window_bounds = array<i64: 16, 5, 8>}, {pipeline_mode = #tpu.pipeline_mode<synchronous>, transform_indices = @transform_3, window_bounds = array<i64: 1, 8>}, {pipeline_mode = #tpu.pipeline_mode<synchronous>, transform_indices = @transform_4, window_bounds = array<i64: 16, 16, 64>}, {pipeline_mode = #tpu.pipeline_mode<synchronous>, transform_indices = @transform_5, window_bounds = array<i64: 16, 8, 16>}, {pipeline_mode = #tpu.pipeline_mode<synchronous>, transform_indices = @transform_6, window_bounds = array<i64: 1, 16>}, {pipeline_mode = #tpu.pipeline_mode<synchronous>, transform_indices = @transform_7, window_bounds = array<i64: 1, 16>}, {pipeline_mode = #tpu.pipeline_mode<synchronous>, transform_indices = @transform_8, window_bounds = array<i64: 16, 4, 16>}, {pipeline_mode = #tpu.pipeline_mode<synchronous>, transform_indices = @transform_9, window_bounds = array<i64: 16, 16, 32>}, {pipeline_mode = #tpu.pipeline_mode<synchronous>, transform_indices = @transform_10, window_bounds = array<i64: 1, 32>}, {pipeline_mode = #tpu.pipeline_mode<synchronous>, transform_indices = @transform_11, window_bounds = array<i64: 1, 32>}, {pipeline_mode = #tpu.pipeline_mode<synchronous>, transform_indices = @transform_12, window_bounds = array<i64: 4, 32>}, {pipeline_mode = #tpu.pipeline_mode<synchronous>, transform_indices = @transform_13, window_bounds = array<i64: 1, 1>}, {transform_indices = @transform_14, window_bounds = array<i64: 1, 1, 1>}]} {
    %c0 = arith.constant 0 : index
    %c0_0 = arith.constant 0 : index
    %c0_1 = arith.constant 0 : index
    %0 = vector.load %arg1[%c0, %c0_0, %c0_1] : memref<1x256x5xf32, #tpu.memory_space<vmem>>, vector<1x256x5xf32>
    %1 = vector.shape_cast %0 : vector<1x256x5xf32> to vector<256x5xf32>
    %cst = arith.constant 0.000000e+00 : f32
    %2 = vector.broadcast %cst : f32 to vector<64x8xf32>
    %c0_2 = arith.constant 0 : index
    %c0_3 = arith.constant 0 : index
    %c0_4 = arith.constant 0 : index
    %3 = vector.load %arg2[%c0_2, %c0_3, %c0_4] : memref<16x64x256xf32, #tpu.memory_space<vmem>>, vector<1x64x256xf32>
    %4 = vector.shape_cast %3 : vector<1x64x256xf32> to vector<64x256xf32>
    %cst_5 = arith.constant dense<0.000000e+00> : vector<64x5xf32>
    %5 = tpu.matmul %4, %1, %cst_5 {dimension_numbers = #tpu.dot_dimension_numbers<[1], [0], [0], [1], [0, 0, 1, 1], [], []>} : vector<64x256xf32>, vector<256x5xf32>, vector<64x5xf32> -> vector<64x5xf32>
    %c0_6 = arith.constant 0 : index
    %c0_7 = arith.constant 0 : index
    %c0_8 = arith.constant 0 : index
    %6 = vector.load %arg3[%c0_6, %c0_7, %c0_8] : memref<16x5x8xf32, #tpu.memory_space<vmem>>, vector<1x5x8xf32>
    %7 = vector.shape_cast %6 : vector<1x5x8xf32> to vector<5x8xf32>
    %cst_9 = arith.constant dense<0.000000e+00> : vector<64x8xf32>
    %8 = tpu.matmul %5, %7, %cst_9 {dimension_numbers = #tpu.dot_dimension_numbers<[1], [0], [0], [1], [0, 0, 1, 1], [], []>} : vector<64x5xf32>, vector<5x8xf32>, vector<64x8xf32> -> vector<64x8xf32>
    %9 = arith.addf %2, %8 : vector<64x8xf32>
    %c1 = arith.constant 1 : index
    %c0_10 = arith.constant 0 : index
    %c0_11 = arith.constant 0 : index
    %10 = vector.load %arg2[%c1, %c0_10, %c0_11] : memref<16x64x256xf32, #tpu.memory_space<vmem>>, vector<1x64x256xf32>
    %11 = vector.shape_cast %10 : vector<1x64x256xf32> to vector<64x256xf32>
    %cst_12 = arith.constant dense<0.000000e+00> : vector<64x5xf32>
    %12 = tpu.matmul %11, %1, %cst_12 {dimension_numbers = #tpu.dot_dimension_numbers<[1], [0], [0], [1], [0, 0, 1, 1], [], []>} : vector<64x256xf32>, vector<256x5xf32>, vector<64x5xf32> -> vector<64x5xf32>
    %c1_13 = arith.constant 1 : index
    %c0_14 = arith.constant 0 : index
    %c0_15 = arith.constant 0 : index
    %13 = vector.load %arg3[%c1_13, %c0_14, %c0_15] : memref<16x5x8xf32, #tpu.memory_space<vmem>>, vector<1x5x8xf32>
    %14 = vector.shape_cast %13 : vector<1x5x8xf32> to vector<5x8xf32>
    %cst_16 = arith.constant dense<0.000000e+00> : vector<64x8xf32>
    %15 = tpu.matmul %12, %14, %cst_16 {dimension_numbers = #tpu.dot_dimension_numbers<[1], [0], [0], [1], [0, 0, 1, 1], [], []>} : vector<64x5xf32>, vector<5x8xf32>, vector<64x8xf32> -> vector<64x8xf32>
    %16 = arith.addf %9, %15 : vector<64x8xf32>
    %c2 = arith.constant 2 : index
    %c0_17 = arith.constant 0 : index
    %c0_18 = arith.constant 0 : index
    %17 = vector.load %arg2[%c2, %c0_17, %c0_18] : memref<16x64x256xf32, #tpu.memory_space<vmem>>, vector<1x64x256xf32>
    %18 = vector.shape_cast %17 : vector<1x64x256xf32> to vector<64x256xf32>
    %cst_19 = arith.constant dense<0.000000e+00> : vector<64x5xf32>
    %19 = tpu.matmul %18, %1, %cst_19 {dimension_numbers = #tpu.dot_dimension_numbers<[1], [0], [0], [1], [0, 0, 1, 1], [], []>} : vector<64x256xf32>, vector<256x5xf32>, vector<64x5xf32> -> vector<64x5xf32>
    %c2_20 = arith.constant 2 : index
    %c0_21 = arith.constant 0 : index
    %c0_22 = arith.constant 0 : index
    %20 = vector.load %arg3[%c2_20, %c0_21, %c0_22] : memref<16x5x8xf32, #tpu.memory_space<vmem>>, vector<1x5x8xf32>
    %21 = vector.shape_cast %20 : vector<1x5x8xf32> to vector<5x8xf32>
    %cst_23 = arith.constant dense<0.000000e+00> : vector<64x8xf32>
    %22 = tpu.matmul %19, %21, %cst_23 {dimension_numbers = #tpu.dot_dimension_numbers<[1], [0], [0], [1], [0, 0, 1, 1], [], []>} : vector<64x5xf32>, vector<5x8xf32>, vector<64x8xf32> -> vector<64x8xf32>
    %23 = arith.addf %16, %22 : vector<64x8xf32>
    %c3 = arith.constant 3 : index
    %c0_24 = arith.constant 0 : index
    %c0_25 = arith.constant 0 : index
    %24 = vector.load %arg2[%c3, %c0_24, %c0_25] : memref<16x64x256xf32, #tpu.memory_space<vmem>>, vector<1x64x256xf32>
    %25 = vector.shape_cast %24 : vector<1x64x256xf32> to vector<64x256xf32>
    %cst_26 = arith.constant dense<0.000000e+00> : vector<64x5xf32>
    %26 = tpu.matmul %25, %1, %cst_26 {dimension_numbers = #tpu.dot_dimension_numbers<[1], [0], [0], [1], [0, 0, 1, 1], [], []>} : vector<64x256xf32>, vector<256x5xf32>, vector<64x5xf32> -> vector<64x5xf32>
    %c3_27 = arith.constant 3 : index
    %c0_28 = arith.constant 0 : index
    %c0_29 = arith.constant 0 : index
    %27 = vector.load %arg3[%c3_27, %c0_28, %c0_29] : memref<16x5x8xf32, #tpu.memory_space<vmem>>, vector<1x5x8xf32>
    %28 = vector.shape_cast %27 : vector<1x5x8xf32> to vector<5x8xf32>
    %cst_30 = arith.constant dense<0.000000e+00> : vector<64x8xf32>
    %29 = tpu.matmul %26, %28, %cst_30 {dimension_numbers = #tpu.dot_dimension_numbers<[1], [0], [0], [1], [0, 0, 1, 1], [], []>} : vector<64x5xf32>, vector<5x8xf32>, vector<64x8xf32> -> vector<64x8xf32>
    %30 = arith.addf %23, %29 : vector<64x8xf32>
    %c4 = arith.constant 4 : index
    %c0_31 = arith.constant 0 : index
    %c0_32 = arith.constant 0 : index
    %31 = vector.load %arg2[%c4, %c0_31, %c0_32] : memref<16x64x256xf32, #tpu.memory_space<vmem>>, vector<1x64x256xf32>
    %32 = vector.shape_cast %31 : vector<1x64x256xf32> to vector<64x256xf32>
    %cst_33 = arith.constant dense<0.000000e+00> : vector<64x5xf32>
    %33 = tpu.matmul %32, %1, %cst_33 {dimension_numbers = #tpu.dot_dimension_numbers<[1], [0], [0], [1], [0, 0, 1, 1], [], []>} : vector<64x256xf32>, vector<256x5xf32>, vector<64x5xf32> -> vector<64x5xf32>
    %c4_34 = arith.constant 4 : index
    %c0_35 = arith.constant 0 : index
    %c0_36 = arith.constant 0 : index
    %34 = vector.load %arg3[%c4_34, %c0_35, %c0_36] : memref<16x5x8xf32, #tpu.memory_space<vmem>>, vector<1x5x8xf32>
    %35 = vector.shape_cast %34 : vector<1x5x8xf32> to vector<5x8xf32>
    %cst_37 = arith.constant dense<0.000000e+00> : vector<64x8xf32>
    %36 = tpu.matmul %33, %35, %cst_37 {dimension_numbers = #tpu.dot_dimension_numbers<[1], [0], [0], [1], [0, 0, 1, 1], [], []>} : vector<64x5xf32>, vector<5x8xf32>, vector<64x8xf32> -> vector<64x8xf32>
    %37 = arith.addf %30, %36 : vector<64x8xf32>
    %c5 = arith.constant 5 : index
    %c0_38 = arith.constant 0 : index
    %c0_39 = arith.constant 0 : index
    %38 = vector.load %arg2[%c5, %c0_38, %c0_39] : memref<16x64x256xf32, #tpu.memory_space<vmem>>, vector<1x64x256xf32>
    %39 = vector.shape_cast %38 : vector<1x64x256xf32> to vector<64x256xf32>
    %cst_40 = arith.constant dense<0.000000e+00> : vector<64x5xf32>
    %40 = tpu.matmul %39, %1, %cst_40 {dimension_numbers = #tpu.dot_dimension_numbers<[1], [0], [0], [1], [0, 0, 1, 1], [], []>} : vector<64x256xf32>, vector<256x5xf32>, vector<64x5xf32> -> vector<64x5xf32>
    %c5_41 = arith.constant 5 : index
    %c0_42 = arith.constant 0 : index
    %c0_43 = arith.constant 0 : index
    %41 = vector.load %arg3[%c5_41, %c0_42, %c0_43] : memref<16x5x8xf32, #tpu.memory_space<vmem>>, vector<1x5x8xf32>
    %42 = vector.shape_cast %41 : vector<1x5x8xf32> to vector<5x8xf32>
    %cst_44 = arith.constant dense<0.000000e+00> : vector<64x8xf32>
    %43 = tpu.matmul %40, %42, %cst_44 {dimension_numbers = #tpu.dot_dimension_numbers<[1], [0], [0], [1], [0, 0, 1, 1], [], []>} : vector<64x5xf32>, vector<5x8xf32>, vector<64x8xf32> -> vector<64x8xf32>
    %44 = arith.addf %37, %43 : vector<64x8xf32>
    %c6 = arith.constant 6 : index
    %c0_45 = arith.constant 0 : index
    %c0_46 = arith.constant 0 : index
    %45 = vector.load %arg2[%c6, %c0_45, %c0_46] : memref<16x64x256xf32, #tpu.memory_space<vmem>>, vector<1x64x256xf32>
    %46 = vector.shape_cast %45 : vector<1x64x256xf32> to vector<64x256xf32>
    %cst_47 = arith.constant dense<0.000000e+00> : vector<64x5xf32>
    %47 = tpu.matmul %46, %1, %cst_47 {dimension_numbers = #tpu.dot_dimension_numbers<[1], [0], [0], [1], [0, 0, 1, 1], [], []>} : vector<64x256xf32>, vector<256x5xf32>, vector<64x5xf32> -> vector<64x5xf32>
    %c6_48 = arith.constant 6 : index
    %c0_49 = arith.constant 0 : index
    %c0_50 = arith.constant 0 : index
    %48 = vector.load %arg3[%c6_48, %c0_49, %c0_50] : memref<16x5x8xf32, #tpu.memory_space<vmem>>, vector<1x5x8xf32>
    %49 = vector.shape_cast %48 : vector<1x5x8xf32> to vector<5x8xf32>
    %cst_51 = arith.constant dense<0.000000e+00> : vector<64x8xf32>
    %50 = tpu.matmul %47, %49, %cst_51 {dimension_numbers = #tpu.dot_dimension_numbers<[1], [0], [0], [1], [0, 0, 1, 1], [], []>} : vector<64x5xf32>, vector<5x8xf32>, vector<64x8xf32> -> vector<64x8xf32>
    %51 = arith.addf %44, %50 : vector<64x8xf32>
    %c7 = arith.constant 7 : index
    %c0_52 = arith.constant 0 : index
    %c0_53 = arith.constant 0 : index
    %52 = vector.load %arg2[%c7, %c0_52, %c0_53] : memref<16x64x256xf32, #tpu.memory_space<vmem>>, vector<1x64x256xf32>
    %53 = vector.shape_cast %52 : vector<1x64x256xf32> to vector<64x256xf32>
    %cst_54 = arith.constant dense<0.000000e+00> : vector<64x5xf32>
    %54 = tpu.matmul %53, %1, %cst_54 {dimension_numbers = #tpu.dot_dimension_numbers<[1], [0], [0], [1], [0, 0, 1, 1], [], []>} : vector<64x256xf32>, vector<256x5xf32>, vector<64x5xf32> -> vector<64x5xf32>
    %c7_55 = arith.constant 7 : index
    %c0_56 = arith.constant 0 : index
    %c0_57 = arith.constant 0 : index
    %55 = vector.load %arg3[%c7_55, %c0_56, %c0_57] : memref<16x5x8xf32, #tpu.memory_space<vmem>>, vector<1x5x8xf32>
    %56 = vector.shape_cast %55 : vector<1x5x8xf32> to vector<5x8xf32>
    %cst_58 = arith.constant dense<0.000000e+00> : vector<64x8xf32>
    %57 = tpu.matmul %54, %56, %cst_58 {dimension_numbers = #tpu.dot_dimension_numbers<[1], [0], [0], [1], [0, 0, 1, 1], [], []>} : vector<64x5xf32>, vector<5x8xf32>, vector<64x8xf32> -> vector<64x8xf32>
    %58 = arith.addf %51, %57 : vector<64x8xf32>
    %c8 = arith.constant 8 : index
    %c0_59 = arith.constant 0 : index
    %c0_60 = arith.constant 0 : index
    %59 = vector.load %arg2[%c8, %c0_59, %c0_60] : memref<16x64x256xf32, #tpu.memory_space<vmem>>, vector<1x64x256xf32>
    %60 = vector.shape_cast %59 : vector<1x64x256xf32> to vector<64x256xf32>
    %cst_61 = arith.constant dense<0.000000e+00> : vector<64x5xf32>
    %61 = tpu.matmul %60, %1, %cst_61 {dimension_numbers = #tpu.dot_dimension_numbers<[1], [0], [0], [1], [0, 0, 1, 1], [], []>} : vector<64x256xf32>, vector<256x5xf32>, vector<64x5xf32> -> vector<64x5xf32>
    %c8_62 = arith.constant 8 : index
    %c0_63 = arith.constant 0 : index
    %c0_64 = arith.constant 0 : index
    %62 = vector.load %arg3[%c8_62, %c0_63, %c0_64] : memref<16x5x8xf32, #tpu.memory_space<vmem>>, vector<1x5x8xf32>
    %63 = vector.shape_cast %62 : vector<1x5x8xf32> to vector<5x8xf32>
    %cst_65 = arith.constant dense<0.000000e+00> : vector<64x8xf32>
    %64 = tpu.matmul %61, %63, %cst_65 {dimension_numbers = #tpu.dot_dimension_numbers<[1], [0], [0], [1], [0, 0, 1, 1], [], []>} : vector<64x5xf32>, vector<5x8xf32>, vector<64x8xf32> -> vector<64x8xf32>
    %65 = arith.addf %58, %64 : vector<64x8xf32>
    %c9 = arith.constant 9 : index
    %c0_66 = arith.constant 0 : index
    %c0_67 = arith.constant 0 : index
    %66 = vector.load %arg2[%c9, %c0_66, %c0_67] : memref<16x64x256xf32, #tpu.memory_space<vmem>>, vector<1x64x256xf32>
    %67 = vector.shape_cast %66 : vector<1x64x256xf32> to vector<64x256xf32>
    %cst_68 = arith.constant dense<0.000000e+00> : vector<64x5xf32>
    %68 = tpu.matmul %67, %1, %cst_68 {dimension_numbers = #tpu.dot_dimension_numbers<[1], [0], [0], [1], [0, 0, 1, 1], [], []>} : vector<64x256xf32>, vector<256x5xf32>, vector<64x5xf32> -> vector<64x5xf32>
    %c9_69 = arith.constant 9 : index
    %c0_70 = arith.constant 0 : index
    %c0_71 = arith.constant 0 : index
    %69 = vector.load %arg3[%c9_69, %c0_70, %c0_71] : memref<16x5x8xf32, #tpu.memory_space<vmem>>, vector<1x5x8xf32>
    %70 = vector.shape_cast %69 : vector<1x5x8xf32> to vector<5x8xf32>
    %cst_72 = arith.constant dense<0.000000e+00> : vector<64x8xf32>
    %71 = tpu.matmul %68, %70, %cst_72 {dimension_numbers = #tpu.dot_dimension_numbers<[1], [0], [0], [1], [0, 0, 1, 1], [], []>} : vector<64x5xf32>, vector<5x8xf32>, vector<64x8xf32> -> vector<64x8xf32>
    %72 = arith.addf %65, %71 : vector<64x8xf32>
    %c10 = arith.constant 10 : index
    %c0_73 = arith.constant 0 : index
    %c0_74 = arith.constant 0 : index
    %73 = vector.load %arg2[%c10, %c0_73, %c0_74] : memref<16x64x256xf32, #tpu.memory_space<vmem>>, vector<1x64x256xf32>
    %74 = vector.shape_cast %73 : vector<1x64x256xf32> to vector<64x256xf32>
    %cst_75 = arith.constant dense<0.000000e+00> : vector<64x5xf32>
    %75 = tpu.matmul %74, %1, %cst_75 {dimension_numbers = #tpu.dot_dimension_numbers<[1], [0], [0], [1], [0, 0, 1, 1], [], []>} : vector<64x256xf32>, vector<256x5xf32>, vector<64x5xf32> -> vector<64x5xf32>
    %c10_76 = arith.constant 10 : index
    %c0_77 = arith.constant 0 : index
    %c0_78 = arith.constant 0 : index
    %76 = vector.load %arg3[%c10_76, %c0_77, %c0_78] : memref<16x5x8xf32, #tpu.memory_space<vmem>>, vector<1x5x8xf32>
    %77 = vector.shape_cast %76 : vector<1x5x8xf32> to vector<5x8xf32>
    %cst_79 = arith.constant dense<0.000000e+00> : vector<64x8xf32>
    %78 = tpu.matmul %75, %77, %cst_79 {dimension_numbers = #tpu.dot_dimension_numbers<[1], [0], [0], [1], [0, 0, 1, 1], [], []>} : vector<64x5xf32>, vector<5x8xf32>, vector<64x8xf32> -> vector<64x8xf32>
    %79 = arith.addf %72, %78 : vector<64x8xf32>
    %c11 = arith.constant 11 : index
    %c0_80 = arith.constant 0 : index
    %c0_81 = arith.constant 0 : index
    %80 = vector.load %arg2[%c11, %c0_80, %c0_81] : memref<16x64x256xf32, #tpu.memory_space<vmem>>, vector<1x64x256xf32>
    %81 = vector.shape_cast %80 : vector<1x64x256xf32> to vector<64x256xf32>
    %cst_82 = arith.constant dense<0.000000e+00> : vector<64x5xf32>
    %82 = tpu.matmul %81, %1, %cst_82 {dimension_numbers = #tpu.dot_dimension_numbers<[1], [0], [0], [1], [0, 0, 1, 1], [], []>} : vector<64x256xf32>, vector<256x5xf32>, vector<64x5xf32> -> vector<64x5xf32>
    %c11_83 = arith.constant 11 : index
    %c0_84 = arith.constant 0 : index
    %c0_85 = arith.constant 0 : index
    %83 = vector.load %arg3[%c11_83, %c0_84, %c0_85] : memref<16x5x8xf32, #tpu.memory_space<vmem>>, vector<1x5x8xf32>
    %84 = vector.shape_cast %83 : vector<1x5x8xf32> to vector<5x8xf32>
    %cst_86 = arith.constant dense<0.000000e+00> : vector<64x8xf32>
    %85 = tpu.matmul %82, %84, %cst_86 {dimension_numbers = #tpu.dot_dimension_numbers<[1], [0], [0], [1], [0, 0, 1, 1], [], []>} : vector<64x5xf32>, vector<5x8xf32>, vector<64x8xf32> -> vector<64x8xf32>
    %86 = arith.addf %79, %85 : vector<64x8xf32>
    %c12 = arith.constant 12 : index
    %c0_87 = arith.constant 0 : index
    %c0_88 = arith.constant 0 : index
    %87 = vector.load %arg2[%c12, %c0_87, %c0_88] : memref<16x64x256xf32, #tpu.memory_space<vmem>>, vector<1x64x256xf32>
    %88 = vector.shape_cast %87 : vector<1x64x256xf32> to vector<64x256xf32>
    %cst_89 = arith.constant dense<0.000000e+00> : vector<64x5xf32>
    %89 = tpu.matmul %88, %1, %cst_89 {dimension_numbers = #tpu.dot_dimension_numbers<[1], [0], [0], [1], [0, 0, 1, 1], [], []>} : vector<64x256xf32>, vector<256x5xf32>, vector<64x5xf32> -> vector<64x5xf32>
    %c12_90 = arith.constant 12 : index
    %c0_91 = arith.constant 0 : index
    %c0_92 = arith.constant 0 : index
    %90 = vector.load %arg3[%c12_90, %c0_91, %c0_92] : memref<16x5x8xf32, #tpu.memory_space<vmem>>, vector<1x5x8xf32>
    %91 = vector.shape_cast %90 : vector<1x5x8xf32> to vector<5x8xf32>
    %cst_93 = arith.constant dense<0.000000e+00> : vector<64x8xf32>
    %92 = tpu.matmul %89, %91, %cst_93 {dimension_numbers = #tpu.dot_dimension_numbers<[1], [0], [0], [1], [0, 0, 1, 1], [], []>} : vector<64x5xf32>, vector<5x8xf32>, vector<64x8xf32> -> vector<64x8xf32>
    %93 = arith.addf %86, %92 : vector<64x8xf32>
    %c13 = arith.constant 13 : index
    %c0_94 = arith.constant 0 : index
    %c0_95 = arith.constant 0 : index
    %94 = vector.load %arg2[%c13, %c0_94, %c0_95] : memref<16x64x256xf32, #tpu.memory_space<vmem>>, vector<1x64x256xf32>
    %95 = vector.shape_cast %94 : vector<1x64x256xf32> to vector<64x256xf32>
    %cst_96 = arith.constant dense<0.000000e+00> : vector<64x5xf32>
    %96 = tpu.matmul %95, %1, %cst_96 {dimension_numbers = #tpu.dot_dimension_numbers<[1], [0], [0], [1], [0, 0, 1, 1], [], []>} : vector<64x256xf32>, vector<256x5xf32>, vector<64x5xf32> -> vector<64x5xf32>
    %c13_97 = arith.constant 13 : index
    %c0_98 = arith.constant 0 : index
    %c0_99 = arith.constant 0 : index
    %97 = vector.load %arg3[%c13_97, %c0_98, %c0_99] : memref<16x5x8xf32, #tpu.memory_space<vmem>>, vector<1x5x8xf32>
    %98 = vector.shape_cast %97 : vector<1x5x8xf32> to vector<5x8xf32>
    %cst_100 = arith.constant dense<0.000000e+00> : vector<64x8xf32>
    %99 = tpu.matmul %96, %98, %cst_100 {dimension_numbers = #tpu.dot_dimension_numbers<[1], [0], [0], [1], [0, 0, 1, 1], [], []>} : vector<64x5xf32>, vector<5x8xf32>, vector<64x8xf32> -> vector<64x8xf32>
    %100 = arith.addf %93, %99 : vector<64x8xf32>
    %c14 = arith.constant 14 : index
    %c0_101 = arith.constant 0 : index
    %c0_102 = arith.constant 0 : index
    %101 = vector.load %arg2[%c14, %c0_101, %c0_102] : memref<16x64x256xf32, #tpu.memory_space<vmem>>, vector<1x64x256xf32>
    %102 = vector.shape_cast %101 : vector<1x64x256xf32> to vector<64x256xf32>
    %cst_103 = arith.constant dense<0.000000e+00> : vector<64x5xf32>
    %103 = tpu.matmul %102, %1, %cst_103 {dimension_numbers = #tpu.dot_dimension_numbers<[1], [0], [0], [1], [0, 0, 1, 1], [], []>} : vector<64x256xf32>, vector<256x5xf32>, vector<64x5xf32> -> vector<64x5xf32>
    %c14_104 = arith.constant 14 : index
    %c0_105 = arith.constant 0 : index
    %c0_106 = arith.constant 0 : index
    %104 = vector.load %arg3[%c14_104, %c0_105, %c0_106] : memref<16x5x8xf32, #tpu.memory_space<vmem>>, vector<1x5x8xf32>
    %105 = vector.shape_cast %104 : vector<1x5x8xf32> to vector<5x8xf32>
    %cst_107 = arith.constant dense<0.000000e+00> : vector<64x8xf32>
    %106 = tpu.matmul %103, %105, %cst_107 {dimension_numbers = #tpu.dot_dimension_numbers<[1], [0], [0], [1], [0, 0, 1, 1], [], []>} : vector<64x5xf32>, vector<5x8xf32>, vector<64x8xf32> -> vector<64x8xf32>
    %107 = arith.addf %100, %106 : vector<64x8xf32>
    %c15 = arith.constant 15 : index
    %c0_108 = arith.constant 0 : index
    %c0_109 = arith.constant 0 : index
    %108 = vector.load %arg2[%c15, %c0_108, %c0_109] : memref<16x64x256xf32, #tpu.memory_space<vmem>>, vector<1x64x256xf32>
    %109 = vector.shape_cast %108 : vector<1x64x256xf32> to vector<64x256xf32>
    %cst_110 = arith.constant dense<0.000000e+00> : vector<64x5xf32>
    %110 = tpu.matmul %109, %1, %cst_110 {dimension_numbers = #tpu.dot_dimension_numbers<[1], [0], [0], [1], [0, 0, 1, 1], [], []>} : vector<64x256xf32>, vector<256x5xf32>, vector<64x5xf32> -> vector<64x5xf32>
    %c15_111 = arith.constant 15 : index
    %c0_112 = arith.constant 0 : index
    %c0_113 = arith.constant 0 : index
    %111 = vector.load %arg3[%c15_111, %c0_112, %c0_113] : memref<16x5x8xf32, #tpu.memory_space<vmem>>, vector<1x5x8xf32>
    %112 = vector.shape_cast %111 : vector<1x5x8xf32> to vector<5x8xf32>
    %cst_114 = arith.constant dense<0.000000e+00> : vector<64x8xf32>
    %113 = tpu.matmul %110, %112, %cst_114 {dimension_numbers = #tpu.dot_dimension_numbers<[1], [0], [0], [1], [0, 0, 1, 1], [], []>} : vector<64x5xf32>, vector<5x8xf32>, vector<64x8xf32> -> vector<64x8xf32>
    %114 = arith.addf %107, %113 : vector<64x8xf32>
    %c0_115 = arith.constant 0 : index
    %c0_116 = arith.constant 0 : index
    %115 = vector.load %arg4[%c0_115, %c0_116] : memref<1x8xf32, #tpu.memory_space<vmem>>, vector<1x8xf32>
    %116 = vector.broadcast %115 : vector<1x8xf32> to vector<64x8xf32>
    %117 = arith.addf %114, %116 : vector<64x8xf32>
    %cst_117 = arith.constant 0.000000e+00 : f32
    %118 = vector.broadcast %cst_117 : f32 to vector<64x8xf32>
    %119 = arith.cmpf ogt, %117, %118 : vector<64x8xf32>
    %cst_118 = arith.constant 2.000000e-01 : f32
    %120 = vector.broadcast %cst_118 : f32 to vector<64x8xf32>
    %121 = arith.mulf %120, %117 : vector<64x8xf32>
    %122 = arith.select %119, %117, %121 : vector<64x8xi1>, vector<64x8xf32>
    %cst_119 = arith.constant 0.000000e+00 : f32
    %123 = vector.broadcast %cst_119 : f32 to vector<16x16xf32>
    %c0_120 = arith.constant 0 : index
    %c0_121 = arith.constant 0 : index
    %c0_122 = arith.constant 0 : index
    %124 = vector.load %arg5[%c0_120, %c0_121, %c0_122] : memref<16x16x64xf32, #tpu.memory_space<vmem>>, vector<1x16x64xf32>
    %125 = vector.shape_cast %124 : vector<1x16x64xf32> to vector<16x64xf32>
    %cst_123 = arith.constant dense<0.000000e+00> : vector<16x8xf32>
    %126 = tpu.matmul %125, %122, %cst_123 {dimension_numbers = #tpu.dot_dimension_numbers<[1], [0], [0], [1], [0, 0, 1, 1], [], []>} : vector<16x64xf32>, vector<64x8xf32>, vector<16x8xf32> -> vector<16x8xf32>
    %c0_124 = arith.constant 0 : index
    %c0_125 = arith.constant 0 : index
    %c0_126 = arith.constant 0 : index
    %127 = vector.load %arg6[%c0_124, %c0_125, %c0_126] : memref<16x8x16xf32, #tpu.memory_space<vmem>>, vector<1x8x16xf32>
    %128 = vector.shape_cast %127 : vector<1x8x16xf32> to vector<8x16xf32>
    %cst_127 = arith.constant dense<0.000000e+00> : vector<16x16xf32>
    %129 = tpu.matmul %126, %128, %cst_127 {dimension_numbers = #tpu.dot_dimension_numbers<[1], [0], [0], [1], [0, 0, 1, 1], [], []>} : vector<16x8xf32>, vector<8x16xf32>, vector<16x16xf32> -> vector<16x16xf32>
    %130 = arith.addf %123, %129 : vector<16x16xf32>
    %c1_128 = arith.constant 1 : index
    %c0_129 = arith.constant 0 : index
    %c0_130 = arith.constant 0 : index
    %131 = vector.load %arg5[%c1_128, %c0_129, %c0_130] : memref<16x16x64xf32, #tpu.memory_space<vmem>>, vector<1x16x64xf32>
    %132 = vector.shape_cast %131 : vector<1x16x64xf32> to vector<16x64xf32>
    %cst_131 = arith.constant dense<0.000000e+00> : vector<16x8xf32>
    %133 = tpu.matmul %132, %122, %cst_131 {dimension_numbers = #tpu.dot_dimension_numbers<[1], [0], [0], [1], [0, 0, 1, 1], [], []>} : vector<16x64xf32>, vector<64x8xf32>, vector<16x8xf32> -> vector<16x8xf32>
    %c1_132 = arith.constant 1 : index
    %c0_133 = arith.constant 0 : index
    %c0_134 = arith.constant 0 : index
    %134 = vector.load %arg6[%c1_132, %c0_133, %c0_134] : memref<16x8x16xf32, #tpu.memory_space<vmem>>, vector<1x8x16xf32>
    %135 = vector.shape_cast %134 : vector<1x8x16xf32> to vector<8x16xf32>
    %cst_135 = arith.constant dense<0.000000e+00> : vector<16x16xf32>
    %136 = tpu.matmul %133, %135, %cst_135 {dimension_numbers = #tpu.dot_dimension_numbers<[1], [0], [0], [1], [0, 0, 1, 1], [], []>} : vector<16x8xf32>, vector<8x16xf32>, vector<16x16xf32> -> vector<16x16xf32>
    %137 = arith.addf %130, %136 : vector<16x16xf32>
    %c2_136 = arith.constant 2 : index
    %c0_137 = arith.constant 0 : index
    %c0_138 = arith.constant 0 : index
    %138 = vector.load %arg5[%c2_136, %c0_137, %c0_138] : memref<16x16x64xf32, #tpu.memory_space<vmem>>, vector<1x16x64xf32>
    %139 = vector.shape_cast %138 : vector<1x16x64xf32> to vector<16x64xf32>
    %cst_139 = arith.constant dense<0.000000e+00> : vector<16x8xf32>
    %140 = tpu.matmul %139, %122, %cst_139 {dimension_numbers = #tpu.dot_dimension_numbers<[1], [0], [0], [1], [0, 0, 1, 1], [], []>} : vector<16x64xf32>, vector<64x8xf32>, vector<16x8xf32> -> vector<16x8xf32>
    %c2_140 = arith.constant 2 : index
    %c0_141 = arith.constant 0 : index
    %c0_142 = arith.constant 0 : index
    %141 = vector.load %arg6[%c2_140, %c0_141, %c0_142] : memref<16x8x16xf32, #tpu.memory_space<vmem>>, vector<1x8x16xf32>
    %142 = vector.shape_cast %141 : vector<1x8x16xf32> to vector<8x16xf32>
    %cst_143 = arith.constant dense<0.000000e+00> : vector<16x16xf32>
    %143 = tpu.matmul %140, %142, %cst_143 {dimension_numbers = #tpu.dot_dimension_numbers<[1], [0], [0], [1], [0, 0, 1, 1], [], []>} : vector<16x8xf32>, vector<8x16xf32>, vector<16x16xf32> -> vector<16x16xf32>
    %144 = arith.addf %137, %143 : vector<16x16xf32>
    %c3_144 = arith.constant 3 : index
    %c0_145 = arith.constant 0 : index
    %c0_146 = arith.constant 0 : index
    %145 = vector.load %arg5[%c3_144, %c0_145, %c0_146] : memref<16x16x64xf32, #tpu.memory_space<vmem>>, vector<1x16x64xf32>
    %146 = vector.shape_cast %145 : vector<1x16x64xf32> to vector<16x64xf32>
    %cst_147 = arith.constant dense<0.000000e+00> : vector<16x8xf32>
    %147 = tpu.matmul %146, %122, %cst_147 {dimension_numbers = #tpu.dot_dimension_numbers<[1], [0], [0], [1], [0, 0, 1, 1], [], []>} : vector<16x64xf32>, vector<64x8xf32>, vector<16x8xf32> -> vector<16x8xf32>
    %c3_148 = arith.constant 3 : index
    %c0_149 = arith.constant 0 : index
    %c0_150 = arith.constant 0 : index
    %148 = vector.load %arg6[%c3_148, %c0_149, %c0_150] : memref<16x8x16xf32, #tpu.memory_space<vmem>>, vector<1x8x16xf32>
    %149 = vector.shape_cast %148 : vector<1x8x16xf32> to vector<8x16xf32>
    %cst_151 = arith.constant dense<0.000000e+00> : vector<16x16xf32>
    %150 = tpu.matmul %147, %149, %cst_151 {dimension_numbers = #tpu.dot_dimension_numbers<[1], [0], [0], [1], [0, 0, 1, 1], [], []>} : vector<16x8xf32>, vector<8x16xf32>, vector<16x16xf32> -> vector<16x16xf32>
    %151 = arith.addf %144, %150 : vector<16x16xf32>
    %c4_152 = arith.constant 4 : index
    %c0_153 = arith.constant 0 : index
    %c0_154 = arith.constant 0 : index
    %152 = vector.load %arg5[%c4_152, %c0_153, %c0_154] : memref<16x16x64xf32, #tpu.memory_space<vmem>>, vector<1x16x64xf32>
    %153 = vector.shape_cast %152 : vector<1x16x64xf32> to vector<16x64xf32>
    %cst_155 = arith.constant dense<0.000000e+00> : vector<16x8xf32>
    %154 = tpu.matmul %153, %122, %cst_155 {dimension_numbers = #tpu.dot_dimension_numbers<[1], [0], [0], [1], [0, 0, 1, 1], [], []>} : vector<16x64xf32>, vector<64x8xf32>, vector<16x8xf32> -> vector<16x8xf32>
    %c4_156 = arith.constant 4 : index
    %c0_157 = arith.constant 0 : index
    %c0_158 = arith.constant 0 : index
    %155 = vector.load %arg6[%c4_156, %c0_157, %c0_158] : memref<16x8x16xf32, #tpu.memory_space<vmem>>, vector<1x8x16xf32>
    %156 = vector.shape_cast %155 : vector<1x8x16xf32> to vector<8x16xf32>
    %cst_159 = arith.constant dense<0.000000e+00> : vector<16x16xf32>
    %157 = tpu.matmul %154, %156, %cst_159 {dimension_numbers = #tpu.dot_dimension_numbers<[1], [0], [0], [1], [0, 0, 1, 1], [], []>} : vector<16x8xf32>, vector<8x16xf32>, vector<16x16xf32> -> vector<16x16xf32>
    %158 = arith.addf %151, %157 : vector<16x16xf32>
    %c5_160 = arith.constant 5 : index
    %c0_161 = arith.constant 0 : index
    %c0_162 = arith.constant 0 : index
    %159 = vector.load %arg5[%c5_160, %c0_161, %c0_162] : memref<16x16x64xf32, #tpu.memory_space<vmem>>, vector<1x16x64xf32>
    %160 = vector.shape_cast %159 : vector<1x16x64xf32> to vector<16x64xf32>
    %cst_163 = arith.constant dense<0.000000e+00> : vector<16x8xf32>
    %161 = tpu.matmul %160, %122, %cst_163 {dimension_numbers = #tpu.dot_dimension_numbers<[1], [0], [0], [1], [0, 0, 1, 1], [], []>} : vector<16x64xf32>, vector<64x8xf32>, vector<16x8xf32> -> vector<16x8xf32>
    %c5_164 = arith.constant 5 : index
    %c0_165 = arith.constant 0 : index
    %c0_166 = arith.constant 0 : index
    %162 = vector.load %arg6[%c5_164, %c0_165, %c0_166] : memref<16x8x16xf32, #tpu.memory_space<vmem>>, vector<1x8x16xf32>
    %163 = vector.shape_cast %162 : vector<1x8x16xf32> to vector<8x16xf32>
    %cst_167 = arith.constant dense<0.000000e+00> : vector<16x16xf32>
    %164 = tpu.matmul %161, %163, %cst_167 {dimension_numbers = #tpu.dot_dimension_numbers<[1], [0], [0], [1], [0, 0, 1, 1], [], []>} : vector<16x8xf32>, vector<8x16xf32>, vector<16x16xf32> -> vector<16x16xf32>
    %165 = arith.addf %158, %164 : vector<16x16xf32>
    %c6_168 = arith.constant 6 : index
    %c0_169 = arith.constant 0 : index
    %c0_170 = arith.constant 0 : index
    %166 = vector.load %arg5[%c6_168, %c0_169, %c0_170] : memref<16x16x64xf32, #tpu.memory_space<vmem>>, vector<1x16x64xf32>
    %167 = vector.shape_cast %166 : vector<1x16x64xf32> to vector<16x64xf32>
    %cst_171 = arith.constant dense<0.000000e+00> : vector<16x8xf32>
    %168 = tpu.matmul %167, %122, %cst_171 {dimension_numbers = #tpu.dot_dimension_numbers<[1], [0], [0], [1], [0, 0, 1, 1], [], []>} : vector<16x64xf32>, vector<64x8xf32>, vector<16x8xf32> -> vector<16x8xf32>
    %c6_172 = arith.constant 6 : index
    %c0_173 = arith.constant 0 : index
    %c0_174 = arith.constant 0 : index
    %169 = vector.load %arg6[%c6_172, %c0_173, %c0_174] : memref<16x8x16xf32, #tpu.memory_space<vmem>>, vector<1x8x16xf32>
    %170 = vector.shape_cast %169 : vector<1x8x16xf32> to vector<8x16xf32>
    %cst_175 = arith.constant dense<0.000000e+00> : vector<16x16xf32>
    %171 = tpu.matmul %168, %170, %cst_175 {dimension_numbers = #tpu.dot_dimension_numbers<[1], [0], [0], [1], [0, 0, 1, 1], [], []>} : vector<16x8xf32>, vector<8x16xf32>, vector<16x16xf32> -> vector<16x16xf32>
    %172 = arith.addf %165, %171 : vector<16x16xf32>
    %c7_176 = arith.constant 7 : index
    %c0_177 = arith.constant 0 : index
    %c0_178 = arith.constant 0 : index
    %173 = vector.load %arg5[%c7_176, %c0_177, %c0_178] : memref<16x16x64xf32, #tpu.memory_space<vmem>>, vector<1x16x64xf32>
    %174 = vector.shape_cast %173 : vector<1x16x64xf32> to vector<16x64xf32>
    %cst_179 = arith.constant dense<0.000000e+00> : vector<16x8xf32>
    %175 = tpu.matmul %174, %122, %cst_179 {dimension_numbers = #tpu.dot_dimension_numbers<[1], [0], [0], [1], [0, 0, 1, 1], [], []>} : vector<16x64xf32>, vector<64x8xf32>, vector<16x8xf32> -> vector<16x8xf32>
    %c7_180 = arith.constant 7 : index
    %c0_181 = arith.constant 0 : index
    %c0_182 = arith.constant 0 : index
    %176 = vector.load %arg6[%c7_180, %c0_181, %c0_182] : memref<16x8x16xf32, #tpu.memory_space<vmem>>, vector<1x8x16xf32>
    %177 = vector.shape_cast %176 : vector<1x8x16xf32> to vector<8x16xf32>
    %cst_183 = arith.constant dense<0.000000e+00> : vector<16x16xf32>
    %178 = tpu.matmul %175, %177, %cst_183 {dimension_numbers = #tpu.dot_dimension_numbers<[1], [0], [0], [1], [0, 0, 1, 1], [], []>} : vector<16x8xf32>, vector<8x16xf32>, vector<16x16xf32> -> vector<16x16xf32>
    %179 = arith.addf %172, %178 : vector<16x16xf32>
    %c8_184 = arith.constant 8 : index
    %c0_185 = arith.constant 0 : index
    %c0_186 = arith.constant 0 : index
    %180 = vector.load %arg5[%c8_184, %c0_185, %c0_186] : memref<16x16x64xf32, #tpu.memory_space<vmem>>, vector<1x16x64xf32>
    %181 = vector.shape_cast %180 : vector<1x16x64xf32> to vector<16x64xf32>
    %cst_187 = arith.constant dense<0.000000e+00> : vector<16x8xf32>
    %182 = tpu.matmul %181, %122, %cst_187 {dimension_numbers = #tpu.dot_dimension_numbers<[1], [0], [0], [1], [0, 0, 1, 1], [], []>} : vector<16x64xf32>, vector<64x8xf32>, vector<16x8xf32> -> vector<16x8xf32>
    %c8_188 = arith.constant 8 : index
    %c0_189 = arith.constant 0 : index
    %c0_190 = arith.constant 0 : index
    %183 = vector.load %arg6[%c8_188, %c0_189, %c0_190] : memref<16x8x16xf32, #tpu.memory_space<vmem>>, vector<1x8x16xf32>
    %184 = vector.shape_cast %183 : vector<1x8x16xf32> to vector<8x16xf32>
    %cst_191 = arith.constant dense<0.000000e+00> : vector<16x16xf32>
    %185 = tpu.matmul %182, %184, %cst_191 {dimension_numbers = #tpu.dot_dimension_numbers<[1], [0], [0], [1], [0, 0, 1, 1], [], []>} : vector<16x8xf32>, vector<8x16xf32>, vector<16x16xf32> -> vector<16x16xf32>
    %186 = arith.addf %179, %185 : vector<16x16xf32>
    %c9_192 = arith.constant 9 : index
    %c0_193 = arith.constant 0 : index
    %c0_194 = arith.constant 0 : index
    %187 = vector.load %arg5[%c9_192, %c0_193, %c0_194] : memref<16x16x64xf32, #tpu.memory_space<vmem>>, vector<1x16x64xf32>
    %188 = vector.shape_cast %187 : vector<1x16x64xf32> to vector<16x64xf32>
    %cst_195 = arith.constant dense<0.000000e+00> : vector<16x8xf32>
    %189 = tpu.matmul %188, %122, %cst_195 {dimension_numbers = #tpu.dot_dimension_numbers<[1], [0], [0], [1], [0, 0, 1, 1], [], []>} : vector<16x64xf32>, vector<64x8xf32>, vector<16x8xf32> -> vector<16x8xf32>
    %c9_196 = arith.constant 9 : index
    %c0_197 = arith.constant 0 : index
    %c0_198 = arith.constant 0 : index
    %190 = vector.load %arg6[%c9_196, %c0_197, %c0_198] : memref<16x8x16xf32, #tpu.memory_space<vmem>>, vector<1x8x16xf32>
    %191 = vector.shape_cast %190 : vector<1x8x16xf32> to vector<8x16xf32>
    %cst_199 = arith.constant dense<0.000000e+00> : vector<16x16xf32>
    %192 = tpu.matmul %189, %191, %cst_199 {dimension_numbers = #tpu.dot_dimension_numbers<[1], [0], [0], [1], [0, 0, 1, 1], [], []>} : vector<16x8xf32>, vector<8x16xf32>, vector<16x16xf32> -> vector<16x16xf32>
    %193 = arith.addf %186, %192 : vector<16x16xf32>
    %c10_200 = arith.constant 10 : index
    %c0_201 = arith.constant 0 : index
    %c0_202 = arith.constant 0 : index
    %194 = vector.load %arg5[%c10_200, %c0_201, %c0_202] : memref<16x16x64xf32, #tpu.memory_space<vmem>>, vector<1x16x64xf32>
    %195 = vector.shape_cast %194 : vector<1x16x64xf32> to vector<16x64xf32>
    %cst_203 = arith.constant dense<0.000000e+00> : vector<16x8xf32>
    %196 = tpu.matmul %195, %122, %cst_203 {dimension_numbers = #tpu.dot_dimension_numbers<[1], [0], [0], [1], [0, 0, 1, 1], [], []>} : vector<16x64xf32>, vector<64x8xf32>, vector<16x8xf32> -> vector<16x8xf32>
    %c10_204 = arith.constant 10 : index
    %c0_205 = arith.constant 0 : index
    %c0_206 = arith.constant 0 : index
    %197 = vector.load %arg6[%c10_204, %c0_205, %c0_206] : memref<16x8x16xf32, #tpu.memory_space<vmem>>, vector<1x8x16xf32>
    %198 = vector.shape_cast %197 : vector<1x8x16xf32> to vector<8x16xf32>
    %cst_207 = arith.constant dense<0.000000e+00> : vector<16x16xf32>
    %199 = tpu.matmul %196, %198, %cst_207 {dimension_numbers = #tpu.dot_dimension_numbers<[1], [0], [0], [1], [0, 0, 1, 1], [], []>} : vector<16x8xf32>, vector<8x16xf32>, vector<16x16xf32> -> vector<16x16xf32>
    %200 = arith.addf %193, %199 : vector<16x16xf32>
    %c11_208 = arith.constant 11 : index
    %c0_209 = arith.constant 0 : index
    %c0_210 = arith.constant 0 : index
    %201 = vector.load %arg5[%c11_208, %c0_209, %c0_210] : memref<16x16x64xf32, #tpu.memory_space<vmem>>, vector<1x16x64xf32>
    %202 = vector.shape_cast %201 : vector<1x16x64xf32> to vector<16x64xf32>
    %cst_211 = arith.constant dense<0.000000e+00> : vector<16x8xf32>
    %203 = tpu.matmul %202, %122, %cst_211 {dimension_numbers = #tpu.dot_dimension_numbers<[1], [0], [0], [1], [0, 0, 1, 1], [], []>} : vector<16x64xf32>, vector<64x8xf32>, vector<16x8xf32> -> vector<16x8xf32>
    %c11_212 = arith.constant 11 : index
    %c0_213 = arith.constant 0 : index
    %c0_214 = arith.constant 0 : index
    %204 = vector.load %arg6[%c11_212, %c0_213, %c0_214] : memref<16x8x16xf32, #tpu.memory_space<vmem>>, vector<1x8x16xf32>
    %205 = vector.shape_cast %204 : vector<1x8x16xf32> to vector<8x16xf32>
    %cst_215 = arith.constant dense<0.000000e+00> : vector<16x16xf32>
    %206 = tpu.matmul %203, %205, %cst_215 {dimension_numbers = #tpu.dot_dimension_numbers<[1], [0], [0], [1], [0, 0, 1, 1], [], []>} : vector<16x8xf32>, vector<8x16xf32>, vector<16x16xf32> -> vector<16x16xf32>
    %207 = arith.addf %200, %206 : vector<16x16xf32>
    %c12_216 = arith.constant 12 : index
    %c0_217 = arith.constant 0 : index
    %c0_218 = arith.constant 0 : index
    %208 = vector.load %arg5[%c12_216, %c0_217, %c0_218] : memref<16x16x64xf32, #tpu.memory_space<vmem>>, vector<1x16x64xf32>
    %209 = vector.shape_cast %208 : vector<1x16x64xf32> to vector<16x64xf32>
    %cst_219 = arith.constant dense<0.000000e+00> : vector<16x8xf32>
    %210 = tpu.matmul %209, %122, %cst_219 {dimension_numbers = #tpu.dot_dimension_numbers<[1], [0], [0], [1], [0, 0, 1, 1], [], []>} : vector<16x64xf32>, vector<64x8xf32>, vector<16x8xf32> -> vector<16x8xf32>
    %c12_220 = arith.constant 12 : index
    %c0_221 = arith.constant 0 : index
    %c0_222 = arith.constant 0 : index
    %211 = vector.load %arg6[%c12_220, %c0_221, %c0_222] : memref<16x8x16xf32, #tpu.memory_space<vmem>>, vector<1x8x16xf32>
    %212 = vector.shape_cast %211 : vector<1x8x16xf32> to vector<8x16xf32>
    %cst_223 = arith.constant dense<0.000000e+00> : vector<16x16xf32>
    %213 = tpu.matmul %210, %212, %cst_223 {dimension_numbers = #tpu.dot_dimension_numbers<[1], [0], [0], [1], [0, 0, 1, 1], [], []>} : vector<16x8xf32>, vector<8x16xf32>, vector<16x16xf32> -> vector<16x16xf32>
    %214 = arith.addf %207, %213 : vector<16x16xf32>
    %c13_224 = arith.constant 13 : index
    %c0_225 = arith.constant 0 : index
    %c0_226 = arith.constant 0 : index
    %215 = vector.load %arg5[%c13_224, %c0_225, %c0_226] : memref<16x16x64xf32, #tpu.memory_space<vmem>>, vector<1x16x64xf32>
    %216 = vector.shape_cast %215 : vector<1x16x64xf32> to vector<16x64xf32>
    %cst_227 = arith.constant dense<0.000000e+00> : vector<16x8xf32>
    %217 = tpu.matmul %216, %122, %cst_227 {dimension_numbers = #tpu.dot_dimension_numbers<[1], [0], [0], [1], [0, 0, 1, 1], [], []>} : vector<16x64xf32>, vector<64x8xf32>, vector<16x8xf32> -> vector<16x8xf32>
    %c13_228 = arith.constant 13 : index
    %c0_229 = arith.constant 0 : index
    %c0_230 = arith.constant 0 : index
    %218 = vector.load %arg6[%c13_228, %c0_229, %c0_230] : memref<16x8x16xf32, #tpu.memory_space<vmem>>, vector<1x8x16xf32>
    %219 = vector.shape_cast %218 : vector<1x8x16xf32> to vector<8x16xf32>
    %cst_231 = arith.constant dense<0.000000e+00> : vector<16x16xf32>
    %220 = tpu.matmul %217, %219, %cst_231 {dimension_numbers = #tpu.dot_dimension_numbers<[1], [0], [0], [1], [0, 0, 1, 1], [], []>} : vector<16x8xf32>, vector<8x16xf32>, vector<16x16xf32> -> vector<16x16xf32>
    %221 = arith.addf %214, %220 : vector<16x16xf32>
    %c14_232 = arith.constant 14 : index
    %c0_233 = arith.constant 0 : index
    %c0_234 = arith.constant 0 : index
    %222 = vector.load %arg5[%c14_232, %c0_233, %c0_234] : memref<16x16x64xf32, #tpu.memory_space<vmem>>, vector<1x16x64xf32>
    %223 = vector.shape_cast %222 : vector<1x16x64xf32> to vector<16x64xf32>
    %cst_235 = arith.constant dense<0.000000e+00> : vector<16x8xf32>
    %224 = tpu.matmul %223, %122, %cst_235 {dimension_numbers = #tpu.dot_dimension_numbers<[1], [0], [0], [1], [0, 0, 1, 1], [], []>} : vector<16x64xf32>, vector<64x8xf32>, vector<16x8xf32> -> vector<16x8xf32>
    %c14_236 = arith.constant 14 : index
    %c0_237 = arith.constant 0 : index
    %c0_238 = arith.constant 0 : index
    %225 = vector.load %arg6[%c14_236, %c0_237, %c0_238] : memref<16x8x16xf32, #tpu.memory_space<vmem>>, vector<1x8x16xf32>
    %226 = vector.shape_cast %225 : vector<1x8x16xf32> to vector<8x16xf32>
    %cst_239 = arith.constant dense<0.000000e+00> : vector<16x16xf32>
    %227 = tpu.matmul %224, %226, %cst_239 {dimension_numbers = #tpu.dot_dimension_numbers<[1], [0], [0], [1], [0, 0, 1, 1], [], []>} : vector<16x8xf32>, vector<8x16xf32>, vector<16x16xf32> -> vector<16x16xf32>
    %228 = arith.addf %221, %227 : vector<16x16xf32>
    %c15_240 = arith.constant 15 : index
    %c0_241 = arith.constant 0 : index
    %c0_242 = arith.constant 0 : index
    %229 = vector.load %arg5[%c15_240, %c0_241, %c0_242] : memref<16x16x64xf32, #tpu.memory_space<vmem>>, vector<1x16x64xf32>
    %230 = vector.shape_cast %229 : vector<1x16x64xf32> to vector<16x64xf32>
    %cst_243 = arith.constant dense<0.000000e+00> : vector<16x8xf32>
    %231 = tpu.matmul %230, %122, %cst_243 {dimension_numbers = #tpu.dot_dimension_numbers<[1], [0], [0], [1], [0, 0, 1, 1], [], []>} : vector<16x64xf32>, vector<64x8xf32>, vector<16x8xf32> -> vector<16x8xf32>
    %c15_244 = arith.constant 15 : index
    %c0_245 = arith.constant 0 : index
    %c0_246 = arith.constant 0 : index
    %232 = vector.load %arg6[%c15_244, %c0_245, %c0_246] : memref<16x8x16xf32, #tpu.memory_space<vmem>>, vector<1x8x16xf32>
    %233 = vector.shape_cast %232 : vector<1x8x16xf32> to vector<8x16xf32>
    %cst_247 = arith.constant dense<0.000000e+00> : vector<16x16xf32>
    %234 = tpu.matmul %231, %233, %cst_247 {dimension_numbers = #tpu.dot_dimension_numbers<[1], [0], [0], [1], [0, 0, 1, 1], [], []>} : vector<16x8xf32>, vector<8x16xf32>, vector<16x16xf32> -> vector<16x16xf32>
    %235 = arith.addf %228, %234 : vector<16x16xf32>
    %c0_248 = arith.constant 0 : index
    %c0_249 = arith.constant 0 : index
    %236 = vector.load %arg7[%c0_248, %c0_249] : memref<1x16xf32, #tpu.memory_space<vmem>>, vector<1x16xf32>
    %c0_250 = arith.constant 0 : index
    %c0_251 = arith.constant 0 : index
    %237 = vector.load %arg8[%c0_250, %c0_251] : memref<1x16xf32, #tpu.memory_space<vmem>>, vector<1x16xf32>
    %cst_252 = arith.constant dense<0.000000e+00> : vector<16xf32>
    %238 = vector.multi_reduction <add>, %235, %cst_252 [0] : vector<16x16xf32> to vector<16xf32>
    %239 = vector.shape_cast %238 : vector<16xf32> to vector<1x16xf32>
    %cst_253 = arith.constant 1.600000e+01 : f32
    %240 = vector.broadcast %cst_253 : f32 to vector<1x16xf32>
    %241 = arith.divf %239, %240 : vector<1x16xf32>
    %242 = vector.broadcast %241 : vector<1x16xf32> to vector<16x16xf32>
    %243 = arith.subf %235, %242 : vector<16x16xf32>
    %244 = arith.mulf %243, %243 : vector<16x16xf32>
    %cst_254 = arith.constant dense<0.000000e+00> : vector<16xf32>
    %245 = vector.multi_reduction <add>, %244, %cst_254 [0] : vector<16x16xf32> to vector<16xf32>
    %246 = vector.shape_cast %245 : vector<16xf32> to vector<1x16xf32>
    %cst_255 = arith.constant 1.600000e+01 : f32
    %247 = vector.broadcast %cst_255 : f32 to vector<1x16xf32>
    %248 = arith.divf %246, %247 : vector<1x16xf32>
    %249 = vector.broadcast %241 : vector<1x16xf32> to vector<16x16xf32>
    %250 = arith.subf %235, %249 : vector<16x16xf32>
    %cst_256 = arith.constant 9.99999974E-6 : f32
    %251 = vector.broadcast %cst_256 : f32 to vector<1x16xf32>
    %252 = arith.addf %248, %251 : vector<1x16xf32>
    %253 = math.rsqrt %252 : vector<1x16xf32>
    %254 = vector.broadcast %253 : vector<1x16xf32> to vector<16x16xf32>
    %255 = arith.mulf %250, %254 : vector<16x16xf32>
    %256 = vector.broadcast %236 : vector<1x16xf32> to vector<16x16xf32>
    %257 = arith.mulf %255, %256 : vector<16x16xf32>
    %258 = vector.broadcast %237 : vector<1x16xf32> to vector<16x16xf32>
    %259 = arith.addf %257, %258 : vector<16x16xf32>
    %cst_257 = arith.constant 0.000000e+00 : f32
    %260 = vector.broadcast %cst_257 : f32 to vector<16x16xf32>
    %261 = arith.cmpf ogt, %259, %260 : vector<16x16xf32>
    %cst_258 = arith.constant 2.000000e-01 : f32
    %262 = vector.broadcast %cst_258 : f32 to vector<16x16xf32>
    %263 = arith.mulf %262, %259 : vector<16x16xf32>
    %264 = arith.select %261, %259, %263 : vector<16x16xi1>, vector<16x16xf32>
    %cst_259 = arith.constant 0.000000e+00 : f32
    %265 = vector.broadcast %cst_259 : f32 to vector<4x32xf32>
    %c0_260 = arith.constant 0 : index
    %c0_261 = arith.constant 0 : index
    %c0_262 = arith.constant 0 : index
    %266 = vector.load %arg9[%c0_260, %c0_261, %c0_262] : memref<16x4x16xf32, #tpu.memory_space<vmem>>, vector<1x4x16xf32>
    %267 = vector.shape_cast %266 : vector<1x4x16xf32> to vector<4x16xf32>
    %cst_263 = arith.constant dense<0.000000e+00> : vector<4x16xf32>
    %268 = tpu.matmul %267, %264, %cst_263 {dimension_numbers = #tpu.dot_dimension_numbers<[1], [0], [0], [1], [0, 0, 1, 1], [], []>} : vector<4x16xf32>, vector<16x16xf32>, vector<4x16xf32> -> vector<4x16xf32>
    %c0_264 = arith.constant 0 : index
    %c0_265 = arith.constant 0 : index
    %c0_266 = arith.constant 0 : index
    %269 = vector.load %arg10[%c0_264, %c0_265, %c0_266] : memref<16x16x32xf32, #tpu.memory_space<vmem>>, vector<1x16x32xf32>
    %270 = vector.shape_cast %269 : vector<1x16x32xf32> to vector<16x32xf32>
    %cst_267 = arith.constant dense<0.000000e+00> : vector<4x32xf32>
    %271 = tpu.matmul %268, %270, %cst_267 {dimension_numbers = #tpu.dot_dimension_numbers<[1], [0], [0], [1], [0, 0, 1, 1], [], []>} : vector<4x16xf32>, vector<16x32xf32>, vector<4x32xf32> -> vector<4x32xf32>
    %272 = arith.addf %265, %271 : vector<4x32xf32>
    %c1_268 = arith.constant 1 : index
    %c0_269 = arith.constant 0 : index
    %c0_270 = arith.constant 0 : index
    %273 = vector.load %arg9[%c1_268, %c0_269, %c0_270] : memref<16x4x16xf32, #tpu.memory_space<vmem>>, vector<1x4x16xf32>
    %274 = vector.shape_cast %273 : vector<1x4x16xf32> to vector<4x16xf32>
    %cst_271 = arith.constant dense<0.000000e+00> : vector<4x16xf32>
    %275 = tpu.matmul %274, %264, %cst_271 {dimension_numbers = #tpu.dot_dimension_numbers<[1], [0], [0], [1], [0, 0, 1, 1], [], []>} : vector<4x16xf32>, vector<16x16xf32>, vector<4x16xf32> -> vector<4x16xf32>
    %c1_272 = arith.constant 1 : index
    %c0_273 = arith.constant 0 : index
    %c0_274 = arith.constant 0 : index
    %276 = vector.load %arg10[%c1_272, %c0_273, %c0_274] : memref<16x16x32xf32, #tpu.memory_space<vmem>>, vector<1x16x32xf32>
    %277 = vector.shape_cast %276 : vector<1x16x32xf32> to vector<16x32xf32>
    %cst_275 = arith.constant dense<0.000000e+00> : vector<4x32xf32>
    %278 = tpu.matmul %275, %277, %cst_275 {dimension_numbers = #tpu.dot_dimension_numbers<[1], [0], [0], [1], [0, 0, 1, 1], [], []>} : vector<4x16xf32>, vector<16x32xf32>, vector<4x32xf32> -> vector<4x32xf32>
    %279 = arith.addf %272, %278 : vector<4x32xf32>
    %c2_276 = arith.constant 2 : index
    %c0_277 = arith.constant 0 : index
    %c0_278 = arith.constant 0 : index
    %280 = vector.load %arg9[%c2_276, %c0_277, %c0_278] : memref<16x4x16xf32, #tpu.memory_space<vmem>>, vector<1x4x16xf32>
    %281 = vector.shape_cast %280 : vector<1x4x16xf32> to vector<4x16xf32>
    %cst_279 = arith.constant dense<0.000000e+00> : vector<4x16xf32>
    %282 = tpu.matmul %281, %264, %cst_279 {dimension_numbers = #tpu.dot_dimension_numbers<[1], [0], [0], [1], [0, 0, 1, 1], [], []>} : vector<4x16xf32>, vector<16x16xf32>, vector<4x16xf32> -> vector<4x16xf32>
    %c2_280 = arith.constant 2 : index
    %c0_281 = arith.constant 0 : index
    %c0_282 = arith.constant 0 : index
    %283 = vector.load %arg10[%c2_280, %c0_281, %c0_282] : memref<16x16x32xf32, #tpu.memory_space<vmem>>, vector<1x16x32xf32>
    %284 = vector.shape_cast %283 : vector<1x16x32xf32> to vector<16x32xf32>
    %cst_283 = arith.constant dense<0.000000e+00> : vector<4x32xf32>
    %285 = tpu.matmul %282, %284, %cst_283 {dimension_numbers = #tpu.dot_dimension_numbers<[1], [0], [0], [1], [0, 0, 1, 1], [], []>} : vector<4x16xf32>, vector<16x32xf32>, vector<4x32xf32> -> vector<4x32xf32>
    %286 = arith.addf %279, %285 : vector<4x32xf32>
    %c3_284 = arith.constant 3 : index
    %c0_285 = arith.constant 0 : index
    %c0_286 = arith.constant 0 : index
    %287 = vector.load %arg9[%c3_284, %c0_285, %c0_286] : memref<16x4x16xf32, #tpu.memory_space<vmem>>, vector<1x4x16xf32>
    %288 = vector.shape_cast %287 : vector<1x4x16xf32> to vector<4x16xf32>
    %cst_287 = arith.constant dense<0.000000e+00> : vector<4x16xf32>
    %289 = tpu.matmul %288, %264, %cst_287 {dimension_numbers = #tpu.dot_dimension_numbers<[1], [0], [0], [1], [0, 0, 1, 1], [], []>} : vector<4x16xf32>, vector<16x16xf32>, vector<4x16xf32> -> vector<4x16xf32>
    %c3_288 = arith.constant 3 : index
    %c0_289 = arith.constant 0 : index
    %c0_290 = arith.constant 0 : index
    %290 = vector.load %arg10[%c3_288, %c0_289, %c0_290] : memref<16x16x32xf32, #tpu.memory_space<vmem>>, vector<1x16x32xf32>
    %291 = vector.shape_cast %290 : vector<1x16x32xf32> to vector<16x32xf32>
    %cst_291 = arith.constant dense<0.000000e+00> : vector<4x32xf32>
    %292 = tpu.matmul %289, %291, %cst_291 {dimension_numbers = #tpu.dot_dimension_numbers<[1], [0], [0], [1], [0, 0, 1, 1], [], []>} : vector<4x16xf32>, vector<16x32xf32>, vector<4x32xf32> -> vector<4x32xf32>
    %293 = arith.addf %286, %292 : vector<4x32xf32>
    %c4_292 = arith.constant 4 : index
    %c0_293 = arith.constant 0 : index
    %c0_294 = arith.constant 0 : index
    %294 = vector.load %arg9[%c4_292, %c0_293, %c0_294] : memref<16x4x16xf32, #tpu.memory_space<vmem>>, vector<1x4x16xf32>
    %295 = vector.shape_cast %294 : vector<1x4x16xf32> to vector<4x16xf32>
    %cst_295 = arith.constant dense<0.000000e+00> : vector<4x16xf32>
    %296 = tpu.matmul %295, %264, %cst_295 {dimension_numbers = #tpu.dot_dimension_numbers<[1], [0], [0], [1], [0, 0, 1, 1], [], []>} : vector<4x16xf32>, vector<16x16xf32>, vector<4x16xf32> -> vector<4x16xf32>
    %c4_296 = arith.constant 4 : index
    %c0_297 = arith.constant 0 : index
    %c0_298 = arith.constant 0 : index
    %297 = vector.load %arg10[%c4_296, %c0_297, %c0_298] : memref<16x16x32xf32, #tpu.memory_space<vmem>>, vector<1x16x32xf32>
    %298 = vector.shape_cast %297 : vector<1x16x32xf32> to vector<16x32xf32>
    %cst_299 = arith.constant dense<0.000000e+00> : vector<4x32xf32>
    %299 = tpu.matmul %296, %298, %cst_299 {dimension_numbers = #tpu.dot_dimension_numbers<[1], [0], [0], [1], [0, 0, 1, 1], [], []>} : vector<4x16xf32>, vector<16x32xf32>, vector<4x32xf32> -> vector<4x32xf32>
    %300 = arith.addf %293, %299 : vector<4x32xf32>
    %c5_300 = arith.constant 5 : index
    %c0_301 = arith.constant 0 : index
    %c0_302 = arith.constant 0 : index
    %301 = vector.load %arg9[%c5_300, %c0_301, %c0_302] : memref<16x4x16xf32, #tpu.memory_space<vmem>>, vector<1x4x16xf32>
    %302 = vector.shape_cast %301 : vector<1x4x16xf32> to vector<4x16xf32>
    %cst_303 = arith.constant dense<0.000000e+00> : vector<4x16xf32>
    %303 = tpu.matmul %302, %264, %cst_303 {dimension_numbers = #tpu.dot_dimension_numbers<[1], [0], [0], [1], [0, 0, 1, 1], [], []>} : vector<4x16xf32>, vector<16x16xf32>, vector<4x16xf32> -> vector<4x16xf32>
    %c5_304 = arith.constant 5 : index
    %c0_305 = arith.constant 0 : index
    %c0_306 = arith.constant 0 : index
    %304 = vector.load %arg10[%c5_304, %c0_305, %c0_306] : memref<16x16x32xf32, #tpu.memory_space<vmem>>, vector<1x16x32xf32>
    %305 = vector.shape_cast %304 : vector<1x16x32xf32> to vector<16x32xf32>
    %cst_307 = arith.constant dense<0.000000e+00> : vector<4x32xf32>
    %306 = tpu.matmul %303, %305, %cst_307 {dimension_numbers = #tpu.dot_dimension_numbers<[1], [0], [0], [1], [0, 0, 1, 1], [], []>} : vector<4x16xf32>, vector<16x32xf32>, vector<4x32xf32> -> vector<4x32xf32>
    %307 = arith.addf %300, %306 : vector<4x32xf32>
    %c6_308 = arith.constant 6 : index
    %c0_309 = arith.constant 0 : index
    %c0_310 = arith.constant 0 : index
    %308 = vector.load %arg9[%c6_308, %c0_309, %c0_310] : memref<16x4x16xf32, #tpu.memory_space<vmem>>, vector<1x4x16xf32>
    %309 = vector.shape_cast %308 : vector<1x4x16xf32> to vector<4x16xf32>
    %cst_311 = arith.constant dense<0.000000e+00> : vector<4x16xf32>
    %310 = tpu.matmul %309, %264, %cst_311 {dimension_numbers = #tpu.dot_dimension_numbers<[1], [0], [0], [1], [0, 0, 1, 1], [], []>} : vector<4x16xf32>, vector<16x16xf32>, vector<4x16xf32> -> vector<4x16xf32>
    %c6_312 = arith.constant 6 : index
    %c0_313 = arith.constant 0 : index
    %c0_314 = arith.constant 0 : index
    %311 = vector.load %arg10[%c6_312, %c0_313, %c0_314] : memref<16x16x32xf32, #tpu.memory_space<vmem>>, vector<1x16x32xf32>
    %312 = vector.shape_cast %311 : vector<1x16x32xf32> to vector<16x32xf32>
    %cst_315 = arith.constant dense<0.000000e+00> : vector<4x32xf32>
    %313 = tpu.matmul %310, %312, %cst_315 {dimension_numbers = #tpu.dot_dimension_numbers<[1], [0], [0], [1], [0, 0, 1, 1], [], []>} : vector<4x16xf32>, vector<16x32xf32>, vector<4x32xf32> -> vector<4x32xf32>
    %314 = arith.addf %307, %313 : vector<4x32xf32>
    %c7_316 = arith.constant 7 : index
    %c0_317 = arith.constant 0 : index
    %c0_318 = arith.constant 0 : index
    %315 = vector.load %arg9[%c7_316, %c0_317, %c0_318] : memref<16x4x16xf32, #tpu.memory_space<vmem>>, vector<1x4x16xf32>
    %316 = vector.shape_cast %315 : vector<1x4x16xf32> to vector<4x16xf32>
    %cst_319 = arith.constant dense<0.000000e+00> : vector<4x16xf32>
    %317 = tpu.matmul %316, %264, %cst_319 {dimension_numbers = #tpu.dot_dimension_numbers<[1], [0], [0], [1], [0, 0, 1, 1], [], []>} : vector<4x16xf32>, vector<16x16xf32>, vector<4x16xf32> -> vector<4x16xf32>
    %c7_320 = arith.constant 7 : index
    %c0_321 = arith.constant 0 : index
    %c0_322 = arith.constant 0 : index
    %318 = vector.load %arg10[%c7_320, %c0_321, %c0_322] : memref<16x16x32xf32, #tpu.memory_space<vmem>>, vector<1x16x32xf32>
    %319 = vector.shape_cast %318 : vector<1x16x32xf32> to vector<16x32xf32>
    %cst_323 = arith.constant dense<0.000000e+00> : vector<4x32xf32>
    %320 = tpu.matmul %317, %319, %cst_323 {dimension_numbers = #tpu.dot_dimension_numbers<[1], [0], [0], [1], [0, 0, 1, 1], [], []>} : vector<4x16xf32>, vector<16x32xf32>, vector<4x32xf32> -> vector<4x32xf32>
    %321 = arith.addf %314, %320 : vector<4x32xf32>
    %c8_324 = arith.constant 8 : index
    %c0_325 = arith.constant 0 : index
    %c0_326 = arith.constant 0 : index
    %322 = vector.load %arg9[%c8_324, %c0_325, %c0_326] : memref<16x4x16xf32, #tpu.memory_space<vmem>>, vector<1x4x16xf32>
    %323 = vector.shape_cast %322 : vector<1x4x16xf32> to vector<4x16xf32>
    %cst_327 = arith.constant dense<0.000000e+00> : vector<4x16xf32>
    %324 = tpu.matmul %323, %264, %cst_327 {dimension_numbers = #tpu.dot_dimension_numbers<[1], [0], [0], [1], [0, 0, 1, 1], [], []>} : vector<4x16xf32>, vector<16x16xf32>, vector<4x16xf32> -> vector<4x16xf32>
    %c8_328 = arith.constant 8 : index
    %c0_329 = arith.constant 0 : index
    %c0_330 = arith.constant 0 : index
    %325 = vector.load %arg10[%c8_328, %c0_329, %c0_330] : memref<16x16x32xf32, #tpu.memory_space<vmem>>, vector<1x16x32xf32>
    %326 = vector.shape_cast %325 : vector<1x16x32xf32> to vector<16x32xf32>
    %cst_331 = arith.constant dense<0.000000e+00> : vector<4x32xf32>
    %327 = tpu.matmul %324, %326, %cst_331 {dimension_numbers = #tpu.dot_dimension_numbers<[1], [0], [0], [1], [0, 0, 1, 1], [], []>} : vector<4x16xf32>, vector<16x32xf32>, vector<4x32xf32> -> vector<4x32xf32>
    %328 = arith.addf %321, %327 : vector<4x32xf32>
    %c9_332 = arith.constant 9 : index
    %c0_333 = arith.constant 0 : index
    %c0_334 = arith.constant 0 : index
    %329 = vector.load %arg9[%c9_332, %c0_333, %c0_334] : memref<16x4x16xf32, #tpu.memory_space<vmem>>, vector<1x4x16xf32>
    %330 = vector.shape_cast %329 : vector<1x4x16xf32> to vector<4x16xf32>
    %cst_335 = arith.constant dense<0.000000e+00> : vector<4x16xf32>
    %331 = tpu.matmul %330, %264, %cst_335 {dimension_numbers = #tpu.dot_dimension_numbers<[1], [0], [0], [1], [0, 0, 1, 1], [], []>} : vector<4x16xf32>, vector<16x16xf32>, vector<4x16xf32> -> vector<4x16xf32>
    %c9_336 = arith.constant 9 : index
    %c0_337 = arith.constant 0 : index
    %c0_338 = arith.constant 0 : index
    %332 = vector.load %arg10[%c9_336, %c0_337, %c0_338] : memref<16x16x32xf32, #tpu.memory_space<vmem>>, vector<1x16x32xf32>
    %333 = vector.shape_cast %332 : vector<1x16x32xf32> to vector<16x32xf32>
    %cst_339 = arith.constant dense<0.000000e+00> : vector<4x32xf32>
    %334 = tpu.matmul %331, %333, %cst_339 {dimension_numbers = #tpu.dot_dimension_numbers<[1], [0], [0], [1], [0, 0, 1, 1], [], []>} : vector<4x16xf32>, vector<16x32xf32>, vector<4x32xf32> -> vector<4x32xf32>
    %335 = arith.addf %328, %334 : vector<4x32xf32>
    %c10_340 = arith.constant 10 : index
    %c0_341 = arith.constant 0 : index
    %c0_342 = arith.constant 0 : index
    %336 = vector.load %arg9[%c10_340, %c0_341, %c0_342] : memref<16x4x16xf32, #tpu.memory_space<vmem>>, vector<1x4x16xf32>
    %337 = vector.shape_cast %336 : vector<1x4x16xf32> to vector<4x16xf32>
    %cst_343 = arith.constant dense<0.000000e+00> : vector<4x16xf32>
    %338 = tpu.matmul %337, %264, %cst_343 {dimension_numbers = #tpu.dot_dimension_numbers<[1], [0], [0], [1], [0, 0, 1, 1], [], []>} : vector<4x16xf32>, vector<16x16xf32>, vector<4x16xf32> -> vector<4x16xf32>
    %c10_344 = arith.constant 10 : index
    %c0_345 = arith.constant 0 : index
    %c0_346 = arith.constant 0 : index
    %339 = vector.load %arg10[%c10_344, %c0_345, %c0_346] : memref<16x16x32xf32, #tpu.memory_space<vmem>>, vector<1x16x32xf32>
    %340 = vector.shape_cast %339 : vector<1x16x32xf32> to vector<16x32xf32>
    %cst_347 = arith.constant dense<0.000000e+00> : vector<4x32xf32>
    %341 = tpu.matmul %338, %340, %cst_347 {dimension_numbers = #tpu.dot_dimension_numbers<[1], [0], [0], [1], [0, 0, 1, 1], [], []>} : vector<4x16xf32>, vector<16x32xf32>, vector<4x32xf32> -> vector<4x32xf32>
    %342 = arith.addf %335, %341 : vector<4x32xf32>
    %c11_348 = arith.constant 11 : index
    %c0_349 = arith.constant 0 : index
    %c0_350 = arith.constant 0 : index
    %343 = vector.load %arg9[%c11_348, %c0_349, %c0_350] : memref<16x4x16xf32, #tpu.memory_space<vmem>>, vector<1x4x16xf32>
    %344 = vector.shape_cast %343 : vector<1x4x16xf32> to vector<4x16xf32>
    %cst_351 = arith.constant dense<0.000000e+00> : vector<4x16xf32>
    %345 = tpu.matmul %344, %264, %cst_351 {dimension_numbers = #tpu.dot_dimension_numbers<[1], [0], [0], [1], [0, 0, 1, 1], [], []>} : vector<4x16xf32>, vector<16x16xf32>, vector<4x16xf32> -> vector<4x16xf32>
    %c11_352 = arith.constant 11 : index
    %c0_353 = arith.constant 0 : index
    %c0_354 = arith.constant 0 : index
    %346 = vector.load %arg10[%c11_352, %c0_353, %c0_354] : memref<16x16x32xf32, #tpu.memory_space<vmem>>, vector<1x16x32xf32>
    %347 = vector.shape_cast %346 : vector<1x16x32xf32> to vector<16x32xf32>
    %cst_355 = arith.constant dense<0.000000e+00> : vector<4x32xf32>
    %348 = tpu.matmul %345, %347, %cst_355 {dimension_numbers = #tpu.dot_dimension_numbers<[1], [0], [0], [1], [0, 0, 1, 1], [], []>} : vector<4x16xf32>, vector<16x32xf32>, vector<4x32xf32> -> vector<4x32xf32>
    %349 = arith.addf %342, %348 : vector<4x32xf32>
    %c12_356 = arith.constant 12 : index
    %c0_357 = arith.constant 0 : index
    %c0_358 = arith.constant 0 : index
    %350 = vector.load %arg9[%c12_356, %c0_357, %c0_358] : memref<16x4x16xf32, #tpu.memory_space<vmem>>, vector<1x4x16xf32>
    %351 = vector.shape_cast %350 : vector<1x4x16xf32> to vector<4x16xf32>
    %cst_359 = arith.constant dense<0.000000e+00> : vector<4x16xf32>
    %352 = tpu.matmul %351, %264, %cst_359 {dimension_numbers = #tpu.dot_dimension_numbers<[1], [0], [0], [1], [0, 0, 1, 1], [], []>} : vector<4x16xf32>, vector<16x16xf32>, vector<4x16xf32> -> vector<4x16xf32>
    %c12_360 = arith.constant 12 : index
    %c0_361 = arith.constant 0 : index
    %c0_362 = arith.constant 0 : index
    %353 = vector.load %arg10[%c12_360, %c0_361, %c0_362] : memref<16x16x32xf32, #tpu.memory_space<vmem>>, vector<1x16x32xf32>
    %354 = vector.shape_cast %353 : vector<1x16x32xf32> to vector<16x32xf32>
    %cst_363 = arith.constant dense<0.000000e+00> : vector<4x32xf32>
    %355 = tpu.matmul %352, %354, %cst_363 {dimension_numbers = #tpu.dot_dimension_numbers<[1], [0], [0], [1], [0, 0, 1, 1], [], []>} : vector<4x16xf32>, vector<16x32xf32>, vector<4x32xf32> -> vector<4x32xf32>
    %356 = arith.addf %349, %355 : vector<4x32xf32>
    %c13_364 = arith.constant 13 : index
    %c0_365 = arith.constant 0 : index
    %c0_366 = arith.constant 0 : index
    %357 = vector.load %arg9[%c13_364, %c0_365, %c0_366] : memref<16x4x16xf32, #tpu.memory_space<vmem>>, vector<1x4x16xf32>
    %358 = vector.shape_cast %357 : vector<1x4x16xf32> to vector<4x16xf32>
    %cst_367 = arith.constant dense<0.000000e+00> : vector<4x16xf32>
    %359 = tpu.matmul %358, %264, %cst_367 {dimension_numbers = #tpu.dot_dimension_numbers<[1], [0], [0], [1], [0, 0, 1, 1], [], []>} : vector<4x16xf32>, vector<16x16xf32>, vector<4x16xf32> -> vector<4x16xf32>
    %c13_368 = arith.constant 13 : index
    %c0_369 = arith.constant 0 : index
    %c0_370 = arith.constant 0 : index
    %360 = vector.load %arg10[%c13_368, %c0_369, %c0_370] : memref<16x16x32xf32, #tpu.memory_space<vmem>>, vector<1x16x32xf32>
    %361 = vector.shape_cast %360 : vector<1x16x32xf32> to vector<16x32xf32>
    %cst_371 = arith.constant dense<0.000000e+00> : vector<4x32xf32>
    %362 = tpu.matmul %359, %361, %cst_371 {dimension_numbers = #tpu.dot_dimension_numbers<[1], [0], [0], [1], [0, 0, 1, 1], [], []>} : vector<4x16xf32>, vector<16x32xf32>, vector<4x32xf32> -> vector<4x32xf32>
    %363 = arith.addf %356, %362 : vector<4x32xf32>
    %c14_372 = arith.constant 14 : index
    %c0_373 = arith.constant 0 : index
    %c0_374 = arith.constant 0 : index
    %364 = vector.load %arg9[%c14_372, %c0_373, %c0_374] : memref<16x4x16xf32, #tpu.memory_space<vmem>>, vector<1x4x16xf32>
    %365 = vector.shape_cast %364 : vector<1x4x16xf32> to vector<4x16xf32>
    %cst_375 = arith.constant dense<0.000000e+00> : vector<4x16xf32>
    %366 = tpu.matmul %365, %264, %cst_375 {dimension_numbers = #tpu.dot_dimension_numbers<[1], [0], [0], [1], [0, 0, 1, 1], [], []>} : vector<4x16xf32>, vector<16x16xf32>, vector<4x16xf32> -> vector<4x16xf32>
    %c14_376 = arith.constant 14 : index
    %c0_377 = arith.constant 0 : index
    %c0_378 = arith.constant 0 : index
    %367 = vector.load %arg10[%c14_376, %c0_377, %c0_378] : memref<16x16x32xf32, #tpu.memory_space<vmem>>, vector<1x16x32xf32>
    %368 = vector.shape_cast %367 : vector<1x16x32xf32> to vector<16x32xf32>
    %cst_379 = arith.constant dense<0.000000e+00> : vector<4x32xf32>
    %369 = tpu.matmul %366, %368, %cst_379 {dimension_numbers = #tpu.dot_dimension_numbers<[1], [0], [0], [1], [0, 0, 1, 1], [], []>} : vector<4x16xf32>, vector<16x32xf32>, vector<4x32xf32> -> vector<4x32xf32>
    %370 = arith.addf %363, %369 : vector<4x32xf32>
    %c15_380 = arith.constant 15 : index
    %c0_381 = arith.constant 0 : index
    %c0_382 = arith.constant 0 : index
    %371 = vector.load %arg9[%c15_380, %c0_381, %c0_382] : memref<16x4x16xf32, #tpu.memory_space<vmem>>, vector<1x4x16xf32>
    %372 = vector.shape_cast %371 : vector<1x4x16xf32> to vector<4x16xf32>
    %cst_383 = arith.constant dense<0.000000e+00> : vector<4x16xf32>
    %373 = tpu.matmul %372, %264, %cst_383 {dimension_numbers = #tpu.dot_dimension_numbers<[1], [0], [0], [1], [0, 0, 1, 1], [], []>} : vector<4x16xf32>, vector<16x16xf32>, vector<4x16xf32> -> vector<4x16xf32>
    %c15_384 = arith.constant 15 : index
    %c0_385 = arith.constant 0 : index
    %c0_386 = arith.constant 0 : index
    %374 = vector.load %arg10[%c15_384, %c0_385, %c0_386] : memref<16x16x32xf32, #tpu.memory_space<vmem>>, vector<1x16x32xf32>
    %375 = vector.shape_cast %374 : vector<1x16x32xf32> to vector<16x32xf32>
    %cst_387 = arith.constant dense<0.000000e+00> : vector<4x32xf32>
    %376 = tpu.matmul %373, %375, %cst_387 {dimension_numbers = #tpu.dot_dimension_numbers<[1], [0], [0], [1], [0, 0, 1, 1], [], []>} : vector<4x16xf32>, vector<16x32xf32>, vector<4x32xf32> -> vector<4x32xf32>
    %377 = arith.addf %370, %376 : vector<4x32xf32>
    %c0_388 = arith.constant 0 : index
    %c0_389 = arith.constant 0 : index
    %378 = vector.load %arg11[%c0_388, %c0_389] : memref<1x32xf32, #tpu.memory_space<vmem>>, vector<1x32xf32>
    %c0_390 = arith.constant 0 : index
    %c0_391 = arith.constant 0 : index
    %379 = vector.load %arg12[%c0_390, %c0_391] : memref<1x32xf32, #tpu.memory_space<vmem>>, vector<1x32xf32>
    %cst_392 = arith.constant dense<0.000000e+00> : vector<32xf32>
    %380 = vector.multi_reduction <add>, %377, %cst_392 [0] : vector<4x32xf32> to vector<32xf32>
    %381 = vector.shape_cast %380 : vector<32xf32> to vector<1x32xf32>
    %cst_393 = arith.constant 4.000000e+00 : f32
    %382 = vector.broadcast %cst_393 : f32 to vector<1x32xf32>
    %383 = arith.divf %381, %382 : vector<1x32xf32>
    %384 = vector.broadcast %383 : vector<1x32xf32> to vector<4x32xf32>
    %385 = arith.subf %377, %384 : vector<4x32xf32>
    %386 = arith.mulf %385, %385 : vector<4x32xf32>
    %cst_394 = arith.constant dense<0.000000e+00> : vector<32xf32>
    %387 = vector.multi_reduction <add>, %386, %cst_394 [0] : vector<4x32xf32> to vector<32xf32>
    %388 = vector.shape_cast %387 : vector<32xf32> to vector<1x32xf32>
    %cst_395 = arith.constant 4.000000e+00 : f32
    %389 = vector.broadcast %cst_395 : f32 to vector<1x32xf32>
    %390 = arith.divf %388, %389 : vector<1x32xf32>
    %391 = vector.broadcast %383 : vector<1x32xf32> to vector<4x32xf32>
    %392 = arith.subf %377, %391 : vector<4x32xf32>
    %cst_396 = arith.constant 9.99999974E-6 : f32
    %393 = vector.broadcast %cst_396 : f32 to vector<1x32xf32>
    %394 = arith.addf %390, %393 : vector<1x32xf32>
    %395 = math.rsqrt %394 : vector<1x32xf32>
    %396 = vector.broadcast %395 : vector<1x32xf32> to vector<4x32xf32>
    %397 = arith.mulf %392, %396 : vector<4x32xf32>
    %398 = vector.broadcast %378 : vector<1x32xf32> to vector<4x32xf32>
    %399 = arith.mulf %397, %398 : vector<4x32xf32>
    %400 = vector.broadcast %379 : vector<1x32xf32> to vector<4x32xf32>
    %401 = arith.addf %399, %400 : vector<4x32xf32>
    %cst_397 = arith.constant 0.000000e+00 : f32
    %402 = vector.broadcast %cst_397 : f32 to vector<4x32xf32>
    %403 = arith.cmpf ogt, %401, %402 : vector<4x32xf32>
    %cst_398 = arith.constant 2.000000e-01 : f32
    %404 = vector.broadcast %cst_398 : f32 to vector<4x32xf32>
    %405 = arith.mulf %404, %401 : vector<4x32xf32>
    %406 = arith.select %403, %401, %405 : vector<4x32xi1>, vector<4x32xf32>
    %c0_399 = arith.constant 0 : index
    %c0_400 = arith.constant 0 : index
    %407 = vector.load %arg13[%c0_399, %c0_400] : memref<4x32xf32, #tpu.memory_space<vmem>>, vector<4x32xf32>
    %408 = arith.mulf %406, %407 : vector<4x32xf32>
    %cst_401 = arith.constant dense<0.000000e+00> : vector<4xf32>
    %409 = vector.multi_reduction <add>, %408, %cst_401 [1] : vector<4x32xf32> to vector<4xf32>
    %410 = vector.shape_cast %409 : vector<4xf32> to vector<4x1xf32>
    %cst_402 = arith.constant dense<0.000000e+00> : vector<1xf32>
    %411 = vector.multi_reduction <add>, %410, %cst_402 [0] : vector<4x1xf32> to vector<1xf32>
    %412 = vector.shape_cast %411 : vector<1xf32> to vector<1x1xf32>
    %c0_403 = arith.constant 0 : index
    %c0_404 = arith.constant 0 : index
    %413 = vector.load %arg14[%c0_403, %c0_404] : memref<1x1xf32, #tpu.memory_space<vmem>>, vector<1x1xf32>
    %414 = arith.addf %412, %413 : vector<1x1xf32>
    %c0_405 = arith.constant 0 : index
    %c0_406 = arith.constant 0 : index
    %c0_407 = arith.constant 0 : index
    %415 = vector.load %arg15[%c0_405, %c0_406, %c0_407] : memref<1x1x1xf32, #tpu.memory_space<vmem>>, vector<1x1x1xf32>
    %416 = vector.shape_cast %415 : vector<1x1x1xf32> to vector<1x1xf32>
    %417 = vector.shape_cast %414 : vector<1x1xf32> to vector<1x1x1xf32>
    tpu.vector_store %arg15[%c0_405, %c0_406, %c0_407], %417 {strides = array<i32>} : memref<1x1x1xf32, #tpu.memory_space<vmem>>, vector<1x1x1xf32>,
    return
  }
  func.func @transform_0(%arg0: i32) -> (i32, i32, i32) {
    %c0_i32 = arith.constant 0 : i32
    %c0_i32_0 = arith.constant 0 : i32
    %c0_i32_1 = arith.constant 0 : i32
    return %arg0, %c0_i32, %c0_i32_0 : i32, i32, i32
  }
  func.func @transform_1(%arg0: i32) -> (i32, i32, i32) {
    %c0_i32 = arith.constant 0 : i32
    %c0_i32_0 = arith.constant 0 : i32
    %c0_i32_1 = arith.constant 0 : i32
    %c0_i32_2 = arith.constant 0 : i32
    return %c0_i32, %c0_i32_0, %c0_i32_1 : i32, i32, i32
  }
  func.func @transform_2(%arg0: i32) -> (i32, i32, i32) {
    %c0_i32 = arith.constant 0 : i32
    %c0_i32_0 = arith.constant 0 : i32
    %c0_i32_1 = arith.constant 0 : i32
    %c0_i32_2 = arith.constant 0 : i32
    return %c0_i32, %c0_i32_0, %c0_i32_1 : i32, i32, i32
  }
  func.func @transform_3(%arg0: i32) -> (i32, i32) {
    %c0_i32 = arith.constant 0 : i32
    %c0_i32_0 = arith.constant 0 : i32
    %c0_i32_1 = arith.constant 0 : i32
    return %c0_i32, %c0_i32_0 : i32, i32
  }
  func.func @transform_4(%arg0: i32) -> (i32, i32, i32) {
    %c0_i32 = arith.constant 0 : i32
    %c0_i32_0 = arith.constant 0 : i32
    %c0_i32_1 = arith.constant 0 : i32
    %c0_i32_2 = arith.constant 0 : i32
    return %c0_i32, %c0_i32_0, %c0_i32_1 : i32, i32, i32
  }
  func.func @transform_5(%arg0: i32) -> (i32, i32, i32) {
    %c0_i32 = arith.constant 0 : i32
    %c0_i32_0 = arith.constant 0 : i32
    %c0_i32_1 = arith.constant 0 : i32
    %c0_i32_2 = arith.constant 0 : i32
    return %c0_i32, %c0_i32_0, %c0_i32_1 : i32, i32, i32
  }
  func.func @transform_6(%arg0: i32) -> (i32, i32) {
    %c0_i32 = arith.constant 0 : i32
    %c0_i32_0 = arith.constant 0 : i32
    %c0_i32_1 = arith.constant 0 : i32
    return %c0_i32, %c0_i32_0 : i32, i32
  }
  func.func @transform_7(%arg0: i32) -> (i32, i32) {
    %c0_i32 = arith.constant 0 : i32
    %c0_i32_0 = arith.constant 0 : i32
    %c0_i32_1 = arith.constant 0 : i32
    return %c0_i32, %c0_i32_0 : i32, i32
  }
  func.func @transform_8(%arg0: i32) -> (i32, i32, i32) {
    %c0_i32 = arith.constant 0 : i32
    %c0_i32_0 = arith.constant 0 : i32
    %c0_i32_1 = arith.constant 0 : i32
    %c0_i32_2 = arith.constant 0 : i32
    return %c0_i32, %c0_i32_0, %c0_i32_1 : i32, i32, i32
  }
  func.func @transform_9(%arg0: i32) -> (i32, i32, i32) {
    %c0_i32 = arith.constant 0 : i32
    %c0_i32_0 = arith.constant 0 : i32
    %c0_i32_1 = arith.constant 0 : i32
    %c0_i32_2 = arith.constant 0 : i32
    return %c0_i32, %c0_i32_0, %c0_i32_1 : i32, i32, i32
  }
  func.func @transform_10(%arg0: i32) -> (i32, i32) {
    %c0_i32 = arith.constant 0 : i32
    %c0_i32_0 = arith.constant 0 : i32
    %c0_i32_1 = arith.constant 0 : i32
    return %c0_i32, %c0_i32_0 : i32, i32
  }
  func.func @transform_11(%arg0: i32) -> (i32, i32) {
    %c0_i32 = arith.constant 0 : i32
    %c0_i32_0 = arith.constant 0 : i32
    %c0_i32_1 = arith.constant 0 : i32
    return %c0_i32, %c0_i32_0 : i32, i32
  }
  func.func @transform_12(%arg0: i32) -> (i32, i32) {
    %c0_i32 = arith.constant 0 : i32
    %c0_i32_0 = arith.constant 0 : i32
    %c0_i32_1 = arith.constant 0 : i32
    return %c0_i32, %c0_i32_0 : i32, i32
  }
  func.func @transform_13(%arg0: i32) -> (i32, i32) {
    %c0_i32 = arith.constant 0 : i32
    %c0_i32_0 = arith.constant 0 : i32
    %c0_i32_1 = arith.constant 0 : i32
    return %c0_i32, %c0_i32_0 : i32, i32
  }
  func.func @transform_14(%arg0: i32) -> (i32, i32, i32) {
    %c0_i32 = arith.constant 0 : i32
    %c0_i32_0 = arith.constant 0 : i32
    %c0_i32_1 = arith.constant 0 : i32
    return %arg0, %c0_i32, %c0_i32_0 : i32, i32, i32
  }
}

</mosaic_0001>

<llo_original>
// kernel: tpu_custom_call.1
$region0: #{tpu_custom_call.1}
  #allocation0 [shape = 'u32[]', space=smem, size = 0x4, offset = 0x4, fixed_abs, tag = 'smem constant byte address 0x4 - core index']
  #allocation1 [shape = 'u32[144,128]{1,0:T(1,128)}', space=vmem, size = 0x12000, scoped, tag = 'internal scratch']
  #allocation2 [shape = 'f32[1,1]{1,0:T(1,128)S(1)}', space=vmem, size = 0x200, scoped, tag = 'scoped memory for tpu_custom_call.1']
  %s0 = inlined_call_operand.vmem [shape: f32[2,256,5], index: 0, kind: input, shape index: {}]
  %s1 = inlined_call_operand.hbm [shape: f32[16,64,256], index: 1, kind: input, shape index: {}]
  %s2 = inlined_call_operand.vmem [shape: f32[16,5,8], index: 2, kind: input, shape index: {}]
  %s3 = inlined_call_operand.vmem [shape: f32[1,8], index: 3, kind: input, shape index: {}]
  %s4 = inlined_call_operand.vmem [shape: f32[16,16,64], index: 4, kind: input, shape index: {}]
  %s5 = inlined_call_operand.vmem [shape: f32[16,8,16], index: 5, kind: input, shape index: {}]
  %s6 = inlined_call_operand.vmem [shape: f32[1,16], index: 6, kind: input, shape index: {}]
  %s7 = inlined_call_operand.vmem [shape: f32[1,16], index: 7, kind: input, shape index: {}]
  %s8 = inlined_call_operand.vmem [shape: f32[16,4,16], index: 8, kind: input, shape index: {}]
  %s9 = inlined_call_operand.vmem [shape: f32[16,16,32], index: 9, kind: input, shape index: {}]
  %s10 = inlined_call_operand.vmem [shape: f32[1,32], index: 10, kind: input, shape index: {}]
  %s11 = inlined_call_operand.vmem [shape: f32[1,32], index: 11, kind: input, shape index: {}]
  %s12 = inlined_call_operand.vmem [shape: f32[4,32], index: 12, kind: input, shape index: {}]
  %s13 = inlined_call_operand.<no memory space> [shape: f32[1,1], index: 13, kind: input, shape index: {}]
  %s14 = inlined_call_operand.vmem [shape: f32[2,1,1], index: 14, kind: output, shape index: {}]
  %s15 = sld [smem:[#allocation0]]
  $region93: #{tpu_custom_call.1} parent=0
    _
  %s17 = ssub.s32 1, %s15
  %s18 = scalar_select 0, %s17, %s15
  %v19 = vstv %s13
  %20 = vst [vmem:[#allocation2] sm:$0x1] %v19
  $region1: #{tpu_custom_call.1} parent=0
    #allocation3 [shape = 'u8[1048576]{0}', space=vmem, size = 0x100000, scoped, tag = 'input window, operand 1, single buffered']
    #allocation4 [shape = 's32[2]{0}', space=sflag, size = 0x8, scoped, tag = 'scoped memory for tpu_custom_call.1']
    %21 = vsyncpa [#allocation4], 0
    loop: start=0, step=1, limit=4
    $region2: #{tpu_custom_call.1} parent=1 // loop_pre_header
      _
    $region3: #{tpu_custom_call.1} parent=1 // loop_header
      %s23 = sphi 0, %s27
      %p24 = scmp.ge.s32.totalorder %s23, 4
      %s33 = sphi 0, %s35
      %s36 = sphi 0, %s33
      %s37 = sphi 0, %s36
      %s53 = sphi 0, %s37
      %s57 = sphi 0, %s57
      %s59 = sphi 0, %s57
      %s60 = sphi 0, %s59
      %s74 = sphi 0, %s60
      %s78 = sphi 0, %s78
      %s80 = sphi 0, %s78
      %s81 = sphi 0, %s80
      %s95 = sphi 0, %s81
      %s99 = sphi 0, %s99
      %s101 = sphi 0, %s99
      %s102 = sphi 0, %s101
      %s116 = sphi 0, %s102
      %s120 = sphi 0, %s120
      %s122 = sphi 0, %s120
      %s123 = sphi 0, %s122
      %s137 = sphi 0, %s123
      %s141 = sphi 0, %s141
      %s143 = sphi 0, %s141
      %s144 = sphi 0, %s143
      %s158 = sphi 0, %s144
      %s162 = sphi 0, %s162
      %s164 = sphi 0, %s162
      %s165 = sphi 0, %s164
      %s179 = sphi 0, %s165
      %s183 = sphi 0, %s183
      %s185 = sphi 0, %s183
      %s186 = sphi 0, %s185
      %s200 = sphi 0, %s186
      %s204 = sphi 0, %s204
      %s206 = sphi 0, %s204
      %s207 = sphi 0, %s206
      %s221 = sphi 0, %s207
      %s225 = sphi 0, %s225
      %s227 = sphi 0, %s225
      %s228 = sphi 0, %s227
      %s242 = sphi 0, %s228
      %s246 = sphi 0, %s246
      %s248 = sphi 0, %s246
      %s249 = sphi 0, %s248
      %s263 = sphi 0, %s249
      %s267 = sphi 0, %s267
      %s269 = sphi 0, %s267
      %s270 = sphi 0, %s269
      %s284 = sphi 0, %s270
      %s288 = sphi 0, %s288
      %s290 = sphi 0, %s288
      %s291 = sphi 0, %s290
      %s305 = sphi 0, %s291
      %s309 = sphi 0, %s309
      %s311 = sphi 0, %s309
      %s312 = sphi 0, %s311
      %s326 = sphi 0, %s312
      %s332 = sphi 0, %s334
      %s335 = sphi 0, %s332
      %s336 = sphi 0, %s335
      %s352 = sphi 0, %s336
    $region4: #{tpu_custom_call.1} parent=1 // loop_header_branch
      %26 = sbr.rel (%p24) target = $region8
    $region5: #{tpu_custom_call.1} parent=1 // loop_body
      %s28 = ssub.s32 %s23, 1
      %s29 = ssub.s32 %s23, 2
      %s30 = sadd.s32 %s23, 1
      %s31 = ssub.s32 %s23, %s30
      %p32 = scmp.eq.s32.totalorder %s31, 0
      %s34 = sadd.s32 %s33, 1
      %s35 = scalar_select %p32, %s33, %s34
      %p38 = pneg %p32
      %p39 = scmp.eq.s32.totalorder %s23, 1
      %p40 = por %p38, %p39
      %p41 = scmp.ne.s32.totalorder %s33, %s36
      %p42 = scmp.eq.s32.totalorder %s23, 0
      %p43 = por %p41, %p42
      %p44 = scmp.ne.s32.totalorder %s33, %s36
      %p45 = scmp.eq.s32.totalorder %s28, 1
      %p46 = por %p44, %p45
      %p47 = scmp.ne.s32.totalorder %s36, %s37
      %p48 = scmp.eq.s32.totalorder %s28, 0
      %p49 = por %p47, %p48
      %p50 = scmp.ne.s32.totalorder %s36, %s37
      %p51 = scmp.eq.s32.totalorder %s29, 1
      %p52 = por %p50, %p51
      %p54 = scmp.ne.s32.totalorder %s37, %s53
      %p55 = scmp.eq.s32.totalorder %s29, 0
      %p56 = por %p54, %p55
      %s58 = sadd.s32 %s57, 1
      %p61 = scmp.eq.s32.totalorder %s23, 1
      %p62 = scmp.ne.s32.totalorder %s57, %s59
      %p63 = scmp.eq.s32.totalorder %s23, 0
      %p64 = por %p62, %p63
      %p65 = scmp.ne.s32.totalorder %s57, %s59
      %p66 = scmp.eq.s32.totalorder %s28, 1
      %p67 = por %p65, %p66
      %p68 = scmp.ne.s32.totalorder %s59, %s60
      %p69 = scmp.eq.s32.totalorder %s28, 0
      %p70 = por %p68, %p69
      %p71 = scmp.ne.s32.totalorder %s59, %s60
      %p72 = scmp.eq.s32.totalorder %s29, 1
      %p73 = por %p71, %p72
      %p75 = scmp.ne.s32.totalorder %s60, %s74
      %p76 = scmp.eq.s32.totalorder %s29, 0
      %p77 = por %p75, %p76
      %s79 = sadd.s32 %s78, 1
      %p82 = scmp.eq.s32.totalorder %s23, 1
      %p83 = scmp.ne.s32.totalorder %s78, %s80
      %p84 = scmp.eq.s32.totalorder %s23, 0
      %p85 = por %p83, %p84
      %p86 = scmp.ne.s32.totalorder %s78, %s80
      %p87 = scmp.eq.s32.totalorder %s28, 1
      %p88 = por %p86, %p87
      %p89 = scmp.ne.s32.totalorder %s80, %s81
      %p90 = scmp.eq.s32.totalorder %s28, 0
      %p91 = por %p89, %p90
      %p92 = scmp.ne.s32.totalorder %s80, %s81
      %p93 = scmp.eq.s32.totalorder %s29, 1
      %p94 = por %p92, %p93
      %p96 = scmp.ne.s32.totalorder %s81, %s95
      %p97 = scmp.eq.s32.totalorder %s29, 0
      %p98 = por %p96, %p97
      %s100 = sadd.s32 %s99, 1
      %p103 = scmp.eq.s32.totalorder %s23, 1
      %p104 = scmp.ne.s32.totalorder %s99, %s101
      %p105 = scmp.eq.s32.totalorder %s23, 0
      %p106 = por %p104, %p105
      %p107 = scmp.ne.s32.totalorder %s99, %s101
      %p108 = scmp.eq.s32.totalorder %s28, 1
      %p109 = por %p107, %p108
      %p110 = scmp.ne.s32.totalorder %s101, %s102
      %p111 = scmp.eq.s32.totalorder %s28, 0
      %p112 = por %p110, %p111
      %p113 = scmp.ne.s32.totalorder %s101, %s102
      %p114 = scmp.eq.s32.totalorder %s29, 1
      %p115 = por %p113, %p114
      %p117 = scmp.ne.s32.totalorder %s102, %s116
      %p118 = scmp.eq.s32.totalorder %s29, 0
      %p119 = por %p117, %p118
      %s121 = sadd.s32 %s120, 1
      %p124 = scmp.eq.s32.totalorder %s23, 1
      %p125 = scmp.ne.s32.totalorder %s120, %s122
      %p126 = scmp.eq.s32.totalorder %s23, 0
      %p127 = por %p125, %p126
      %p128 = scmp.ne.s32.totalorder %s120, %s122
      %p129 = scmp.eq.s32.totalorder %s28, 1
      %p130 = por %p128, %p129
      %p131 = scmp.ne.s32.totalorder %s122, %s123
      %p132 = scmp.eq.s32.totalorder %s28, 0
      %p133 = por %p131, %p132
      %p134 = scmp.ne.s32.totalorder %s122, %s123
      %p135 = scmp.eq.s32.totalorder %s29, 1
      %p136 = por %p134, %p135
      %p138 = scmp.ne.s32.totalorder %s123, %s137
      %p139 = scmp.eq.s32.totalorder %s29, 0
      %p140 = por %p138, %p139
      %s142 = sadd.s32 %s141, 1
      %p145 = scmp.eq.s32.totalorder %s23, 1
      %p146 = scmp.ne.s32.totalorder %s141, %s143
      %p147 = scmp.eq.s32.totalorder %s23, 0
      %p148 = por %p146, %p147
      %p149 = scmp.ne.s32.totalorder %s141, %s143
      %p150 = scmp.eq.s32.totalorder %s28, 1
      %p151 = por %p149, %p150
      %p152 = scmp.ne.s32.totalorder %s143, %s144
      %p153 = scmp.eq.s32.totalorder %s28, 0
      %p154 = por %p152, %p153
      %p155 = scmp.ne.s32.totalorder %s143, %s144
      %p156 = scmp.eq.s32.totalorder %s29, 1
      %p157 = por %p155, %p156
      %p159 = scmp.ne.s32.totalorder %s144, %s158
      %p160 = scmp.eq.s32.totalorder %s29, 0
      %p161 = por %p159, %p160
      %s163 = sadd.s32 %s162, 1
      %p166 = scmp.eq.s32.totalorder %s23, 1
      %p167 = scmp.ne.s32.totalorder %s162, %s164
      %p168 = scmp.eq.s32.totalorder %s23, 0
      %p169 = por %p167, %p168
      %p170 = scmp.ne.s32.totalorder %s162, %s164
      %p171 = scmp.eq.s32.totalorder %s28, 1
      %p172 = por %p170, %p171
      %p173 = scmp.ne.s32.totalorder %s164, %s165
      %p174 = scmp.eq.s32.totalorder %s28, 0
      %p175 = por %p173, %p174
      %p176 = scmp.ne.s32.totalorder %s164, %s165
      %p177 = scmp.eq.s32.totalorder %s29, 1
      %p178 = por %p176, %p177
      %p180 = scmp.ne.s32.totalorder %s165, %s179
      %p181 = scmp.eq.s32.totalorder %s29, 0
      %p182 = por %p180, %p181
      %s184 = sadd.s32 %s183, 1
      %p187 = scmp.eq.s32.totalorder %s23, 1
      %p188 = scmp.ne.s32.totalorder %s183, %s185
      %p189 = scmp.eq.s32.totalorder %s23, 0
      %p190 = por %p188, %p189
      %p191 = scmp.ne.s32.totalorder %s183, %s185
      %p192 = scmp.eq.s32.totalorder %s28, 1
      %p193 = por %p191, %p192
      %p194 = scmp.ne.s32.totalorder %s185, %s186
      %p195 = scmp.eq.s32.totalorder %s28, 0
      %p196 = por %p194, %p195
      %p197 = scmp.ne.s32.totalorder %s185, %s186
      %p198 = scmp.eq.s32.totalorder %s29, 1
      %p199 = por %p197, %p198
      %p201 = scmp.ne.s32.totalorder %s186, %s200
      %p202 = scmp.eq.s32.totalorder %s29, 0
      %p203 = por %p201, %p202
      %s205 = sadd.s32 %s204, 1
      %p208 = scmp.eq.s32.totalorder %s23, 1
      %p209 = scmp.ne.s32.totalorder %s204, %s206
      %p210 = scmp.eq.s32.totalorder %s23, 0
      %p211 = por %p209, %p210
      %p212 = scmp.ne.s32.totalorder %s204, %s206
      %p213 = scmp.eq.s32.totalorder %s28, 1
      %p214 = por %p212, %p213
      %p215 = scmp.ne.s32.totalorder %s206, %s207
      %p216 = scmp.eq.s32.totalorder %s28, 0
      %p217 = por %p215, %p216
      %p218 = scmp.ne.s32.totalorder %s206, %s207
      %p219 = scmp.eq.s32.totalorder %s29, 1
      %p220 = por %p218, %p219
      %p222 = scmp.ne.s32.totalorder %s207, %s221
      %p223 = scmp.eq.s32.totalorder %s29, 0
      %p224 = por %p222, %p223
      %s226 = sadd.s32 %s225, 1
      %p229 = scmp.eq.s32.totalorder %s23, 1
      %p230 = scmp.ne.s32.totalorder %s225, %s227
      %p231 = scmp.eq.s32.totalorder %s23, 0
      %p232 = por %p230, %p231
      %p233 = scmp.ne.s32.totalorder %s225, %s227
      %p234 = scmp.eq.s32.totalorder %s28, 1
      %p235 = por %p233, %p234
      %p236 = scmp.ne.s32.totalorder %s227, %s228
      %p237 = scmp.eq.s32.totalorder %s28, 0
      %p238 = por %p236, %p237
      %p239 = scmp.ne.s32.totalorder %s227, %s228
      %p240 = scmp.eq.s32.totalorder %s29, 1
      %p241 = por %p239, %p240
      %p243 = scmp.ne.s32.totalorder %s228, %s242
      %p244 = scmp.eq.s32.totalorder %s29, 0
      %p245 = por %p243, %p244
      %s247 = sadd.s32 %s246, 1
      %p250 = scmp.eq.s32.totalorder %s23, 1
      %p251 = scmp.ne.s32.totalorder %s246, %s248
      %p252 = scmp.eq.s32.totalorder %s23, 0
      %p253 = por %p251, %p252
      %p254 = scmp.ne.s32.totalorder %s246, %s248
      %p255 = scmp.eq.s32.totalorder %s28, 1
      %p256 = por %p254, %p255
      %p257 = scmp.ne.s32.totalorder %s248, %s249
      %p258 = scmp.eq.s32.totalorder %s28, 0
      %p259 = por %p257, %p258
      %p260 = scmp.ne.s32.totalorder %s248, %s249
      %p261 = scmp.eq.s32.totalorder %s29, 1
      %p262 = por %p260, %p261
      %p264 = scmp.ne.s32.totalorder %s249, %s263
      %p265 = scmp.eq.s32.totalorder %s29, 0
      %p266 = por %p264, %p265
      %s268 = sadd.s32 %s267, 1
      %p271 = scmp.eq.s32.totalorder %s23, 1
      %p272 = scmp.ne.s32.totalorder %s267, %s269
      %p273 = scmp.eq.s32.totalorder %s23, 0
      %p274 = por %p272, %p273
      %p275 = scmp.ne.s32.totalorder %s267, %s269
      %p276 = scmp.eq.s32.totalorder %s28, 1
      %p277 = por %p275, %p276
      %p278 = scmp.ne.s32.totalorder %s269, %s270
      %p279 = scmp.eq.s32.totalorder %s28, 0
      %p280 = por %p278, %p279
      %p281 = scmp.ne.s32.totalorder %s269, %s270
      %p282 = scmp.eq.s32.totalorder %s29, 1
      %p283 = por %p281, %p282
      %p285 = scmp.ne.s32.totalorder %s270, %s284
      %p286 = scmp.eq.s32.totalorder %s29, 0
      %p287 = por %p285, %p286
      %s289 = sadd.s32 %s288, 1
      %p292 = scmp.eq.s32.totalorder %s23, 1
      %p293 = scmp.ne.s32.totalorder %s288, %s290
      %p294 = scmp.eq.s32.totalorder %s23, 0
      %p295 = por %p293, %p294
      %p296 = scmp.ne.s32.totalorder %s288, %s290
      %p297 = scmp.eq.s32.totalorder %s28, 1
      %p298 = por %p296, %p297
      %p299 = scmp.ne.s32.totalorder %s290, %s291
      %p300 = scmp.eq.s32.totalorder %s28, 0
      %p301 = por %p299, %p300
      %p302 = scmp.ne.s32.totalorder %s290, %s291
      %p303 = scmp.eq.s32.totalorder %s29, 1
      %p304 = por %p302, %p303
      %p306 = scmp.ne.s32.totalorder %s291, %s305
      %p307 = scmp.eq.s32.totalorder %s29, 0
      %p308 = por %p306, %p307
      %s310 = sadd.s32 %s309, 1
      %p313 = scmp.eq.s32.totalorder %s23, 1
      %p314 = scmp.ne.s32.totalorder %s309, %s311
      %p315 = scmp.eq.s32.totalorder %s23, 0
      %p316 = por %p314, %p315
      %p317 = scmp.ne.s32.totalorder %s309, %s311
      %p318 = scmp.eq.s32.totalorder %s28, 1
      %p319 = por %p317, %p318
      %p320 = scmp.ne.s32.totalorder %s311, %s312
      %p321 = scmp.eq.s32.totalorder %s28, 0
      %p322 = por %p320, %p321
      %p323 = scmp.ne.s32.totalorder %s311, %s312
      %p324 = scmp.eq.s32.totalorder %s29, 1
      %p325 = por %p323, %p324
      %p327 = scmp.ne.s32.totalorder %s312, %s326
      %p328 = scmp.eq.s32.totalorder %s29, 0
      %p329 = por %p327, %p328
      %s330 = ssub.s32 %s23, %s30
      %p331 = scmp.eq.s32.totalorder %s330, 0
      %s333 = sadd.s32 %s332, 1
      %s334 = scalar_select %p331, %s332, %s333
      %p337 = pneg %p331
      %p338 = scmp.eq.s32.totalorder %s23, 1
      %p339 = por %p337, %p338
      %p340 = scmp.ne.s32.totalorder %s332, %s335
      %p341 = scmp.eq.s32.totalorder %s23, 0
      %p342 = por %p340, %p341
      %p343 = scmp.ne.s32.totalorder %s332, %s335
      %p344 = scmp.eq.s32.totalorder %s28, 1
      %p345 = por %p343, %p344
      %p346 = scmp.ne.s32.totalorder %s335, %s336
      %p347 = scmp.eq.s32.totalorder %s28, 0
      %p348 = por %p346, %p347
      %p349 = scmp.ne.s32.totalorder %s335, %s336
      %p350 = scmp.eq.s32.totalorder %s29, 1
      %p351 = por %p349, %p350
      %p353 = scmp.ne.s32.totalorder %s336, %s352
      %p354 = scmp.eq.s32.totalorder %s29, 0
      %p355 = por %p353, %p354
      %p356 = scmp.le.s32.totalorder 1, %s23
      %p357 = scmp.lt.s32.totalorder %s23, 3
      %p358 = pnand %p356, %p357
      %p359 = pneg %p358
      // Predicated region
      $region9: #{tpu_custom_call.1} parent=5 // pred_check
        _
      $region10: #{tpu_custom_call.1} parent=5 // pred_check_branch
        %361 = sbr.rel (%p358) target = $region12
      $region11: #{tpu_custom_call.1} parent=5 // pred_region
        %s362 = ssub.s32 %s23, 1
        // Predicated region
        $region13: #{tpu_custom_call.1} parent=11 // pred_check
          %p363 = pneg %p70
        $region14: #{tpu_custom_call.1} parent=11 // pred_check_branch
          %365 = sbr.rel (%p363) target = $region16
        $region15: #{tpu_custom_call.1} parent=11 // pred_region
          %s367 = ssub.s32 32768, 32768
          %368 = vsyncadd [#allocation4], %s367
          %s369 = sshll.u32 [#allocation3], 4
          %s370 = int_to_ptr.vmem [resolvable:$true] %s369
          %375 = dma.hbm_to_vmem [thread:$0]  %s1, 32768, %s370, [#allocation4], 256, 256, 16
        $region16: #{tpu_custom_call.1} parent=11 // pred_fallthru
          _
        // Predicated region
        $region17: #{tpu_custom_call.1} parent=11 // pred_check
          %p376 = pneg %p91
        $region18: #{tpu_custom_call.1} parent=11 // pred_check_branch
          %378 = sbr.rel (%p376) target = $region20
        $region19: #{tpu_custom_call.1} parent=11 // pred_region
          _
        $region20: #{tpu_custom_call.1} parent=11 // pred_fallthru
          _
        // Predicated region
        $region21: #{tpu_custom_call.1} parent=11 // pred_check
          %p379 = pneg %p112
        $region22: #{tpu_custom_call.1} parent=11 // pred_check_branch
          %381 = sbr.rel (%p379) target = $region24
        $region23: #{tpu_custom_call.1} parent=11 // pred_region
          _
        $region24: #{tpu_custom_call.1} parent=11 // pred_fallthru
          _
        // Predicated region
        $region25: #{tpu_custom_call.1} parent=11 // pred_check
          %p382 = pneg %p133
        $region26: #{tpu_custom_call.1} parent=11 // pred_check_branch
          %384 = sbr.rel (%p382) target = $region28
        $region27: #{tpu_custom_call.1} parent=11 // pred_region
          _
        $region28: #{tpu_custom_call.1} parent=11 // pred_fallthru
          _
        // Predicated region
        $region29: #{tpu_custom_call.1} parent=11 // pred_check
          %p385 = pneg %p154
        $region30: #{tpu_custom_call.1} parent=11 // pred_check_branch
          %387 = sbr.rel (%p385) target = $region32
        $region31: #{tpu_custom_call.1} parent=11 // pred_region
          _
        $region32: #{tpu_custom_call.1} parent=11 // pred_fallthru
          _
        // Predicated region
        $region33: #{tpu_custom_call.1} parent=11 // pred_check
          %p388 = pneg %p175
        $region34: #{tpu_custom_call.1} parent=11 // pred_check_branch
          %390 = sbr.rel (%p388) target = $region36
        $region35: #{tpu_custom_call.1} parent=11 // pred_region
          _
        $region36: #{tpu_custom_call.1} parent=11 // pred_fallthru
          _
        // Predicated region
        $region37: #{tpu_custom_call.1} parent=11 // pred_check
          %p391 = pneg %p196
        $region38: #{tpu_custom_call.1} parent=11 // pred_check_branch
          %393 = sbr.rel (%p391) target = $region40
        $region39: #{tpu_custom_call.1} parent=11 // pred_region
          _
        $region40: #{tpu_custom_call.1} parent=11 // pred_fallthru
          _
        // Predicated region
        $region41: #{tpu_custom_call.1} parent=11 // pred_check
          %p394 = pneg %p217
        $region42: #{tpu_custom_call.1} parent=11 // pred_check_branch
          %396 = sbr.rel (%p394) target = $region44
        $region43: #{tpu_custom_call.1} parent=11 // pred_region
          _
        $region44: #{tpu_custom_call.1} parent=11 // pred_fallthru
          _
        // Predicated region
        $region45: #{tpu_custom_call.1} parent=11 // pred_check
          %p397 = pneg %p238
        $region46: #{tpu_custom_call.1} parent=11 // pred_check_branch
          %399 = sbr.rel (%p397) target = $region48
        $region47: #{tpu_custom_call.1} parent=11 // pred_region
          _
        $region48: #{tpu_custom_call.1} parent=11 // pred_fallthru
          _
        // Predicated region
        $region49: #{tpu_custom_call.1} parent=11 // pred_check
          %p400 = pneg %p259
        $region50: #{tpu_custom_call.1} parent=11 // pred_check_branch
          %402 = sbr.rel (%p400) target = $region52
        $region51: #{tpu_custom_call.1} parent=11 // pred_region
          _
        $region52: #{tpu_custom_call.1} parent=11 // pred_fallthru
          _
        // Predicated region
        $region53: #{tpu_custom_call.1} parent=11 // pred_check
          %p403 = pneg %p280
        $region54: #{tpu_custom_call.1} parent=11 // pred_check_branch
          %405 = sbr.rel (%p403) target = $region56
        $region55: #{tpu_custom_call.1} parent=11 // pred_region
          _
        $region56: #{tpu_custom_call.1} parent=11 // pred_fallthru
          _
        // Predicated region
        $region57: #{tpu_custom_call.1} parent=11 // pred_check
          %p406 = pneg %p301
        $region58: #{tpu_custom_call.1} parent=11 // pred_check_branch
          %408 = sbr.rel (%p406) target = $region60
        $region59: #{tpu_custom_call.1} parent=11 // pred_region
          _
        $region60: #{tpu_custom_call.1} parent=11 // pred_fallthru
          _
        // Predicated region
        $region61: #{tpu_custom_call.1} parent=11 // pred_check
          %p409 = pneg %p322
        $region62: #{tpu_custom_call.1} parent=11 // pred_check_branch
          %411 = sbr.rel (%p409) target = $region64
        $region63: #{tpu_custom_call.1} parent=11 // pred_region
          _
        $region64: #{tpu_custom_call.1} parent=11 // pred_fallthru
          _
      $region12: #{tpu_custom_call.1} parent=5 // pred_fallthru
        _
      %p412 = scmp.lt.s32.totalorder %s23, 2
      // Predicated region
      $region65: #{tpu_custom_call.1} parent=5 // pred_check
        %p413 = pneg %p412
      $region66: #{tpu_custom_call.1} parent=5 // pred_check_branch
        %415 = sbr.rel (%p413) target = $region68
      $region67: #{tpu_custom_call.1} parent=5 // pred_region
        // Predicated region
        $region69: #{tpu_custom_call.1} parent=67 // pred_check
          %p416 = pneg %p43
        $region70: #{tpu_custom_call.1} parent=67 // pred_check_branch
          %418 = sbr.rel (%p416) target = $region72
        $region71: #{tpu_custom_call.1} parent=67 // pred_region
          %p419 = scmp.lt.s32.totalorder %s23, 1
          %s420 = scalar_select %p419, %s23, 1
          %s421 = smul.addr %s420, 32
          %s422 = smul.addr %s421, 8
          %s423 = scalar_lea.vmem %s0, %s422
        $region72: #{tpu_custom_call.1} parent=67 // pred_fallthru
          _
      $region68: #{tpu_custom_call.1} parent=5 // pred_fallthru
        _
      %p424 = scmp.le.s32.totalorder 1, %s23
      %p425 = scmp.lt.s32.totalorder %s23, 3
      %p426 = pnand %p424, %p425
      %p427 = pneg %p426
      // Predicated region
      $region73: #{tpu_custom_call.1} parent=5 // pred_check
        _
      $region74: #{tpu_custom_call.1} parent=5 // pred_check_branch
        %429 = sbr.rel (%p426) target = $region76
      $region75: #{tpu_custom_call.1} parent=5 // pred_region
        %s430 = ssub.s32 %s23, 1
        // Predicated region
        $region77: #{tpu_custom_call.1} parent=75 // pred_check
          %p431 = pneg %p70
        $region78: #{tpu_custom_call.1} parent=75 // pred_check_branch
          %433 = sbr.rel (%p431) target = $region80
        $region79: #{tpu_custom_call.1} parent=75 // pred_region
          %434 = dma.done [#allocation4], 32768
        $region80: #{tpu_custom_call.1} parent=75 // pred_fallthru
          _
        %p435 = scmp.lt.s32.totalorder %s28, 1
        %s436 = scalar_select %p435, %s28, 1
        %s437 = smul.addr %s436, 32
        %s438 = smul.addr %s437, 8
        %s439 = scalar_lea.vmem %s0, %s438
        %p440 = pneg %p49
        %p441 = pneg %p46
        %p442 = pneg %p70
        %p443 = pneg %p67
        %p444 = pneg %p91
        %p445 = pneg %p88
        %p446 = pneg %p112
        %p447 = pneg %p109
        %p448 = pneg %p133
        %p449 = pneg %p130
        %p450 = pneg %p154
        %p451 = pneg %p151
        %p452 = pneg %p175
        %p453 = pneg %p172
        %p454 = pneg %p196
        %p455 = pneg %p193
        %p456 = pneg %p217
        %p457 = pneg %p214
        %p458 = pneg %p238
        %p459 = pneg %p235
        %p460 = pneg %p259
        %p461 = pneg %p256
        %p462 = pneg %p280
        %p463 = pneg %p277
        %p464 = pneg %p301
        %p465 = pneg %p298
        %p466 = pneg %p322
        %p467 = pneg %p319
        %p468 = pneg %p348
        %p469 = pneg %p345
        %p470 = scmp.lt.s32.totalorder %s28, 1
        %s471 = scalar_select %p470, %s28, 1
        %s472 = scalar_lea.vmem %s14, %s471
        %p473 = scmp.lt.s32.totalorder %s28, 1
        %s474 = scalar_select %p473, %s28, 1
        %s475 = smul.addr %s474, 32
        %s476 = smul.addr %s475, 8
        %s477 = scalar_lea.vmem %s0, %s476
        %p478 = scmp.lt.s32.totalorder %s28, 1
        %s479 = scalar_select %p478, %s28, 1
        %s480 = scalar_lea.vmem %s14, %s479
        %v481 = vld [vmem:[%s477] sm:$0xff]
        %v482 = vld [vmem:[%s477 + $0x8] sm:$0xff]
        %v483 = vld [vmem:[%s477 + $0x10] sm:$0xff]
        %v484 = vld [vmem:[%s477 + $0x18] sm:$0xff]
        %v485 = vld [vmem:[%s477 + $0x20] sm:$0xff]
        %v486 = vld [vmem:[%s477 + $0x28] sm:$0xff]
        %v487 = vld [vmem:[%s477 + $0x30] sm:$0xff]
        %v488 = vld [vmem:[%s477 + $0x38] sm:$0xff]
        %v489 = vld [vmem:[%s477 + $0x40] sm:$0xff]
        %v490 = vld [vmem:[%s477 + $0x48] sm:$0xff]
        %v491 = vld [vmem:[%s477 + $0x50] sm:$0xff]
        %v492 = vld [vmem:[%s477 + $0x58] sm:$0xff]
        %v493 = vld [vmem:[%s477 + $0x60] sm:$0xff]
        %v494 = vld [vmem:[%s477 + $0x68] sm:$0xff]
        %v495 = vld [vmem:[%s477 + $0x70] sm:$0xff]
        %v496 = vld [vmem:[%s477 + $0x78] sm:$0xff]
        %v497 = vld [vmem:[%s477 + $0x80] sm:$0xff]
        %v498 = vld [vmem:[%s477 + $0x88] sm:$0xff]
        %v499 = vld [vmem:[%s477 + $0x90] sm:$0xff]
        %v500 = vld [vmem:[%s477 + $0x98] sm:$0xff]
        %v501 = vld [vmem:[%s477 + $0xa0] sm:$0xff]
        %v502 = vld [vmem:[%s477 + $0xa8] sm:$0xff]
        %v503 = vld [vmem:[%s477 + $0xb0] sm:$0xff]
        %v504 = vld [vmem:[%s477 + $0xb8] sm:$0xff]
        %v505 = vld [vmem:[%s477 + $0xc0] sm:$0xff]
        %v506 = vld [vmem:[%s477 + $0xc8] sm:$0xff]
        %v507 = vld [vmem:[%s477 + $0xd0] sm:$0xff]
        %v508 = vld [vmem:[%s477 + $0xd8] sm:$0xff]
        %v509 = vld [vmem:[%s477 + $0xe0] sm:$0xff]
        %v510 = vld [vmem:[%s477 + $0xe8] sm:$0xff]
        %v511 = vld [vmem:[%s477 + $0xf0] sm:$0xff]
        %v512 = vld [vmem:[%s477 + $0xf8] sm:$0xff]
        %v513 = vld [vmem:[#allocation3] sm:$0xff]
        %v514 = vld [vmem:[#allocation3 + $0x8] sm:$0xff]
        %v515 = vld [vmem:[#allocation3 + $0x10] sm:$0xff]
        %v516 = vld [vmem:[#allocation3 + $0x18] sm:$0xff]
        %v517 = vld [vmem:[#allocation3 + $0x20] sm:$0xff]
        %v518 = vld [vmem:[#allocation3 + $0x28] sm:$0xff]
        %v519 = vld [vmem:[#allocation3 + $0x30] sm:$0xff]
        %v520 = vld [vmem:[#allocation3 + $0x38] sm:$0xff]
        %v521 = vld [vmem:[#allocation3 + $0x40] sm:$0xff]
        %v522 = vld [vmem:[#allocation3 + $0x48] sm:$0xff]
        %v523 = vld [vmem:[#allocation3 + $0x50] sm:$0xff]
        %v524 = vld [vmem:[#allocation3 + $0x58] sm:$0xff]
        %v525 = vld [vmem:[#allocation3 + $0x60] sm:$0xff]
        %v526 = vld [vmem:[#allocation3 + $0x68] sm:$0xff]
        %v527 = vld [vmem:[#allocation3 + $0x70] sm:$0xff]
        %v528 = vld [vmem:[#allocation3 + $0x78] sm:$0xff]
        %529 = vmatprep.subr.mxu0 0.0
        %530 = vmatpush1.msra.mxu0 %v496
        %531 = vmatprep.subr.mxu0 0.0
        %532 = vmatpush1.msra.mxu0 %v495
        %533 = vmatprep.subr.mxu0 0.0
        %534 = vmatpush1.msra.mxu0 %v494
        %535 = vmatprep.subr.mxu0 0.0
        %536 = vmatpush1.msra.mxu0 %v493
        %537 = vmatprep.subr.mxu0 0.0
        %538 = vmatpush1.msra.mxu0 %v492
        %539 = vmatprep.subr.mxu0 0.0
        %540 = vmatpush1.msra.mxu0 %v491
        %541 = vmatprep.subr.mxu0 0.0
        %542 = vmatpush1.msra.mxu0 %v490
        %543 = vmatprep.subr.mxu0 0.0
        %544 = vmatpush1.msra.mxu0 %v489
        %545 = vmatprep.subr.mxu0 0.0
        %546 = vmatpush1.msra.mxu0 %v488
        %547 = vmatprep.subr.mxu0 0.0
        %548 = vmatpush1.msra.mxu0 %v487
        %549 = vmatprep.subr.mxu0 0.0
        %550 = vmatpush1.msra.mxu0 %v486
        %551 = vmatprep.subr.mxu0 0.0
        %552 = vmatpush1.msra.mxu0 %v485
        %553 = vmatprep.subr.mxu0 0.0
        %554 = vmatpush1.msra.mxu0 %v484
        %555 = vmatprep.subr.mxu0 0.0
        %556 = vmatpush1.msra.mxu0 %v483
        %557 = vmatprep.subr.mxu0 0.0
        %558 = vmatpush1.msra.mxu0 %v482
        %559 = vmatprep.subr.mxu0 0.0
        %560 = vmatpush1.msra.mxu0 %v481
        %561 = vmatprep.subr.mxu0 0.0
        %562 = vmatpush2.msra.mxu0 %v512
        %563 = vmatprep.subr.mxu0 0.0
        %564 = vmatpush2.msra.mxu0 %v511
        %565 = vmatprep.subr.mxu0 0.0
        %566 = vmatpush2.msra.mxu0 %v510
        %567 = vmatprep.subr.mxu0 0.0
        %568 = vmatpush2.msra.mxu0 %v509
        %569 = vmatprep.subr.mxu0 0.0
        %570 = vmatpush2.msra.mxu0 %v508
        %571 = vmatprep.subr.mxu0 0.0
        %572 = vmatpush2.msra.mxu0 %v507
        %573 = vmatprep.subr.mxu0 0.0
        %574 = vmatpush2.msra.mxu0 %v506
        %575 = vmatprep.subr.mxu0 0.0
        %576 = vmatpush2.msra.mxu0 %v505
        %577 = vmatprep.subr.mxu0 0.0
        %578 = vmatpush2.msra.mxu0 %v504
        %579 = vmatprep.subr.mxu0 0.0
        %580 = vmatpush2.msra.mxu0 %v503
        %581 = vmatprep.subr.mxu0 0.0
        %582 = vmatpush2.msra.mxu0 %v502
        %583 = vmatprep.subr.mxu0 0.0
        %584 = vmatpush2.msra.mxu0 %v501
        %585 = vmatprep.subr.mxu0 0.0
        %586 = vmatpush2.msra.mxu0 %v500
        %587 = vmatprep.subr.mxu0 0.0
        %588 = vmatpush2.msra.mxu0 %v499
        %589 = vmatprep.subr.mxu0 0.0
        %590 = vmatpush2.msra.mxu0 %v498
        %591 = vmatprep.subr.mxu0 0.0
        %592 = vmatpush2.msra.mxu0 %v497
        %593 = vmatprep.mubr.f32.mxu0 %v514
        %594 = vmatmul.mubr.f32.gmra.mxu0 %v513
        %v595 = vpop.f32.mrf.mxu0
        %v596 = vadd.f32 0.0, %v595
        %v597 = vpop.f32.mrf.mxu0
        %598 = vmatprep.mubr.f32.mxu0 %v516
        %599 = vmatmul.mubr.f32.gmra.mxu0 %v515
        %v600 = vpop.f32.mrf.mxu0
        %v601 = vadd.f32 0.0, %v600
        %v602 = vpop.f32.mrf.mxu0
        %603 = vmatprep.mubr.f32.mxu0 %v518
        %604 = vmatmul.mubr.f32.gmra.mxu0 %v517
        %v605 = vpop.f32.mrf.mxu0
        %v606 = vadd.f32 0.0, %v605
        %v607 = vpop.f32.mrf.mxu0
        %608 = vmatprep.mubr.f32.mxu0 %v520
        %609 = vmatmul.mubr.f32.gmra.mxu0 %v519
        %v610 = vpop.f32.mrf.mxu0
        %v611 = vadd.f32 0.0, %v610
        %v612 = vpop.f32.mrf.mxu0
        %613 = vmatprep.mubr.f32.mxu0 %v522
        %614 = vmatmul.mubr.f32.gmra.mxu0 %v521
        %v615 = vpop.f32.mrf.mxu0
        %v616 = vadd.f32 0.0, %v615
        %v617 = vpop.f32.mrf.mxu0
        %618 = vmatprep.mubr.f32.mxu0 %v524
        %619 = vmatmul.mubr.f32.gmra.mxu0 %v523
        %v620 = vpop.f32.mrf.mxu0
        %v621 = vadd.f32 0.0, %v620
        %v622 = vpop.f32.mrf.mxu0
        %623 = vmatprep.mubr.f32.mxu0 %v526
        %624 = vmatmul.mubr.f32.gmra.mxu0 %v525
        %v625 = vpop.f32.mrf.mxu0
        %v626 = vadd.f32 0.0, %v625
        %v627 = vpop.f32.mrf.mxu0
        %628 = vmatprep.mubr.f32.mxu0 %v528
        %629 = vmatmul.mubr.f32.gmra.mxu0 %v527
        %v630 = vpop.f32.mrf.mxu0
        %v631 = vadd.f32 0.0, %v630
        %v632 = vpop.f32.mrf.mxu0
        %633 = vdwg.mxu0
        %v634 = vld [vmem:[%s2] sm:$0x1f]
        %s635 = scalar_lea.vmem [#allocation3], 128
        %v636 = vld [vmem:[%s635] sm:$0xff]
        %v637 = vld [vmem:[%s635 + $0x8] sm:$0xff]
        %v638 = vld [vmem:[%s635 + $0x10] sm:$0xff]
        %v639 = vld [vmem:[%s635 + $0x18] sm:$0xff]
        %v640 = vld [vmem:[%s635 + $0x20] sm:$0xff]
        %v641 = vld [vmem:[%s635 + $0x28] sm:$0xff]
        %v642 = vld [vmem:[%s635 + $0x30] sm:$0xff]
        %v643 = vld [vmem:[%s635 + $0x38] sm:$0xff]
        %v644 = vld [vmem:[%s635 + $0x40] sm:$0xff]
        %v645 = vld [vmem:[%s635 + $0x48] sm:$0xff]
        %v646 = vld [vmem:[%s635 + $0x50] sm:$0xff]
        %v647 = vld [vmem:[%s635 + $0x58] sm:$0xff]
        %v648 = vld [vmem:[%s635 + $0x60] sm:$0xff]
        %v649 = vld [vmem:[%s635 + $0x68] sm:$0xff]
        %v650 = vld [vmem:[%s635 + $0x70] sm:$0xff]
        %v651 = vld [vmem:[%s635 + $0x78] sm:$0xff]
        %652 = vmatprep.subr.mxu0 0.0
        %653 = vmatpush1.msra.mxu0 %v496
        %654 = vmatprep.subr.mxu0 0.0
        %655 = vmatpush1.msra.mxu0 %v495
        %656 = vmatprep.subr.mxu0 0.0
        %657 = vmatpush1.msra.mxu0 %v494
        %658 = vmatprep.subr.mxu0 0.0
        %659 = vmatpush1.msra.mxu0 %v493
        %660 = vmatprep.subr.mxu0 0.0
        %661 = vmatpush1.msra.mxu0 %v492
        %662 = vmatprep.subr.mxu0 0.0
        %663 = vmatpush1.msra.mxu0 %v491
        %664 = vmatprep.subr.mxu0 0.0
        %665 = vmatpush1.msra.mxu0 %v490
        %666 = vmatprep.subr.mxu0 0.0
        %667 = vmatpush1.msra.mxu0 %v489
        %668 = vmatprep.subr.mxu0 0.0
        %669 = vmatpush1.msra.mxu0 %v488
        %670 = vmatprep.subr.mxu0 0.0
        %671 = vmatpush1.msra.mxu0 %v487
        %672 = vmatprep.subr.mxu0 0.0
        %673 = vmatpush1.msra.mxu0 %v486
        %674 = vmatprep.subr.mxu0 0.0
        %675 = vmatpush1.msra.mxu0 %v485
        %676 = vmatprep.subr.mxu0 0.0
        %677 = vmatpush1.msra.mxu0 %v484
        %678 = vmatprep.subr.mxu0 0.0
        %679 = vmatpush1.msra.mxu0 %v483
        %680 = vmatprep.subr.mxu0 0.0
        %681 = vmatpush1.msra.mxu0 %v482
        %682 = vmatprep.subr.mxu0 0.0
        %683 = vmatpush1.msra.mxu0 %v481
        %684 = vmatprep.subr.mxu0 0.0
        %685 = vmatpush2.msra.mxu0 %v512
        %686 = vmatprep.subr.mxu0 0.0
        %687 = vmatpush2.msra.mxu0 %v511
        %688 = vmatprep.subr.mxu0 0.0
        %689 = vmatpush2.msra.mxu0 %v510
        %690 = vmatprep.subr.mxu0 0.0
        %691 = vmatpush2.msra.mxu0 %v509
        %692 = vmatprep.subr.mxu0 0.0
        %693 = vmatpush2.msra.mxu0 %v508
        %694 = vmatprep.subr.mxu0 0.0
        %695 = vmatpush2.msra.mxu0 %v507
        %696 = vmatprep.subr.mxu0 0.0
        %697 = vmatpush2.msra.mxu0 %v506
        %698 = vmatprep.subr.mxu0 0.0
        %699 = vmatpush2.msra.mxu0 %v505
        %700 = vmatprep.subr.mxu0 0.0
        %701 = vmatpush2.msra.mxu0 %v504
        %702 = vmatprep.subr.mxu0 0.0
        %703 = vmatpush2.msra.mxu0 %v503
        %704 = vmatprep.subr.mxu0 0.0
        %705 = vmatpush2.msra.mxu0 %v502
        %706 = vmatprep.subr.mxu0 0.0
        %707 = vmatpush2.msra.mxu0 %v501
        %708 = vmatprep.subr.mxu0 0.0
        %709 = vmatpush2.msra.mxu0 %v500
        %710 = vmatprep.subr.mxu0 0.0
        %711 = vmatpush2.msra.mxu0 %v499
        %712 = vmatprep.subr.mxu0 0.0
        %713 = vmatpush2.msra.mxu0 %v498
        %714 = vmatprep.subr.mxu0 0.0
        %715 = vmatpush2.msra.mxu0 %v497
        %716 = vmatprep.mubr.f32.mxu0 %v637
        %717 = vmatmul.mubr.f32.gmra.mxu0 %v636
        %v718 = vpop.f32.mrf.mxu0
        %v719 = vadd.f32 0.0, %v718
        %v720 = vpop.f32.mrf.mxu0
        %721 = vmatprep.mubr.f32.mxu0 %v639
        %722 = vmatmul.mubr.f32.gmra.mxu0 %v638
        %v723 = vpop.f32.mrf.mxu0
        %v724 = vadd.f32 0.0, %v723
        %v725 = vpop.f32.mrf.mxu0
        %726 = vmatprep.mubr.f32.mxu0 %v641
        %727 = vmatmul.mubr.f32.gmra.mxu0 %v640
        %v728 = vpop.f32.mrf.mxu0
        %v729 = vadd.f32 0.0, %v728
        %v730 = vpop.f32.mrf.mxu0
        %731 = vmatprep.mubr.f32.mxu0 %v643
        %732 = vmatmul.mubr.f32.gmra.mxu0 %v642
        %v733 = vpop.f32.mrf.mxu0
        %v734 = vadd.f32 0.0, %v733
        %v735 = vpop.f32.mrf.mxu0
        %736 = vmatprep.mubr.f32.mxu0 %v645
        %737 = vmatmul.mubr.f32.gmra.mxu0 %v644
        %v738 = vpop.f32.mrf.mxu0
        %v739 = vadd.f32 0.0, %v738
        %v740 = vpop.f32.mrf.mxu0
        %741 = vmatprep.mubr.f32.mxu0 %v647
        %742 = vmatmul.mubr.f32.gmra.mxu0 %v646
        %v743 = vpop.f32.mrf.mxu0
        %v744 = vadd.f32 0.0, %v743
        %v745 = vpop.f32.mrf.mxu0
        %746 = vmatprep.mubr.f32.mxu0 %v649
        %747 = vmatmul.mubr.f32.gmra.mxu0 %v648
        %v748 = vpop.f32.mrf.mxu0
        %v749 = vadd.f32 0.0, %v748
        %v750 = vpop.f32.mrf.mxu0
        %751 = vmatprep.mubr.f32.mxu0 %v651
        %752 = vmatmul.mubr.f32.gmra.mxu0 %v650
        %v753 = vpop.f32.mrf.mxu0
        %v754 = vadd.f32 0.0, %v753
        %v755 = vpop.f32.mrf.mxu0
        %756 = vdwg.mxu0
        %s757 = scalar_lea.vmem %s2, 8
        %v758 = vld [vmem:[%s757] sm:$0x1f]
        %vm759 = vcmask 39936
        %v761 = vsel %vm759, %v719, 0
        %v764 = vsel %vm759, %v724, 0
        %v767 = vsel %vm759, %v729, 0
        %v770 = vsel %vm759, %v734, 0
        %v773 = vsel %vm759, %v739, 0
        %v776 = vsel %vm759, %v744, 0
        %v779 = vsel %vm759, %v749, 0
        %v782 = vsel %vm759, %v754, 0
        %vm784 = vcmask 1044480
        %v786 = vsel %vm784, %v758, 0
        %788 = vmatprep.subr.mxu0 0.0
        %789 = vmatpush1.msra.mxu0 0.0
        %790 = vmatprep.subr.mxu0 0.0
        %791 = vmatpush1.msra.mxu0 0.0
        %792 = vmatprep.subr.mxu0 0.0
        %793 = vmatpush1.msra.mxu0 0.0
        %794 = vmatprep.subr.mxu0 0.0
        %795 = vmatpush1.msra.mxu0 0.0
        %796 = vmatprep.subr.mxu0 0.0
        %797 = vmatpush1.msra.mxu0 0.0
        %798 = vmatprep.subr.mxu0 0.0
        %799 = vmatpush1.msra.mxu0 0.0
        %800 = vmatprep.subr.mxu0 0.0
        %801 = vmatpush1.msra.mxu0 0.0
        %802 = vmatprep.subr.mxu0 0.0
        %803 = vmatpush1.msra.mxu0 0.0
        %804 = vmatprep.subr.mxu0 0.0
        %805 = vmatpush1.msra.mxu0 0.0
        %806 = vmatprep.subr.mxu0 0.0
        %807 = vmatpush1.msra.mxu0 0.0
        %808 = vmatprep.subr.mxu0 0.0
        %809 = vmatpush1.msra.mxu0 0.0
        %810 = vmatprep.subr.mxu0 0.0
        %811 = vmatpush1.msra.mxu0 0.0
        %812 = vmatprep.subr.mxu0 0.0
        %813 = vmatpush1.msra.mxu0 0.0
        %814 = vmatprep.subr.mxu0 0.0
        %815 = vmatpush1.msra.mxu0 0.0
        %816 = vmatprep.subr.mxu0 0.0
        %817 = vmatpush1.msra.mxu0 0.0
        %818 = vmatprep.subr.mxu0 0.0
        %819 = vmatpush1.msra.mxu0 %v786
        %820 = vmatprep.subr.mxu0 0.0
        %821 = vmatpush2.msra.mxu0 0.0
        %822 = vmatprep.subr.mxu0 0.0
        %823 = vmatpush2.msra.mxu0 0.0
        %824 = vmatprep.subr.mxu0 0.0
        %825 = vmatpush2.msra.mxu0 0.0
        %826 = vmatprep.subr.mxu0 0.0
        %827 = vmatpush2.msra.mxu0 0.0
        %828 = vmatprep.subr.mxu0 0.0
        %829 = vmatpush2.msra.mxu0 0.0
        %830 = vmatprep.subr.mxu0 0.0
        %831 = vmatpush2.msra.mxu0 0.0
        %832 = vmatprep.subr.mxu0 0.0
        %833 = vmatpush2.msra.mxu0 0.0
        %834 = vmatprep.subr.mxu0 0.0
        %835 = vmatpush2.msra.mxu0 0.0
        %836 = vmatprep.subr.mxu0 0.0
        %837 = vmatpush2.msra.mxu0 0.0
        %838 = vmatprep.subr.mxu0 0.0
        %839 = vmatpush2.msra.mxu0 0.0
        %840 = vmatprep.subr.mxu0 0.0
        %841 = vmatpush2.msra.mxu0 0.0
        %842 = vmatprep.subr.mxu0 0.0
        %843 = vmatpush2.msra.mxu0 0.0
        %844 = vmatprep.subr.mxu0 0.0
        %845 = vmatpush2.msra.mxu0 0.0
        %846 = vmatprep.subr.mxu0 0.0
        %847 = vmatpush2.msra.mxu0 0.0
        %848 = vmatprep.subr.mxu0 0.0
        %849 = vmatpush2.msra.mxu0 0.0
        %850 = vmatprep.subr.mxu0 0.0
        %851 = vmatpush2.msra.mxu0 0.0
        %852 = vmatprep.mubr.f32.mxu0 0.0
        %853 = vmatmul.mubr.f32.gmra.mxu0 %v761
        %v854 = vpop.f32.mrf.mxu0
        %v855 = vadd.f32 0.0, %v854
        %v856 = vpop.f32.mrf.mxu0
        %857 = vmatprep.mubr.f32.mxu0 0.0
        %858 = vmatmul.mubr.f32.gmra.mxu0 %v764
        %v859 = vpop.f32.mrf.mxu0
        %v860 = vadd.f32 0.0, %v859
        %v861 = vpop.f32.mrf.mxu0
        %862 = vmatprep.mubr.f32.mxu0 0.0
        %863 = vmatmul.mubr.f32.gmra.mxu0 %v767
        %v864 = vpop.f32.mrf.mxu0
        %v865 = vadd.f32 0.0, %v864
        %v866 = vpop.f32.mrf.mxu0
        %867 = vmatprep.mubr.f32.mxu0 0.0
        %868 = vmatmul.mubr.f32.gmra.mxu0 %v770
        %v869 = vpop.f32.mrf.mxu0
        %v870 = vadd.f32 0.0, %v869
        %v871 = vpop.f32.mrf.mxu0
        %872 = vmatprep.mubr.f32.mxu0 0.0
        %873 = vmatmul.mubr.f32.gmra.mxu0 %v773
        %v874 = vpop.f32.mrf.mxu0
        %v875 = vadd.f32 0.0, %v874
        %v876 = vpop.f32.mrf.mxu0
        %877 = vmatprep.mubr.f32.mxu0 0.0
        %878 = vmatmul.mubr.f32.gmra.mxu0 %v776
        %v879 = vpop.f32.mrf.mxu0
        %v880 = vadd.f32 0.0, %v879
        %v881 = vpop.f32.mrf.mxu0
        %882 = vmatprep.mubr.f32.mxu0 0.0
        %883 = vmatmul.mubr.f32.gmra.mxu0 %v779
        %v884 = vpop.f32.mrf.mxu0
        %v885 = vadd.f32 0.0, %v884
        %v886 = vpop.f32.mrf.mxu0
        %887 = vmatprep.mubr.f32.mxu0 0.0
        %888 = vmatmul.mubr.f32.gmra.mxu0 %v782
        %v889 = vpop.f32.mrf.mxu0
        %v890 = vadd.f32 0.0, %v889
        %v891 = vpop.f32.mrf.mxu0
        %892 = vdwg.mxu0
        %v894 = vsel %vm759, %v596, 0
        %v897 = vsel %vm759, %v601, 0
        %v900 = vsel %vm759, %v606, 0
        %v903 = vsel %vm759, %v611, 0
        %v906 = vsel %vm759, %v616, 0
        %v909 = vsel %vm759, %v621, 0
        %v912 = vsel %vm759, %v626, 0
        %v915 = vsel %vm759, %v631, 0
        %v918 = vsel %vm784, %v634, 0
        %920 = vmatprep.subr.mxu0 0.0
        %921 = vmatpush1.msra.mxu0 0.0
        %922 = vmatprep.subr.mxu0 0.0
        %923 = vmatpush1.msra.mxu0 0.0
        %924 = vmatprep.subr.mxu0 0.0
        %925 = vmatpush1.msra.mxu0 0.0
        %926 = vmatprep.subr.mxu0 0.0
        %927 = vmatpush1.msra.mxu0 0.0
        %928 = vmatprep.subr.mxu0 0.0
        %929 = vmatpush1.msra.mxu0 0.0
        %930 = vmatprep.subr.mxu0 0.0
        %931 = vmatpush1.msra.mxu0 0.0
        %932 = vmatprep.subr.mxu0 0.0
        %933 = vmatpush1.msra.mxu0 0.0
        %934 = vmatprep.subr.mxu0 0.0
        %935 = vmatpush1.msra.mxu0 0.0
        %936 = vmatprep.subr.mxu0 0.0
        %937 = vmatpush1.msra.mxu0 0.0
        %938 = vmatprep.subr.mxu0 0.0
        %939 = vmatpush1.msra.mxu0 0.0
        %940 = vmatprep.subr.mxu0 0.0
        %941 = vmatpush1.msra.mxu0 0.0
        %942 = vmatprep.subr.mxu0 0.0
        %943 = vmatpush1.msra.mxu0 0.0
        %944 = vmatprep.subr.mxu0 0.0
        %945 = vmatpush1.msra.mxu0 0.0
        %946 = vmatprep.subr.mxu0 0.0
        %947 = vmatpush1.msra.mxu0 0.0
        %948 = vmatprep.subr.mxu0 0.0
        %949 = vmatpush1.msra.mxu0 0.0
        %950 = vmatprep.subr.mxu0 0.0
        %951 = vmatpush1.msra.mxu0 %v918
        %952 = vmatprep.subr.mxu0 0.0
        %953 = vmatpush2.msra.mxu0 0.0
        %954 = vmatprep.subr.mxu0 0.0
        %955 = vmatpush2.msra.mxu0 0.0
        %956 = vmatprep.subr.mxu0 0.0
        %957 = vmatpush2.msra.mxu0 0.0
        %958 = vmatprep.subr.mxu0 0.0
        %959 = vmatpush2.msra.mxu0 0.0
        %960 = vmatprep.subr.mxu0 0.0
        %961 = vmatpush2.msra.mxu0 0.0
        %962 = vmatprep.subr.mxu0 0.0
        %963 = vmatpush2.msra.mxu0 0.0
        %964 = vmatprep.subr.mxu0 0.0
        %965 = vmatpush2.msra.mxu0 0.0
        %966 = vmatprep.subr.mxu0 0.0
        %967 = vmatpush2.msra.mxu0 0.0
        %968 = vmatprep.subr.mxu0 0.0
        %969 = vmatpush2.msra.mxu0 0.0
        %970 = vmatprep.subr.mxu0 0.0
        %971 = vmatpush2.msra.mxu0 0.0
        %972 = vmatprep.subr.mxu0 0.0
        %973 = vmatpush2.msra.mxu0 0.0
        %974 = vmatprep.subr.mxu0 0.0
        %975 = vmatpush2.msra.mxu0 0.0
        %976 = vmatprep.subr.mxu0 0.0
        %977 = vmatpush2.msra.mxu0 0.0
        %978 = vmatprep.subr.mxu0 0.0
        %979 = vmatpush2.msra.mxu0 0.0
        %980 = vmatprep.subr.mxu0 0.0
        %981 = vmatpush2.msra.mxu0 0.0
        %982 = vmatprep.subr.mxu0 0.0
        %983 = vmatpush2.msra.mxu0 0.0
        %984 = vmatprep.mubr.f32.mxu0 0.0
        %985 = vmatmul.mubr.f32.gmra.mxu0 %v894
        %v986 = vpop.f32.mrf.mxu0
        %v987 = vadd.f32 %v855, %v986
        %v988 = vpop.f32.mrf.mxu0
        %989 = vmatprep.mubr.f32.mxu0 0.0
        %990 = vmatmul.mubr.f32.gmra.mxu0 %v897
        %v991 = vpop.f32.mrf.mxu0
        %v992 = vadd.f32 %v860, %v991
        %v993 = vpop.f32.mrf.mxu0
        %994 = vmatprep.mubr.f32.mxu0 0.0
        %995 = vmatmul.mubr.f32.gmra.mxu0 %v900
        %v996 = vpop.f32.mrf.mxu0
        %v997 = vadd.f32 %v865, %v996
        %v998 = vpop.f32.mrf.mxu0
        %999 = vmatprep.mubr.f32.mxu0 0.0
        %1000 = vmatmul.mubr.f32.gmra.mxu0 %v903
        %v1001 = vpop.f32.mrf.mxu0
        %v1002 = vadd.f32 %v870, %v1001
        %v1003 = vpop.f32.mrf.mxu0
        %1004 = vmatprep.mubr.f32.mxu0 0.0
        %1005 = vmatmul.mubr.f32.gmra.mxu0 %v906
        %v1006 = vpop.f32.mrf.mxu0
        %v1007 = vadd.f32 %v875, %v1006
        %v1008 = vpop.f32.mrf.mxu0
        %1009 = vmatprep.mubr.f32.mxu0 0.0
        %1010 = vmatmul.mubr.f32.gmra.mxu0 %v909
        %v1011 = vpop.f32.mrf.mxu0
        %v1012 = vadd.f32 %v880, %v1011
        %v1013 = vpop.f32.mrf.mxu0
        %1014 = vmatprep.mubr.f32.mxu0 0.0
        %1015 = vmatmul.mubr.f32.gmra.mxu0 %v912
        %v1016 = vpop.f32.mrf.mxu0
        %v1017 = vadd.f32 %v885, %v1016
        %v1018 = vpop.f32.mrf.mxu0
        %1019 = vmatprep.mubr.f32.mxu0 0.0
        %1020 = vmatmul.mubr.f32.gmra.mxu0 %v915
        %v1021 = vpop.f32.mrf.mxu0
        %v1022 = vadd.f32 %v890, %v1021
        %v1023 = vpop.f32.mrf.mxu0
        %1024 = vdwg.mxu0
        %s1025 = scalar_lea.vmem [#allocation3], 256
        %v1026 = vld [vmem:[%s1025] sm:$0xff]
        %v1027 = vld [vmem:[%s1025 + $0x8] sm:$0xff]
        %v1028 = vld [vmem:[%s1025 + $0x10] sm:$0xff]
        %v1029 = vld [vmem:[%s1025 + $0x18] sm:$0xff]
        %v1030 = vld [vmem:[%s1025 + $0x20] sm:$0xff]
        %v1031 = vld [vmem:[%s1025 + $0x28] sm:$0xff]
        %v1032 = vld [vmem:[%s1025 + $0x30] sm:$0xff]
        %v1033 = vld [vmem:[%s1025 + $0x38] sm:$0xff]
        %v1034 = vld [vmem:[%s1025 + $0x40] sm:$0xff]
        %v1035 = vld [vmem:[%s1025 + $0x48] sm:$0xff]
        %v1036 = vld [vmem:[%s1025 + $0x50] sm:$0xff]
        %v1037 = vld [vmem:[%s1025 + $0x58] sm:$0xff]
        %v1038 = vld [vmem:[%s1025 + $0x60] sm:$0xff]
        %v1039 = vld [vmem:[%s1025 + $0x68] sm:$0xff]
        %v1040 = vld [vmem:[%s1025 + $0x70] sm:$0xff]
        %v1041 = vld [vmem:[%s1025 + $0x78] sm:$0xff]
        %1042 = vmatprep.subr.mxu0 0.0
        %1043 = vmatpush1.msra.mxu0 %v496
        %1044 = vmatprep.subr.mxu0 0.0
        %1045 = vmatpush1.msra.mxu0 %v495
        %1046 = vmatprep.subr.mxu0 0.0
        %1047 = vmatpush1.msra.mxu0 %v494
        %1048 = vmatprep.subr.mxu0 0.0
        %1049 = vmatpush1.msra.mxu0 %v493
        %1050 = vmatprep.subr.mxu0 0.0
        %1051 = vmatpush1.msra.mxu0 %v492
        %1052 = vmatprep.subr.mxu0 0.0
        %1053 = vmatpush1.msra.mxu0 %v491
        %1054 = vmatprep.subr.mxu0 0.0
        %1055 = vmatpush1.msra.mxu0 %v490
        %1056 = vmatprep.subr.mxu0 0.0
        %1057 = vmatpush1.msra.mxu0 %v489
        %1058 = vmatprep.subr.mxu0 0.0
        %1059 = vmatpush1.msra.mxu0 %v488
        %1060 = vmatprep.subr.mxu0 0.0
        %1061 = vmatpush1.msra.mxu0 %v487
        %1062 = vmatprep.subr.mxu0 0.0
        %1063 = vmatpush1.msra.mxu0 %v486
        %1064 = vmatprep.subr.mxu0 0.0
        %1065 = vmatpush1.msra.mxu0 %v485
        %1066 = vmatprep.subr.mxu0 0.0
        %1067 = vmatpush1.msra.mxu0 %v484
        %1068 = vmatprep.subr.mxu0 0.0
        %1069 = vmatpush1.msra.mxu0 %v483
        %1070 = vmatprep.subr.mxu0 0.0
        %1071 = vmatpush1.msra.mxu0 %v482
        %1072 = vmatprep.subr.mxu0 0.0
        %1073 = vmatpush1.msra.mxu0 %v481
        %1074 = vmatprep.subr.mxu0 0.0
        %1075 = vmatpush2.msra.mxu0 %v512
        %1076 = vmatprep.subr.mxu0 0.0
        %1077 = vmatpush2.msra.mxu0 %v511
        %1078 = vmatprep.subr.mxu0 0.0
        %1079 = vmatpush2.msra.mxu0 %v510
        %1080 = vmatprep.subr.mxu0 0.0
        %1081 = vmatpush2.msra.mxu0 %v509
        %1082 = vmatprep.subr.mxu0 0.0
        %1083 = vmatpush2.msra.mxu0 %v508
        %1084 = vmatprep.subr.mxu0 0.0
        %1085 = vmatpush2.msra.mxu0 %v507
        %1086 = vmatprep.subr.mxu0 0.0
        %1087 = vmatpush2.msra.mxu0 %v506
        %1088 = vmatprep.subr.mxu0 0.0
        %1089 = vmatpush2.msra.mxu0 %v505
        %1090 = vmatprep.subr.mxu0 0.0
        %1091 = vmatpush2.msra.mxu0 %v504
        %1092 = vmatprep.subr.mxu0 0.0
        %1093 = vmatpush2.msra.mxu0 %v503
        %1094 = vmatprep.subr.mxu0 0.0
        %1095 = vmatpush2.msra.mxu0 %v502
        %1096 = vmatprep.subr.mxu0 0.0
        %1097 = vmatpush2.msra.mxu0 %v501
        %1098 = vmatprep.subr.mxu0 0.0
        %1099 = vmatpush2.msra.mxu0 %v500
        %1100 = vmatprep.subr.mxu0 0.0
        %1101 = vmatpush2.msra.mxu0 %v499
        %1102 = vmatprep.subr.mxu0 0.0
        %1103 = vmatpush2.msra.mxu0 %v498
        %1104 = vmatprep.subr.mxu0 0.0
        %1105 = vmatpush2.msra.mxu0 %v497
        %1106 = vmatprep.mubr.f32.mxu0 %v1027
        %1107 = vmatmul.mubr.f32.gmra.mxu0 %v1026
        %v1108 = vpop.f32.mrf.mxu0
        %v1109 = vadd.f32 0.0, %v1108
        %v1110 = vpop.f32.mrf.mxu0
        %1111 = vmatprep.mubr.f32.mxu0 %v1029
        %1112 = vmatmul.mubr.f32.gmra.mxu0 %v1028
        %v1113 = vpop.f32.mrf.mxu0
        %v1114 = vadd.f32 0.0, %v1113
        %v1115 = vpop.f32.mrf.mxu0
        %1116 = vmatprep.mubr.f32.mxu0 %v1031
        %1117 = vmatmul.mubr.f32.gmra.mxu0 %v1030
        %v1118 = vpop.f32.mrf.mxu0
        %v1119 = vadd.f32 0.0, %v1118
        %v1120 = vpop.f32.mrf.mxu0
        %1121 = vmatprep.mubr.f32.mxu0 %v1033
        %1122 = vmatmul.mubr.f32.gmra.mxu0 %v1032
        %v1123 = vpop.f32.mrf.mxu0
        %v1124 = vadd.f32 0.0, %v1123
        %v1125 = vpop.f32.mrf.mxu0
        %1126 = vmatprep.mubr.f32.mxu0 %v1035
        %1127 = vmatmul.mubr.f32.gmra.mxu0 %v1034
        %v1128 = vpop.f32.mrf.mxu0
        %v1129 = vadd.f32 0.0, %v1128
        %v1130 = vpop.f32.mrf.mxu0
        %1131 = vmatprep.mubr.f32.mxu0 %v1037
        %1132 = vmatmul.mubr.f32.gmra.mxu0 %v1036
        %v1133 = vpop.f32.mrf.mxu0
        %v1134 = vadd.f32 0.0, %v1133
        %v1135 = vpop.f32.mrf.mxu0
        %1136 = vmatprep.mubr.f32.mxu0 %v1039
        %1137 = vmatmul.mubr.f32.gmra.mxu0 %v1038
        %v1138 = vpop.f32.mrf.mxu0
        %v1139 = vadd.f32 0.0, %v1138
        %v1140 = vpop.f32.mrf.mxu0
        %1141 = vmatprep.mubr.f32.mxu0 %v1041
        %1142 = vmatmul.mubr.f32.gmra.mxu0 %v1040
        %v1143 = vpop.f32.mrf.mxu0
        %v1144 = vadd.f32 0.0, %v1143
        %v1145 = vpop.f32.mrf.mxu0
        %1146 = vdwg.mxu0
        %s1147 = scalar_lea.vmem %s2, 16
        %v1148 = vld [vmem:[%s1147] sm:$0x1f]
        %v1150 = vsel %vm759, %v1109, 0
        %v1153 = vsel %vm759, %v1114, 0
        %v1156 = vsel %vm759, %v1119, 0
        %v1159 = vsel %vm759, %v1124, 0
        %v1162 = vsel %vm759, %v1129, 0
        %v1165 = vsel %vm759, %v1134, 0
        %v1168 = vsel %vm759, %v1139, 0
        %v1171 = vsel %vm759, %v1144, 0
        %v1174 = vsel %vm784, %v1148, 0
        %1176 = vmatprep.subr.mxu0 0.0
        %1177 = vmatpush1.msra.mxu0 0.0
        %1178 = vmatprep.subr.mxu0 0.0
        %1179 = vmatpush1.msra.mxu0 0.0
        %1180 = vmatprep.subr.mxu0 0.0
        %1181 = vmatpush1.msra.mxu0 0.0
        %1182 = vmatprep.subr.mxu0 0.0
        %1183 = vmatpush1.msra.mxu0 0.0
        %1184 = vmatprep.subr.mxu0 0.0
        %1185 = vmatpush1.msra.mxu0 0.0
        %1186 = vmatprep.subr.mxu0 0.0
        %1187 = vmatpush1.msra.mxu0 0.0
        %1188 = vmatprep.subr.mxu0 0.0
        %1189 = vmatpush1.msra.mxu0 0.0
        %1190 = vmatprep.subr.mxu0 0.0
        %1191 = vmatpush1.msra.mxu0 0.0
        %1192 = vmatprep.subr.mxu0 0.0
        %1193 = vmatpush1.msra.mxu0 0.0
        %1194 = vmatprep.subr.mxu0 0.0
        %1195 = vmatpush1.msra.mxu0 0.0
        %1196 = vmatprep.subr.mxu0 0.0
        %1197 = vmatpush1.msra.mxu0 0.0
        %1198 = vmatprep.subr.mxu0 0.0
        %1199 = vmatpush1.msra.mxu0 0.0
        %1200 = vmatprep.subr.mxu0 0.0
        %1201 = vmatpush1.msra.mxu0 0.0
        %1202 = vmatprep.subr.mxu0 0.0
        %1203 = vmatpush1.msra.mxu0 0.0
        %1204 = vmatprep.subr.mxu0 0.0
        %1205 = vmatpush1.msra.mxu0 0.0
        %1206 = vmatprep.subr.mxu0 0.0
        %1207 = vmatpush1.msra.mxu0 %v1174
        %1208 = vmatprep.subr.mxu0 0.0
        %1209 = vmatpush2.msra.mxu0 0.0
        %1210 = vmatprep.subr.mxu0 0.0
        %1211 = vmatpush2.msra.mxu0 0.0
        %1212 = vmatprep.subr.mxu0 0.0
        %1213 = vmatpush2.msra.mxu0 0.0
        %1214 = vmatprep.subr.mxu0 0.0
        %1215 = vmatpush2.msra.mxu0 0.0
        %1216 = vmatprep.subr.mxu0 0.0
        %1217 = vmatpush2.msra.mxu0 0.0
        %1218 = vmatprep.subr.mxu0 0.0
        %1219 = vmatpush2.msra.mxu0 0.0
        %1220 = vmatprep.subr.mxu0 0.0
        %1221 = vmatpush2.msra.mxu0 0.0
        %1222 = vmatprep.subr.mxu0 0.0
        %1223 = vmatpush2.msra.mxu0 0.0
        %1224 = vmatprep.subr.mxu0 0.0
        %1225 = vmatpush2.msra.mxu0 0.0
        %1226 = vmatprep.subr.mxu0 0.0
        %1227 = vmatpush2.msra.mxu0 0.0
        %1228 = vmatprep.subr.mxu0 0.0
        %1229 = vmatpush2.msra.mxu0 0.0
        %1230 = vmatprep.subr.mxu0 0.0
        %1231 = vmatpush2.msra.mxu0 0.0
        %1232 = vmatprep.subr.mxu0 0.0
        %1233 = vmatpush2.msra.mxu0 0.0
        %1234 = vmatprep.subr.mxu0 0.0
        %1235 = vmatpush2.msra.mxu0 0.0
        %1236 = vmatprep.subr.mxu0 0.0
        %1237 = vmatpush2.msra.mxu0 0.0
        %1238 = vmatprep.subr.mxu0 0.0
        %1239 = vmatpush2.msra.mxu0 0.0
        %1240 = vmatprep.mubr.f32.mxu0 0.0
        %1241 = vmatmul.mubr.f32.gmra.mxu0 %v1150
        %v1242 = vpop.f32.mrf.mxu0
        %v1243 = vadd.f32 0.0, %v1242
        %v1244 = vpop.f32.mrf.mxu0
        %1245 = vmatprep.mubr.f32.mxu0 0.0
        %1246 = vmatmul.mubr.f32.gmra.mxu0 %v1153
        %v1247 = vpop.f32.mrf.mxu0
        %v1248 = vadd.f32 0.0, %v1247
        %v1249 = vpop.f32.mrf.mxu0
        %1250 = vmatprep.mubr.f32.mxu0 0.0
        %1251 = vmatmul.mubr.f32.gmra.mxu0 %v1156
        %v1252 = vpop.f32.mrf.mxu0
        %v1253 = vadd.f32 0.0, %v1252
        %v1254 = vpop.f32.mrf.mxu0
        %1255 = vmatprep.mubr.f32.mxu0 0.0
        %1256 = vmatmul.mubr.f32.gmra.mxu0 %v1159
        %v1257 = vpop.f32.mrf.mxu0
        %v1258 = vadd.f32 0.0, %v1257
        %v1259 = vpop.f32.mrf.mxu0
        %1260 = vmatprep.mubr.f32.mxu0 0.0
        %1261 = vmatmul.mubr.f32.gmra.mxu0 %v1162
        %v1262 = vpop.f32.mrf.mxu0
        %v1263 = vadd.f32 0.0, %v1262
        %v1264 = vpop.f32.mrf.mxu0
        %1265 = vmatprep.mubr.f32.mxu0 0.0
        %1266 = vmatmul.mubr.f32.gmra.mxu0 %v1165
        %v1267 = vpop.f32.mrf.mxu0
        %v1268 = vadd.f32 0.0, %v1267
        %v1269 = vpop.f32.mrf.mxu0
        %1270 = vmatprep.mubr.f32.mxu0 0.0
        %1271 = vmatmul.mubr.f32.gmra.mxu0 %v1168
        %v1272 = vpop.f32.mrf.mxu0
        %v1273 = vadd.f32 0.0, %v1272
        %v1274 = vpop.f32.mrf.mxu0
        %1275 = vmatprep.mubr.f32.mxu0 0.0
        %1276 = vmatmul.mubr.f32.gmra.mxu0 %v1171
        %v1277 = vpop.f32.mrf.mxu0
        %v1278 = vadd.f32 0.0, %v1277
        %v1279 = vpop.f32.mrf.mxu0
        %1280 = vdwg.mxu0
        %v1281 = vadd.f32 %v987, %v1243
        %v1282 = vadd.f32 %v992, %v1248
        %v1283 = vadd.f32 %v997, %v1253
        %v1284 = vadd.f32 %v1002, %v1258
        %v1285 = vadd.f32 %v1007, %v1263
        %v1286 = vadd.f32 %v1012, %v1268
        %v1287 = vadd.f32 %v1017, %v1273
        %v1288 = vadd.f32 %v1022, %v1278
        %s1289 = scalar_lea.vmem [#allocation3], 384
        %v1290 = vld [vmem:[%s1289] sm:$0xff]
        %v1291 = vld [vmem:[%s1289 + $0x8] sm:$0xff]
        %v1292 = vld [vmem:[%s1289 + $0x10] sm:$0xff]
        %v1293 = vld [vmem:[%s1289 + $0x18] sm:$0xff]
        %v1294 = vld [vmem:[%s1289 + $0x20] sm:$0xff]
        %v1295 = vld [vmem:[%s1289 + $0x28] sm:$0xff]
        %v1296 = vld [vmem:[%s1289 + $0x30] sm:$0xff]
        %v1297 = vld [vmem:[%s1289 + $0x38] sm:$0xff]
        %v1298 = vld [vmem:[%s1289 + $0x40] sm:$0xff]
        %v1299 = vld [vmem:[%s1289 + $0x48] sm:$0xff]
        %v1300 = vld [vmem:[%s1289 + $0x50] sm:$0xff]
        %v1301 = vld [vmem:[%s1289 + $0x58] sm:$0xff]
        %v1302 = vld [vmem:[%s1289 + $0x60] sm:$0xff]
        %v1303 = vld [vmem:[%s1289 + $0x68] sm:$0xff]
        %v1304 = vld [vmem:[%s1289 + $0x70] sm:$0xff]
        %v1305 = vld [vmem:[%s1289 + $0x78] sm:$0xff]
        %1306 = vmatprep.subr.mxu0 0.0
        %1307 = vmatpush1.msra.mxu0 %v496
        %1308 = vmatprep.subr.mxu0 0.0
        %1309 = vmatpush1.msra.mxu0 %v495
        %1310 = vmatprep.subr.mxu0 0.0
        %1311 = vmatpush1.msra.mxu0 %v494
        %1312 = vmatprep.subr.mxu0 0.0
        %1313 = vmatpush1.msra.mxu0 %v493
        %1314 = vmatprep.subr.mxu0 0.0
        %1315 = vmatpush1.msra.mxu0 %v492
        %1316 = vmatprep.subr.mxu0 0.0
        %1317 = vmatpush1.msra.mxu0 %v491
        %1318 = vmatprep.subr.mxu0 0.0
        %1319 = vmatpush1.msra.mxu0 %v490
        %1320 = vmatprep.subr.mxu0 0.0
        %1321 = vmatpush1.msra.mxu0 %v489
        %1322 = vmatprep.subr.mxu0 0.0
        %1323 = vmatpush1.msra.mxu0 %v488
        %1324 = vmatprep.subr.mxu0 0.0
        %1325 = vmatpush1.msra.mxu0 %v487
        %1326 = vmatprep.subr.mxu0 0.0
        %1327 = vmatpush1.msra.mxu0 %v486
        %1328 = vmatprep.subr.mxu0 0.0
        %1329 = vmatpush1.msra.mxu0 %v485
        %1330 = vmatprep.subr.mxu0 0.0
        %1331 = vmatpush1.msra.mxu0 %v484
        %1332 = vmatprep.subr.mxu0 0.0
        %1333 = vmatpush1.msra.mxu0 %v483
        %1334 = vmatprep.subr.mxu0 0.0
        %1335 = vmatpush1.msra.mxu0 %v482
        %1336 = vmatprep.subr.mxu0 0.0
        %1337 = vmatpush1.msra.mxu0 %v481
        %1338 = vmatprep.subr.mxu0 0.0
        %1339 = vmatpush2.msra.mxu0 %v512
        %1340 = vmatprep.subr.mxu0 0.0
        %1341 = vmatpush2.msra.mxu0 %v511
        %1342 = vmatprep.subr.mxu0 0.0
        %1343 = vmatpush2.msra.mxu0 %v510
        %1344 = vmatprep.subr.mxu0 0.0
        %1345 = vmatpush2.msra.mxu0 %v509
        %1346 = vmatprep.subr.mxu0 0.0
        %1347 = vmatpush2.msra.mxu0 %v508
        %1348 = vmatprep.subr.mxu0 0.0
        %1349 = vmatpush2.msra.mxu0 %v507
        %1350 = vmatprep.subr.mxu0 0.0
        %1351 = vmatpush2.msra.mxu0 %v506
        %1352 = vmatprep.subr.mxu0 0.0
        %1353 = vmatpush2.msra.mxu0 %v505
        %1354 = vmatprep.subr.mxu0 0.0
        %1355 = vmatpush2.msra.mxu0 %v504
        %1356 = vmatprep.subr.mxu0 0.0
        %1357 = vmatpush2.msra.mxu0 %v503
        %1358 = vmatprep.subr.mxu0 0.0
        %1359 = vmatpush2.msra.mxu0 %v502
        %1360 = vmatprep.subr.mxu0 0.0
        %1361 = vmatpush2.msra.mxu0 %v501
        %1362 = vmatprep.subr.mxu0 0.0
        %1363 = vmatpush2.msra.mxu0 %v500
        %1364 = vmatprep.subr.mxu0 0.0
        %1365 = vmatpush2.msra.mxu0 %v499
        %1366 = vmatprep.subr.mxu0 0.0
        %1367 = vmatpush2.msra.mxu0 %v498
        %1368 = vmatprep.subr.mxu0 0.0
        %1369 = vmatpush2.msra.mxu0 %v497
        %1370 = vmatprep.mubr.f32.mxu0 %v1291
        %1371 = vmatmul.mubr.f32.gmra.mxu0 %v1290
        %v1372 = vpop.f32.mrf.mxu0
        %v1373 = vadd.f32 0.0, %v1372
        %v1374 = vpop.f32.mrf.mxu0
        %1375 = vmatprep.mubr.f32.mxu0 %v1293
        %1376 = vmatmul.mubr.f32.gmra.mxu0 %v1292
        %v1377 = vpop.f32.mrf.mxu0
        %v1378 = vadd.f32 0.0, %v1377
        %v1379 = vpop.f32.mrf.mxu0
        %1380 = vmatprep.mubr.f32.mxu0 %v1295
        %1381 = vmatmul.mubr.f32.gmra.mxu0 %v1294
        %v1382 = vpop.f32.mrf.mxu0
        %v1383 = vadd.f32 0.0, %v1382
        %v1384 = vpop.f32.mrf.mxu0
        %1385 = vmatprep.mubr.f32.mxu0 %v1297
        %1386 = vmatmul.mubr.f32.gmra.mxu0 %v1296
        %v1387 = vpop.f32.mrf.mxu0
        %v1388 = vadd.f32 0.0, %v1387
        %v1389 = vpop.f32.mrf.mxu0
        %1390 = vmatprep.mubr.f32.mxu0 %v1299
        %1391 = vmatmul.mubr.f32.gmra.mxu0 %v1298
        %v1392 = vpop.f32.mrf.mxu0
        %v1393 = vadd.f32 0.0, %v1392
        %v1394 = vpop.f32.mrf.mxu0
        %1395 = vmatprep.mubr.f32.mxu0 %v1301
        %1396 = vmatmul.mubr.f32.gmra.mxu0 %v1300
        %v1397 = vpop.f32.mrf.mxu0
        %v1398 = vadd.f32 0.0, %v1397
        %v1399 = vpop.f32.mrf.mxu0
        %1400 = vmatprep.mubr.f32.mxu0 %v1303
        %1401 = vmatmul.mubr.f32.gmra.mxu0 %v1302
        %v1402 = vpop.f32.mrf.mxu0
        %v1403 = vadd.f32 0.0, %v1402
        %v1404 = vpop.f32.mrf.mxu0
        %1405 = vmatprep.mubr.f32.mxu0 %v1305
        %1406 = vmatmul.mubr.f32.gmra.mxu0 %v1304
        %v1407 = vpop.f32.mrf.mxu0
        %v1408 = vadd.f32 0.0, %v1407
        %v1409 = vpop.f32.mrf.mxu0
        %1410 = vdwg.mxu0
        %s1411 = scalar_lea.vmem %s2, 24
        %v1412 = vld [vmem:[%s1411] sm:$0x1f]
        %v1414 = vsel %vm759, %v1373, 0
        %v1417 = vsel %vm759, %v1378, 0
        %v1420 = vsel %vm759, %v1383, 0
        %v1423 = vsel %vm759, %v1388, 0
        %v1426 = vsel %vm759, %v1393, 0
        %v1429 = vsel %vm759, %v1398, 0
        %v1432 = vsel %vm759, %v1403, 0
        %v1435 = vsel %vm759, %v1408, 0
        %v1438 = vsel %vm784, %v1412, 0
        %1440 = vmatprep.subr.mxu0 0.0
        %1441 = vmatpush1.msra.mxu0 0.0
        %1442 = vmatprep.subr.mxu0 0.0
        %1443 = vmatpush1.msra.mxu0 0.0
        %1444 = vmatprep.subr.mxu0 0.0
        %1445 = vmatpush1.msra.mxu0 0.0
        %1446 = vmatprep.subr.mxu0 0.0
        %1447 = vmatpush1.msra.mxu0 0.0
        %1448 = vmatprep.subr.mxu0 0.0
        %1449 = vmatpush1.msra.mxu0 0.0
        %1450 = vmatprep.subr.mxu0 0.0
        %1451 = vmatpush1.msra.mxu0 0.0
        %1452 = vmatprep.subr.mxu0 0.0
        %1453 = vmatpush1.msra.mxu0 0.0
        %1454 = vmatprep.subr.mxu0 0.0
        %1455 = vmatpush1.msra.mxu0 0.0
        %1456 = vmatprep.subr.mxu0 0.0
        %1457 = vmatpush1.msra.mxu0 0.0
        %1458 = vmatprep.subr.mxu0 0.0
        %1459 = vmatpush1.msra.mxu0 0.0
        %1460 = vmatprep.subr.mxu0 0.0
        %1461 = vmatpush1.msra.mxu0 0.0
        %1462 = vmatprep.subr.mxu0 0.0
        %1463 = vmatpush1.msra.mxu0 0.0
        %1464 = vmatprep.subr.mxu0 0.0
        %1465 = vmatpush1.msra.mxu0 0.0
        %1466 = vmatprep.subr.mxu0 0.0
        %1467 = vmatpush1.msra.mxu0 0.0
        %1468 = vmatprep.subr.mxu0 0.0
        %1469 = vmatpush1.msra.mxu0 0.0
        %1470 = vmatprep.subr.mxu0 0.0
        %1471 = vmatpush1.msra.mxu0 %v1438
        %1472 = vmatprep.subr.mxu0 0.0
        %1473 = vmatpush2.msra.mxu0 0.0
        %1474 = vmatprep.subr.mxu0 0.0
        %1475 = vmatpush2.msra.mxu0 0.0
        %1476 = vmatprep.subr.mxu0 0.0
        %1477 = vmatpush2.msra.mxu0 0.0
        %1478 = vmatprep.subr.mxu0 0.0
        %1479 = vmatpush2.msra.mxu0 0.0
        %1480 = vmatprep.subr.mxu0 0.0
        %1481 = vmatpush2.msra.mxu0 0.0
        %1482 = vmatprep.subr.mxu0 0.0
        %1483 = vmatpush2.msra.mxu0 0.0
        %1484 = vmatprep.subr.mxu0 0.0
        %1485 = vmatpush2.msra.mxu0 0.0
        %1486 = vmatprep.subr.mxu0 0.0
        %1487 = vmatpush2.msra.mxu0 0.0
        %1488 = vmatprep.subr.mxu0 0.0
        %1489 = vmatpush2.msra.mxu0 0.0
        %1490 = vmatprep.subr.mxu0 0.0
        %1491 = vmatpush2.msra.mxu0 0.0
        %1492 = vmatprep.subr.mxu0 0.0
        %1493 = vmatpush2.msra.mxu0 0.0
        %1494 = vmatprep.subr.mxu0 0.0
        %1495 = vmatpush2.msra.mxu0 0.0
        %1496 = vmatprep.subr.mxu0 0.0
        %1497 = vmatpush2.msra.mxu0 0.0
        %1498 = vmatprep.subr.mxu0 0.0
        %1499 = vmatpush2.msra.mxu0 0.0
        %1500 = vmatprep.subr.mxu0 0.0
        %1501 = vmatpush2.msra.mxu0 0.0
        %1502 = vmatprep.subr.mxu0 0.0
        %1503 = vmatpush2.msra.mxu0 0.0
        %1504 = vmatprep.mubr.f32.mxu0 0.0
        %1505 = vmatmul.mubr.f32.gmra.mxu0 %v1414
        %v1506 = vpop.f32.mrf.mxu0
        %v1507 = vadd.f32 0.0, %v1506
        %v1508 = vpop.f32.mrf.mxu0
        %1509 = vmatprep.mubr.f32.mxu0 0.0
        %1510 = vmatmul.mubr.f32.gmra.mxu0 %v1417
        %v1511 = vpop.f32.mrf.mxu0
        %v1512 = vadd.f32 0.0, %v1511
        %v1513 = vpop.f32.mrf.mxu0
        %1514 = vmatprep.mubr.f32.mxu0 0.0
        %1515 = vmatmul.mubr.f32.gmra.mxu0 %v1420
        %v1516 = vpop.f32.mrf.mxu0
        %v1517 = vadd.f32 0.0, %v1516
        %v1518 = vpop.f32.mrf.mxu0
        %1519 = vmatprep.mubr.f32.mxu0 0.0
        %1520 = vmatmul.mubr.f32.gmra.mxu0 %v1423
        %v1521 = vpop.f32.mrf.mxu0
        %v1522 = vadd.f32 0.0, %v1521
        %v1523 = vpop.f32.mrf.mxu0
        %1524 = vmatprep.mubr.f32.mxu0 0.0
        %1525 = vmatmul.mubr.f32.gmra.mxu0 %v1426
        %v1526 = vpop.f32.mrf.mxu0
        %v1527 = vadd.f32 0.0, %v1526
        %v1528 = vpop.f32.mrf.mxu0
        %1529 = vmatprep.mubr.f32.mxu0 0.0
        %1530 = vmatmul.mubr.f32.gmra.mxu0 %v1429
        %v1531 = vpop.f32.mrf.mxu0
        %v1532 = vadd.f32 0.0, %v1531
        %v1533 = vpop.f32.mrf.mxu0
        %1534 = vmatprep.mubr.f32.mxu0 0.0
        %1535 = vmatmul.mubr.f32.gmra.mxu0 %v1432
        %v1536 = vpop.f32.mrf.mxu0
        %v1537 = vadd.f32 0.0, %v1536
        %v1538 = vpop.f32.mrf.mxu0
        %1539 = vmatprep.mubr.f32.mxu0 0.0
        %1540 = vmatmul.mubr.f32.gmra.mxu0 %v1435
        %v1541 = vpop.f32.mrf.mxu0
        %v1542 = vadd.f32 0.0, %v1541
        %v1543 = vpop.f32.mrf.mxu0
        %1544 = vdwg.mxu0
        %v1545 = vadd.f32 %v1281, %v1507
        %v1546 = vadd.f32 %v1282, %v1512
        %v1547 = vadd.f32 %v1283, %v1517
        %v1548 = vadd.f32 %v1284, %v1522
        %v1549 = vadd.f32 %v1285, %v1527
        %v1550 = vadd.f32 %v1286, %v1532
        %v1551 = vadd.f32 %v1287, %v1537
        %v1552 = vadd.f32 %v1288, %v1542
        %s1553 = scalar_lea.vmem [#allocation3], 512
        %v1554 = vld [vmem:[%s1553] sm:$0xff]
        %v1555 = vld [vmem:[%s1553 + $0x8] sm:$0xff]
        %v1556 = vld [vmem:[%s1553 + $0x10] sm:$0xff]
        %v1557 = vld [vmem:[%s1553 + $0x18] sm:$0xff]
        %v1558 = vld [vmem:[%s1553 + $0x20] sm:$0xff]
        %v1559 = vld [vmem:[%s1553 + $0x28] sm:$0xff]
        %v1560 = vld [vmem:[%s1553 + $0x30] sm:$0xff]
        %v1561 = vld [vmem:[%s1553 + $0x38] sm:$0xff]
        %v1562 = vld [vmem:[%s1553 + $0x40] sm:$0xff]
        %v1563 = vld [vmem:[%s1553 + $0x48] sm:$0xff]
        %v1564 = vld [vmem:[%s1553 + $0x50] sm:$0xff]
        %v1565 = vld [vmem:[%s1553 + $0x58] sm:$0xff]
        %v1566 = vld [vmem:[%s1553 + $0x60] sm:$0xff]
        %v1567 = vld [vmem:[%s1553 + $0x68] sm:$0xff]
        %v1568 = vld [vmem:[%s1553 + $0x70] sm:$0xff]
        %v1569 = vld [vmem:[%s1553 + $0x78] sm:$0xff]
        %1570 = vmatprep.subr.mxu0 0.0
        %1571 = vmatpush1.msra.mxu0 %v496
        %1572 = vmatprep.subr.mxu0 0.0
        %1573 = vmatpush1.msra.mxu0 %v495
        %1574 = vmatprep.subr.mxu0 0.0
        %1575 = vmatpush1.msra.mxu0 %v494
        %1576 = vmatprep.subr.mxu0 0.0
        %1577 = vmatpush1.msra.mxu0 %v493
        %1578 = vmatprep.subr.mxu0 0.0
        %1579 = vmatpush1.msra.mxu0 %v492
        %1580 = vmatprep.subr.mxu0 0.0
        %1581 = vmatpush1.msra.mxu0 %v491
        %1582 = vmatprep.subr.mxu0 0.0
        %1583 = vmatpush1.msra.mxu0 %v490
        %1584 = vmatprep.subr.mxu0 0.0
        %1585 = vmatpush1.msra.mxu0 %v489
        %1586 = vmatprep.subr.mxu0 0.0
        %1587 = vmatpush1.msra.mxu0 %v488
        %1588 = vmatprep.subr.mxu0 0.0
        %1589 = vmatpush1.msra.mxu0 %v487
        %1590 = vmatprep.subr.mxu0 0.0
        %1591 = vmatpush1.msra.mxu0 %v486
        %1592 = vmatprep.subr.mxu0 0.0
        %1593 = vmatpush1.msra.mxu0 %v485
        %1594 = vmatprep.subr.mxu0 0.0
        %1595 = vmatpush1.msra.mxu0 %v484
        %1596 = vmatprep.subr.mxu0 0.0
        %1597 = vmatpush1.msra.mxu0 %v483
        %1598 = vmatprep.subr.mxu0 0.0
        %1599 = vmatpush1.msra.mxu0 %v482
        %1600 = vmatprep.subr.mxu0 0.0
        %1601 = vmatpush1.msra.mxu0 %v481
        %1602 = vmatprep.subr.mxu0 0.0
        %1603 = vmatpush2.msra.mxu0 %v512
        %1604 = vmatprep.subr.mxu0 0.0
        %1605 = vmatpush2.msra.mxu0 %v511
        %1606 = vmatprep.subr.mxu0 0.0
        %1607 = vmatpush2.msra.mxu0 %v510
        %1608 = vmatprep.subr.mxu0 0.0
        %1609 = vmatpush2.msra.mxu0 %v509
        %1610 = vmatprep.subr.mxu0 0.0
        %1611 = vmatpush2.msra.mxu0 %v508
        %1612 = vmatprep.subr.mxu0 0.0
        %1613 = vmatpush2.msra.mxu0 %v507
        %1614 = vmatprep.subr.mxu0 0.0
        %1615 = vmatpush2.msra.mxu0 %v506
        %1616 = vmatprep.subr.mxu0 0.0
        %1617 = vmatpush2.msra.mxu0 %v505
        %1618 = vmatprep.subr.mxu0 0.0
        %1619 = vmatpush2.msra.mxu0 %v504
        %1620 = vmatprep.subr.mxu0 0.0
        %1621 = vmatpush2.msra.mxu0 %v503
        %1622 = vmatprep.subr.mxu0 0.0
        %1623 = vmatpush2.msra.mxu0 %v502
        %1624 = vmatprep.subr.mxu0 0.0
        %1625 = vmatpush2.msra.mxu0 %v501
        %1626 = vmatprep.subr.mxu0 0.0
        %1627 = vmatpush2.msra.mxu0 %v500
        %1628 = vmatprep.subr.mxu0 0.0
        %1629 = vmatpush2.msra.mxu0 %v499
        %1630 = vmatprep.subr.mxu0 0.0
        %1631 = vmatpush2.msra.mxu0 %v498
        %1632 = vmatprep.subr.mxu0 0.0
        %1633 = vmatpush2.msra.mxu0 %v497
        %1634 = vmatprep.mubr.f32.mxu0 %v1555
        %1635 = vmatmul.mubr.f32.gmra.mxu0 %v1554
        %v1636 = vpop.f32.mrf.mxu0
        %v1637 = vadd.f32 0.0, %v1636
        %v1638 = vpop.f32.mrf.mxu0
        %1639 = vmatprep.mubr.f32.mxu0 %v1557
        %1640 = vmatmul.mubr.f32.gmra.mxu0 %v1556
        %v1641 = vpop.f32.mrf.mxu0
        %v1642 = vadd.f32 0.0, %v1641
        %v1643 = vpop.f32.mrf.mxu0
        %1644 = vmatprep.mubr.f32.mxu0 %v1559
        %1645 = vmatmul.mubr.f32.gmra.mxu0 %v1558
        %v1646 = vpop.f32.mrf.mxu0
        %v1647 = vadd.f32 0.0, %v1646
        %v1648 = vpop.f32.mrf.mxu0
        %1649 = vmatprep.mubr.f32.mxu0 %v1561
        %1650 = vmatmul.mubr.f32.gmra.mxu0 %v1560
        %v1651 = vpop.f32.mrf.mxu0
        %v1652 = vadd.f32 0.0, %v1651
        %v1653 = vpop.f32.mrf.mxu0
        %1654 = vmatprep.mubr.f32.mxu0 %v1563
        %1655 = vmatmul.mubr.f32.gmra.mxu0 %v1562
        %v1656 = vpop.f32.mrf.mxu0
        %v1657 = vadd.f32 0.0, %v1656
        %v1658 = vpop.f32.mrf.mxu0
        %1659 = vmatprep.mubr.f32.mxu0 %v1565
        %1660 = vmatmul.mubr.f32.gmra.mxu0 %v1564
        %v1661 = vpop.f32.mrf.mxu0
        %v1662 = vadd.f32 0.0, %v1661
        %v1663 = vpop.f32.mrf.mxu0
        %1664 = vmatprep.mubr.f32.mxu0 %v1567
        %1665 = vmatmul.mubr.f32.gmra.mxu0 %v1566
        %v1666 = vpop.f32.mrf.mxu0
        %v1667 = vadd.f32 0.0, %v1666
        %v1668 = vpop.f32.mrf.mxu0
        %1669 = vmatprep.mubr.f32.mxu0 %v1569
        %1670 = vmatmul.mubr.f32.gmra.mxu0 %v1568
        %v1671 = vpop.f32.mrf.mxu0
        %v1672 = vadd.f32 0.0, %v1671
        %v1673 = vpop.f32.mrf.mxu0
        %1674 = vdwg.mxu0
        %s1675 = scalar_lea.vmem %s2, 32
        %v1676 = vld [vmem:[%s1675] sm:$0x1f]
        %v1678 = vsel %vm759, %v1637, 0
        %v1681 = vsel %vm759, %v1642, 0
        %v1684 = vsel %vm759, %v1647, 0
        %v1687 = vsel %vm759, %v1652, 0
        %v1690 = vsel %vm759, %v1657, 0
        %v1693 = vsel %vm759, %v1662, 0
        %v1696 = vsel %vm759, %v1667, 0
        %v1699 = vsel %vm759, %v1672, 0
        %v1702 = vsel %vm784, %v1676, 0
        %1704 = vmatprep.subr.mxu0 0.0
        %1705 = vmatpush1.msra.mxu0 0.0
        %1706 = vmatprep.subr.mxu0 0.0
        %1707 = vmatpush1.msra.mxu0 0.0
        %1708 = vmatprep.subr.mxu0 0.0
        %1709 = vmatpush1.msra.mxu0 0.0
        %1710 = vmatprep.subr.mxu0 0.0
        %1711 = vmatpush1.msra.mxu0 0.0
        %1712 = vmatprep.subr.mxu0 0.0
        %1713 = vmatpush1.msra.mxu0 0.0
        %1714 = vmatprep.subr.mxu0 0.0
        %1715 = vmatpush1.msra.mxu0 0.0
        %1716 = vmatprep.subr.mxu0 0.0
        %1717 = vmatpush1.msra.mxu0 0.0
        %1718 = vmatprep.subr.mxu0 0.0
        %1719 = vmatpush1.msra.mxu0 0.0
        %1720 = vmatprep.subr.mxu0 0.0
        %1721 = vmatpush1.msra.mxu0 0.0
        %1722 = vmatprep.subr.mxu0 0.0
        %1723 = vmatpush1.msra.mxu0 0.0
        %1724 = vmatprep.subr.mxu0 0.0
        %1725 = vmatpush1.msra.mxu0 0.0
        %1726 = vmatprep.subr.mxu0 0.0
        %1727 = vmatpush1.msra.mxu0 0.0
        %1728 = vmatprep.subr.mxu0 0.0
        %1729 = vmatpush1.msra.mxu0 0.0
        %1730 = vmatprep.subr.mxu0 0.0
        %1731 = vmatpush1.msra.mxu0 0.0
        %1732 = vmatprep.subr.mxu0 0.0
        %1733 = vmatpush1.msra.mxu0 0.0
        %1734 = vmatprep.subr.mxu0 0.0
        %1735 = vmatpush1.msra.mxu0 %v1702
        %1736 = vmatprep.subr.mxu0 0.0
        %1737 = vmatpush2.msra.mxu0 0.0
        %1738 = vmatprep.subr.mxu0 0.0
        %1739 = vmatpush2.msra.mxu0 0.0
        %1740 = vmatprep.subr.mxu0 0.0
        %1741 = vmatpush2.msra.mxu0 0.0
        %1742 = vmatprep.subr.mxu0 0.0
        %1743 = vmatpush2.msra.mxu0 0.0
        %1744 = vmatprep.subr.mxu0 0.0
        %1745 = vmatpush2.msra.mxu0 0.0
        %1746 = vmatprep.subr.mxu0 0.0
        %1747 = vmatpush2.msra.mxu0 0.0
        %1748 = vmatprep.subr.mxu0 0.0
        %1749 = vmatpush2.msra.mxu0 0.0
        %1750 = vmatprep.subr.mxu0 0.0
        %1751 = vmatpush2.msra.mxu0 0.0
        %1752 = vmatprep.subr.mxu0 0.0
        %1753 = vmatpush2.msra.mxu0 0.0
        %1754 = vmatprep.subr.mxu0 0.0
        %1755 = vmatpush2.msra.mxu0 0.0
        %1756 = vmatprep.subr.mxu0 0.0
        %1757 = vmatpush2.msra.mxu0 0.0
        %1758 = vmatprep.subr.mxu0 0.0
        %1759 = vmatpush2.msra.mxu0 0.0
        %1760 = vmatprep.subr.mxu0 0.0
        %1761 = vmatpush2.msra.mxu0 0.0
        %1762 = vmatprep.subr.mxu0 0.0
        %1763 = vmatpush2.msra.mxu0 0.0
        %1764 = vmatprep.subr.mxu0 0.0
        %1765 = vmatpush2.msra.mxu0 0.0
        %1766 = vmatprep.subr.mxu0 0.0
        %1767 = vmatpush2.msra.mxu0 0.0
        %1768 = vmatprep.mubr.f32.mxu0 0.0
        %1769 = vmatmul.mubr.f32.gmra.mxu0 %v1678
        %v1770 = vpop.f32.mrf.mxu0
        %v1771 = vadd.f32 0.0, %v1770
        %v1772 = vpop.f32.mrf.mxu0
        %1773 = vmatprep.mubr.f32.mxu0 0.0
        %1774 = vmatmul.mubr.f32.gmra.mxu0 %v1681
        %v1775 = vpop.f32.mrf.mxu0
        %v1776 = vadd.f32 0.0, %v1775
        %v1777 = vpop.f32.mrf.mxu0
        %1778 = vmatprep.mubr.f32.mxu0 0.0
        %1779 = vmatmul.mubr.f32.gmra.mxu0 %v1684
        %v1780 = vpop.f32.mrf.mxu0
        %v1781 = vadd.f32 0.0, %v1780
        %v1782 = vpop.f32.mrf.mxu0
        %1783 = vmatprep.mubr.f32.mxu0 0.0
        %1784 = vmatmul.mubr.f32.gmra.mxu0 %v1687
        %v1785 = vpop.f32.mrf.mxu0
        %v1786 = vadd.f32 0.0, %v1785
        %v1787 = vpop.f32.mrf.mxu0
        %1788 = vmatprep.mubr.f32.mxu0 0.0
        %1789 = vmatmul.mubr.f32.gmra.mxu0 %v1690
        %v1790 = vpop.f32.mrf.mxu0
        %v1791 = vadd.f32 0.0, %v1790
        %v1792 = vpop.f32.mrf.mxu0
        %1793 = vmatprep.mubr.f32.mxu0 0.0
        %1794 = vmatmul.mubr.f32.gmra.mxu0 %v1693
        %v1795 = vpop.f32.mrf.mxu0
        %v1796 = vadd.f32 0.0, %v1795
        %v1797 = vpop.f32.mrf.mxu0
        %1798 = vmatprep.mubr.f32.mxu0 0.0
        %1799 = vmatmul.mubr.f32.gmra.mxu0 %v1696
        %v1800 = vpop.f32.mrf.mxu0
        %v1801 = vadd.f32 0.0, %v1800
        %v1802 = vpop.f32.mrf.mxu0
        %1803 = vmatprep.mubr.f32.mxu0 0.0
        %1804 = vmatmul.mubr.f32.gmra.mxu0 %v1699
        %v1805 = vpop.f32.mrf.mxu0
        %v1806 = vadd.f32 0.0, %v1805
        %v1807 = vpop.f32.mrf.mxu0
        %1808 = vdwg.mxu0
        %v1809 = vadd.f32 %v1545, %v1771
        %v1810 = vadd.f32 %v1546, %v1776
        %v1811 = vadd.f32 %v1547, %v1781
        %v1812 = vadd.f32 %v1548, %v1786
        %v1813 = vadd.f32 %v1549, %v1791
        %v1814 = vadd.f32 %v1550, %v1796
        %v1815 = vadd.f32 %v1551, %v1801
        %v1816 = vadd.f32 %v1552, %v1806
        %s1817 = scalar_lea.vmem [#allocation3], 640
        %v1818 = vld [vmem:[%s1817] sm:$0xff]
        %v1819 = vld [vmem:[%s1817 + $0x8] sm:$0xff]
        %v1820 = vld [vmem:[%s1817 + $0x10] sm:$0xff]
        %v1821 = vld [vmem:[%s1817 + $0x18] sm:$0xff]
        %v1822 = vld [vmem:[%s1817 + $0x20] sm:$0xff]
        %v1823 = vld [vmem:[%s1817 + $0x28] sm:$0xff]
        %v1824 = vld [vmem:[%s1817 + $0x30] sm:$0xff]
        %v1825 = vld [vmem:[%s1817 + $0x38] sm:$0xff]
        %v1826 = vld [vmem:[%s1817 + $0x40] sm:$0xff]
        %v1827 = vld [vmem:[%s1817 + $0x48] sm:$0xff]
        %v1828 = vld [vmem:[%s1817 + $0x50] sm:$0xff]
        %v1829 = vld [vmem:[%s1817 + $0x58] sm:$0xff]
        %v1830 = vld [vmem:[%s1817 + $0x60] sm:$0xff]
        %v1831 = vld [vmem:[%s1817 + $0x68] sm:$0xff]
        %v1832 = vld [vmem:[%s1817 + $0x70] sm:$0xff]
        %v1833 = vld [vmem:[%s1817 + $0x78] sm:$0xff]
        %1834 = vmatprep.subr.mxu0 0.0
        %1835 = vmatpush1.msra.mxu0 %v496
        %1836 = vmatprep.subr.mxu0 0.0
        %1837 = vmatpush1.msra.mxu0 %v495
        %1838 = vmatprep.subr.mxu0 0.0
        %1839 = vmatpush1.msra.mxu0 %v494
        %1840 = vmatprep.subr.mxu0 0.0
        %1841 = vmatpush1.msra.mxu0 %v493
        %1842 = vmatprep.subr.mxu0 0.0
        %1843 = vmatpush1.msra.mxu0 %v492
        %1844 = vmatprep.subr.mxu0 0.0
        %1845 = vmatpush1.msra.mxu0 %v491
        %1846 = vmatprep.subr.mxu0 0.0
        %1847 = vmatpush1.msra.mxu0 %v490
        %1848 = vmatprep.subr.mxu0 0.0
        %1849 = vmatpush1.msra.mxu0 %v489
        %1850 = vmatprep.subr.mxu0 0.0
        %1851 = vmatpush1.msra.mxu0 %v488
        %1852 = vmatprep.subr.mxu0 0.0
        %1853 = vmatpush1.msra.mxu0 %v487
        %1854 = vmatprep.subr.mxu0 0.0
        %1855 = vmatpush1.msra.mxu0 %v486
        %1856 = vmatprep.subr.mxu0 0.0
        %1857 = vmatpush1.msra.mxu0 %v485
        %1858 = vmatprep.subr.mxu0 0.0
        %1859 = vmatpush1.msra.mxu0 %v484
        %1860 = vmatprep.subr.mxu0 0.0
        %1861 = vmatpush1.msra.mxu0 %v483
        %1862 = vmatprep.subr.mxu0 0.0
        %1863 = vmatpush1.msra.mxu0 %v482
        %1864 = vmatprep.subr.mxu0 0.0
        %1865 = vmatpush1.msra.mxu0 %v481
        %1866 = vmatprep.subr.mxu0 0.0
        %1867 = vmatpush2.msra.mxu0 %v512
        %1868 = vmatprep.subr.mxu0 0.0
        %1869 = vmatpush2.msra.mxu0 %v511
        %1870 = vmatprep.subr.mxu0 0.0
        %1871 = vmatpush2.msra.mxu0 %v510
        %1872 = vmatprep.subr.mxu0 0.0
        %1873 = vmatpush2.msra.mxu0 %v509
        %1874 = vmatprep.subr.mxu0 0.0
        %1875 = vmatpush2.msra.mxu0 %v508
        %1876 = vmatprep.subr.mxu0 0.0
        %1877 = vmatpush2.msra.mxu0 %v507
        %1878 = vmatprep.subr.mxu0 0.0
        %1879 = vmatpush2.msra.mxu0 %v506
        %1880 = vmatprep.subr.mxu0 0.0
        %1881 = vmatpush2.msra.mxu0 %v505
        %1882 = vmatprep.subr.mxu0 0.0
        %1883 = vmatpush2.msra.mxu0 %v504
        %1884 = vmatprep.subr.mxu0 0.0
        %1885 = vmatpush2.msra.mxu0 %v503
        %1886 = vmatprep.subr.mxu0 0.0
        %1887 = vmatpush2.msra.mxu0 %v502
        %1888 = vmatprep.subr.mxu0 0.0
        %1889 = vmatpush2.msra.mxu0 %v501
        %1890 = vmatprep.subr.mxu0 0.0
        %1891 = vmatpush2.msra.mxu0 %v500
        %1892 = vmatprep.subr.mxu0 0.0
        %1893 = vmatpush2.msra.mxu0 %v499
        %1894 = vmatprep.subr.mxu0 0.0
        %1895 = vmatpush2.msra.mxu0 %v498
        %1896 = vmatprep.subr.mxu0 0.0
        %1897 = vmatpush2.msra.mxu0 %v497
        %1898 = vmatprep.mubr.f32.mxu0 %v1819
        %1899 = vmatmul.mubr.f32.gmra.mxu0 %v1818
        %v1900 = vpop.f32.mrf.mxu0
        %v1901 = vadd.f32 0.0, %v1900
        %v1902 = vpop.f32.mrf.mxu0
        %1903 = vmatprep.mubr.f32.mxu0 %v1821
        %1904 = vmatmul.mubr.f32.gmra.mxu0 %v1820
        %v1905 = vpop.f32.mrf.mxu0
        %v1906 = vadd.f32 0.0, %v1905
        %v1907 = vpop.f32.mrf.mxu0
        %1908 = vmatprep.mubr.f32.mxu0 %v1823
        %1909 = vmatmul.mubr.f32.gmra.mxu0 %v1822
        %v1910 = vpop.f32.mrf.mxu0
        %v1911 = vadd.f32 0.0, %v1910
        %v1912 = vpop.f32.mrf.mxu0
        %1913 = vmatprep.mubr.f32.mxu0 %v1825
        %1914 = vmatmul.mubr.f32.gmra.mxu0 %v1824
        %v1915 = vpop.f32.mrf.mxu0
        %v1916 = vadd.f32 0.0, %v1915
        %v1917 = vpop.f32.mrf.mxu0
        %1918 = vmatprep.mubr.f32.mxu0 %v1827
        %1919 = vmatmul.mubr.f32.gmra.mxu0 %v1826
        %v1920 = vpop.f32.mrf.mxu0
        %v1921 = vadd.f32 0.0, %v1920
        %v1922 = vpop.f32.mrf.mxu0
        %1923 = vmatprep.mubr.f32.mxu0 %v1829
        %1924 = vmatmul.mubr.f32.gmra.mxu0 %v1828
        %v1925 = vpop.f32.mrf.mxu0
        %v1926 = vadd.f32 0.0, %v1925
        %v1927 = vpop.f32.mrf.mxu0
        %1928 = vmatprep.mubr.f32.mxu0 %v1831
        %1929 = vmatmul.mubr.f32.gmra.mxu0 %v1830
        %v1930 = vpop.f32.mrf.mxu0
        %v1931 = vadd.f32 0.0, %v1930
        %v1932 = vpop.f32.mrf.mxu0
        %1933 = vmatprep.mubr.f32.mxu0 %v1833
        %1934 = vmatmul.mubr.f32.gmra.mxu0 %v1832
        %v1935 = vpop.f32.mrf.mxu0
        %v1936 = vadd.f32 0.0, %v1935
        %v1937 = vpop.f32.mrf.mxu0
        %1938 = vdwg.mxu0
        %s1939 = scalar_lea.vmem %s2, 40
        %v1940 = vld [vmem:[%s1939] sm:$0x1f]
        %v1942 = vsel %vm759, %v1901, 0
        %v1945 = vsel %vm759, %v1906, 0
        %v1948 = vsel %vm759, %v1911, 0
        %v1951 = vsel %vm759, %v1916, 0
        %v1954 = vsel %vm759, %v1921, 0
        %v1957 = vsel %vm759, %v1926, 0
        %v1960 = vsel %vm759, %v1931, 0
        %v1963 = vsel %vm759, %v1936, 0
        %v1966 = vsel %vm784, %v1940, 0
        %1968 = vmatprep.subr.mxu0 0.0
        %1969 = vmatpush1.msra.mxu0 0.0
        %1970 = vmatprep.subr.mxu0 0.0
        %1971 = vmatpush1.msra.mxu0 0.0
        %1972 = vmatprep.subr.mxu0 0.0
        %1973 = vmatpush1.msra.mxu0 0.0
        %1974 = vmatprep.subr.mxu0 0.0
        %1975 = vmatpush1.msra.mxu0 0.0
        %1976 = vmatprep.subr.mxu0 0.0
        %1977 = vmatpush1.msra.mxu0 0.0
        %1978 = vmatprep.subr.mxu0 0.0
        %1979 = vmatpush1.msra.mxu0 0.0
        %1980 = vmatprep.subr.mxu0 0.0
        %1981 = vmatpush1.msra.mxu0 0.0
        %1982 = vmatprep.subr.mxu0 0.0
        %1983 = vmatpush1.msra.mxu0 0.0
        %1984 = vmatprep.subr.mxu0 0.0
        %1985 = vmatpush1.msra.mxu0 0.0
        %1986 = vmatprep.subr.mxu0 0.0
        %1987 = vmatpush1.msra.mxu0 0.0
        %1988 = vmatprep.subr.mxu0 0.0
        %1989 = vmatpush1.msra.mxu0 0.0
        %1990 = vmatprep.subr.mxu0 0.0
        %1991 = vmatpush1.msra.mxu0 0.0
        %1992 = vmatprep.subr.mxu0 0.0
        %1993 = vmatpush1.msra.mxu0 0.0
        %1994 = vmatprep.subr.mxu0 0.0
        %1995 = vmatpush1.msra.mxu0 0.0
        %1996 = vmatprep.subr.mxu0 0.0
        %1997 = vmatpush1.msra.mxu0 0.0
        %1998 = vmatprep.subr.mxu0 0.0
        %1999 = vmatpush1.msra.mxu0 %v1966
        %2000 = vmatprep.subr.mxu0 0.0
        %2001 = vmatpush2.msra.mxu0 0.0
        %2002 = vmatprep.subr.mxu0 0.0
        %2003 = vmatpush2.msra.mxu0 0.0
        %2004 = vmatprep.subr.mxu0 0.0
        %2005 = vmatpush2.msra.mxu0 0.0
        %2006 = vmatprep.subr.mxu0 0.0
        %2007 = vmatpush2.msra.mxu0 0.0
        %2008 = vmatprep.subr.mxu0 0.0
        %2009 = vmatpush2.msra.mxu0 0.0
        %2010 = vmatprep.subr.mxu0 0.0
        %2011 = vmatpush2.msra.mxu0 0.0
        %2012 = vmatprep.subr.mxu0 0.0
        %2013 = vmatpush2.msra.mxu0 0.0
        %2014 = vmatprep.subr.mxu0 0.0
        %2015 = vmatpush2.msra.mxu0 0.0
        %2016 = vmatprep.subr.mxu0 0.0
        %2017 = vmatpush2.msra.mxu0 0.0
        %2018 = vmatprep.subr.mxu0 0.0
        %2019 = vmatpush2.msra.mxu0 0.0
        %2020 = vmatprep.subr.mxu0 0.0
        %2021 = vmatpush2.msra.mxu0 0.0
        %2022 = vmatprep.subr.mxu0 0.0
        %2023 = vmatpush2.msra.mxu0 0.0
        %2024 = vmatprep.subr.mxu0 0.0
        %2025 = vmatpush2.msra.mxu0 0.0
        %2026 = vmatprep.subr.mxu0 0.0
        %2027 = vmatpush2.msra.mxu0 0.0
        %2028 = vmatprep.subr.mxu0 0.0
        %2029 = vmatpush2.msra.mxu0 0.0
        %2030 = vmatprep.subr.mxu0 0.0
        %2031 = vmatpush2.msra.mxu0 0.0
        %2032 = vmatprep.mubr.f32.mxu0 0.0
        %2033 = vmatmul.mubr.f32.gmra.mxu0 %v1942
        %v2034 = vpop.f32.mrf.mxu0
        %v2035 = vadd.f32 0.0, %v2034
        %v2036 = vpop.f32.mrf.mxu0
        %2037 = vmatprep.mubr.f32.mxu0 0.0
        %2038 = vmatmul.mubr.f32.gmra.mxu0 %v1945
        %v2039 = vpop.f32.mrf.mxu0
        %v2040 = vadd.f32 0.0, %v2039
        %v2041 = vpop.f32.mrf.mxu0
        %2042 = vmatprep.mubr.f32.mxu0 0.0
        %2043 = vmatmul.mubr.f32.gmra.mxu0 %v1948
        %v2044 = vpop.f32.mrf.mxu0
        %v2045 = vadd.f32 0.0, %v2044
        %v2046 = vpop.f32.mrf.mxu0
        %2047 = vmatprep.mubr.f32.mxu0 0.0
        %2048 = vmatmul.mubr.f32.gmra.mxu0 %v1951
        %v2049 = vpop.f32.mrf.mxu0
        %v2050 = vadd.f32 0.0, %v2049
        %v2051 = vpop.f32.mrf.mxu0
        %2052 = vmatprep.mubr.f32.mxu0 0.0
        %2053 = vmatmul.mubr.f32.gmra.mxu0 %v1954
        %v2054 = vpop.f32.mrf.mxu0
        %v2055 = vadd.f32 0.0, %v2054
        %v2056 = vpop.f32.mrf.mxu0
        %2057 = vmatprep.mubr.f32.mxu0 0.0
        %2058 = vmatmul.mubr.f32.gmra.mxu0 %v1957
        %v2059 = vpop.f32.mrf.mxu0
        %v2060 = vadd.f32 0.0, %v2059
        %v2061 = vpop.f32.mrf.mxu0
        %2062 = vmatprep.mubr.f32.mxu0 0.0
        %2063 = vmatmul.mubr.f32.gmra.mxu0 %v1960
        %v2064 = vpop.f32.mrf.mxu0
        %v2065 = vadd.f32 0.0, %v2064
        %v2066 = vpop.f32.mrf.mxu0
        %2067 = vmatprep.mubr.f32.mxu0 0.0
        %2068 = vmatmul.mubr.f32.gmra.mxu0 %v1963
        %v2069 = vpop.f32.mrf.mxu0
        %v2070 = vadd.f32 0.0, %v2069
        %v2071 = vpop.f32.mrf.mxu0
        %2072 = vdwg.mxu0
        %v2073 = vadd.f32 %v1809, %v2035
        %v2074 = vadd.f32 %v1810, %v2040
        %v2075 = vadd.f32 %v1811, %v2045
        %v2076 = vadd.f32 %v1812, %v2050
        %v2077 = vadd.f32 %v1813, %v2055
        %v2078 = vadd.f32 %v1814, %v2060
        %v2079 = vadd.f32 %v1815, %v2065
        %v2080 = vadd.f32 %v1816, %v2070
        %s2081 = scalar_lea.vmem [#allocation3], 768
        %v2082 = vld [vmem:[%s2081] sm:$0xff]
        %v2083 = vld [vmem:[%s2081 + $0x8] sm:$0xff]
        %v2084 = vld [vmem:[%s2081 + $0x10] sm:$0xff]
        %v2085 = vld [vmem:[%s2081 + $0x18] sm:$0xff]
        %v2086 = vld [vmem:[%s2081 + $0x20] sm:$0xff]
        %v2087 = vld [vmem:[%s2081 + $0x28] sm:$0xff]
        %v2088 = vld [vmem:[%s2081 + $0x30] sm:$0xff]
        %v2089 = vld [vmem:[%s2081 + $0x38] sm:$0xff]
        %v2090 = vld [vmem:[%s2081 + $0x40] sm:$0xff]
        %v2091 = vld [vmem:[%s2081 + $0x48] sm:$0xff]
        %v2092 = vld [vmem:[%s2081 + $0x50] sm:$0xff]
        %v2093 = vld [vmem:[%s2081 + $0x58] sm:$0xff]
        %v2094 = vld [vmem:[%s2081 + $0x60] sm:$0xff]
        %v2095 = vld [vmem:[%s2081 + $0x68] sm:$0xff]
        %v2096 = vld [vmem:[%s2081 + $0x70] sm:$0xff]
        %v2097 = vld [vmem:[%s2081 + $0x78] sm:$0xff]
        %2098 = vmatprep.subr.mxu0 0.0
        %2099 = vmatpush1.msra.mxu0 %v496
        %2100 = vmatprep.subr.mxu0 0.0
        %2101 = vmatpush1.msra.mxu0 %v495
        %2102 = vmatprep.subr.mxu0 0.0
        %2103 = vmatpush1.msra.mxu0 %v494
        %2104 = vmatprep.subr.mxu0 0.0
        %2105 = vmatpush1.msra.mxu0 %v493
        %2106 = vmatprep.subr.mxu0 0.0
        %2107 = vmatpush1.msra.mxu0 %v492
        %2108 = vmatprep.subr.mxu0 0.0
        %2109 = vmatpush1.msra.mxu0 %v491
        %2110 = vmatprep.subr.mxu0 0.0
        %2111 = vmatpush1.msra.mxu0 %v490
        %2112 = vmatprep.subr.mxu0 0.0
        %2113 = vmatpush1.msra.mxu0 %v489
        %2114 = vmatprep.subr.mxu0 0.0
        %2115 = vmatpush1.msra.mxu0 %v488
        %2116 = vmatprep.subr.mxu0 0.0
        %2117 = vmatpush1.msra.mxu0 %v487
        %2118 = vmatprep.subr.mxu0 0.0
        %2119 = vmatpush1.msra.mxu0 %v486
        %2120 = vmatprep.subr.mxu0 0.0
        %2121 = vmatpush1.msra.mxu0 %v485
        %2122 = vmatprep.subr.mxu0 0.0
        %2123 = vmatpush1.msra.mxu0 %v484
        %2124 = vmatprep.subr.mxu0 0.0
        %2125 = vmatpush1.msra.mxu0 %v483
        %2126 = vmatprep.subr.mxu0 0.0
        %2127 = vmatpush1.msra.mxu0 %v482
        %2128 = vmatprep.subr.mxu0 0.0
        %2129 = vmatpush1.msra.mxu0 %v481
        %2130 = vmatprep.subr.mxu0 0.0
        %2131 = vmatpush2.msra.mxu0 %v512
        %2132 = vmatprep.subr.mxu0 0.0
        %2133 = vmatpush2.msra.mxu0 %v511
        %2134 = vmatprep.subr.mxu0 0.0
        %2135 = vmatpush2.msra.mxu0 %v510
        %2136 = vmatprep.subr.mxu0 0.0
        %2137 = vmatpush2.msra.mxu0 %v509
        %2138 = vmatprep.subr.mxu0 0.0
        %2139 = vmatpush2.msra.mxu0 %v508
        %2140 = vmatprep.subr.mxu0 0.0
        %2141 = vmatpush2.msra.mxu0 %v507
        %2142 = vmatprep.subr.mxu0 0.0
        %2143 = vmatpush2.msra.mxu0 %v506
        %2144 = vmatprep.subr.mxu0 0.0
        %2145 = vmatpush2.msra.mxu0 %v505
        %2146 = vmatprep.subr.mxu0 0.0
        %2147 = vmatpush2.msra.mxu0 %v504
        %2148 = vmatprep.subr.mxu0 0.0
        %2149 = vmatpush2.msra.mxu0 %v503
        %2150 = vmatprep.subr.mxu0 0.0
        %2151 = vmatpush2.msra.mxu0 %v502
        %2152 = vmatprep.subr.mxu0 0.0
        %2153 = vmatpush2.msra.mxu0 %v501
        %2154 = vmatprep.subr.mxu0 0.0
        %2155 = vmatpush2.msra.mxu0 %v500
        %2156 = vmatprep.subr.mxu0 0.0
        %2157 = vmatpush2.msra.mxu0 %v499
        %2158 = vmatprep.subr.mxu0 0.0
        %2159 = vmatpush2.msra.mxu0 %v498
        %2160 = vmatprep.subr.mxu0 0.0
        %2161 = vmatpush2.msra.mxu0 %v497
        %2162 = vmatprep.mubr.f32.mxu0 %v2083
        %2163 = vmatmul.mubr.f32.gmra.mxu0 %v2082
        %v2164 = vpop.f32.mrf.mxu0
        %v2165 = vadd.f32 0.0, %v2164
        %v2166 = vpop.f32.mrf.mxu0
        %2167 = vmatprep.mubr.f32.mxu0 %v2085
        %2168 = vmatmul.mubr.f32.gmra.mxu0 %v2084
        %v2169 = vpop.f32.mrf.mxu0
        %v2170 = vadd.f32 0.0, %v2169
        %v2171 = vpop.f32.mrf.mxu0
        %2172 = vmatprep.mubr.f32.mxu0 %v2087
        %2173 = vmatmul.mubr.f32.gmra.mxu0 %v2086
        %v2174 = vpop.f32.mrf.mxu0
        %v2175 = vadd.f32 0.0, %v2174
        %v2176 = vpop.f32.mrf.mxu0
        %2177 = vmatprep.mubr.f32.mxu0 %v2089
        %2178 = vmatmul.mubr.f32.gmra.mxu0 %v2088
        %v2179 = vpop.f32.mrf.mxu0
        %v2180 = vadd.f32 0.0, %v2179
        %v2181 = vpop.f32.mrf.mxu0
        %2182 = vmatprep.mubr.f32.mxu0 %v2091
        %2183 = vmatmul.mubr.f32.gmra.mxu0 %v2090
        %v2184 = vpop.f32.mrf.mxu0
        %v2185 = vadd.f32 0.0, %v2184
        %v2186 = vpop.f32.mrf.mxu0
        %2187 = vmatprep.mubr.f32.mxu0 %v2093
        %2188 = vmatmul.mubr.f32.gmra.mxu0 %v2092
        %v2189 = vpop.f32.mrf.mxu0
        %v2190 = vadd.f32 0.0, %v2189
        %v2191 = vpop.f32.mrf.mxu0
        %2192 = vmatprep.mubr.f32.mxu0 %v2095
        %2193 = vmatmul.mubr.f32.gmra.mxu0 %v2094
        %v2194 = vpop.f32.mrf.mxu0
        %v2195 = vadd.f32 0.0, %v2194
        %v2196 = vpop.f32.mrf.mxu0
        %2197 = vmatprep.mubr.f32.mxu0 %v2097
        %2198 = vmatmul.mubr.f32.gmra.mxu0 %v2096
        %v2199 = vpop.f32.mrf.mxu0
        %v2200 = vadd.f32 0.0, %v2199
        %v2201 = vpop.f32.mrf.mxu0
        %2202 = vdwg.mxu0
        %s2203 = scalar_lea.vmem %s2, 48
        %v2204 = vld [vmem:[%s2203] sm:$0x1f]
        %v2206 = vsel %vm759, %v2165, 0
        %v2209 = vsel %vm759, %v2170, 0
        %v2212 = vsel %vm759, %v2175, 0
        %v2215 = vsel %vm759, %v2180, 0
        %v2218 = vsel %vm759, %v2185, 0
        %v2221 = vsel %vm759, %v2190, 0
        %v2224 = vsel %vm759, %v2195, 0
        %v2227 = vsel %vm759, %v2200, 0
        %v2230 = vsel %vm784, %v2204, 0
        %2232 = vmatprep.subr.mxu0 0.0
        %2233 = vmatpush1.msra.mxu0 0.0
        %2234 = vmatprep.subr.mxu0 0.0
        %2235 = vmatpush1.msra.mxu0 0.0
        %2236 = vmatprep.subr.mxu0 0.0
        %2237 = vmatpush1.msra.mxu0 0.0
        %2238 = vmatprep.subr.mxu0 0.0
        %2239 = vmatpush1.msra.mxu0 0.0
        %2240 = vmatprep.subr.mxu0 0.0
        %2241 = vmatpush1.msra.mxu0 0.0
        %2242 = vmatprep.subr.mxu0 0.0
        %2243 = vmatpush1.msra.mxu0 0.0
        %2244 = vmatprep.subr.mxu0 0.0
        %2245 = vmatpush1.msra.mxu0 0.0
        %2246 = vmatprep.subr.mxu0 0.0
        %2247 = vmatpush1.msra.mxu0 0.0
        %2248 = vmatprep.subr.mxu0 0.0
        %2249 = vmatpush1.msra.mxu0 0.0
        %2250 = vmatprep.subr.mxu0 0.0
        %2251 = vmatpush1.msra.mxu0 0.0
        %2252 = vmatprep.subr.mxu0 0.0
        %2253 = vmatpush1.msra.mxu0 0.0
        %2254 = vmatprep.subr.mxu0 0.0
        %2255 = vmatpush1.msra.mxu0 0.0
        %2256 = vmatprep.subr.mxu0 0.0
        %2257 = vmatpush1.msra.mxu0 0.0
        %2258 = vmatprep.subr.mxu0 0.0
        %2259 = vmatpush1.msra.mxu0 0.0
        %2260 = vmatprep.subr.mxu0 0.0
        %2261 = vmatpush1.msra.mxu0 0.0
        %2262 = vmatprep.subr.mxu0 0.0
        %2263 = vmatpush1.msra.mxu0 %v2230
        %2264 = vmatprep.subr.mxu0 0.0
        %2265 = vmatpush2.msra.mxu0 0.0
        %2266 = vmatprep.subr.mxu0 0.0
        %2267 = vmatpush2.msra.mxu0 0.0
        %2268 = vmatprep.subr.mxu0 0.0
        %2269 = vmatpush2.msra.mxu0 0.0
        %2270 = vmatprep.subr.mxu0 0.0
        %2271 = vmatpush2.msra.mxu0 0.0
        %2272 = vmatprep.subr.mxu0 0.0
        %2273 = vmatpush2.msra.mxu0 0.0
        %2274 = vmatprep.subr.mxu0 0.0
        %2275 = vmatpush2.msra.mxu0 0.0
        %2276 = vmatprep.subr.mxu0 0.0
        %2277 = vmatpush2.msra.mxu0 0.0
        %2278 = vmatprep.subr.mxu0 0.0
        %2279 = vmatpush2.msra.mxu0 0.0
        %2280 = vmatprep.subr.mxu0 0.0
        %2281 = vmatpush2.msra.mxu0 0.0
        %2282 = vmatprep.subr.mxu0 0.0
        %2283 = vmatpush2.msra.mxu0 0.0
        %2284 = vmatprep.subr.mxu0 0.0
        %2285 = vmatpush2.msra.mxu0 0.0
        %2286 = vmatprep.subr.mxu0 0.0
        %2287 = vmatpush2.msra.mxu0 0.0
        %2288 = vmatprep.subr.mxu0 0.0
        %2289 = vmatpush2.msra.mxu0 0.0
        %2290 = vmatprep.subr.mxu0 0.0
        %2291 = vmatpush2.msra.mxu0 0.0
        %2292 = vmatprep.subr.mxu0 0.0
        %2293 = vmatpush2.msra.mxu0 0.0
        %2294 = vmatprep.subr.mxu0 0.0
        %2295 = vmatpush2.msra.mxu0 0.0
        %2296 = vmatprep.mubr.f32.mxu0 0.0
        %2297 = vmatmul.mubr.f32.gmra.mxu0 %v2206
        %v2298 = vpop.f32.mrf.mxu0
        %v2299 = vadd.f32 0.0, %v2298
        %v2300 = vpop.f32.mrf.mxu0
        %2301 = vmatprep.mubr.f32.mxu0 0.0
        %2302 = vmatmul.mubr.f32.gmra.mxu0 %v2209
        %v2303 = vpop.f32.mrf.mxu0
        %v2304 = vadd.f32 0.0, %v2303
        %v2305 = vpop.f32.mrf.mxu0
        %2306 = vmatprep.mubr.f32.mxu0 0.0
        %2307 = vmatmul.mubr.f32.gmra.mxu0 %v2212
        %v2308 = vpop.f32.mrf.mxu0
        %v2309 = vadd.f32 0.0, %v2308
        %v2310 = vpop.f32.mrf.mxu0
        %2311 = vmatprep.mubr.f32.mxu0 0.0
        %2312 = vmatmul.mubr.f32.gmra.mxu0 %v2215
        %v2313 = vpop.f32.mrf.mxu0
        %v2314 = vadd.f32 0.0, %v2313
        %v2315 = vpop.f32.mrf.mxu0
        %2316 = vmatprep.mubr.f32.mxu0 0.0
        %2317 = vmatmul.mubr.f32.gmra.mxu0 %v2218
        %v2318 = vpop.f32.mrf.mxu0
        %v2319 = vadd.f32 0.0, %v2318
        %v2320 = vpop.f32.mrf.mxu0
        %2321 = vmatprep.mubr.f32.mxu0 0.0
        %2322 = vmatmul.mubr.f32.gmra.mxu0 %v2221
        %v2323 = vpop.f32.mrf.mxu0
        %v2324 = vadd.f32 0.0, %v2323
        %v2325 = vpop.f32.mrf.mxu0
        %2326 = vmatprep.mubr.f32.mxu0 0.0
        %2327 = vmatmul.mubr.f32.gmra.mxu0 %v2224
        %v2328 = vpop.f32.mrf.mxu0
        %v2329 = vadd.f32 0.0, %v2328
        %v2330 = vpop.f32.mrf.mxu0
        %2331 = vmatprep.mubr.f32.mxu0 0.0
        %2332 = vmatmul.mubr.f32.gmra.mxu0 %v2227
        %v2333 = vpop.f32.mrf.mxu0
        %v2334 = vadd.f32 0.0, %v2333
        %v2335 = vpop.f32.mrf.mxu0
        %2336 = vdwg.mxu0
        %v2337 = vadd.f32 %v2073, %v2299
        %v2338 = vadd.f32 %v2074, %v2304
        %v2339 = vadd.f32 %v2075, %v2309
        %v2340 = vadd.f32 %v2076, %v2314
        %v2341 = vadd.f32 %v2077, %v2319
        %v2342 = vadd.f32 %v2078, %v2324
        %v2343 = vadd.f32 %v2079, %v2329
        %v2344 = vadd.f32 %v2080, %v2334
        %s2345 = scalar_lea.vmem [#allocation3], 896
        %v2346 = vld [vmem:[%s2345] sm:$0xff]
        %v2347 = vld [vmem:[%s2345 + $0x8] sm:$0xff]
        %v2348 = vld [vmem:[%s2345 + $0x10] sm:$0xff]
        %v2349 = vld [vmem:[%s2345 + $0x18] sm:$0xff]
        %v2350 = vld [vmem:[%s2345 + $0x20] sm:$0xff]
        %v2351 = vld [vmem:[%s2345 + $0x28] sm:$0xff]
        %v2352 = vld [vmem:[%s2345 + $0x30] sm:$0xff]
        %v2353 = vld [vmem:[%s2345 + $0x38] sm:$0xff]
        %v2354 = vld [vmem:[%s2345 + $0x40] sm:$0xff]
        %v2355 = vld [vmem:[%s2345 + $0x48] sm:$0xff]
        %v2356 = vld [vmem:[%s2345 + $0x50] sm:$0xff]
        %v2357 = vld [vmem:[%s2345 + $0x58] sm:$0xff]
        %v2358 = vld [vmem:[%s2345 + $0x60] sm:$0xff]
        %v2359 = vld [vmem:[%s2345 + $0x68] sm:$0xff]
        %v2360 = vld [vmem:[%s2345 + $0x70] sm:$0xff]
        %v2361 = vld [vmem:[%s2345 + $0x78] sm:$0xff]
        %2362 = vmatprep.subr.mxu0 0.0
        %2363 = vmatpush1.msra.mxu0 %v496
        %2364 = vmatprep.subr.mxu0 0.0
        %2365 = vmatpush1.msra.mxu0 %v495
        %2366 = vmatprep.subr.mxu0 0.0
        %2367 = vmatpush1.msra.mxu0 %v494
        %2368 = vmatprep.subr.mxu0 0.0
        %2369 = vmatpush1.msra.mxu0 %v493
        %2370 = vmatprep.subr.mxu0 0.0
        %2371 = vmatpush1.msra.mxu0 %v492
        %2372 = vmatprep.subr.mxu0 0.0
        %2373 = vmatpush1.msra.mxu0 %v491
        %2374 = vmatprep.subr.mxu0 0.0
        %2375 = vmatpush1.msra.mxu0 %v490
        %2376 = vmatprep.subr.mxu0 0.0
        %2377 = vmatpush1.msra.mxu0 %v489
        %2378 = vmatprep.subr.mxu0 0.0
        %2379 = vmatpush1.msra.mxu0 %v488
        %2380 = vmatprep.subr.mxu0 0.0
        %2381 = vmatpush1.msra.mxu0 %v487
        %2382 = vmatprep.subr.mxu0 0.0
        %2383 = vmatpush1.msra.mxu0 %v486
        %2384 = vmatprep.subr.mxu0 0.0
        %2385 = vmatpush1.msra.mxu0 %v485
        %2386 = vmatprep.subr.mxu0 0.0
        %2387 = vmatpush1.msra.mxu0 %v484
        %2388 = vmatprep.subr.mxu0 0.0
        %2389 = vmatpush1.msra.mxu0 %v483
        %2390 = vmatprep.subr.mxu0 0.0
        %2391 = vmatpush1.msra.mxu0 %v482
        %2392 = vmatprep.subr.mxu0 0.0
        %2393 = vmatpush1.msra.mxu0 %v481
        %2394 = vmatprep.subr.mxu0 0.0
        %2395 = vmatpush2.msra.mxu0 %v512
        %2396 = vmatprep.subr.mxu0 0.0
        %2397 = vmatpush2.msra.mxu0 %v511
        %2398 = vmatprep.subr.mxu0 0.0
        %2399 = vmatpush2.msra.mxu0 %v510
        %2400 = vmatprep.subr.mxu0 0.0
        %2401 = vmatpush2.msra.mxu0 %v509
        %2402 = vmatprep.subr.mxu0 0.0
        %2403 = vmatpush2.msra.mxu0 %v508
        %2404 = vmatprep.subr.mxu0 0.0
        %2405 = vmatpush2.msra.mxu0 %v507
        %2406 = vmatprep.subr.mxu0 0.0
        %2407 = vmatpush2.msra.mxu0 %v506
        %2408 = vmatprep.subr.mxu0 0.0
        %2409 = vmatpush2.msra.mxu0 %v505
        %2410 = vmatprep.subr.mxu0 0.0
        %2411 = vmatpush2.msra.mxu0 %v504
        %2412 = vmatprep.subr.mxu0 0.0
        %2413 = vmatpush2.msra.mxu0 %v503
        %2414 = vmatprep.subr.mxu0 0.0
        %2415 = vmatpush2.msra.mxu0 %v502
        %2416 = vmatprep.subr.mxu0 0.0
        %2417 = vmatpush2.msra.mxu0 %v501
        %2418 = vmatprep.subr.mxu0 0.0
        %2419 = vmatpush2.msra.mxu0 %v500
        %2420 = vmatprep.subr.mxu0 0.0
        %2421 = vmatpush2.msra.mxu0 %v499
        %2422 = vmatprep.subr.mxu0 0.0
        %2423 = vmatpush2.msra.mxu0 %v498
        %2424 = vmatprep.subr.mxu0 0.0
        %2425 = vmatpush2.msra.mxu0 %v497
        %2426 = vmatprep.mubr.f32.mxu0 %v2347
        %2427 = vmatmul.mubr.f32.gmra.mxu0 %v2346
        %v2428 = vpop.f32.mrf.mxu0
        %v2429 = vadd.f32 0.0, %v2428
        %v2430 = vpop.f32.mrf.mxu0
        %2431 = vmatprep.mubr.f32.mxu0 %v2349
        %2432 = vmatmul.mubr.f32.gmra.mxu0 %v2348
        %v2433 = vpop.f32.mrf.mxu0
        %v2434 = vadd.f32 0.0, %v2433
        %v2435 = vpop.f32.mrf.mxu0
        %2436 = vmatprep.mubr.f32.mxu0 %v2351
        %2437 = vmatmul.mubr.f32.gmra.mxu0 %v2350
        %v2438 = vpop.f32.mrf.mxu0
        %v2439 = vadd.f32 0.0, %v2438
        %v2440 = vpop.f32.mrf.mxu0
        %2441 = vmatprep.mubr.f32.mxu0 %v2353
        %2442 = vmatmul.mubr.f32.gmra.mxu0 %v2352
        %v2443 = vpop.f32.mrf.mxu0
        %v2444 = vadd.f32 0.0, %v2443
        %v2445 = vpop.f32.mrf.mxu0
        %2446 = vmatprep.mubr.f32.mxu0 %v2355
        %2447 = vmatmul.mubr.f32.gmra.mxu0 %v2354
        %v2448 = vpop.f32.mrf.mxu0
        %v2449 = vadd.f32 0.0, %v2448
        %v2450 = vpop.f32.mrf.mxu0
        %2451 = vmatprep.mubr.f32.mxu0 %v2357
        %2452 = vmatmul.mubr.f32.gmra.mxu0 %v2356
        %v2453 = vpop.f32.mrf.mxu0
        %v2454 = vadd.f32 0.0, %v2453
        %v2455 = vpop.f32.mrf.mxu0
        %2456 = vmatprep.mubr.f32.mxu0 %v2359
        %2457 = vmatmul.mubr.f32.gmra.mxu0 %v2358
        %v2458 = vpop.f32.mrf.mxu0
        %v2459 = vadd.f32 0.0, %v2458
        %v2460 = vpop.f32.mrf.mxu0
        %2461 = vmatprep.mubr.f32.mxu0 %v2361
        %2462 = vmatmul.mubr.f32.gmra.mxu0 %v2360
        %v2463 = vpop.f32.mrf.mxu0
        %v2464 = vadd.f32 0.0, %v2463
        %v2465 = vpop.f32.mrf.mxu0
        %2466 = vdwg.mxu0
        %s2467 = scalar_lea.vmem %s2, 56
        %v2468 = vld [vmem:[%s2467] sm:$0x1f]
        %v2470 = vsel %vm759, %v2429, 0
        %v2473 = vsel %vm759, %v2434, 0
        %v2476 = vsel %vm759, %v2439, 0
        %v2479 = vsel %vm759, %v2444, 0
        %v2482 = vsel %vm759, %v2449, 0
        %v2485 = vsel %vm759, %v2454, 0
        %v2488 = vsel %vm759, %v2459, 0
        %v2491 = vsel %vm759, %v2464, 0
        %v2494 = vsel %vm784, %v2468, 0
        %2496 = vmatprep.subr.mxu0 0.0
        %2497 = vmatpush1.msra.mxu0 0.0
        %2498 = vmatprep.subr.mxu0 0.0
        %2499 = vmatpush1.msra.mxu0 0.0
        %2500 = vmatprep.subr.mxu0 0.0
        %2501 = vmatpush1.msra.mxu0 0.0
        %2502 = vmatprep.subr.mxu0 0.0
        %2503 = vmatpush1.msra.mxu0 0.0
        %2504 = vmatprep.subr.mxu0 0.0
        %2505 = vmatpush1.msra.mxu0 0.0
        %2506 = vmatprep.subr.mxu0 0.0
        %2507 = vmatpush1.msra.mxu0 0.0
        %2508 = vmatprep.subr.mxu0 0.0
        %2509 = vmatpush1.msra.mxu0 0.0
        %2510 = vmatprep.subr.mxu0 0.0
        %2511 = vmatpush1.msra.mxu0 0.0
        %2512 = vmatprep.subr.mxu0 0.0
        %2513 = vmatpush1.msra.mxu0 0.0
        %2514 = vmatprep.subr.mxu0 0.0
        %2515 = vmatpush1.msra.mxu0 0.0
        %2516 = vmatprep.subr.mxu0 0.0
        %2517 = vmatpush1.msra.mxu0 0.0
        %2518 = vmatprep.subr.mxu0 0.0
        %2519 = vmatpush1.msra.mxu0 0.0
        %2520 = vmatprep.subr.mxu0 0.0
        %2521 = vmatpush1.msra.mxu0 0.0
        %2522 = vmatprep.subr.mxu0 0.0
        %2523 = vmatpush1.msra.mxu0 0.0
        %2524 = vmatprep.subr.mxu0 0.0
        %2525 = vmatpush1.msra.mxu0 0.0
        %2526 = vmatprep.subr.mxu0 0.0
        %2527 = vmatpush1.msra.mxu0 %v2494
        %2528 = vmatprep.subr.mxu0 0.0
        %2529 = vmatpush2.msra.mxu0 0.0
        %2530 = vmatprep.subr.mxu0 0.0
        %2531 = vmatpush2.msra.mxu0 0.0
        %2532 = vmatprep.subr.mxu0 0.0
        %2533 = vmatpush2.msra.mxu0 0.0
        %2534 = vmatprep.subr.mxu0 0.0
        %2535 = vmatpush2.msra.mxu0 0.0
        %2536 = vmatprep.subr.mxu0 0.0
        %2537 = vmatpush2.msra.mxu0 0.0
        %2538 = vmatprep.subr.mxu0 0.0
        %2539 = vmatpush2.msra.mxu0 0.0
        %2540 = vmatprep.subr.mxu0 0.0
        %2541 = vmatpush2.msra.mxu0 0.0
        %2542 = vmatprep.subr.mxu0 0.0
        %2543 = vmatpush2.msra.mxu0 0.0
        %2544 = vmatprep.subr.mxu0 0.0
        %2545 = vmatpush2.msra.mxu0 0.0
        %2546 = vmatprep.subr.mxu0 0.0
        %2547 = vmatpush2.msra.mxu0 0.0
        %2548 = vmatprep.subr.mxu0 0.0
        %2549 = vmatpush2.msra.mxu0 0.0
        %2550 = vmatprep.subr.mxu0 0.0
        %2551 = vmatpush2.msra.mxu0 0.0
        %2552 = vmatprep.subr.mxu0 0.0
        %2553 = vmatpush2.msra.mxu0 0.0
        %2554 = vmatprep.subr.mxu0 0.0
        %2555 = vmatpush2.msra.mxu0 0.0
        %2556 = vmatprep.subr.mxu0 0.0
        %2557 = vmatpush2.msra.mxu0 0.0
        %2558 = vmatprep.subr.mxu0 0.0
        %2559 = vmatpush2.msra.mxu0 0.0
        %2560 = vmatprep.mubr.f32.mxu0 0.0
        %2561 = vmatmul.mubr.f32.gmra.mxu0 %v2470
        %v2562 = vpop.f32.mrf.mxu0
        %v2563 = vadd.f32 0.0, %v2562
        %v2564 = vpop.f32.mrf.mxu0
        %2565 = vmatprep.mubr.f32.mxu0 0.0
        %2566 = vmatmul.mubr.f32.gmra.mxu0 %v2473
        %v2567 = vpop.f32.mrf.mxu0
        %v2568 = vadd.f32 0.0, %v2567
        %v2569 = vpop.f32.mrf.mxu0
        %2570 = vmatprep.mubr.f32.mxu0 0.0
        %2571 = vmatmul.mubr.f32.gmra.mxu0 %v2476
        %v2572 = vpop.f32.mrf.mxu0
        %v2573 = vadd.f32 0.0, %v2572
        %v2574 = vpop.f32.mrf.mxu0
        %2575 = vmatprep.mubr.f32.mxu0 0.0
        %2576 = vmatmul.mubr.f32.gmra.mxu0 %v2479
        %v2577 = vpop.f32.mrf.mxu0
        %v2578 = vadd.f32 0.0, %v2577
        %v2579 = vpop.f32.mrf.mxu0
        %2580 = vmatprep.mubr.f32.mxu0 0.0
        %2581 = vmatmul.mubr.f32.gmra.mxu0 %v2482
        %v2582 = vpop.f32.mrf.mxu0
        %v2583 = vadd.f32 0.0, %v2582
        %v2584 = vpop.f32.mrf.mxu0
        %2585 = vmatprep.mubr.f32.mxu0 0.0
        %2586 = vmatmul.mubr.f32.gmra.mxu0 %v2485
        %v2587 = vpop.f32.mrf.mxu0
        %v2588 = vadd.f32 0.0, %v2587
        %v2589 = vpop.f32.mrf.mxu0
        %2590 = vmatprep.mubr.f32.mxu0 0.0
        %2591 = vmatmul.mubr.f32.gmra.mxu0 %v2488
        %v2592 = vpop.f32.mrf.mxu0
        %v2593 = vadd.f32 0.0, %v2592
        %v2594 = vpop.f32.mrf.mxu0
        %2595 = vmatprep.mubr.f32.mxu0 0.0
        %2596 = vmatmul.mubr.f32.gmra.mxu0 %v2491
        %v2597 = vpop.f32.mrf.mxu0
        %v2598 = vadd.f32 0.0, %v2597
        %v2599 = vpop.f32.mrf.mxu0
        %2600 = vdwg.mxu0
        %v2601 = vadd.f32 %v2337, %v2563
        %v2602 = vadd.f32 %v2338, %v2568
        %v2603 = vadd.f32 %v2339, %v2573
        %v2604 = vadd.f32 %v2340, %v2578
        %v2605 = vadd.f32 %v2341, %v2583
        %v2606 = vadd.f32 %v2342, %v2588
        %v2607 = vadd.f32 %v2343, %v2593
        %v2608 = vadd.f32 %v2344, %v2598
        %s2609 = scalar_lea.vmem [#allocation3], 1024
        %v2610 = vld [vmem:[%s2609] sm:$0xff]
        %v2611 = vld [vmem:[%s2609 + $0x8] sm:$0xff]
        %v2612 = vld [vmem:[%s2609 + $0x10] sm:$0xff]
        %v2613 = vld [vmem:[%s2609 + $0x18] sm:$0xff]
        %v2614 = vld [vmem:[%s2609 + $0x20] sm:$0xff]
        %v2615 = vld [vmem:[%s2609 + $0x28] sm:$0xff]
        %v2616 = vld [vmem:[%s2609 + $0x30] sm:$0xff]
        %v2617 = vld [vmem:[%s2609 + $0x38] sm:$0xff]
        %v2618 = vld [vmem:[%s2609 + $0x40] sm:$0xff]
        %v2619 = vld [vmem:[%s2609 + $0x48] sm:$0xff]
        %v2620 = vld [vmem:[%s2609 + $0x50] sm:$0xff]
        %v2621 = vld [vmem:[%s2609 + $0x58] sm:$0xff]
        %v2622 = vld [vmem:[%s2609 + $0x60] sm:$0xff]
        %v2623 = vld [vmem:[%s2609 + $0x68] sm:$0xff]
        %v2624 = vld [vmem:[%s2609 + $0x70] sm:$0xff]
        %v2625 = vld [vmem:[%s2609 + $0x78] sm:$0xff]
        %2626 = vmatprep.subr.mxu0 0.0
        %2627 = vmatpush1.msra.mxu0 %v496
        %2628 = vmatprep.subr.mxu0 0.0
        %2629 = vmatpush1.msra.mxu0 %v495
        %2630 = vmatprep.subr.mxu0 0.0
        %2631 = vmatpush1.msra.mxu0 %v494
        %2632 = vmatprep.subr.mxu0 0.0
        %2633 = vmatpush1.msra.mxu0 %v493
        %2634 = vmatprep.subr.mxu0 0.0
        %2635 = vmatpush1.msra.mxu0 %v492
        %2636 = vmatprep.subr.mxu0 0.0
        %2637 = vmatpush1.msra.mxu0 %v491
        %2638 = vmatprep.subr.mxu0 0.0
        %2639 = vmatpush1.msra.mxu0 %v490
        %2640 = vmatprep.subr.mxu0 0.0
        %2641 = vmatpush1.msra.mxu0 %v489
        %2642 = vmatprep.subr.mxu0 0.0
        %2643 = vmatpush1.msra.mxu0 %v488
        %2644 = vmatprep.subr.mxu0 0.0
        %2645 = vmatpush1.msra.mxu0 %v487
        %2646 = vmatprep.subr.mxu0 0.0
        %2647 = vmatpush1.msra.mxu0 %v486
        %2648 = vmatprep.subr.mxu0 0.0
        %2649 = vmatpush1.msra.mxu0 %v485
        %2650 = vmatprep.subr.mxu0 0.0
        %2651 = vmatpush1.msra.mxu0 %v484
        %2652 = vmatprep.subr.mxu0 0.0
        %2653 = vmatpush1.msra.mxu0 %v483
        %2654 = vmatprep.subr.mxu0 0.0
        %2655 = vmatpush1.msra.mxu0 %v482
        %2656 = vmatprep.subr.mxu0 0.0
        %2657 = vmatpush1.msra.mxu0 %v481
        %2658 = vmatprep.subr.mxu0 0.0
        %2659 = vmatpush2.msra.mxu0 %v512
        %2660 = vmatprep.subr.mxu0 0.0
        %2661 = vmatpush2.msra.mxu0 %v511
        %2662 = vmatprep.subr.mxu0 0.0
        %2663 = vmatpush2.msra.mxu0 %v510
        %2664 = vmatprep.subr.mxu0 0.0
        %2665 = vmatpush2.msra.mxu0 %v509
        %2666 = vmatprep.subr.mxu0 0.0
        %2667 = vmatpush2.msra.mxu0 %v508
        %2668 = vmatprep.subr.mxu0 0.0
        %2669 = vmatpush2.msra.mxu0 %v507
        %2670 = vmatprep.subr.mxu0 0.0
        %2671 = vmatpush2.msra.mxu0 %v506
        %2672 = vmatprep.subr.mxu0 0.0
        %2673 = vmatpush2.msra.mxu0 %v505
        %2674 = vmatprep.subr.mxu0 0.0
        %2675 = vmatpush2.msra.mxu0 %v504
        %2676 = vmatprep.subr.mxu0 0.0
        %2677 = vmatpush2.msra.mxu0 %v503
        %2678 = vmatprep.subr.mxu0 0.0
        %2679 = vmatpush2.msra.mxu0 %v502
        %2680 = vmatprep.subr.mxu0 0.0
        %2681 = vmatpush2.msra.mxu0 %v501
        %2682 = vmatprep.subr.mxu0 0.0
        %2683 = vmatpush2.msra.mxu0 %v500
        %2684 = vmatprep.subr.mxu0 0.0
        %2685 = vmatpush2.msra.mxu0 %v499
        %2686 = vmatprep.subr.mxu0 0.0
        %2687 = vmatpush2.msra.mxu0 %v498
        %2688 = vmatprep.subr.mxu0 0.0
        %2689 = vmatpush2.msra.mxu0 %v497
        %2690 = vmatprep.mubr.f32.mxu0 %v2611
        %2691 = vmatmul.mubr.f32.gmra.mxu0 %v2610
        %v2692 = vpop.f32.mrf.mxu0
        %v2693 = vadd.f32 0.0, %v2692
        %v2694 = vpop.f32.mrf.mxu0
        %2695 = vmatprep.mubr.f32.mxu0 %v2613
        %2696 = vmatmul.mubr.f32.gmra.mxu0 %v2612
        %v2697 = vpop.f32.mrf.mxu0
        %v2698 = vadd.f32 0.0, %v2697
        %v2699 = vpop.f32.mrf.mxu0
        %2700 = vmatprep.mubr.f32.mxu0 %v2615
        %2701 = vmatmul.mubr.f32.gmra.mxu0 %v2614
        %v2702 = vpop.f32.mrf.mxu0
        %v2703 = vadd.f32 0.0, %v2702
        %v2704 = vpop.f32.mrf.mxu0
        %2705 = vmatprep.mubr.f32.mxu0 %v2617
        %2706 = vmatmul.mubr.f32.gmra.mxu0 %v2616
        %v2707 = vpop.f32.mrf.mxu0
        %v2708 = vadd.f32 0.0, %v2707
        %v2709 = vpop.f32.mrf.mxu0
        %2710 = vmatprep.mubr.f32.mxu0 %v2619
        %2711 = vmatmul.mubr.f32.gmra.mxu0 %v2618
        %v2712 = vpop.f32.mrf.mxu0
        %v2713 = vadd.f32 0.0, %v2712
        %v2714 = vpop.f32.mrf.mxu0
        %2715 = vmatprep.mubr.f32.mxu0 %v2621
        %2716 = vmatmul.mubr.f32.gmra.mxu0 %v2620
        %v2717 = vpop.f32.mrf.mxu0
        %v2718 = vadd.f32 0.0, %v2717
        %v2719 = vpop.f32.mrf.mxu0
        %2720 = vmatprep.mubr.f32.mxu0 %v2623
        %2721 = vmatmul.mubr.f32.gmra.mxu0 %v2622
        %v2722 = vpop.f32.mrf.mxu0
        %v2723 = vadd.f32 0.0, %v2722
        %v2724 = vpop.f32.mrf.mxu0
        %2725 = vmatprep.mubr.f32.mxu0 %v2625
        %2726 = vmatmul.mubr.f32.gmra.mxu0 %v2624
        %v2727 = vpop.f32.mrf.mxu0
        %v2728 = vadd.f32 0.0, %v2727
        %v2729 = vpop.f32.mrf.mxu0
        %2730 = vdwg.mxu0
        %s2731 = scalar_lea.vmem %s2, 64
        %v2732 = vld [vmem:[%s2731] sm:$0x1f]
        %v2734 = vsel %vm759, %v2693, 0
        %v2737 = vsel %vm759, %v2698, 0
        %v2740 = vsel %vm759, %v2703, 0
        %v2743 = vsel %vm759, %v2708, 0
        %v2746 = vsel %vm759, %v2713, 0
        %v2749 = vsel %vm759, %v2718, 0
        %v2752 = vsel %vm759, %v2723, 0
        %v2755 = vsel %vm759, %v2728, 0
        %v2758 = vsel %vm784, %v2732, 0
        %2760 = vmatprep.subr.mxu0 0.0
        %2761 = vmatpush1.msra.mxu0 0.0
        %2762 = vmatprep.subr.mxu0 0.0
        %2763 = vmatpush1.msra.mxu0 0.0
        %2764 = vmatprep.subr.mxu0 0.0
        %2765 = vmatpush1.msra.mxu0 0.0
        %2766 = vmatprep.subr.mxu0 0.0
        %2767 = vmatpush1.msra.mxu0 0.0
        %2768 = vmatprep.subr.mxu0 0.0
        %2769 = vmatpush1.msra.mxu0 0.0
        %2770 = vmatprep.subr.mxu0 0.0
        %2771 = vmatpush1.msra.mxu0 0.0
        %2772 = vmatprep.subr.mxu0 0.0
        %2773 = vmatpush1.msra.mxu0 0.0
        %2774 = vmatprep.subr.mxu0 0.0
        %2775 = vmatpush1.msra.mxu0 0.0
        %2776 = vmatprep.subr.mxu0 0.0
        %2777 = vmatpush1.msra.mxu0 0.0
        %2778 = vmatprep.subr.mxu0 0.0
        %2779 = vmatpush1.msra.mxu0 0.0
        %2780 = vmatprep.subr.mxu0 0.0
        %2781 = vmatpush1.msra.mxu0 0.0
        %2782 = vmatprep.subr.mxu0 0.0
        %2783 = vmatpush1.msra.mxu0 0.0
        %2784 = vmatprep.subr.mxu0 0.0
        %2785 = vmatpush1.msra.mxu0 0.0
        %2786 = vmatprep.subr.mxu0 0.0
        %2787 = vmatpush1.msra.mxu0 0.0
        %2788 = vmatprep.subr.mxu0 0.0
        %2789 = vmatpush1.msra.mxu0 0.0
        %2790 = vmatprep.subr.mxu0 0.0
        %2791 = vmatpush1.msra.mxu0 %v2758
        %2792 = vmatprep.subr.mxu0 0.0
        %2793 = vmatpush2.msra.mxu0 0.0
        %2794 = vmatprep.subr.mxu0 0.0
        %2795 = vmatpush2.msra.mxu0 0.0
        %2796 = vmatprep.subr.mxu0 0.0
        %2797 = vmatpush2.msra.mxu0 0.0
        %2798 = vmatprep.subr.mxu0 0.0
        %2799 = vmatpush2.msra.mxu0 0.0
        %2800 = vmatprep.subr.mxu0 0.0
        %2801 = vmatpush2.msra.mxu0 0.0
        %2802 = vmatprep.subr.mxu0 0.0
        %2803 = vmatpush2.msra.mxu0 0.0
        %2804 = vmatprep.subr.mxu0 0.0
        %2805 = vmatpush2.msra.mxu0 0.0
        %2806 = vmatprep.subr.mxu0 0.0
        %2807 = vmatpush2.msra.mxu0 0.0
        %2808 = vmatprep.subr.mxu0 0.0
        %2809 = vmatpush2.msra.mxu0 0.0
        %2810 = vmatprep.subr.mxu0 0.0
        %2811 = vmatpush2.msra.mxu0 0.0
        %2812 = vmatprep.subr.mxu0 0.0
        %2813 = vmatpush2.msra.mxu0 0.0
        %2814 = vmatprep.subr.mxu0 0.0
        %2815 = vmatpush2.msra.mxu0 0.0
        %2816 = vmatprep.subr.mxu0 0.0
        %2817 = vmatpush2.msra.mxu0 0.0
        %2818 = vmatprep.subr.mxu0 0.0
        %2819 = vmatpush2.msra.mxu0 0.0
        %2820 = vmatprep.subr.mxu0 0.0
        %2821 = vmatpush2.msra.mxu0 0.0
        %2822 = vmatprep.subr.mxu0 0.0
        %2823 = vmatpush2.msra.mxu0 0.0
        %2824 = vmatprep.mubr.f32.mxu0 0.0
        %2825 = vmatmul.mubr.f32.gmra.mxu0 %v2734
        %v2826 = vpop.f32.mrf.mxu0
        %v2827 = vadd.f32 0.0, %v2826
        %v2828 = vpop.f32.mrf.mxu0
        %2829 = vmatprep.mubr.f32.mxu0 0.0
        %2830 = vmatmul.mubr.f32.gmra.mxu0 %v2737
        %v2831 = vpop.f32.mrf.mxu0
        %v2832 = vadd.f32 0.0, %v2831
        %v2833 = vpop.f32.mrf.mxu0
        %2834 = vmatprep.mubr.f32.mxu0 0.0
        %2835 = vmatmul.mubr.f32.gmra.mxu0 %v2740
        %v2836 = vpop.f32.mrf.mxu0
        %v2837 = vadd.f32 0.0, %v2836
        %v2838 = vpop.f32.mrf.mxu0
        %2839 = vmatprep.mubr.f32.mxu0 0.0
        %2840 = vmatmul.mubr.f32.gmra.mxu0 %v2743
        %v2841 = vpop.f32.mrf.mxu0
        %v2842 = vadd.f32 0.0, %v2841
        %v2843 = vpop.f32.mrf.mxu0
        %2844 = vmatprep.mubr.f32.mxu0 0.0
        %2845 = vmatmul.mubr.f32.gmra.mxu0 %v2746
        %v2846 = vpop.f32.mrf.mxu0
        %v2847 = vadd.f32 0.0, %v2846
        %v2848 = vpop.f32.mrf.mxu0
        %2849 = vmatprep.mubr.f32.mxu0 0.0
        %2850 = vmatmul.mubr.f32.gmra.mxu0 %v2749
        %v2851 = vpop.f32.mrf.mxu0
        %v2852 = vadd.f32 0.0, %v2851
        %v2853 = vpop.f32.mrf.mxu0
        %2854 = vmatprep.mubr.f32.mxu0 0.0
        %2855 = vmatmul.mubr.f32.gmra.mxu0 %v2752
        %v2856 = vpop.f32.mrf.mxu0
        %v2857 = vadd.f32 0.0, %v2856
        %v2858 = vpop.f32.mrf.mxu0
        %2859 = vmatprep.mubr.f32.mxu0 0.0
        %2860 = vmatmul.mubr.f32.gmra.mxu0 %v2755
        %v2861 = vpop.f32.mrf.mxu0
        %v2862 = vadd.f32 0.0, %v2861
        %v2863 = vpop.f32.mrf.mxu0
        %2864 = vdwg.mxu0
        %v2865 = vadd.f32 %v2601, %v2827
        %v2866 = vadd.f32 %v2602, %v2832
        %v2867 = vadd.f32 %v2603, %v2837
        %v2868 = vadd.f32 %v2604, %v2842
        %v2869 = vadd.f32 %v2605, %v2847
        %v2870 = vadd.f32 %v2606, %v2852
        %v2871 = vadd.f32 %v2607, %v2857
        %v2872 = vadd.f32 %v2608, %v2862
        %s2873 = scalar_lea.vmem [#allocation3], 1152
        %v2874 = vld [vmem:[%s2873] sm:$0xff]
        %v2875 = vld [vmem:[%s2873 + $0x8] sm:$0xff]
        %v2876 = vld [vmem:[%s2873 + $0x10] sm:$0xff]
        %v2877 = vld [vmem:[%s2873 + $0x18] sm:$0xff]
        %v2878 = vld [vmem:[%s2873 + $0x20] sm:$0xff]
        %v2879 = vld [vmem:[%s2873 + $0x28] sm:$0xff]
        %v2880 = vld [vmem:[%s2873 + $0x30] sm:$0xff]
        %v2881 = vld [vmem:[%s2873 + $0x38] sm:$0xff]
        %v2882 = vld [vmem:[%s2873 + $0x40] sm:$0xff]
        %v2883 = vld [vmem:[%s2873 + $0x48] sm:$0xff]
        %v2884 = vld [vmem:[%s2873 + $0x50] sm:$0xff]
        %v2885 = vld [vmem:[%s2873 + $0x58] sm:$0xff]
        %v2886 = vld [vmem:[%s2873 + $0x60] sm:$0xff]
        %v2887 = vld [vmem:[%s2873 + $0x68] sm:$0xff]
        %v2888 = vld [vmem:[%s2873 + $0x70] sm:$0xff]
        %v2889 = vld [vmem:[%s2873 + $0x78] sm:$0xff]
        %2890 = vmatprep.subr.mxu0 0.0
        %2891 = vmatpush1.msra.mxu0 %v496
        %2892 = vmatprep.subr.mxu0 0.0
        %2893 = vmatpush1.msra.mxu0 %v495
        %2894 = vmatprep.subr.mxu0 0.0
        %2895 = vmatpush1.msra.mxu0 %v494
        %2896 = vmatprep.subr.mxu0 0.0
        %2897 = vmatpush1.msra.mxu0 %v493
        %2898 = vmatprep.subr.mxu0 0.0
        %2899 = vmatpush1.msra.mxu0 %v492
        %2900 = vmatprep.subr.mxu0 0.0
        %2901 = vmatpush1.msra.mxu0 %v491
        %2902 = vmatprep.subr.mxu0 0.0
        %2903 = vmatpush1.msra.mxu0 %v490
        %2904 = vmatprep.subr.mxu0 0.0
        %2905 = vmatpush1.msra.mxu0 %v489
        %2906 = vmatprep.subr.mxu0 0.0
        %2907 = vmatpush1.msra.mxu0 %v488
        %2908 = vmatprep.subr.mxu0 0.0
        %2909 = vmatpush1.msra.mxu0 %v487
        %2910 = vmatprep.subr.mxu0 0.0
        %2911 = vmatpush1.msra.mxu0 %v486
        %2912 = vmatprep.subr.mxu0 0.0
        %2913 = vmatpush1.msra.mxu0 %v485
        %2914 = vmatprep.subr.mxu0 0.0
        %2915 = vmatpush1.msra.mxu0 %v484
        %2916 = vmatprep.subr.mxu0 0.0
        %2917 = vmatpush1.msra.mxu0 %v483
        %2918 = vmatprep.subr.mxu0 0.0
        %2919 = vmatpush1.msra.mxu0 %v482
        %2920 = vmatprep.subr.mxu0 0.0
        %2921 = vmatpush1.msra.mxu0 %v481
        %2922 = vmatprep.subr.mxu0 0.0
        %2923 = vmatpush2.msra.mxu0 %v512
        %2924 = vmatprep.subr.mxu0 0.0
        %2925 = vmatpush2.msra.mxu0 %v511
        %2926 = vmatprep.subr.mxu0 0.0
        %2927 = vmatpush2.msra.mxu0 %v510
        %2928 = vmatprep.subr.mxu0 0.0
        %2929 = vmatpush2.msra.mxu0 %v509
        %2930 = vmatprep.subr.mxu0 0.0
        %2931 = vmatpush2.msra.mxu0 %v508
        %2932 = vmatprep.subr.mxu0 0.0
        %2933 = vmatpush2.msra.mxu0 %v507
        %2934 = vmatprep.subr.mxu0 0.0
        %2935 = vmatpush2.msra.mxu0 %v506
        %2936 = vmatprep.subr.mxu0 0.0
        %2937 = vmatpush2.msra.mxu0 %v505
        %2938 = vmatprep.subr.mxu0 0.0
        %2939 = vmatpush2.msra.mxu0 %v504
        %2940 = vmatprep.subr.mxu0 0.0
        %2941 = vmatpush2.msra.mxu0 %v503
        %2942 = vmatprep.subr.mxu0 0.0
        %2943 = vmatpush2.msra.mxu0 %v502
        %2944 = vmatprep.subr.mxu0 0.0
        %2945 = vmatpush2.msra.mxu0 %v501
        %2946 = vmatprep.subr.mxu0 0.0
        %2947 = vmatpush2.msra.mxu0 %v500
        %2948 = vmatprep.subr.mxu0 0.0
        %2949 = vmatpush2.msra.mxu0 %v499
        %2950 = vmatprep.subr.mxu0 0.0
        %2951 = vmatpush2.msra.mxu0 %v498
        %2952 = vmatprep.subr.mxu0 0.0
        %2953 = vmatpush2.msra.mxu0 %v497
        %2954 = vmatprep.mubr.f32.mxu0 %v2875
        %2955 = vmatmul.mubr.f32.gmra.mxu0 %v2874
        %v2956 = vpop.f32.mrf.mxu0
        %v2957 = vadd.f32 0.0, %v2956
        %v2958 = vpop.f32.mrf.mxu0
        %2959 = vmatprep.mubr.f32.mxu0 %v2877
        %2960 = vmatmul.mubr.f32.gmra.mxu0 %v2876
        %v2961 = vpop.f32.mrf.mxu0
        %v2962 = vadd.f32 0.0, %v2961
        %v2963 = vpop.f32.mrf.mxu0
        %2964 = vmatprep.mubr.f32.mxu0 %v2879
        %2965 = vmatmul.mubr.f32.gmra.mxu0 %v2878
        %v2966 = vpop.f32.mrf.mxu0
        %v2967 = vadd.f32 0.0, %v2966
        %v2968 = vpop.f32.mrf.mxu0
        %2969 = vmatprep.mubr.f32.mxu0 %v2881
        %2970 = vmatmul.mubr.f32.gmra.mxu0 %v2880
        %v2971 = vpop.f32.mrf.mxu0
        %v2972 = vadd.f32 0.0, %v2971
        %v2973 = vpop.f32.mrf.mxu0
        %2974 = vmatprep.mubr.f32.mxu0 %v2883
        %2975 = vmatmul.mubr.f32.gmra.mxu0 %v2882
        %v2976 = vpop.f32.mrf.mxu0
        %v2977 = vadd.f32 0.0, %v2976
        %v2978 = vpop.f32.mrf.mxu0
        %2979 = vmatprep.mubr.f32.mxu0 %v2885
        %2980 = vmatmul.mubr.f32.gmra.mxu0 %v2884
        %v2981 = vpop.f32.mrf.mxu0
        %v2982 = vadd.f32 0.0, %v2981
        %v2983 = vpop.f32.mrf.mxu0
        %2984 = vmatprep.mubr.f32.mxu0 %v2887
        %2985 = vmatmul.mubr.f32.gmra.mxu0 %v2886
        %v2986 = vpop.f32.mrf.mxu0
        %v2987 = vadd.f32 0.0, %v2986
        %v2988 = vpop.f32.mrf.mxu0
        %2989 = vmatprep.mubr.f32.mxu0 %v2889
        %2990 = vmatmul.mubr.f32.gmra.mxu0 %v2888
        %v2991 = vpop.f32.mrf.mxu0
        %v2992 = vadd.f32 0.0, %v2991
        %v2993 = vpop.f32.mrf.mxu0
        %2994 = vdwg.mxu0
        %s2995 = scalar_lea.vmem %s2, 72
        %v2996 = vld [vmem:[%s2995] sm:$0x1f]
        %v2998 = vsel %vm759, %v2957, 0
        %v3001 = vsel %vm759, %v2962, 0
        %v3004 = vsel %vm759, %v2967, 0
        %v3007 = vsel %vm759, %v2972, 0
        %v3010 = vsel %vm759, %v2977, 0
        %v3013 = vsel %vm759, %v2982, 0
        %v3016 = vsel %vm759, %v2987, 0
        %v3019 = vsel %vm759, %v2992, 0
        %v3022 = vsel %vm784, %v2996, 0
        %3024 = vmatprep.subr.mxu0 0.0
        %3025 = vmatpush1.msra.mxu0 0.0
        %3026 = vmatprep.subr.mxu0 0.0
        %3027 = vmatpush1.msra.mxu0 0.0
        %3028 = vmatprep.subr.mxu0 0.0
        %3029 = vmatpush1.msra.mxu0 0.0
        %3030 = vmatprep.subr.mxu0 0.0
        %3031 = vmatpush1.msra.mxu0 0.0
        %3032 = vmatprep.subr.mxu0 0.0
        %3033 = vmatpush1.msra.mxu0 0.0
        %3034 = vmatprep.subr.mxu0 0.0
        %3035 = vmatpush1.msra.mxu0 0.0
        %3036 = vmatprep.subr.mxu0 0.0
        %3037 = vmatpush1.msra.mxu0 0.0
        %3038 = vmatprep.subr.mxu0 0.0
        %3039 = vmatpush1.msra.mxu0 0.0
        %3040 = vmatprep.subr.mxu0 0.0
        %3041 = vmatpush1.msra.mxu0 0.0
        %3042 = vmatprep.subr.mxu0 0.0
        %3043 = vmatpush1.msra.mxu0 0.0
        %3044 = vmatprep.subr.mxu0 0.0
        %3045 = vmatpush1.msra.mxu0 0.0
        %3046 = vmatprep.subr.mxu0 0.0
        %3047 = vmatpush1.msra.mxu0 0.0
        %3048 = vmatprep.subr.mxu0 0.0
        %3049 = vmatpush1.msra.mxu0 0.0
        %3050 = vmatprep.subr.mxu0 0.0
        %3051 = vmatpush1.msra.mxu0 0.0
        %3052 = vmatprep.subr.mxu0 0.0
        %3053 = vmatpush1.msra.mxu0 0.0
        %3054 = vmatprep.subr.mxu0 0.0
        %3055 = vmatpush1.msra.mxu0 %v3022
        %3056 = vmatprep.subr.mxu0 0.0
        %3057 = vmatpush2.msra.mxu0 0.0
        %3058 = vmatprep.subr.mxu0 0.0
        %3059 = vmatpush2.msra.mxu0 0.0
        %3060 = vmatprep.subr.mxu0 0.0
        %3061 = vmatpush2.msra.mxu0 0.0
        %3062 = vmatprep.subr.mxu0 0.0
        %3063 = vmatpush2.msra.mxu0 0.0
        %3064 = vmatprep.subr.mxu0 0.0
        %3065 = vmatpush2.msra.mxu0 0.0
        %3066 = vmatprep.subr.mxu0 0.0
        %3067 = vmatpush2.msra.mxu0 0.0
        %3068 = vmatprep.subr.mxu0 0.0
        %3069 = vmatpush2.msra.mxu0 0.0
        %3070 = vmatprep.subr.mxu0 0.0
        %3071 = vmatpush2.msra.mxu0 0.0
        %3072 = vmatprep.subr.mxu0 0.0
        %3073 = vmatpush2.msra.mxu0 0.0
        %3074 = vmatprep.subr.mxu0 0.0
        %3075 = vmatpush2.msra.mxu0 0.0
        %3076 = vmatprep.subr.mxu0 0.0
        %3077 = vmatpush2.msra.mxu0 0.0
        %3078 = vmatprep.subr.mxu0 0.0
        %3079 = vmatpush2.msra.mxu0 0.0
        %3080 = vmatprep.subr.mxu0 0.0
        %3081 = vmatpush2.msra.mxu0 0.0
        %3082 = vmatprep.subr.mxu0 0.0
        %3083 = vmatpush2.msra.mxu0 0.0
        %3084 = vmatprep.subr.mxu0 0.0
        %3085 = vmatpush2.msra.mxu0 0.0
        %3086 = vmatprep.subr.mxu0 0.0
        %3087 = vmatpush2.msra.mxu0 0.0
        %3088 = vmatprep.mubr.f32.mxu0 0.0
        %3089 = vmatmul.mubr.f32.gmra.mxu0 %v2998
        %v3090 = vpop.f32.mrf.mxu0
        %v3091 = vadd.f32 0.0, %v3090
        %v3092 = vpop.f32.mrf.mxu0
        %3093 = vmatprep.mubr.f32.mxu0 0.0
        %3094 = vmatmul.mubr.f32.gmra.mxu0 %v3001
        %v3095 = vpop.f32.mrf.mxu0
        %v3096 = vadd.f32 0.0, %v3095
        %v3097 = vpop.f32.mrf.mxu0
        %3098 = vmatprep.mubr.f32.mxu0 0.0
        %3099 = vmatmul.mubr.f32.gmra.mxu0 %v3004
        %v3100 = vpop.f32.mrf.mxu0
        %v3101 = vadd.f32 0.0, %v3100
        %v3102 = vpop.f32.mrf.mxu0
        %3103 = vmatprep.mubr.f32.mxu0 0.0
        %3104 = vmatmul.mubr.f32.gmra.mxu0 %v3007
        %v3105 = vpop.f32.mrf.mxu0
        %v3106 = vadd.f32 0.0, %v3105
        %v3107 = vpop.f32.mrf.mxu0
        %3108 = vmatprep.mubr.f32.mxu0 0.0
        %3109 = vmatmul.mubr.f32.gmra.mxu0 %v3010
        %v3110 = vpop.f32.mrf.mxu0
        %v3111 = vadd.f32 0.0, %v3110
        %v3112 = vpop.f32.mrf.mxu0
        %3113 = vmatprep.mubr.f32.mxu0 0.0
        %3114 = vmatmul.mubr.f32.gmra.mxu0 %v3013
        %v3115 = vpop.f32.mrf.mxu0
        %v3116 = vadd.f32 0.0, %v3115
        %v3117 = vpop.f32.mrf.mxu0
        %3118 = vmatprep.mubr.f32.mxu0 0.0
        %3119 = vmatmul.mubr.f32.gmra.mxu0 %v3016
        %v3120 = vpop.f32.mrf.mxu0
        %v3121 = vadd.f32 0.0, %v3120
        %v3122 = vpop.f32.mrf.mxu0
        %3123 = vmatprep.mubr.f32.mxu0 0.0
        %3124 = vmatmul.mubr.f32.gmra.mxu0 %v3019
        %v3125 = vpop.f32.mrf.mxu0
        %v3126 = vadd.f32 0.0, %v3125
        %v3127 = vpop.f32.mrf.mxu0
        %3128 = vdwg.mxu0
        %v3129 = vadd.f32 %v2865, %v3091
        %v3130 = vadd.f32 %v2866, %v3096
        %v3131 = vadd.f32 %v2867, %v3101
        %v3132 = vadd.f32 %v2868, %v3106
        %v3133 = vadd.f32 %v2869, %v3111
        %v3134 = vadd.f32 %v2870, %v3116
        %v3135 = vadd.f32 %v2871, %v3121
        %v3136 = vadd.f32 %v2872, %v3126
        %s3137 = scalar_lea.vmem [#allocation3], 1280
        %v3138 = vld [vmem:[%s3137] sm:$0xff]
        %v3139 = vld [vmem:[%s3137 + $0x8] sm:$0xff]
        %v3140 = vld [vmem:[%s3137 + $0x10] sm:$0xff]
        %v3141 = vld [vmem:[%s3137 + $0x18] sm:$0xff]
        %v3142 = vld [vmem:[%s3137 + $0x20] sm:$0xff]
        %v3143 = vld [vmem:[%s3137 + $0x28] sm:$0xff]
        %v3144 = vld [vmem:[%s3137 + $0x30] sm:$0xff]
        %v3145 = vld [vmem:[%s3137 + $0x38] sm:$0xff]
        %v3146 = vld [vmem:[%s3137 + $0x40] sm:$0xff]
        %v3147 = vld [vmem:[%s3137 + $0x48] sm:$0xff]
        %v3148 = vld [vmem:[%s3137 + $0x50] sm:$0xff]
        %v3149 = vld [vmem:[%s3137 + $0x58] sm:$0xff]
        %v3150 = vld [vmem:[%s3137 + $0x60] sm:$0xff]
        %v3151 = vld [vmem:[%s3137 + $0x68] sm:$0xff]
        %v3152 = vld [vmem:[%s3137 + $0x70] sm:$0xff]
        %v3153 = vld [vmem:[%s3137 + $0x78] sm:$0xff]
        %3154 = vmatprep.subr.mxu0 0.0
        %3155 = vmatpush1.msra.mxu0 %v496
        %3156 = vmatprep.subr.mxu0 0.0
        %3157 = vmatpush1.msra.mxu0 %v495
        %3158 = vmatprep.subr.mxu0 0.0
        %3159 = vmatpush1.msra.mxu0 %v494
        %3160 = vmatprep.subr.mxu0 0.0
        %3161 = vmatpush1.msra.mxu0 %v493
        %3162 = vmatprep.subr.mxu0 0.0
        %3163 = vmatpush1.msra.mxu0 %v492
        %3164 = vmatprep.subr.mxu0 0.0
        %3165 = vmatpush1.msra.mxu0 %v491
        %3166 = vmatprep.subr.mxu0 0.0
        %3167 = vmatpush1.msra.mxu0 %v490
        %3168 = vmatprep.subr.mxu0 0.0
        %3169 = vmatpush1.msra.mxu0 %v489
        %3170 = vmatprep.subr.mxu0 0.0
        %3171 = vmatpush1.msra.mxu0 %v488
        %3172 = vmatprep.subr.mxu0 0.0
        %3173 = vmatpush1.msra.mxu0 %v487
        %3174 = vmatprep.subr.mxu0 0.0
        %3175 = vmatpush1.msra.mxu0 %v486
        %3176 = vmatprep.subr.mxu0 0.0
        %3177 = vmatpush1.msra.mxu0 %v485
        %3178 = vmatprep.subr.mxu0 0.0
        %3179 = vmatpush1.msra.mxu0 %v484
        %3180 = vmatprep.subr.mxu0 0.0
        %3181 = vmatpush1.msra.mxu0 %v483
        %3182 = vmatprep.subr.mxu0 0.0
        %3183 = vmatpush1.msra.mxu0 %v482
        %3184 = vmatprep.subr.mxu0 0.0
        %3185 = vmatpush1.msra.mxu0 %v481
        %3186 = vmatprep.subr.mxu0 0.0
        %3187 = vmatpush2.msra.mxu0 %v512
        %3188 = vmatprep.subr.mxu0 0.0
        %3189 = vmatpush2.msra.mxu0 %v511
        %3190 = vmatprep.subr.mxu0 0.0
        %3191 = vmatpush2.msra.mxu0 %v510
        %3192 = vmatprep.subr.mxu0 0.0
        %3193 = vmatpush2.msra.mxu0 %v509
        %3194 = vmatprep.subr.mxu0 0.0
        %3195 = vmatpush2.msra.mxu0 %v508
        %3196 = vmatprep.subr.mxu0 0.0
        %3197 = vmatpush2.msra.mxu0 %v507
        %3198 = vmatprep.subr.mxu0 0.0
        %3199 = vmatpush2.msra.mxu0 %v506
        %3200 = vmatprep.subr.mxu0 0.0
        %3201 = vmatpush2.msra.mxu0 %v505
        %3202 = vmatprep.subr.mxu0 0.0
        %3203 = vmatpush2.msra.mxu0 %v504
        %3204 = vmatprep.subr.mxu0 0.0
        %3205 = vmatpush2.msra.mxu0 %v503
        %3206 = vmatprep.subr.mxu0 0.0
        %3207 = vmatpush2.msra.mxu0 %v502
        %3208 = vmatprep.subr.mxu0 0.0
        %3209 = vmatpush2.msra.mxu0 %v501
        %3210 = vmatprep.subr.mxu0 0.0
        %3211 = vmatpush2.msra.mxu0 %v500
        %3212 = vmatprep.subr.mxu0 0.0
        %3213 = vmatpush2.msra.mxu0 %v499
        %3214 = vmatprep.subr.mxu0 0.0
        %3215 = vmatpush2.msra.mxu0 %v498
        %3216 = vmatprep.subr.mxu0 0.0
        %3217 = vmatpush2.msra.mxu0 %v497
        %3218 = vmatprep.mubr.f32.mxu0 %v3139
        %3219 = vmatmul.mubr.f32.gmra.mxu0 %v3138
        %v3220 = vpop.f32.mrf.mxu0
        %v3221 = vadd.f32 0.0, %v3220
        %v3222 = vpop.f32.mrf.mxu0
        %3223 = vmatprep.mubr.f32.mxu0 %v3141
        %3224 = vmatmul.mubr.f32.gmra.mxu0 %v3140
        %v3225 = vpop.f32.mrf.mxu0
        %v3226 = vadd.f32 0.0, %v3225
        %v3227 = vpop.f32.mrf.mxu0
        %3228 = vmatprep.mubr.f32.mxu0 %v3143
        %3229 = vmatmul.mubr.f32.gmra.mxu0 %v3142
        %v3230 = vpop.f32.mrf.mxu0
        %v3231 = vadd.f32 0.0, %v3230
        %v3232 = vpop.f32.mrf.mxu0
        %3233 = vmatprep.mubr.f32.mxu0 %v3145
        %3234 = vmatmul.mubr.f32.gmra.mxu0 %v3144
        %v3235 = vpop.f32.mrf.mxu0
        %v3236 = vadd.f32 0.0, %v3235
        %v3237 = vpop.f32.mrf.mxu0
        %3238 = vmatprep.mubr.f32.mxu0 %v3147
        %3239 = vmatmul.mubr.f32.gmra.mxu0 %v3146
        %v3240 = vpop.f32.mrf.mxu0
        %v3241 = vadd.f32 0.0, %v3240
        %v3242 = vpop.f32.mrf.mxu0
        %3243 = vmatprep.mubr.f32.mxu0 %v3149
        %3244 = vmatmul.mubr.f32.gmra.mxu0 %v3148
        %v3245 = vpop.f32.mrf.mxu0
        %v3246 = vadd.f32 0.0, %v3245
        %v3247 = vpop.f32.mrf.mxu0
        %3248 = vmatprep.mubr.f32.mxu0 %v3151
        %3249 = vmatmul.mubr.f32.gmra.mxu0 %v3150
        %v3250 = vpop.f32.mrf.mxu0
        %v3251 = vadd.f32 0.0, %v3250
        %v3252 = vpop.f32.mrf.mxu0
        %3253 = vmatprep.mubr.f32.mxu0 %v3153
        %3254 = vmatmul.mubr.f32.gmra.mxu0 %v3152
        %v3255 = vpop.f32.mrf.mxu0
        %v3256 = vadd.f32 0.0, %v3255
        %v3257 = vpop.f32.mrf.mxu0
        %3258 = vdwg.mxu0
        %s3259 = scalar_lea.vmem %s2, 80
        %v3260 = vld [vmem:[%s3259] sm:$0x1f]
        %v3262 = vsel %vm759, %v3221, 0
        %v3265 = vsel %vm759, %v3226, 0
        %v3268 = vsel %vm759, %v3231, 0
        %v3271 = vsel %vm759, %v3236, 0
        %v3274 = vsel %vm759, %v3241, 0
        %v3277 = vsel %vm759, %v3246, 0
        %v3280 = vsel %vm759, %v3251, 0
        %v3283 = vsel %vm759, %v3256, 0
        %v3286 = vsel %vm784, %v3260, 0
        %3288 = vmatprep.subr.mxu0 0.0
        %3289 = vmatpush1.msra.mxu0 0.0
        %3290 = vmatprep.subr.mxu0 0.0
        %3291 = vmatpush1.msra.mxu0 0.0
        %3292 = vmatprep.subr.mxu0 0.0
        %3293 = vmatpush1.msra.mxu0 0.0
        %3294 = vmatprep.subr.mxu0 0.0
        %3295 = vmatpush1.msra.mxu0 0.0
        %3296 = vmatprep.subr.mxu0 0.0
        %3297 = vmatpush1.msra.mxu0 0.0
        %3298 = vmatprep.subr.mxu0 0.0
        %3299 = vmatpush1.msra.mxu0 0.0
        %3300 = vmatprep.subr.mxu0 0.0
        %3301 = vmatpush1.msra.mxu0 0.0
        %3302 = vmatprep.subr.mxu0 0.0
        %3303 = vmatpush1.msra.mxu0 0.0
        %3304 = vmatprep.subr.mxu0 0.0
        %3305 = vmatpush1.msra.mxu0 0.0
        %3306 = vmatprep.subr.mxu0 0.0
        %3307 = vmatpush1.msra.mxu0 0.0
        %3308 = vmatprep.subr.mxu0 0.0
        %3309 = vmatpush1.msra.mxu0 0.0
        %3310 = vmatprep.subr.mxu0 0.0
        %3311 = vmatpush1.msra.mxu0 0.0
        %3312 = vmatprep.subr.mxu0 0.0
        %3313 = vmatpush1.msra.mxu0 0.0
        %3314 = vmatprep.subr.mxu0 0.0
        %3315 = vmatpush1.msra.mxu0 0.0
        %3316 = vmatprep.subr.mxu0 0.0
        %3317 = vmatpush1.msra.mxu0 0.0
        %3318 = vmatprep.subr.mxu0 0.0
        %3319 = vmatpush1.msra.mxu0 %v3286
        %3320 = vmatprep.subr.mxu0 0.0
        %3321 = vmatpush2.msra.mxu0 0.0
        %3322 = vmatprep.subr.mxu0 0.0
        %3323 = vmatpush2.msra.mxu0 0.0
        %3324 = vmatprep.subr.mxu0 0.0
        %3325 = vmatpush2.msra.mxu0 0.0
        %3326 = vmatprep.subr.mxu0 0.0
        %3327 = vmatpush2.msra.mxu0 0.0
        %3328 = vmatprep.subr.mxu0 0.0
        %3329 = vmatpush2.msra.mxu0 0.0
        %3330 = vmatprep.subr.mxu0 0.0
        %3331 = vmatpush2.msra.mxu0 0.0
        %3332 = vmatprep.subr.mxu0 0.0
        %3333 = vmatpush2.msra.mxu0 0.0
        %3334 = vmatprep.subr.mxu0 0.0
        %3335 = vmatpush2.msra.mxu0 0.0
        %3336 = vmatprep.subr.mxu0 0.0
        %3337 = vmatpush2.msra.mxu0 0.0
        %3338 = vmatprep.subr.mxu0 0.0
        %3339 = vmatpush2.msra.mxu0 0.0
        %3340 = vmatprep.subr.mxu0 0.0
        %3341 = vmatpush2.msra.mxu0 0.0
        %3342 = vmatprep.subr.mxu0 0.0
        %3343 = vmatpush2.msra.mxu0 0.0
        %3344 = vmatprep.subr.mxu0 0.0
        %3345 = vmatpush2.msra.mxu0 0.0
        %3346 = vmatprep.subr.mxu0 0.0
        %3347 = vmatpush2.msra.mxu0 0.0
        %3348 = vmatprep.subr.mxu0 0.0
        %3349 = vmatpush2.msra.mxu0 0.0
        %3350 = vmatprep.subr.mxu0 0.0
        %3351 = vmatpush2.msra.mxu0 0.0
        %3352 = vmatprep.mubr.f32.mxu0 0.0
        %3353 = vmatmul.mubr.f32.gmra.mxu0 %v3262
        %v3354 = vpop.f32.mrf.mxu0
        %v3355 = vadd.f32 0.0, %v3354
        %v3356 = vpop.f32.mrf.mxu0
        %3357 = vmatprep.mubr.f32.mxu0 0.0
        %3358 = vmatmul.mubr.f32.gmra.mxu0 %v3265
        %v3359 = vpop.f32.mrf.mxu0
        %v3360 = vadd.f32 0.0, %v3359
        %v3361 = vpop.f32.mrf.mxu0
        %3362 = vmatprep.mubr.f32.mxu0 0.0
        %3363 = vmatmul.mubr.f32.gmra.mxu0 %v3268
        %v3364 = vpop.f32.mrf.mxu0
        %v3365 = vadd.f32 0.0, %v3364
        %v3366 = vpop.f32.mrf.mxu0
        %3367 = vmatprep.mubr.f32.mxu0 0.0
        %3368 = vmatmul.mubr.f32.gmra.mxu0 %v3271
        %v3369 = vpop.f32.mrf.mxu0
        %v3370 = vadd.f32 0.0, %v3369
        %v3371 = vpop.f32.mrf.mxu0
        %3372 = vmatprep.mubr.f32.mxu0 0.0
        %3373 = vmatmul.mubr.f32.gmra.mxu0 %v3274
        %v3374 = vpop.f32.mrf.mxu0
        %v3375 = vadd.f32 0.0, %v3374
        %v3376 = vpop.f32.mrf.mxu0
        %3377 = vmatprep.mubr.f32.mxu0 0.0
        %3378 = vmatmul.mubr.f32.gmra.mxu0 %v3277
        %v3379 = vpop.f32.mrf.mxu0
        %v3380 = vadd.f32 0.0, %v3379
        %v3381 = vpop.f32.mrf.mxu0
        %3382 = vmatprep.mubr.f32.mxu0 0.0
        %3383 = vmatmul.mubr.f32.gmra.mxu0 %v3280
        %v3384 = vpop.f32.mrf.mxu0
        %v3385 = vadd.f32 0.0, %v3384
        %v3386 = vpop.f32.mrf.mxu0
        %3387 = vmatprep.mubr.f32.mxu0 0.0
        %3388 = vmatmul.mubr.f32.gmra.mxu0 %v3283
        %v3389 = vpop.f32.mrf.mxu0
        %v3390 = vadd.f32 0.0, %v3389
        %v3391 = vpop.f32.mrf.mxu0
        %3392 = vdwg.mxu0
        %v3393 = vadd.f32 %v3129, %v3355
        %v3394 = vadd.f32 %v3130, %v3360
        %v3395 = vadd.f32 %v3131, %v3365
        %v3396 = vadd.f32 %v3132, %v3370
        %v3397 = vadd.f32 %v3133, %v3375
        %v3398 = vadd.f32 %v3134, %v3380
        %v3399 = vadd.f32 %v3135, %v3385
        %v3400 = vadd.f32 %v3136, %v3390
        %s3401 = scalar_lea.vmem [#allocation3], 1408
        %v3402 = vld [vmem:[%s3401] sm:$0xff]
        %v3403 = vld [vmem:[%s3401 + $0x8] sm:$0xff]
        %v3404 = vld [vmem:[%s3401 + $0x10] sm:$0xff]
        %v3405 = vld [vmem:[%s3401 + $0x18] sm:$0xff]
        %v3406 = vld [vmem:[%s3401 + $0x20] sm:$0xff]
        %v3407 = vld [vmem:[%s3401 + $0x28] sm:$0xff]
        %v3408 = vld [vmem:[%s3401 + $0x30] sm:$0xff]
        %v3409 = vld [vmem:[%s3401 + $0x38] sm:$0xff]
        %v3410 = vld [vmem:[%s3401 + $0x40] sm:$0xff]
        %v3411 = vld [vmem:[%s3401 + $0x48] sm:$0xff]
        %v3412 = vld [vmem:[%s3401 + $0x50] sm:$0xff]
        %v3413 = vld [vmem:[%s3401 + $0x58] sm:$0xff]
        %v3414 = vld [vmem:[%s3401 + $0x60] sm:$0xff]
        %v3415 = vld [vmem:[%s3401 + $0x68] sm:$0xff]
        %v3416 = vld [vmem:[%s3401 + $0x70] sm:$0xff]
        %v3417 = vld [vmem:[%s3401 + $0x78] sm:$0xff]
        %3418 = vmatprep.subr.mxu0 0.0
        %3419 = vmatpush1.msra.mxu0 %v496
        %3420 = vmatprep.subr.mxu0 0.0
        %3421 = vmatpush1.msra.mxu0 %v495
        %3422 = vmatprep.subr.mxu0 0.0
        %3423 = vmatpush1.msra.mxu0 %v494
        %3424 = vmatprep.subr.mxu0 0.0
        %3425 = vmatpush1.msra.mxu0 %v493
        %3426 = vmatprep.subr.mxu0 0.0
        %3427 = vmatpush1.msra.mxu0 %v492
        %3428 = vmatprep.subr.mxu0 0.0
        %3429 = vmatpush1.msra.mxu0 %v491
        %3430 = vmatprep.subr.mxu0 0.0
        %3431 = vmatpush1.msra.mxu0 %v490
        %3432 = vmatprep.subr.mxu0 0.0
        %3433 = vmatpush1.msra.mxu0 %v489
        %3434 = vmatprep.subr.mxu0 0.0
        %3435 = vmatpush1.msra.mxu0 %v488
        %3436 = vmatprep.subr.mxu0 0.0
        %3437 = vmatpush1.msra.mxu0 %v487
        %3438 = vmatprep.subr.mxu0 0.0
        %3439 = vmatpush1.msra.mxu0 %v486
        %3440 = vmatprep.subr.mxu0 0.0
        %3441 = vmatpush1.msra.mxu0 %v485
        %3442 = vmatprep.subr.mxu0 0.0
        %3443 = vmatpush1.msra.mxu0 %v484
        %3444 = vmatprep.subr.mxu0 0.0
        %3445 = vmatpush1.msra.mxu0 %v483
        %3446 = vmatprep.subr.mxu0 0.0
        %3447 = vmatpush1.msra.mxu0 %v482
        %3448 = vmatprep.subr.mxu0 0.0
        %3449 = vmatpush1.msra.mxu0 %v481
        %3450 = vmatprep.subr.mxu0 0.0
        %3451 = vmatpush2.msra.mxu0 %v512
        %3452 = vmatprep.subr.mxu0 0.0
        %3453 = vmatpush2.msra.mxu0 %v511
        %3454 = vmatprep.subr.mxu0 0.0
        %3455 = vmatpush2.msra.mxu0 %v510
        %3456 = vmatprep.subr.mxu0 0.0
        %3457 = vmatpush2.msra.mxu0 %v509
        %3458 = vmatprep.subr.mxu0 0.0
        %3459 = vmatpush2.msra.mxu0 %v508
        %3460 = vmatprep.subr.mxu0 0.0
        %3461 = vmatpush2.msra.mxu0 %v507
        %3462 = vmatprep.subr.mxu0 0.0
        %3463 = vmatpush2.msra.mxu0 %v506
        %3464 = vmatprep.subr.mxu0 0.0
        %3465 = vmatpush2.msra.mxu0 %v505
        %3466 = vmatprep.subr.mxu0 0.0
        %3467 = vmatpush2.msra.mxu0 %v504
        %3468 = vmatprep.subr.mxu0 0.0
        %3469 = vmatpush2.msra.mxu0 %v503
        %3470 = vmatprep.subr.mxu0 0.0
        %3471 = vmatpush2.msra.mxu0 %v502
        %3472 = vmatprep.subr.mxu0 0.0
        %3473 = vmatpush2.msra.mxu0 %v501
        %3474 = vmatprep.subr.mxu0 0.0
        %3475 = vmatpush2.msra.mxu0 %v500
        %3476 = vmatprep.subr.mxu0 0.0
        %3477 = vmatpush2.msra.mxu0 %v499
        %3478 = vmatprep.subr.mxu0 0.0
        %3479 = vmatpush2.msra.mxu0 %v498
        %3480 = vmatprep.subr.mxu0 0.0
        %3481 = vmatpush2.msra.mxu0 %v497
        %3482 = vmatprep.mubr.f32.mxu0 %v3403
        %3483 = vmatmul.mubr.f32.gmra.mxu0 %v3402
        %v3484 = vpop.f32.mrf.mxu0
        %v3485 = vadd.f32 0.0, %v3484
        %v3486 = vpop.f32.mrf.mxu0
        %3487 = vmatprep.mubr.f32.mxu0 %v3405
        %3488 = vmatmul.mubr.f32.gmra.mxu0 %v3404
        %v3489 = vpop.f32.mrf.mxu0
        %v3490 = vadd.f32 0.0, %v3489
        %v3491 = vpop.f32.mrf.mxu0
        %3492 = vmatprep.mubr.f32.mxu0 %v3407
        %3493 = vmatmul.mubr.f32.gmra.mxu0 %v3406
        %v3494 = vpop.f32.mrf.mxu0
        %v3495 = vadd.f32 0.0, %v3494
        %v3496 = vpop.f32.mrf.mxu0
        %3497 = vmatprep.mubr.f32.mxu0 %v3409
        %3498 = vmatmul.mubr.f32.gmra.mxu0 %v3408
        %v3499 = vpop.f32.mrf.mxu0
        %v3500 = vadd.f32 0.0, %v3499
        %v3501 = vpop.f32.mrf.mxu0
        %3502 = vmatprep.mubr.f32.mxu0 %v3411
        %3503 = vmatmul.mubr.f32.gmra.mxu0 %v3410
        %v3504 = vpop.f32.mrf.mxu0
        %v3505 = vadd.f32 0.0, %v3504
        %v3506 = vpop.f32.mrf.mxu0
        %3507 = vmatprep.mubr.f32.mxu0 %v3413
        %3508 = vmatmul.mubr.f32.gmra.mxu0 %v3412
        %v3509 = vpop.f32.mrf.mxu0
        %v3510 = vadd.f32 0.0, %v3509
        %v3511 = vpop.f32.mrf.mxu0
        %3512 = vmatprep.mubr.f32.mxu0 %v3415
        %3513 = vmatmul.mubr.f32.gmra.mxu0 %v3414
        %v3514 = vpop.f32.mrf.mxu0
        %v3515 = vadd.f32 0.0, %v3514
        %v3516 = vpop.f32.mrf.mxu0
        %3517 = vmatprep.mubr.f32.mxu0 %v3417
        %3518 = vmatmul.mubr.f32.gmra.mxu0 %v3416
        %v3519 = vpop.f32.mrf.mxu0
        %v3520 = vadd.f32 0.0, %v3519
        %v3521 = vpop.f32.mrf.mxu0
        %3522 = vdwg.mxu0
        %s3523 = scalar_lea.vmem %s2, 88
        %v3524 = vld [vmem:[%s3523] sm:$0x1f]
        %v3526 = vsel %vm759, %v3485, 0
        %v3529 = vsel %vm759, %v3490, 0
        %v3532 = vsel %vm759, %v3495, 0
        %v3535 = vsel %vm759, %v3500, 0
        %v3538 = vsel %vm759, %v3505, 0
        %v3541 = vsel %vm759, %v3510, 0
        %v3544 = vsel %vm759, %v3515, 0
        %v3547 = vsel %vm759, %v3520, 0
        %v3550 = vsel %vm784, %v3524, 0
        %3552 = vmatprep.subr.mxu0 0.0
        %3553 = vmatpush1.msra.mxu0 0.0
        %3554 = vmatprep.subr.mxu0 0.0
        %3555 = vmatpush1.msra.mxu0 0.0
        %3556 = vmatprep.subr.mxu0 0.0
        %3557 = vmatpush1.msra.mxu0 0.0
        %3558 = vmatprep.subr.mxu0 0.0
        %3559 = vmatpush1.msra.mxu0 0.0
        %3560 = vmatprep.subr.mxu0 0.0
        %3561 = vmatpush1.msra.mxu0 0.0
        %3562 = vmatprep.subr.mxu0 0.0
        %3563 = vmatpush1.msra.mxu0 0.0
        %3564 = vmatprep.subr.mxu0 0.0
        %3565 = vmatpush1.msra.mxu0 0.0
        %3566 = vmatprep.subr.mxu0 0.0
        %3567 = vmatpush1.msra.mxu0 0.0
        %3568 = vmatprep.subr.mxu0 0.0
        %3569 = vmatpush1.msra.mxu0 0.0
        %3570 = vmatprep.subr.mxu0 0.0
        %3571 = vmatpush1.msra.mxu0 0.0
        %3572 = vmatprep.subr.mxu0 0.0
        %3573 = vmatpush1.msra.mxu0 0.0
        %3574 = vmatprep.subr.mxu0 0.0
        %3575 = vmatpush1.msra.mxu0 0.0
        %3576 = vmatprep.subr.mxu0 0.0
        %3577 = vmatpush1.msra.mxu0 0.0
        %3578 = vmatprep.subr.mxu0 0.0
        %3579 = vmatpush1.msra.mxu0 0.0
        %3580 = vmatprep.subr.mxu0 0.0
        %3581 = vmatpush1.msra.mxu0 0.0
        %3582 = vmatprep.subr.mxu0 0.0
        %3583 = vmatpush1.msra.mxu0 %v3550
        %3584 = vmatprep.subr.mxu0 0.0
        %3585 = vmatpush2.msra.mxu0 0.0
        %3586 = vmatprep.subr.mxu0 0.0
        %3587 = vmatpush2.msra.mxu0 0.0
        %3588 = vmatprep.subr.mxu0 0.0
        %3589 = vmatpush2.msra.mxu0 0.0
        %3590 = vmatprep.subr.mxu0 0.0
        %3591 = vmatpush2.msra.mxu0 0.0
        %3592 = vmatprep.subr.mxu0 0.0
        %3593 = vmatpush2.msra.mxu0 0.0
        %3594 = vmatprep.subr.mxu0 0.0
        %3595 = vmatpush2.msra.mxu0 0.0
        %3596 = vmatprep.subr.mxu0 0.0
        %3597 = vmatpush2.msra.mxu0 0.0
        %3598 = vmatprep.subr.mxu0 0.0
        %3599 = vmatpush2.msra.mxu0 0.0
        %3600 = vmatprep.subr.mxu0 0.0
        %3601 = vmatpush2.msra.mxu0 0.0
        %3602 = vmatprep.subr.mxu0 0.0
        %3603 = vmatpush2.msra.mxu0 0.0
        %3604 = vmatprep.subr.mxu0 0.0
        %3605 = vmatpush2.msra.mxu0 0.0
        %3606 = vmatprep.subr.mxu0 0.0
        %3607 = vmatpush2.msra.mxu0 0.0
        %3608 = vmatprep.subr.mxu0 0.0
        %3609 = vmatpush2.msra.mxu0 0.0
        %3610 = vmatprep.subr.mxu0 0.0
        %3611 = vmatpush2.msra.mxu0 0.0
        %3612 = vmatprep.subr.mxu0 0.0
        %3613 = vmatpush2.msra.mxu0 0.0
        %3614 = vmatprep.subr.mxu0 0.0
        %3615 = vmatpush2.msra.mxu0 0.0
        %3616 = vmatprep.mubr.f32.mxu0 0.0
        %3617 = vmatmul.mubr.f32.gmra.mxu0 %v3526
        %v3618 = vpop.f32.mrf.mxu0
        %v3619 = vadd.f32 0.0, %v3618
        %v3620 = vpop.f32.mrf.mxu0
        %3621 = vmatprep.mubr.f32.mxu0 0.0
        %3622 = vmatmul.mubr.f32.gmra.mxu0 %v3529
        %v3623 = vpop.f32.mrf.mxu0
        %v3624 = vadd.f32 0.0, %v3623
        %v3625 = vpop.f32.mrf.mxu0
        %3626 = vmatprep.mubr.f32.mxu0 0.0
        %3627 = vmatmul.mubr.f32.gmra.mxu0 %v3532
        %v3628 = vpop.f32.mrf.mxu0
        %v3629 = vadd.f32 0.0, %v3628
        %v3630 = vpop.f32.mrf.mxu0
        %3631 = vmatprep.mubr.f32.mxu0 0.0
        %3632 = vmatmul.mubr.f32.gmra.mxu0 %v3535
        %v3633 = vpop.f32.mrf.mxu0
        %v3634 = vadd.f32 0.0, %v3633
        %v3635 = vpop.f32.mrf.mxu0
        %3636 = vmatprep.mubr.f32.mxu0 0.0
        %3637 = vmatmul.mubr.f32.gmra.mxu0 %v3538
        %v3638 = vpop.f32.mrf.mxu0
        %v3639 = vadd.f32 0.0, %v3638
        %v3640 = vpop.f32.mrf.mxu0
        %3641 = vmatprep.mubr.f32.mxu0 0.0
        %3642 = vmatmul.mubr.f32.gmra.mxu0 %v3541
        %v3643 = vpop.f32.mrf.mxu0
        %v3644 = vadd.f32 0.0, %v3643
        %v3645 = vpop.f32.mrf.mxu0
        %3646 = vmatprep.mubr.f32.mxu0 0.0
        %3647 = vmatmul.mubr.f32.gmra.mxu0 %v3544
        %v3648 = vpop.f32.mrf.mxu0
        %v3649 = vadd.f32 0.0, %v3648
        %v3650 = vpop.f32.mrf.mxu0
        %3651 = vmatprep.mubr.f32.mxu0 0.0
        %3652 = vmatmul.mubr.f32.gmra.mxu0 %v3547
        %v3653 = vpop.f32.mrf.mxu0
        %v3654 = vadd.f32 0.0, %v3653
        %v3655 = vpop.f32.mrf.mxu0
        %3656 = vdwg.mxu0
        %v3657 = vadd.f32 %v3393, %v3619
        %v3658 = vadd.f32 %v3394, %v3624
        %v3659 = vadd.f32 %v3395, %v3629
        %v3660 = vadd.f32 %v3396, %v3634
        %v3661 = vadd.f32 %v3397, %v3639
        %v3662 = vadd.f32 %v3398, %v3644
        %v3663 = vadd.f32 %v3399, %v3649
        %v3664 = vadd.f32 %v3400, %v3654
        %s3665 = scalar_lea.vmem [#allocation3], 1536
        %v3666 = vld [vmem:[%s3665] sm:$0xff]
        %v3667 = vld [vmem:[%s3665 + $0x8] sm:$0xff]
        %v3668 = vld [vmem:[%s3665 + $0x10] sm:$0xff]
        %v3669 = vld [vmem:[%s3665 + $0x18] sm:$0xff]
        %v3670 = vld [vmem:[%s3665 + $0x20] sm:$0xff]
        %v3671 = vld [vmem:[%s3665 + $0x28] sm:$0xff]
        %v3672 = vld [vmem:[%s3665 + $0x30] sm:$0xff]
        %v3673 = vld [vmem:[%s3665 + $0x38] sm:$0xff]
        %v3674 = vld [vmem:[%s3665 + $0x40] sm:$0xff]
        %v3675 = vld [vmem:[%s3665 + $0x48] sm:$0xff]
        %v3676 = vld [vmem:[%s3665 + $0x50] sm:$0xff]
        %v3677 = vld [vmem:[%s3665 + $0x58] sm:$0xff]
        %v3678 = vld [vmem:[%s3665 + $0x60] sm:$0xff]
        %v3679 = vld [vmem:[%s3665 + $0x68] sm:$0xff]
        %v3680 = vld [vmem:[%s3665 + $0x70] sm:$0xff]
        %v3681 = vld [vmem:[%s3665 + $0x78] sm:$0xff]
        %3682 = vmatprep.subr.mxu0 0.0
        %3683 = vmatpush1.msra.mxu0 %v496
        %3684 = vmatprep.subr.mxu0 0.0
        %3685 = vmatpush1.msra.mxu0 %v495
        %3686 = vmatprep.subr.mxu0 0.0
        %3687 = vmatpush1.msra.mxu0 %v494
        %3688 = vmatprep.subr.mxu0 0.0
        %3689 = vmatpush1.msra.mxu0 %v493
        %3690 = vmatprep.subr.mxu0 0.0
        %3691 = vmatpush1.msra.mxu0 %v492
        %3692 = vmatprep.subr.mxu0 0.0
        %3693 = vmatpush1.msra.mxu0 %v491
        %3694 = vmatprep.subr.mxu0 0.0
        %3695 = vmatpush1.msra.mxu0 %v490
        %3696 = vmatprep.subr.mxu0 0.0
        %3697 = vmatpush1.msra.mxu0 %v489
        %3698 = vmatprep.subr.mxu0 0.0
        %3699 = vmatpush1.msra.mxu0 %v488
        %3700 = vmatprep.subr.mxu0 0.0
        %3701 = vmatpush1.msra.mxu0 %v487
        %3702 = vmatprep.subr.mxu0 0.0
        %3703 = vmatpush1.msra.mxu0 %v486
        %3704 = vmatprep.subr.mxu0 0.0
        %3705 = vmatpush1.msra.mxu0 %v485
        %3706 = vmatprep.subr.mxu0 0.0
        %3707 = vmatpush1.msra.mxu0 %v484
        %3708 = vmatprep.subr.mxu0 0.0
        %3709 = vmatpush1.msra.mxu0 %v483
        %3710 = vmatprep.subr.mxu0 0.0
        %3711 = vmatpush1.msra.mxu0 %v482
        %3712 = vmatprep.subr.mxu0 0.0
        %3713 = vmatpush1.msra.mxu0 %v481
        %3714 = vmatprep.subr.mxu0 0.0
        %3715 = vmatpush2.msra.mxu0 %v512
        %3716 = vmatprep.subr.mxu0 0.0
        %3717 = vmatpush2.msra.mxu0 %v511
        %3718 = vmatprep.subr.mxu0 0.0
        %3719 = vmatpush2.msra.mxu0 %v510
        %3720 = vmatprep.subr.mxu0 0.0
        %3721 = vmatpush2.msra.mxu0 %v509
        %3722 = vmatprep.subr.mxu0 0.0
        %3723 = vmatpush2.msra.mxu0 %v508
        %3724 = vmatprep.subr.mxu0 0.0
        %3725 = vmatpush2.msra.mxu0 %v507
        %3726 = vmatprep.subr.mxu0 0.0
        %3727 = vmatpush2.msra.mxu0 %v506
        %3728 = vmatprep.subr.mxu0 0.0
        %3729 = vmatpush2.msra.mxu0 %v505
        %3730 = vmatprep.subr.mxu0 0.0
        %3731 = vmatpush2.msra.mxu0 %v504
        %3732 = vmatprep.subr.mxu0 0.0
        %3733 = vmatpush2.msra.mxu0 %v503
        %3734 = vmatprep.subr.mxu0 0.0
        %3735 = vmatpush2.msra.mxu0 %v502
        %3736 = vmatprep.subr.mxu0 0.0
        %3737 = vmatpush2.msra.mxu0 %v501
        %3738 = vmatprep.subr.mxu0 0.0
        %3739 = vmatpush2.msra.mxu0 %v500
        %3740 = vmatprep.subr.mxu0 0.0
        %3741 = vmatpush2.msra.mxu0 %v499
        %3742 = vmatprep.subr.mxu0 0.0
        %3743 = vmatpush2.msra.mxu0 %v498
        %3744 = vmatprep.subr.mxu0 0.0
        %3745 = vmatpush2.msra.mxu0 %v497
        %3746 = vmatprep.mubr.f32.mxu0 %v3667
        %3747 = vmatmul.mubr.f32.gmra.mxu0 %v3666
        %v3748 = vpop.f32.mrf.mxu0
        %v3749 = vadd.f32 0.0, %v3748
        %v3750 = vpop.f32.mrf.mxu0
        %3751 = vmatprep.mubr.f32.mxu0 %v3669
        %3752 = vmatmul.mubr.f32.gmra.mxu0 %v3668
        %v3753 = vpop.f32.mrf.mxu0
        %v3754 = vadd.f32 0.0, %v3753
        %v3755 = vpop.f32.mrf.mxu0
        %3756 = vmatprep.mubr.f32.mxu0 %v3671
        %3757 = vmatmul.mubr.f32.gmra.mxu0 %v3670
        %v3758 = vpop.f32.mrf.mxu0
        %v3759 = vadd.f32 0.0, %v3758
        %v3760 = vpop.f32.mrf.mxu0
        %3761 = vmatprep.mubr.f32.mxu0 %v3673
        %3762 = vmatmul.mubr.f32.gmra.mxu0 %v3672
        %v3763 = vpop.f32.mrf.mxu0
        %v3764 = vadd.f32 0.0, %v3763
        %v3765 = vpop.f32.mrf.mxu0
        %3766 = vmatprep.mubr.f32.mxu0 %v3675
        %3767 = vmatmul.mubr.f32.gmra.mxu0 %v3674
        %v3768 = vpop.f32.mrf.mxu0
        %v3769 = vadd.f32 0.0, %v3768
        %v3770 = vpop.f32.mrf.mxu0
        %3771 = vmatprep.mubr.f32.mxu0 %v3677
        %3772 = vmatmul.mubr.f32.gmra.mxu0 %v3676
        %v3773 = vpop.f32.mrf.mxu0
        %v3774 = vadd.f32 0.0, %v3773
        %v3775 = vpop.f32.mrf.mxu0
        %3776 = vmatprep.mubr.f32.mxu0 %v3679
        %3777 = vmatmul.mubr.f32.gmra.mxu0 %v3678
        %v3778 = vpop.f32.mrf.mxu0
        %v3779 = vadd.f32 0.0, %v3778
        %v3780 = vpop.f32.mrf.mxu0
        %3781 = vmatprep.mubr.f32.mxu0 %v3681
        %3782 = vmatmul.mubr.f32.gmra.mxu0 %v3680
        %v3783 = vpop.f32.mrf.mxu0
        %v3784 = vadd.f32 0.0, %v3783
        %v3785 = vpop.f32.mrf.mxu0
        %3786 = vdwg.mxu0
        %s3787 = scalar_lea.vmem %s2, 96
        %v3788 = vld [vmem:[%s3787] sm:$0x1f]
        %v3790 = vsel %vm759, %v3749, 0
        %v3793 = vsel %vm759, %v3754, 0
        %v3796 = vsel %vm759, %v3759, 0
        %v3799 = vsel %vm759, %v3764, 0
        %v3802 = vsel %vm759, %v3769, 0
        %v3805 = vsel %vm759, %v3774, 0
        %v3808 = vsel %vm759, %v3779, 0
        %v3811 = vsel %vm759, %v3784, 0
        %v3814 = vsel %vm784, %v3788, 0
        %3816 = vmatprep.subr.mxu0 0.0
        %3817 = vmatpush1.msra.mxu0 0.0
        %3818 = vmatprep.subr.mxu0 0.0
        %3819 = vmatpush1.msra.mxu0 0.0
        %3820 = vmatprep.subr.mxu0 0.0
        %3821 = vmatpush1.msra.mxu0 0.0
        %3822 = vmatprep.subr.mxu0 0.0
        %3823 = vmatpush1.msra.mxu0 0.0
        %3824 = vmatprep.subr.mxu0 0.0
        %3825 = vmatpush1.msra.mxu0 0.0
        %3826 = vmatprep.subr.mxu0 0.0
        %3827 = vmatpush1.msra.mxu0 0.0
        %3828 = vmatprep.subr.mxu0 0.0
        %3829 = vmatpush1.msra.mxu0 0.0
        %3830 = vmatprep.subr.mxu0 0.0
        %3831 = vmatpush1.msra.mxu0 0.0
        %3832 = vmatprep.subr.mxu0 0.0
        %3833 = vmatpush1.msra.mxu0 0.0
        %3834 = vmatprep.subr.mxu0 0.0
        %3835 = vmatpush1.msra.mxu0 0.0
        %3836 = vmatprep.subr.mxu0 0.0
        %3837 = vmatpush1.msra.mxu0 0.0
        %3838 = vmatprep.subr.mxu0 0.0
        %3839 = vmatpush1.msra.mxu0 0.0
        %3840 = vmatprep.subr.mxu0 0.0
        %3841 = vmatpush1.msra.mxu0 0.0
        %3842 = vmatprep.subr.mxu0 0.0
        %3843 = vmatpush1.msra.mxu0 0.0
        %3844 = vmatprep.subr.mxu0 0.0
        %3845 = vmatpush1.msra.mxu0 0.0
        %3846 = vmatprep.subr.mxu0 0.0
        %3847 = vmatpush1.msra.mxu0 %v3814
        %3848 = vmatprep.subr.mxu0 0.0
        %3849 = vmatpush2.msra.mxu0 0.0
        %3850 = vmatprep.subr.mxu0 0.0
        %3851 = vmatpush2.msra.mxu0 0.0
        %3852 = vmatprep.subr.mxu0 0.0
        %3853 = vmatpush2.msra.mxu0 0.0
        %3854 = vmatprep.subr.mxu0 0.0
        %3855 = vmatpush2.msra.mxu0 0.0
        %3856 = vmatprep.subr.mxu0 0.0
        %3857 = vmatpush2.msra.mxu0 0.0
        %3858 = vmatprep.subr.mxu0 0.0
        %3859 = vmatpush2.msra.mxu0 0.0
        %3860 = vmatprep.subr.mxu0 0.0
        %3861 = vmatpush2.msra.mxu0 0.0
        %3862 = vmatprep.subr.mxu0 0.0
        %3863 = vmatpush2.msra.mxu0 0.0
        %3864 = vmatprep.subr.mxu0 0.0
        %3865 = vmatpush2.msra.mxu0 0.0
        %3866 = vmatprep.subr.mxu0 0.0
        %3867 = vmatpush2.msra.mxu0 0.0
        %3868 = vmatprep.subr.mxu0 0.0
        %3869 = vmatpush2.msra.mxu0 0.0
        %3870 = vmatprep.subr.mxu0 0.0
        %3871 = vmatpush2.msra.mxu0 0.0
        %3872 = vmatprep.subr.mxu0 0.0
        %3873 = vmatpush2.msra.mxu0 0.0
        %3874 = vmatprep.subr.mxu0 0.0
        %3875 = vmatpush2.msra.mxu0 0.0
        %3876 = vmatprep.subr.mxu0 0.0
        %3877 = vmatpush2.msra.mxu0 0.0
        %3878 = vmatprep.subr.mxu0 0.0
        %3879 = vmatpush2.msra.mxu0 0.0
        %3880 = vmatprep.mubr.f32.mxu0 0.0
        %3881 = vmatmul.mubr.f32.gmra.mxu0 %v3790
        %v3882 = vpop.f32.mrf.mxu0
        %v3883 = vadd.f32 0.0, %v3882
        %v3884 = vpop.f32.mrf.mxu0
        %3885 = vmatprep.mubr.f32.mxu0 0.0
        %3886 = vmatmul.mubr.f32.gmra.mxu0 %v3793
        %v3887 = vpop.f32.mrf.mxu0
        %v3888 = vadd.f32 0.0, %v3887
        %v3889 = vpop.f32.mrf.mxu0
        %3890 = vmatprep.mubr.f32.mxu0 0.0
        %3891 = vmatmul.mubr.f32.gmra.mxu0 %v3796
        %v3892 = vpop.f32.mrf.mxu0
        %v3893 = vadd.f32 0.0, %v3892
        %v3894 = vpop.f32.mrf.mxu0
        %3895 = vmatprep.mubr.f32.mxu0 0.0
        %3896 = vmatmul.mubr.f32.gmra.mxu0 %v3799
        %v3897 = vpop.f32.mrf.mxu0
        %v3898 = vadd.f32 0.0, %v3897
        %v3899 = vpop.f32.mrf.mxu0
        %3900 = vmatprep.mubr.f32.mxu0 0.0
        %3901 = vmatmul.mubr.f32.gmra.mxu0 %v3802
        %v3902 = vpop.f32.mrf.mxu0
        %v3903 = vadd.f32 0.0, %v3902
        %v3904 = vpop.f32.mrf.mxu0
        %3905 = vmatprep.mubr.f32.mxu0 0.0
        %3906 = vmatmul.mubr.f32.gmra.mxu0 %v3805
        %v3907 = vpop.f32.mrf.mxu0
        %v3908 = vadd.f32 0.0, %v3907
        %v3909 = vpop.f32.mrf.mxu0
        %3910 = vmatprep.mubr.f32.mxu0 0.0
        %3911 = vmatmul.mubr.f32.gmra.mxu0 %v3808
        %v3912 = vpop.f32.mrf.mxu0
        %v3913 = vadd.f32 0.0, %v3912
        %v3914 = vpop.f32.mrf.mxu0
        %3915 = vmatprep.mubr.f32.mxu0 0.0
        %3916 = vmatmul.mubr.f32.gmra.mxu0 %v3811
        %v3917 = vpop.f32.mrf.mxu0
        %v3918 = vadd.f32 0.0, %v3917
        %v3919 = vpop.f32.mrf.mxu0
        %3920 = vdwg.mxu0
        %v3921 = vadd.f32 %v3657, %v3883
        %v3922 = vadd.f32 %v3658, %v3888
        %v3923 = vadd.f32 %v3659, %v3893
        %v3924 = vadd.f32 %v3660, %v3898
        %v3925 = vadd.f32 %v3661, %v3903
        %v3926 = vadd.f32 %v3662, %v3908
        %v3927 = vadd.f32 %v3663, %v3913
        %v3928 = vadd.f32 %v3664, %v3918
        %s3929 = scalar_lea.vmem [#allocation3], 1664
        %v3930 = vld [vmem:[%s3929] sm:$0xff]
        %v3931 = vld [vmem:[%s3929 + $0x8] sm:$0xff]
        %v3932 = vld [vmem:[%s3929 + $0x10] sm:$0xff]
        %v3933 = vld [vmem:[%s3929 + $0x18] sm:$0xff]
        %v3934 = vld [vmem:[%s3929 + $0x20] sm:$0xff]
        %v3935 = vld [vmem:[%s3929 + $0x28] sm:$0xff]
        %v3936 = vld [vmem:[%s3929 + $0x30] sm:$0xff]
        %v3937 = vld [vmem:[%s3929 + $0x38] sm:$0xff]
        %v3938 = vld [vmem:[%s3929 + $0x40] sm:$0xff]
        %v3939 = vld [vmem:[%s3929 + $0x48] sm:$0xff]
        %v3940 = vld [vmem:[%s3929 + $0x50] sm:$0xff]
        %v3941 = vld [vmem:[%s3929 + $0x58] sm:$0xff]
        %v3942 = vld [vmem:[%s3929 + $0x60] sm:$0xff]
        %v3943 = vld [vmem:[%s3929 + $0x68] sm:$0xff]
        %v3944 = vld [vmem:[%s3929 + $0x70] sm:$0xff]
        %v3945 = vld [vmem:[%s3929 + $0x78] sm:$0xff]
        %3946 = vmatprep.subr.mxu0 0.0
        %3947 = vmatpush1.msra.mxu0 %v496
        %3948 = vmatprep.subr.mxu0 0.0
        %3949 = vmatpush1.msra.mxu0 %v495
        %3950 = vmatprep.subr.mxu0 0.0
        %3951 = vmatpush1.msra.mxu0 %v494
        %3952 = vmatprep.subr.mxu0 0.0
        %3953 = vmatpush1.msra.mxu0 %v493
        %3954 = vmatprep.subr.mxu0 0.0
        %3955 = vmatpush1.msra.mxu0 %v492
        %3956 = vmatprep.subr.mxu0 0.0
        %3957 = vmatpush1.msra.mxu0 %v491
        %3958 = vmatprep.subr.mxu0 0.0
        %3959 = vmatpush1.msra.mxu0 %v490
        %3960 = vmatprep.subr.mxu0 0.0
        %3961 = vmatpush1.msra.mxu0 %v489
        %3962 = vmatprep.subr.mxu0 0.0
        %3963 = vmatpush1.msra.mxu0 %v488
        %3964 = vmatprep.subr.mxu0 0.0
        %3965 = vmatpush1.msra.mxu0 %v487
        %3966 = vmatprep.subr.mxu0 0.0
        %3967 = vmatpush1.msra.mxu0 %v486
        %3968 = vmatprep.subr.mxu0 0.0
        %3969 = vmatpush1.msra.mxu0 %v485
        %3970 = vmatprep.subr.mxu0 0.0
        %3971 = vmatpush1.msra.mxu0 %v484
        %3972 = vmatprep.subr.mxu0 0.0
        %3973 = vmatpush1.msra.mxu0 %v483
        %3974 = vmatprep.subr.mxu0 0.0
        %3975 = vmatpush1.msra.mxu0 %v482
        %3976 = vmatprep.subr.mxu0 0.0
        %3977 = vmatpush1.msra.mxu0 %v481
        %3978 = vmatprep.subr.mxu0 0.0
        %3979 = vmatpush2.msra.mxu0 %v512
        %3980 = vmatprep.subr.mxu0 0.0
        %3981 = vmatpush2.msra.mxu0 %v511
        %3982 = vmatprep.subr.mxu0 0.0
        %3983 = vmatpush2.msra.mxu0 %v510
        %3984 = vmatprep.subr.mxu0 0.0
        %3985 = vmatpush2.msra.mxu0 %v509
        %3986 = vmatprep.subr.mxu0 0.0
        %3987 = vmatpush2.msra.mxu0 %v508
        %3988 = vmatprep.subr.mxu0 0.0
        %3989 = vmatpush2.msra.mxu0 %v507
        %3990 = vmatprep.subr.mxu0 0.0
        %3991 = vmatpush2.msra.mxu0 %v506
        %3992 = vmatprep.subr.mxu0 0.0
        %3993 = vmatpush2.msra.mxu0 %v505
        %3994 = vmatprep.subr.mxu0 0.0
        %3995 = vmatpush2.msra.mxu0 %v504
        %3996 = vmatprep.subr.mxu0 0.0
        %3997 = vmatpush2.msra.mxu0 %v503
        %3998 = vmatprep.subr.mxu0 0.0
        %3999 = vmatpush2.msra.mxu0 %v502
        %4000 = vmatprep.subr.mxu0 0.0
        %4001 = vmatpush2.msra.mxu0 %v501
        %4002 = vmatprep.subr.mxu0 0.0
        %4003 = vmatpush2.msra.mxu0 %v500
        %4004 = vmatprep.subr.mxu0 0.0
        %4005 = vmatpush2.msra.mxu0 %v499
        %4006 = vmatprep.subr.mxu0 0.0
        %4007 = vmatpush2.msra.mxu0 %v498
        %4008 = vmatprep.subr.mxu0 0.0
        %4009 = vmatpush2.msra.mxu0 %v497
        %4010 = vmatprep.mubr.f32.mxu0 %v3931
        %4011 = vmatmul.mubr.f32.gmra.mxu0 %v3930
        %v4012 = vpop.f32.mrf.mxu0
        %v4013 = vadd.f32 0.0, %v4012
        %v4014 = vpop.f32.mrf.mxu0
        %4015 = vmatprep.mubr.f32.mxu0 %v3933
        %4016 = vmatmul.mubr.f32.gmra.mxu0 %v3932
        %v4017 = vpop.f32.mrf.mxu0
        %v4018 = vadd.f32 0.0, %v4017
        %v4019 = vpop.f32.mrf.mxu0
        %4020 = vmatprep.mubr.f32.mxu0 %v3935
        %4021 = vmatmul.mubr.f32.gmra.mxu0 %v3934
        %v4022 = vpop.f32.mrf.mxu0
        %v4023 = vadd.f32 0.0, %v4022
        %v4024 = vpop.f32.mrf.mxu0
        %4025 = vmatprep.mubr.f32.mxu0 %v3937
        %4026 = vmatmul.mubr.f32.gmra.mxu0 %v3936
        %v4027 = vpop.f32.mrf.mxu0
        %v4028 = vadd.f32 0.0, %v4027
        %v4029 = vpop.f32.mrf.mxu0
        %4030 = vmatprep.mubr.f32.mxu0 %v3939
        %4031 = vmatmul.mubr.f32.gmra.mxu0 %v3938
        %v4032 = vpop.f32.mrf.mxu0
        %v4033 = vadd.f32 0.0, %v4032
        %v4034 = vpop.f32.mrf.mxu0
        %4035 = vmatprep.mubr.f32.mxu0 %v3941
        %4036 = vmatmul.mubr.f32.gmra.mxu0 %v3940
        %v4037 = vpop.f32.mrf.mxu0
        %v4038 = vadd.f32 0.0, %v4037
        %v4039 = vpop.f32.mrf.mxu0
        %4040 = vmatprep.mubr.f32.mxu0 %v3943
        %4041 = vmatmul.mubr.f32.gmra.mxu0 %v3942
        %v4042 = vpop.f32.mrf.mxu0
        %v4043 = vadd.f32 0.0, %v4042
        %v4044 = vpop.f32.mrf.mxu0
        %4045 = vmatprep.mubr.f32.mxu0 %v3945
        %4046 = vmatmul.mubr.f32.gmra.mxu0 %v3944
        %v4047 = vpop.f32.mrf.mxu0
        %v4048 = vadd.f32 0.0, %v4047
        %v4049 = vpop.f32.mrf.mxu0
        %4050 = vdwg.mxu0
        %s4051 = scalar_lea.vmem %s2, 104
        %v4052 = vld [vmem:[%s4051] sm:$0x1f]
        %v4054 = vsel %vm759, %v4013, 0
        %v4057 = vsel %vm759, %v4018, 0
        %v4060 = vsel %vm759, %v4023, 0
        %v4063 = vsel %vm759, %v4028, 0
        %v4066 = vsel %vm759, %v4033, 0
        %v4069 = vsel %vm759, %v4038, 0
        %v4072 = vsel %vm759, %v4043, 0
        %v4075 = vsel %vm759, %v4048, 0
        %v4078 = vsel %vm784, %v4052, 0
        %4080 = vmatprep.subr.mxu0 0.0
        %4081 = vmatpush1.msra.mxu0 0.0
        %4082 = vmatprep.subr.mxu0 0.0
        %4083 = vmatpush1.msra.mxu0 0.0
        %4084 = vmatprep.subr.mxu0 0.0
        %4085 = vmatpush1.msra.mxu0 0.0
        %4086 = vmatprep.subr.mxu0 0.0
        %4087 = vmatpush1.msra.mxu0 0.0
        %4088 = vmatprep.subr.mxu0 0.0
        %4089 = vmatpush1.msra.mxu0 0.0
        %4090 = vmatprep.subr.mxu0 0.0
        %4091 = vmatpush1.msra.mxu0 0.0
        %4092 = vmatprep.subr.mxu0 0.0
        %4093 = vmatpush1.msra.mxu0 0.0
        %4094 = vmatprep.subr.mxu0 0.0
        %4095 = vmatpush1.msra.mxu0 0.0
        %4096 = vmatprep.subr.mxu0 0.0
        %4097 = vmatpush1.msra.mxu0 0.0
        %4098 = vmatprep.subr.mxu0 0.0
        %4099 = vmatpush1.msra.mxu0 0.0
        %4100 = vmatprep.subr.mxu0 0.0
        %4101 = vmatpush1.msra.mxu0 0.0
        %4102 = vmatprep.subr.mxu0 0.0
        %4103 = vmatpush1.msra.mxu0 0.0
        %4104 = vmatprep.subr.mxu0 0.0
        %4105 = vmatpush1.msra.mxu0 0.0
        %4106 = vmatprep.subr.mxu0 0.0
        %4107 = vmatpush1.msra.mxu0 0.0
        %4108 = vmatprep.subr.mxu0 0.0
        %4109 = vmatpush1.msra.mxu0 0.0
        %4110 = vmatprep.subr.mxu0 0.0
        %4111 = vmatpush1.msra.mxu0 %v4078
        %4112 = vmatprep.subr.mxu0 0.0
        %4113 = vmatpush2.msra.mxu0 0.0
        %4114 = vmatprep.subr.mxu0 0.0
        %4115 = vmatpush2.msra.mxu0 0.0
        %4116 = vmatprep.subr.mxu0 0.0
        %4117 = vmatpush2.msra.mxu0 0.0
        %4118 = vmatprep.subr.mxu0 0.0
        %4119 = vmatpush2.msra.mxu0 0.0
        %4120 = vmatprep.subr.mxu0 0.0
        %4121 = vmatpush2.msra.mxu0 0.0
        %4122 = vmatprep.subr.mxu0 0.0
        %4123 = vmatpush2.msra.mxu0 0.0
        %4124 = vmatprep.subr.mxu0 0.0
        %4125 = vmatpush2.msra.mxu0 0.0
        %4126 = vmatprep.subr.mxu0 0.0
        %4127 = vmatpush2.msra.mxu0 0.0
        %4128 = vmatprep.subr.mxu0 0.0
        %4129 = vmatpush2.msra.mxu0 0.0
        %4130 = vmatprep.subr.mxu0 0.0
        %4131 = vmatpush2.msra.mxu0 0.0
        %4132 = vmatprep.subr.mxu0 0.0
        %4133 = vmatpush2.msra.mxu0 0.0
        %4134 = vmatprep.subr.mxu0 0.0
        %4135 = vmatpush2.msra.mxu0 0.0
        %4136 = vmatprep.subr.mxu0 0.0
        %4137 = vmatpush2.msra.mxu0 0.0
        %4138 = vmatprep.subr.mxu0 0.0
        %4139 = vmatpush2.msra.mxu0 0.0
        %4140 = vmatprep.subr.mxu0 0.0
        %4141 = vmatpush2.msra.mxu0 0.0
        %4142 = vmatprep.subr.mxu0 0.0
        %4143 = vmatpush2.msra.mxu0 0.0
        %4144 = vmatprep.mubr.f32.mxu0 0.0
        %4145 = vmatmul.mubr.f32.gmra.mxu0 %v4054
        %v4146 = vpop.f32.mrf.mxu0
        %v4147 = vadd.f32 0.0, %v4146
        %v4148 = vpop.f32.mrf.mxu0
        %4149 = vmatprep.mubr.f32.mxu0 0.0
        %4150 = vmatmul.mubr.f32.gmra.mxu0 %v4057
        %v4151 = vpop.f32.mrf.mxu0
        %v4152 = vadd.f32 0.0, %v4151
        %v4153 = vpop.f32.mrf.mxu0
        %4154 = vmatprep.mubr.f32.mxu0 0.0
        %4155 = vmatmul.mubr.f32.gmra.mxu0 %v4060
        %v4156 = vpop.f32.mrf.mxu0
        %v4157 = vadd.f32 0.0, %v4156
        %v4158 = vpop.f32.mrf.mxu0
        %4159 = vmatprep.mubr.f32.mxu0 0.0
        %4160 = vmatmul.mubr.f32.gmra.mxu0 %v4063
        %v4161 = vpop.f32.mrf.mxu0
        %v4162 = vadd.f32 0.0, %v4161
        %v4163 = vpop.f32.mrf.mxu0
        %4164 = vmatprep.mubr.f32.mxu0 0.0
        %4165 = vmatmul.mubr.f32.gmra.mxu0 %v4066
        %v4166 = vpop.f32.mrf.mxu0
        %v4167 = vadd.f32 0.0, %v4166
        %v4168 = vpop.f32.mrf.mxu0
        %4169 = vmatprep.mubr.f32.mxu0 0.0
        %4170 = vmatmul.mubr.f32.gmra.mxu0 %v4069
        %v4171 = vpop.f32.mrf.mxu0
        %v4172 = vadd.f32 0.0, %v4171
        %v4173 = vpop.f32.mrf.mxu0
        %4174 = vmatprep.mubr.f32.mxu0 0.0
        %4175 = vmatmul.mubr.f32.gmra.mxu0 %v4072
        %v4176 = vpop.f32.mrf.mxu0
        %v4177 = vadd.f32 0.0, %v4176
        %v4178 = vpop.f32.mrf.mxu0
        %4179 = vmatprep.mubr.f32.mxu0 0.0
        %4180 = vmatmul.mubr.f32.gmra.mxu0 %v4075
        %v4181 = vpop.f32.mrf.mxu0
        %v4182 = vadd.f32 0.0, %v4181
        %v4183 = vpop.f32.mrf.mxu0
        %4184 = vdwg.mxu0
        %v4185 = vadd.f32 %v3921, %v4147
        %v4186 = vadd.f32 %v3922, %v4152
        %v4187 = vadd.f32 %v3923, %v4157
        %v4188 = vadd.f32 %v3924, %v4162
        %v4189 = vadd.f32 %v3925, %v4167
        %v4190 = vadd.f32 %v3926, %v4172
        %v4191 = vadd.f32 %v3927, %v4177
        %v4192 = vadd.f32 %v3928, %v4182
        %s4193 = scalar_lea.vmem [#allocation3], 1792
        %v4194 = vld [vmem:[%s4193] sm:$0xff]
        %v4195 = vld [vmem:[%s4193 + $0x8] sm:$0xff]
        %v4196 = vld [vmem:[%s4193 + $0x10] sm:$0xff]
        %v4197 = vld [vmem:[%s4193 + $0x18] sm:$0xff]
        %v4198 = vld [vmem:[%s4193 + $0x20] sm:$0xff]
        %v4199 = vld [vmem:[%s4193 + $0x28] sm:$0xff]
        %v4200 = vld [vmem:[%s4193 + $0x30] sm:$0xff]
        %v4201 = vld [vmem:[%s4193 + $0x38] sm:$0xff]
        %v4202 = vld [vmem:[%s4193 + $0x40] sm:$0xff]
        %v4203 = vld [vmem:[%s4193 + $0x48] sm:$0xff]
        %v4204 = vld [vmem:[%s4193 + $0x50] sm:$0xff]
        %v4205 = vld [vmem:[%s4193 + $0x58] sm:$0xff]
        %v4206 = vld [vmem:[%s4193 + $0x60] sm:$0xff]
        %v4207 = vld [vmem:[%s4193 + $0x68] sm:$0xff]
        %v4208 = vld [vmem:[%s4193 + $0x70] sm:$0xff]
        %v4209 = vld [vmem:[%s4193 + $0x78] sm:$0xff]
        %4210 = vmatprep.subr.mxu0 0.0
        %4211 = vmatpush1.msra.mxu0 %v496
        %4212 = vmatprep.subr.mxu0 0.0
        %4213 = vmatpush1.msra.mxu0 %v495
        %4214 = vmatprep.subr.mxu0 0.0
        %4215 = vmatpush1.msra.mxu0 %v494
        %4216 = vmatprep.subr.mxu0 0.0
        %4217 = vmatpush1.msra.mxu0 %v493
        %4218 = vmatprep.subr.mxu0 0.0
        %4219 = vmatpush1.msra.mxu0 %v492
        %4220 = vmatprep.subr.mxu0 0.0
        %4221 = vmatpush1.msra.mxu0 %v491
        %4222 = vmatprep.subr.mxu0 0.0
        %4223 = vmatpush1.msra.mxu0 %v490
        %4224 = vmatprep.subr.mxu0 0.0
        %4225 = vmatpush1.msra.mxu0 %v489
        %4226 = vmatprep.subr.mxu0 0.0
        %4227 = vmatpush1.msra.mxu0 %v488
        %4228 = vmatprep.subr.mxu0 0.0
        %4229 = vmatpush1.msra.mxu0 %v487
        %4230 = vmatprep.subr.mxu0 0.0
        %4231 = vmatpush1.msra.mxu0 %v486
        %4232 = vmatprep.subr.mxu0 0.0
        %4233 = vmatpush1.msra.mxu0 %v485
        %4234 = vmatprep.subr.mxu0 0.0
        %4235 = vmatpush1.msra.mxu0 %v484
        %4236 = vmatprep.subr.mxu0 0.0
        %4237 = vmatpush1.msra.mxu0 %v483
        %4238 = vmatprep.subr.mxu0 0.0
        %4239 = vmatpush1.msra.mxu0 %v482
        %4240 = vmatprep.subr.mxu0 0.0
        %4241 = vmatpush1.msra.mxu0 %v481
        %4242 = vmatprep.subr.mxu0 0.0
        %4243 = vmatpush2.msra.mxu0 %v512
        %4244 = vmatprep.subr.mxu0 0.0
        %4245 = vmatpush2.msra.mxu0 %v511
        %4246 = vmatprep.subr.mxu0 0.0
        %4247 = vmatpush2.msra.mxu0 %v510
        %4248 = vmatprep.subr.mxu0 0.0
        %4249 = vmatpush2.msra.mxu0 %v509
        %4250 = vmatprep.subr.mxu0 0.0
        %4251 = vmatpush2.msra.mxu0 %v508
        %4252 = vmatprep.subr.mxu0 0.0
        %4253 = vmatpush2.msra.mxu0 %v507
        %4254 = vmatprep.subr.mxu0 0.0
        %4255 = vmatpush2.msra.mxu0 %v506
        %4256 = vmatprep.subr.mxu0 0.0
        %4257 = vmatpush2.msra.mxu0 %v505
        %4258 = vmatprep.subr.mxu0 0.0
        %4259 = vmatpush2.msra.mxu0 %v504
        %4260 = vmatprep.subr.mxu0 0.0
        %4261 = vmatpush2.msra.mxu0 %v503
        %4262 = vmatprep.subr.mxu0 0.0
        %4263 = vmatpush2.msra.mxu0 %v502
        %4264 = vmatprep.subr.mxu0 0.0
        %4265 = vmatpush2.msra.mxu0 %v501
        %4266 = vmatprep.subr.mxu0 0.0
        %4267 = vmatpush2.msra.mxu0 %v500
        %4268 = vmatprep.subr.mxu0 0.0
        %4269 = vmatpush2.msra.mxu0 %v499
        %4270 = vmatprep.subr.mxu0 0.0
        %4271 = vmatpush2.msra.mxu0 %v498
        %4272 = vmatprep.subr.mxu0 0.0
        %4273 = vmatpush2.msra.mxu0 %v497
        %4274 = vmatprep.mubr.f32.mxu0 %v4195
        %4275 = vmatmul.mubr.f32.gmra.mxu0 %v4194
        %v4276 = vpop.f32.mrf.mxu0
        %v4277 = vadd.f32 0.0, %v4276
        %v4278 = vpop.f32.mrf.mxu0
        %4279 = vmatprep.mubr.f32.mxu0 %v4197
        %4280 = vmatmul.mubr.f32.gmra.mxu0 %v4196
        %v4281 = vpop.f32.mrf.mxu0
        %v4282 = vadd.f32 0.0, %v4281
        %v4283 = vpop.f32.mrf.mxu0
        %4284 = vmatprep.mubr.f32.mxu0 %v4199
        %4285 = vmatmul.mubr.f32.gmra.mxu0 %v4198
        %v4286 = vpop.f32.mrf.mxu0
        %v4287 = vadd.f32 0.0, %v4286
        %v4288 = vpop.f32.mrf.mxu0
        %4289 = vmatprep.mubr.f32.mxu0 %v4201
        %4290 = vmatmul.mubr.f32.gmra.mxu0 %v4200
        %v4291 = vpop.f32.mrf.mxu0
        %v4292 = vadd.f32 0.0, %v4291
        %v4293 = vpop.f32.mrf.mxu0
        %4294 = vmatprep.mubr.f32.mxu0 %v4203
        %4295 = vmatmul.mubr.f32.gmra.mxu0 %v4202
        %v4296 = vpop.f32.mrf.mxu0
        %v4297 = vadd.f32 0.0, %v4296
        %v4298 = vpop.f32.mrf.mxu0
        %4299 = vmatprep.mubr.f32.mxu0 %v4205
        %4300 = vmatmul.mubr.f32.gmra.mxu0 %v4204
        %v4301 = vpop.f32.mrf.mxu0
        %v4302 = vadd.f32 0.0, %v4301
        %v4303 = vpop.f32.mrf.mxu0
        %4304 = vmatprep.mubr.f32.mxu0 %v4207
        %4305 = vmatmul.mubr.f32.gmra.mxu0 %v4206
        %v4306 = vpop.f32.mrf.mxu0
        %v4307 = vadd.f32 0.0, %v4306
        %v4308 = vpop.f32.mrf.mxu0
        %4309 = vmatprep.mubr.f32.mxu0 %v4209
        %4310 = vmatmul.mubr.f32.gmra.mxu0 %v4208
        %v4311 = vpop.f32.mrf.mxu0
        %v4312 = vadd.f32 0.0, %v4311
        %v4313 = vpop.f32.mrf.mxu0
        %4314 = vdwg.mxu0
        %s4315 = scalar_lea.vmem %s2, 112
        %v4316 = vld [vmem:[%s4315] sm:$0x1f]
        %v4318 = vsel %vm759, %v4277, 0
        %v4321 = vsel %vm759, %v4282, 0
        %v4324 = vsel %vm759, %v4287, 0
        %v4327 = vsel %vm759, %v4292, 0
        %v4330 = vsel %vm759, %v4297, 0
        %v4333 = vsel %vm759, %v4302, 0
        %v4336 = vsel %vm759, %v4307, 0
        %v4339 = vsel %vm759, %v4312, 0
        %v4342 = vsel %vm784, %v4316, 0
        %4344 = vmatprep.subr.mxu0 0.0
        %4345 = vmatpush1.msra.mxu0 0.0
        %4346 = vmatprep.subr.mxu0 0.0
        %4347 = vmatpush1.msra.mxu0 0.0
        %4348 = vmatprep.subr.mxu0 0.0
        %4349 = vmatpush1.msra.mxu0 0.0
        %4350 = vmatprep.subr.mxu0 0.0
        %4351 = vmatpush1.msra.mxu0 0.0
        %4352 = vmatprep.subr.mxu0 0.0
        %4353 = vmatpush1.msra.mxu0 0.0
        %4354 = vmatprep.subr.mxu0 0.0
        %4355 = vmatpush1.msra.mxu0 0.0
        %4356 = vmatprep.subr.mxu0 0.0
        %4357 = vmatpush1.msra.mxu0 0.0
        %4358 = vmatprep.subr.mxu0 0.0
        %4359 = vmatpush1.msra.mxu0 0.0
        %4360 = vmatprep.subr.mxu0 0.0
        %4361 = vmatpush1.msra.mxu0 0.0
        %4362 = vmatprep.subr.mxu0 0.0
        %4363 = vmatpush1.msra.mxu0 0.0
        %4364 = vmatprep.subr.mxu0 0.0
        %4365 = vmatpush1.msra.mxu0 0.0
        %4366 = vmatprep.subr.mxu0 0.0
        %4367 = vmatpush1.msra.mxu0 0.0
        %4368 = vmatprep.subr.mxu0 0.0
        %4369 = vmatpush1.msra.mxu0 0.0
        %4370 = vmatprep.subr.mxu0 0.0
        %4371 = vmatpush1.msra.mxu0 0.0
        %4372 = vmatprep.subr.mxu0 0.0
        %4373 = vmatpush1.msra.mxu0 0.0
        %4374 = vmatprep.subr.mxu0 0.0
        %4375 = vmatpush1.msra.mxu0 %v4342
        %4376 = vmatprep.subr.mxu0 0.0
        %4377 = vmatpush2.msra.mxu0 0.0
        %4378 = vmatprep.subr.mxu0 0.0
        %4379 = vmatpush2.msra.mxu0 0.0
        %4380 = vmatprep.subr.mxu0 0.0
        %4381 = vmatpush2.msra.mxu0 0.0
        %4382 = vmatprep.subr.mxu0 0.0
        %4383 = vmatpush2.msra.mxu0 0.0
        %4384 = vmatprep.subr.mxu0 0.0
        %4385 = vmatpush2.msra.mxu0 0.0
        %4386 = vmatprep.subr.mxu0 0.0
        %4387 = vmatpush2.msra.mxu0 0.0
        %4388 = vmatprep.subr.mxu0 0.0
        %4389 = vmatpush2.msra.mxu0 0.0
        %4390 = vmatprep.subr.mxu0 0.0
        %4391 = vmatpush2.msra.mxu0 0.0
        %4392 = vmatprep.subr.mxu0 0.0
        %4393 = vmatpush2.msra.mxu0 0.0
        %4394 = vmatprep.subr.mxu0 0.0
        %4395 = vmatpush2.msra.mxu0 0.0
        %4396 = vmatprep.subr.mxu0 0.0
        %4397 = vmatpush2.msra.mxu0 0.0
        %4398 = vmatprep.subr.mxu0 0.0
        %4399 = vmatpush2.msra.mxu0 0.0
        %4400 = vmatprep.subr.mxu0 0.0
        %4401 = vmatpush2.msra.mxu0 0.0
        %4402 = vmatprep.subr.mxu0 0.0
        %4403 = vmatpush2.msra.mxu0 0.0
        %4404 = vmatprep.subr.mxu0 0.0
        %4405 = vmatpush2.msra.mxu0 0.0
        %4406 = vmatprep.subr.mxu0 0.0
        %4407 = vmatpush2.msra.mxu0 0.0
        %4408 = vmatprep.mubr.f32.mxu0 0.0
        %4409 = vmatmul.mubr.f32.gmra.mxu0 %v4318
        %v4410 = vpop.f32.mrf.mxu0
        %v4411 = vadd.f32 0.0, %v4410
        %v4412 = vpop.f32.mrf.mxu0
        %4413 = vmatprep.mubr.f32.mxu0 0.0
        %4414 = vmatmul.mubr.f32.gmra.mxu0 %v4321
        %v4415 = vpop.f32.mrf.mxu0
        %v4416 = vadd.f32 0.0, %v4415
        %v4417 = vpop.f32.mrf.mxu0
        %4418 = vmatprep.mubr.f32.mxu0 0.0
        %4419 = vmatmul.mubr.f32.gmra.mxu0 %v4324
        %v4420 = vpop.f32.mrf.mxu0
        %v4421 = vadd.f32 0.0, %v4420
        %v4422 = vpop.f32.mrf.mxu0
        %4423 = vmatprep.mubr.f32.mxu0 0.0
        %4424 = vmatmul.mubr.f32.gmra.mxu0 %v4327
        %v4425 = vpop.f32.mrf.mxu0
        %v4426 = vadd.f32 0.0, %v4425
        %v4427 = vpop.f32.mrf.mxu0
        %4428 = vmatprep.mubr.f32.mxu0 0.0
        %4429 = vmatmul.mubr.f32.gmra.mxu0 %v4330
        %v4430 = vpop.f32.mrf.mxu0
        %v4431 = vadd.f32 0.0, %v4430
        %v4432 = vpop.f32.mrf.mxu0
        %4433 = vmatprep.mubr.f32.mxu0 0.0
        %4434 = vmatmul.mubr.f32.gmra.mxu0 %v4333
        %v4435 = vpop.f32.mrf.mxu0
        %v4436 = vadd.f32 0.0, %v4435
        %v4437 = vpop.f32.mrf.mxu0
        %4438 = vmatprep.mubr.f32.mxu0 0.0
        %4439 = vmatmul.mubr.f32.gmra.mxu0 %v4336
        %v4440 = vpop.f32.mrf.mxu0
        %v4441 = vadd.f32 0.0, %v4440
        %v4442 = vpop.f32.mrf.mxu0
        %4443 = vmatprep.mubr.f32.mxu0 0.0
        %4444 = vmatmul.mubr.f32.gmra.mxu0 %v4339
        %v4445 = vpop.f32.mrf.mxu0
        %v4446 = vadd.f32 0.0, %v4445
        %v4447 = vpop.f32.mrf.mxu0
        %4448 = vdwg.mxu0
        %v4449 = vadd.f32 %v4185, %v4411
        %v4450 = vadd.f32 %v4186, %v4416
        %v4451 = vadd.f32 %v4187, %v4421
        %v4452 = vadd.f32 %v4188, %v4426
        %v4453 = vadd.f32 %v4189, %v4431
        %v4454 = vadd.f32 %v4190, %v4436
        %v4455 = vadd.f32 %v4191, %v4441
        %v4456 = vadd.f32 %v4192, %v4446
        %s4457 = scalar_lea.vmem [#allocation3], 1920
        %v4458 = vld [vmem:[%s4457] sm:$0xff]
        %v4459 = vld [vmem:[%s4457 + $0x8] sm:$0xff]
        %v4460 = vld [vmem:[%s4457 + $0x10] sm:$0xff]
        %v4461 = vld [vmem:[%s4457 + $0x18] sm:$0xff]
        %v4462 = vld [vmem:[%s4457 + $0x20] sm:$0xff]
        %v4463 = vld [vmem:[%s4457 + $0x28] sm:$0xff]
        %v4464 = vld [vmem:[%s4457 + $0x30] sm:$0xff]
        %v4465 = vld [vmem:[%s4457 + $0x38] sm:$0xff]
        %v4466 = vld [vmem:[%s4457 + $0x40] sm:$0xff]
        %v4467 = vld [vmem:[%s4457 + $0x48] sm:$0xff]
        %v4468 = vld [vmem:[%s4457 + $0x50] sm:$0xff]
        %v4469 = vld [vmem:[%s4457 + $0x58] sm:$0xff]
        %v4470 = vld [vmem:[%s4457 + $0x60] sm:$0xff]
        %v4471 = vld [vmem:[%s4457 + $0x68] sm:$0xff]
        %v4472 = vld [vmem:[%s4457 + $0x70] sm:$0xff]
        %v4473 = vld [vmem:[%s4457 + $0x78] sm:$0xff]
        %4474 = vmatprep.subr.mxu0 0.0
        %4475 = vmatpush1.msra.mxu0 %v496
        %4476 = vmatprep.subr.mxu0 0.0
        %4477 = vmatpush1.msra.mxu0 %v495
        %4478 = vmatprep.subr.mxu0 0.0
        %4479 = vmatpush1.msra.mxu0 %v494
        %4480 = vmatprep.subr.mxu0 0.0
        %4481 = vmatpush1.msra.mxu0 %v493
        %4482 = vmatprep.subr.mxu0 0.0
        %4483 = vmatpush1.msra.mxu0 %v492
        %4484 = vmatprep.subr.mxu0 0.0
        %4485 = vmatpush1.msra.mxu0 %v491
        %4486 = vmatprep.subr.mxu0 0.0
        %4487 = vmatpush1.msra.mxu0 %v490
        %4488 = vmatprep.subr.mxu0 0.0
        %4489 = vmatpush1.msra.mxu0 %v489
        %4490 = vmatprep.subr.mxu0 0.0
        %4491 = vmatpush1.msra.mxu0 %v488
        %4492 = vmatprep.subr.mxu0 0.0
        %4493 = vmatpush1.msra.mxu0 %v487
        %4494 = vmatprep.subr.mxu0 0.0
        %4495 = vmatpush1.msra.mxu0 %v486
        %4496 = vmatprep.subr.mxu0 0.0
        %4497 = vmatpush1.msra.mxu0 %v485
        %4498 = vmatprep.subr.mxu0 0.0
        %4499 = vmatpush1.msra.mxu0 %v484
        %4500 = vmatprep.subr.mxu0 0.0
        %4501 = vmatpush1.msra.mxu0 %v483
        %4502 = vmatprep.subr.mxu0 0.0
        %4503 = vmatpush1.msra.mxu0 %v482
        %4504 = vmatprep.subr.mxu0 0.0
        %4505 = vmatpush1.msra.mxu0 %v481
        %4506 = vmatprep.subr.mxu0 0.0
        %4507 = vmatpush2.msra.mxu0 %v512
        %4508 = vmatprep.subr.mxu0 0.0
        %4509 = vmatpush2.msra.mxu0 %v511
        %4510 = vmatprep.subr.mxu0 0.0
        %4511 = vmatpush2.msra.mxu0 %v510
        %4512 = vmatprep.subr.mxu0 0.0
        %4513 = vmatpush2.msra.mxu0 %v509
        %4514 = vmatprep.subr.mxu0 0.0
        %4515 = vmatpush2.msra.mxu0 %v508
        %4516 = vmatprep.subr.mxu0 0.0
        %4517 = vmatpush2.msra.mxu0 %v507
        %4518 = vmatprep.subr.mxu0 0.0
        %4519 = vmatpush2.msra.mxu0 %v506
        %4520 = vmatprep.subr.mxu0 0.0
        %4521 = vmatpush2.msra.mxu0 %v505
        %4522 = vmatprep.subr.mxu0 0.0
        %4523 = vmatpush2.msra.mxu0 %v504
        %4524 = vmatprep.subr.mxu0 0.0
        %4525 = vmatpush2.msra.mxu0 %v503
        %4526 = vmatprep.subr.mxu0 0.0
        %4527 = vmatpush2.msra.mxu0 %v502
        %4528 = vmatprep.subr.mxu0 0.0
        %4529 = vmatpush2.msra.mxu0 %v501
        %4530 = vmatprep.subr.mxu0 0.0
        %4531 = vmatpush2.msra.mxu0 %v500
        %4532 = vmatprep.subr.mxu0 0.0
        %4533 = vmatpush2.msra.mxu0 %v499
        %4534 = vmatprep.subr.mxu0 0.0
        %4535 = vmatpush2.msra.mxu0 %v498
        %4536 = vmatprep.subr.mxu0 0.0
        %4537 = vmatpush2.msra.mxu0 %v497
        %4538 = vmatprep.mubr.f32.mxu0 %v4459
        %4539 = vmatmul.mubr.f32.gmra.mxu0 %v4458
        %v4540 = vpop.f32.mrf.mxu0
        %v4541 = vadd.f32 0.0, %v4540
        %v4542 = vpop.f32.mrf.mxu0
        %4543 = vmatprep.mubr.f32.mxu0 %v4461
        %4544 = vmatmul.mubr.f32.gmra.mxu0 %v4460
        %v4545 = vpop.f32.mrf.mxu0
        %v4546 = vadd.f32 0.0, %v4545
        %v4547 = vpop.f32.mrf.mxu0
        %4548 = vmatprep.mubr.f32.mxu0 %v4463
        %4549 = vmatmul.mubr.f32.gmra.mxu0 %v4462
        %v4550 = vpop.f32.mrf.mxu0
        %v4551 = vadd.f32 0.0, %v4550
        %v4552 = vpop.f32.mrf.mxu0
        %4553 = vmatprep.mubr.f32.mxu0 %v4465
        %4554 = vmatmul.mubr.f32.gmra.mxu0 %v4464
        %v4555 = vpop.f32.mrf.mxu0
        %v4556 = vadd.f32 0.0, %v4555
        %v4557 = vpop.f32.mrf.mxu0
        %4558 = vmatprep.mubr.f32.mxu0 %v4467
        %4559 = vmatmul.mubr.f32.gmra.mxu0 %v4466
        %v4560 = vpop.f32.mrf.mxu0
        %v4561 = vadd.f32 0.0, %v4560
        %v4562 = vpop.f32.mrf.mxu0
        %4563 = vmatprep.mubr.f32.mxu0 %v4469
        %4564 = vmatmul.mubr.f32.gmra.mxu0 %v4468
        %v4565 = vpop.f32.mrf.mxu0
        %v4566 = vadd.f32 0.0, %v4565
        %v4567 = vpop.f32.mrf.mxu0
        %4568 = vmatprep.mubr.f32.mxu0 %v4471
        %4569 = vmatmul.mubr.f32.gmra.mxu0 %v4470
        %v4570 = vpop.f32.mrf.mxu0
        %v4571 = vadd.f32 0.0, %v4570
        %v4572 = vpop.f32.mrf.mxu0
        %4573 = vmatprep.mubr.f32.mxu0 %v4473
        %4574 = vmatmul.mubr.f32.gmra.mxu0 %v4472
        %v4575 = vpop.f32.mrf.mxu0
        %v4576 = vadd.f32 0.0, %v4575
        %v4577 = vpop.f32.mrf.mxu0
        %4578 = vdwg.mxu0
        %s4579 = scalar_lea.vmem %s2, 120
        %v4580 = vld [vmem:[%s4579] sm:$0x1f]
        %v4582 = vsel %vm759, %v4541, 0
        %v4585 = vsel %vm759, %v4546, 0
        %v4588 = vsel %vm759, %v4551, 0
        %v4591 = vsel %vm759, %v4556, 0
        %v4594 = vsel %vm759, %v4561, 0
        %v4597 = vsel %vm759, %v4566, 0
        %v4600 = vsel %vm759, %v4571, 0
        %v4603 = vsel %vm759, %v4576, 0
        %v4606 = vsel %vm784, %v4580, 0
        %4608 = vmatprep.subr.mxu0 0.0
        %4609 = vmatpush1.msra.mxu0 0.0
        %4610 = vmatprep.subr.mxu0 0.0
        %4611 = vmatpush1.msra.mxu0 0.0
        %4612 = vmatprep.subr.mxu0 0.0
        %4613 = vmatpush1.msra.mxu0 0.0
        %4614 = vmatprep.subr.mxu0 0.0
        %4615 = vmatpush1.msra.mxu0 0.0
        %4616 = vmatprep.subr.mxu0 0.0
        %4617 = vmatpush1.msra.mxu0 0.0
        %4618 = vmatprep.subr.mxu0 0.0
        %4619 = vmatpush1.msra.mxu0 0.0
        %4620 = vmatprep.subr.mxu0 0.0
        %4621 = vmatpush1.msra.mxu0 0.0
        %4622 = vmatprep.subr.mxu0 0.0
        %4623 = vmatpush1.msra.mxu0 0.0
        %4624 = vmatprep.subr.mxu0 0.0
        %4625 = vmatpush1.msra.mxu0 0.0
        %4626 = vmatprep.subr.mxu0 0.0
        %4627 = vmatpush1.msra.mxu0 0.0
        %4628 = vmatprep.subr.mxu0 0.0
        %4629 = vmatpush1.msra.mxu0 0.0
        %4630 = vmatprep.subr.mxu0 0.0
        %4631 = vmatpush1.msra.mxu0 0.0
        %4632 = vmatprep.subr.mxu0 0.0
        %4633 = vmatpush1.msra.mxu0 0.0
        %4634 = vmatprep.subr.mxu0 0.0
        %4635 = vmatpush1.msra.mxu0 0.0
        %4636 = vmatprep.subr.mxu0 0.0
        %4637 = vmatpush1.msra.mxu0 0.0
        %4638 = vmatprep.subr.mxu0 0.0
        %4639 = vmatpush1.msra.mxu0 %v4606
        %4640 = vmatprep.subr.mxu0 0.0
        %4641 = vmatpush2.msra.mxu0 0.0
        %4642 = vmatprep.subr.mxu0 0.0
        %4643 = vmatpush2.msra.mxu0 0.0
        %4644 = vmatprep.subr.mxu0 0.0
        %4645 = vmatpush2.msra.mxu0 0.0
        %4646 = vmatprep.subr.mxu0 0.0
        %4647 = vmatpush2.msra.mxu0 0.0
        %4648 = vmatprep.subr.mxu0 0.0
        %4649 = vmatpush2.msra.mxu0 0.0
        %4650 = vmatprep.subr.mxu0 0.0
        %4651 = vmatpush2.msra.mxu0 0.0
        %4652 = vmatprep.subr.mxu0 0.0
        %4653 = vmatpush2.msra.mxu0 0.0
        %4654 = vmatprep.subr.mxu0 0.0
        %4655 = vmatpush2.msra.mxu0 0.0
        %4656 = vmatprep.subr.mxu0 0.0
        %4657 = vmatpush2.msra.mxu0 0.0
        %4658 = vmatprep.subr.mxu0 0.0
        %4659 = vmatpush2.msra.mxu0 0.0
        %4660 = vmatprep.subr.mxu0 0.0
        %4661 = vmatpush2.msra.mxu0 0.0
        %4662 = vmatprep.subr.mxu0 0.0
        %4663 = vmatpush2.msra.mxu0 0.0
        %4664 = vmatprep.subr.mxu0 0.0
        %4665 = vmatpush2.msra.mxu0 0.0
        %4666 = vmatprep.subr.mxu0 0.0
        %4667 = vmatpush2.msra.mxu0 0.0
        %4668 = vmatprep.subr.mxu0 0.0
        %4669 = vmatpush2.msra.mxu0 0.0
        %4670 = vmatprep.subr.mxu0 0.0
        %4671 = vmatpush2.msra.mxu0 0.0
        %4672 = vmatprep.mubr.f32.mxu0 0.0
        %4673 = vmatmul.mubr.f32.gmra.mxu0 %v4582
        %v4674 = vpop.f32.mrf.mxu0
        %v4675 = vadd.f32 0.0, %v4674
        %v4676 = vpop.f32.mrf.mxu0
        %4677 = vmatprep.mubr.f32.mxu0 0.0
        %4678 = vmatmul.mubr.f32.gmra.mxu0 %v4585
        %v4679 = vpop.f32.mrf.mxu0
        %v4680 = vadd.f32 0.0, %v4679
        %v4681 = vpop.f32.mrf.mxu0
        %4682 = vmatprep.mubr.f32.mxu0 0.0
        %4683 = vmatmul.mubr.f32.gmra.mxu0 %v4588
        %v4684 = vpop.f32.mrf.mxu0
        %v4685 = vadd.f32 0.0, %v4684
        %v4686 = vpop.f32.mrf.mxu0
        %4687 = vmatprep.mubr.f32.mxu0 0.0
        %4688 = vmatmul.mubr.f32.gmra.mxu0 %v4591
        %v4689 = vpop.f32.mrf.mxu0
        %v4690 = vadd.f32 0.0, %v4689
        %v4691 = vpop.f32.mrf.mxu0
        %4692 = vmatprep.mubr.f32.mxu0 0.0
        %4693 = vmatmul.mubr.f32.gmra.mxu0 %v4594
        %v4694 = vpop.f32.mrf.mxu0
        %v4695 = vadd.f32 0.0, %v4694
        %v4696 = vpop.f32.mrf.mxu0
        %4697 = vmatprep.mubr.f32.mxu0 0.0
        %4698 = vmatmul.mubr.f32.gmra.mxu0 %v4597
        %v4699 = vpop.f32.mrf.mxu0
        %v4700 = vadd.f32 0.0, %v4699
        %v4701 = vpop.f32.mrf.mxu0
        %4702 = vmatprep.mubr.f32.mxu0 0.0
        %4703 = vmatmul.mubr.f32.gmra.mxu0 %v4600
        %v4704 = vpop.f32.mrf.mxu0
        %v4705 = vadd.f32 0.0, %v4704
        %v4706 = vpop.f32.mrf.mxu0
        %4707 = vmatprep.mubr.f32.mxu0 0.0
        %4708 = vmatmul.mubr.f32.gmra.mxu0 %v4603
        %v4709 = vpop.f32.mrf.mxu0
        %v4710 = vadd.f32 0.0, %v4709
        %v4711 = vpop.f32.mrf.mxu0
        %4712 = vdwg.mxu0
        %v4713 = vadd.f32 %v4449, %v4675
        %v4714 = vadd.f32 %v4450, %v4680
        %v4715 = vadd.f32 %v4451, %v4685
        %v4716 = vadd.f32 %v4452, %v4690
        %v4717 = vadd.f32 %v4453, %v4695
        %v4718 = vadd.f32 %v4454, %v4700
        %v4719 = vadd.f32 %v4455, %v4705
        %v4720 = vadd.f32 %v4456, %v4710
        %v4721 = vld [vmem:[%s3] sm:$0x1]
        %v4723 = vlaneseq
        %v4724 = vshrl.u32 %v4723, 7
        %v4725 = vsub.s32 0, %v4724
        %v4726 = vrot.slane %v4721, %v4725
        %v4728 = vadd.f32 %v4713, %v4726
        %v4729 = vadd.f32 %v4714, %v4726
        %v4730 = vadd.f32 %v4715, %v4726
        %v4731 = vadd.f32 %v4716, %v4726
        %v4732 = vadd.f32 %v4717, %v4726
        %v4733 = vadd.f32 %v4718, %v4726
        %v4734 = vadd.f32 %v4719, %v4726
        %v4735 = vadd.f32 %v4720, %v4726
        %vm4736 = vcmp.gt.f32.partialorder %v4728, 0.0
        %vm4737 = vcmp.gt.f32.partialorder %v4729, 0.0
        %vm4738 = vcmp.gt.f32.partialorder %v4730, 0.0
        %vm4739 = vcmp.gt.f32.partialorder %v4731, 0.0
        %vm4740 = vcmp.gt.f32.partialorder %v4732, 0.0
        %vm4741 = vcmp.gt.f32.partialorder %v4733, 0.0
        %vm4742 = vcmp.gt.f32.partialorder %v4734, 0.0
        %vm4743 = vcmp.gt.f32.partialorder %v4735, 0.0
        %v4744 = vmul.f32 %v4728, 0.2
        %v4745 = vmul.f32 %v4729, 0.2
        %v4746 = vmul.f32 %v4730, 0.2
        %v4747 = vmul.f32 %v4731, 0.2
        %v4748 = vmul.f32 %v4732, 0.2
        %v4749 = vmul.f32 %v4733, 0.2
        %v4750 = vmul.f32 %v4734, 0.2
        %v4751 = vmul.f32 %v4735, 0.2
        %v4752 = vsel %vm4736, %v4728, %v4744
        %v4753 = vsel %vm4737, %v4729, %v4745
        %v4754 = vsel %vm4738, %v4730, %v4746
        %v4755 = vsel %vm4739, %v4731, %v4747
        %v4756 = vsel %vm4740, %v4732, %v4748
        %v4757 = vsel %vm4741, %v4733, %v4749
        %v4758 = vsel %vm4742, %v4734, %v4750
        %v4759 = vsel %vm4743, %v4735, %v4751
        %v4760 = vld [vmem:[%s4] sm:$0xff]
        %v4761 = vld [vmem:[%s4 + $0x8] sm:$0xff]
        %vm4762 = vcmask 523264
        %v4764 = vsel %vm4762, %v4760, 0
        %v4767 = vsel %vm4762, %v4761, 0
        %4769 = vmatprep.subr.mxu0 0.0
        %4770 = vmatpush1.msra.mxu0 0.0
        %4771 = vmatprep.subr.mxu0 0.0
        %4772 = vmatpush1.msra.mxu0 0.0
        %4773 = vmatprep.subr.mxu0 0.0
        %4774 = vmatpush1.msra.mxu0 0.0
        %4775 = vmatprep.subr.mxu0 0.0
        %4776 = vmatpush1.msra.mxu0 0.0
        %4777 = vmatprep.subr.mxu0 0.0
        %4778 = vmatpush1.msra.mxu0 0.0
        %4779 = vmatprep.subr.mxu0 0.0
        %4780 = vmatpush1.msra.mxu0 0.0
        %4781 = vmatprep.subr.mxu0 0.0
        %4782 = vmatpush1.msra.mxu0 0.0
        %4783 = vmatprep.subr.mxu0 0.0
        %4784 = vmatpush1.msra.mxu0 0.0
        %4785 = vmatprep.subr.mxu0 0.0
        %4786 = vmatpush1.msra.mxu0 %v4759
        %4787 = vmatprep.subr.mxu0 0.0
        %4788 = vmatpush1.msra.mxu0 %v4758
        %4789 = vmatprep.subr.mxu0 0.0
        %4790 = vmatpush1.msra.mxu0 %v4757
        %4791 = vmatprep.subr.mxu0 0.0
        %4792 = vmatpush1.msra.mxu0 %v4756
        %4793 = vmatprep.subr.mxu0 0.0
        %4794 = vmatpush1.msra.mxu0 %v4755
        %4795 = vmatprep.subr.mxu0 0.0
        %4796 = vmatpush1.msra.mxu0 %v4754
        %4797 = vmatprep.subr.mxu0 0.0
        %4798 = vmatpush1.msra.mxu0 %v4753
        %4799 = vmatprep.subr.mxu0 0.0
        %4800 = vmatpush1.msra.mxu0 %v4752
        %4801 = vmatprep.subr.mxu0 0.0
        %4802 = vmatpush2.msra.mxu0 0.0
        %4803 = vmatprep.subr.mxu0 0.0
        %4804 = vmatpush2.msra.mxu0 0.0
        %4805 = vmatprep.subr.mxu0 0.0
        %4806 = vmatpush2.msra.mxu0 0.0
        %4807 = vmatprep.subr.mxu0 0.0
        %4808 = vmatpush2.msra.mxu0 0.0
        %4809 = vmatprep.subr.mxu0 0.0
        %4810 = vmatpush2.msra.mxu0 0.0
        %4811 = vmatprep.subr.mxu0 0.0
        %4812 = vmatpush2.msra.mxu0 0.0
        %4813 = vmatprep.subr.mxu0 0.0
        %4814 = vmatpush2.msra.mxu0 0.0
        %4815 = vmatprep.subr.mxu0 0.0
        %4816 = vmatpush2.msra.mxu0 0.0
        %4817 = vmatprep.subr.mxu0 0.0
        %4818 = vmatpush2.msra.mxu0 0.0
        %4819 = vmatprep.subr.mxu0 0.0
        %4820 = vmatpush2.msra.mxu0 0.0
        %4821 = vmatprep.subr.mxu0 0.0
        %4822 = vmatpush2.msra.mxu0 0.0
        %4823 = vmatprep.subr.mxu0 0.0
        %4824 = vmatpush2.msra.mxu0 0.0
        %4825 = vmatprep.subr.mxu0 0.0
        %4826 = vmatpush2.msra.mxu0 0.0
        %4827 = vmatprep.subr.mxu0 0.0
        %4828 = vmatpush2.msra.mxu0 0.0
        %4829 = vmatprep.subr.mxu0 0.0
        %4830 = vmatpush2.msra.mxu0 0.0
        %4831 = vmatprep.subr.mxu0 0.0
        %4832 = vmatpush2.msra.mxu0 0.0
        %4833 = vmatprep.mubr.f32.mxu0 0.0
        %4834 = vmatmul.mubr.f32.gmra.mxu0 %v4764
        %v4835 = vpop.f32.mrf.mxu0
        %v4836 = vadd.f32 0.0, %v4835
        %v4837 = vpop.f32.mrf.mxu0
        %4838 = vmatprep.mubr.f32.mxu0 0.0
        %4839 = vmatmul.mubr.f32.gmra.mxu0 %v4767
        %v4840 = vpop.f32.mrf.mxu0
        %v4841 = vadd.f32 0.0, %v4840
        %v4842 = vpop.f32.mrf.mxu0
        %4843 = vdwg.mxu0
        %v4844 = vld [vmem:[%s5] sm:$0xff]
        %s4845 = scalar_lea.vmem %s4, 16
        %v4846 = vld [vmem:[%s4845] sm:$0xff]
        %v4847 = vld [vmem:[%s4845 + $0x8] sm:$0xff]
        %v4849 = vsel %vm4762, %v4846, 0
        %v4852 = vsel %vm4762, %v4847, 0
        %4854 = vmatprep.subr.mxu0 0.0
        %4855 = vmatpush1.msra.mxu0 0.0
        %4856 = vmatprep.subr.mxu0 0.0
        %4857 = vmatpush1.msra.mxu0 0.0
        %4858 = vmatprep.subr.mxu0 0.0
        %4859 = vmatpush1.msra.mxu0 0.0
        %4860 = vmatprep.subr.mxu0 0.0
        %4861 = vmatpush1.msra.mxu0 0.0
        %4862 = vmatprep.subr.mxu0 0.0
        %4863 = vmatpush1.msra.mxu0 0.0
        %4864 = vmatprep.subr.mxu0 0.0
        %4865 = vmatpush1.msra.mxu0 0.0
        %4866 = vmatprep.subr.mxu0 0.0
        %4867 = vmatpush1.msra.mxu0 0.0
        %4868 = vmatprep.subr.mxu0 0.0
        %4869 = vmatpush1.msra.mxu0 0.0
        %4870 = vmatprep.subr.mxu0 0.0
        %4871 = vmatpush1.msra.mxu0 %v4759
        %4872 = vmatprep.subr.mxu0 0.0
        %4873 = vmatpush1.msra.mxu0 %v4758
        %4874 = vmatprep.subr.mxu0 0.0
        %4875 = vmatpush1.msra.mxu0 %v4757
        %4876 = vmatprep.subr.mxu0 0.0
        %4877 = vmatpush1.msra.mxu0 %v4756
        %4878 = vmatprep.subr.mxu0 0.0
        %4879 = vmatpush1.msra.mxu0 %v4755
        %4880 = vmatprep.subr.mxu0 0.0
        %4881 = vmatpush1.msra.mxu0 %v4754
        %4882 = vmatprep.subr.mxu0 0.0
        %4883 = vmatpush1.msra.mxu0 %v4753
        %4884 = vmatprep.subr.mxu0 0.0
        %4885 = vmatpush1.msra.mxu0 %v4752
        %4886 = vmatprep.subr.mxu0 0.0
        %4887 = vmatpush2.msra.mxu0 0.0
        %4888 = vmatprep.subr.mxu0 0.0
        %4889 = vmatpush2.msra.mxu0 0.0
        %4890 = vmatprep.subr.mxu0 0.0
        %4891 = vmatpush2.msra.mxu0 0.0
        %4892 = vmatprep.subr.mxu0 0.0
        %4893 = vmatpush2.msra.mxu0 0.0
        %4894 = vmatprep.subr.mxu0 0.0
        %4895 = vmatpush2.msra.mxu0 0.0
        %4896 = vmatprep.subr.mxu0 0.0
        %4897 = vmatpush2.msra.mxu0 0.0
        %4898 = vmatprep.subr.mxu0 0.0
        %4899 = vmatpush2.msra.mxu0 0.0
        %4900 = vmatprep.subr.mxu0 0.0
        %4901 = vmatpush2.msra.mxu0 0.0
        %4902 = vmatprep.subr.mxu0 0.0
        %4903 = vmatpush2.msra.mxu0 0.0
        %4904 = vmatprep.subr.mxu0 0.0
        %4905 = vmatpush2.msra.mxu0 0.0
        %4906 = vmatprep.subr.mxu0 0.0
        %4907 = vmatpush2.msra.mxu0 0.0
        %4908 = vmatprep.subr.mxu0 0.0
        %4909 = vmatpush2.msra.mxu0 0.0
        %4910 = vmatprep.subr.mxu0 0.0
        %4911 = vmatpush2.msra.mxu0 0.0
        %4912 = vmatprep.subr.mxu0 0.0
        %4913 = vmatpush2.msra.mxu0 0.0
        %4914 = vmatprep.subr.mxu0 0.0
        %4915 = vmatpush2.msra.mxu0 0.0
        %4916 = vmatprep.subr.mxu0 0.0
        %4917 = vmatpush2.msra.mxu0 0.0
        %4918 = vmatprep.mubr.f32.mxu0 0.0
        %4919 = vmatmul.mubr.f32.gmra.mxu0 %v4849
        %v4920 = vpop.f32.mrf.mxu0
        %v4921 = vadd.f32 0.0, %v4920
        %v4922 = vpop.f32.mrf.mxu0
        %4923 = vmatprep.mubr.f32.mxu0 0.0
        %4924 = vmatmul.mubr.f32.gmra.mxu0 %v4852
        %v4925 = vpop.f32.mrf.mxu0
        %v4926 = vadd.f32 0.0, %v4925
        %v4927 = vpop.f32.mrf.mxu0
        %4928 = vdwg.mxu0
        %s4929 = scalar_lea.vmem %s5, 8
        %v4930 = vld [vmem:[%s4929] sm:$0xff]
        %vm4931 = vcmask 64512
        %v4933 = vsel %vm4931, %v4921, 0
        %v4936 = vsel %vm4931, %v4926, 0
        %4938 = vmatprep.subr.mxu0 0.0
        %4939 = vmatpush1.msra.mxu0 0.0
        %4940 = vmatprep.subr.mxu0 0.0
        %4941 = vmatpush1.msra.mxu0 0.0
        %4942 = vmatprep.subr.mxu0 0.0
        %4943 = vmatpush1.msra.mxu0 0.0
        %4944 = vmatprep.subr.mxu0 0.0
        %4945 = vmatpush1.msra.mxu0 0.0
        %4946 = vmatprep.subr.mxu0 0.0
        %4947 = vmatpush1.msra.mxu0 0.0
        %4948 = vmatprep.subr.mxu0 0.0
        %4949 = vmatpush1.msra.mxu0 0.0
        %4950 = vmatprep.subr.mxu0 0.0
        %4951 = vmatpush1.msra.mxu0 0.0
        %4952 = vmatprep.subr.mxu0 0.0
        %4953 = vmatpush1.msra.mxu0 0.0
        %4954 = vmatprep.subr.mxu0 0.0
        %4955 = vmatpush1.msra.mxu0 0.0
        %4956 = vmatprep.subr.mxu0 0.0
        %4957 = vmatpush1.msra.mxu0 0.0
        %4958 = vmatprep.subr.mxu0 0.0
        %4959 = vmatpush1.msra.mxu0 0.0
        %4960 = vmatprep.subr.mxu0 0.0
        %4961 = vmatpush1.msra.mxu0 0.0
        %4962 = vmatprep.subr.mxu0 0.0
        %4963 = vmatpush1.msra.mxu0 0.0
        %4964 = vmatprep.subr.mxu0 0.0
        %4965 = vmatpush1.msra.mxu0 0.0
        %4966 = vmatprep.subr.mxu0 0.0
        %4967 = vmatpush1.msra.mxu0 0.0
        %4968 = vmatprep.subr.mxu0 0.0
        %4969 = vmatpush1.msra.mxu0 %v4930
        %4970 = vmatprep.subr.mxu0 0.0
        %4971 = vmatpush2.msra.mxu0 0.0
        %4972 = vmatprep.subr.mxu0 0.0
        %4973 = vmatpush2.msra.mxu0 0.0
        %4974 = vmatprep.subr.mxu0 0.0
        %4975 = vmatpush2.msra.mxu0 0.0
        %4976 = vmatprep.subr.mxu0 0.0
        %4977 = vmatpush2.msra.mxu0 0.0
        %4978 = vmatprep.subr.mxu0 0.0
        %4979 = vmatpush2.msra.mxu0 0.0
        %4980 = vmatprep.subr.mxu0 0.0
        %4981 = vmatpush2.msra.mxu0 0.0
        %4982 = vmatprep.subr.mxu0 0.0
        %4983 = vmatpush2.msra.mxu0 0.0
        %4984 = vmatprep.subr.mxu0 0.0
        %4985 = vmatpush2.msra.mxu0 0.0
        %4986 = vmatprep.subr.mxu0 0.0
        %4987 = vmatpush2.msra.mxu0 0.0
        %4988 = vmatprep.subr.mxu0 0.0
        %4989 = vmatpush2.msra.mxu0 0.0
        %4990 = vmatprep.subr.mxu0 0.0
        %4991 = vmatpush2.msra.mxu0 0.0
        %4992 = vmatprep.subr.mxu0 0.0
        %4993 = vmatpush2.msra.mxu0 0.0
        %4994 = vmatprep.subr.mxu0 0.0
        %4995 = vmatpush2.msra.mxu0 0.0
        %4996 = vmatprep.subr.mxu0 0.0
        %4997 = vmatpush2.msra.mxu0 0.0
        %4998 = vmatprep.subr.mxu0 0.0
        %4999 = vmatpush2.msra.mxu0 0.0
        %5000 = vmatprep.subr.mxu0 0.0
        %5001 = vmatpush2.msra.mxu0 0.0
        %5002 = vmatprep.mubr.f32.mxu0 0.0
        %5003 = vmatmul.mubr.f32.gmra.mxu0 %v4933
        %v5004 = vpop.f32.mrf.mxu0
        %v5005 = vadd.f32 0.0, %v5004
        %v5006 = vpop.f32.mrf.mxu0
        %5007 = vmatprep.mubr.f32.mxu0 0.0
        %5008 = vmatmul.mubr.f32.gmra.mxu0 %v4936
        %v5009 = vpop.f32.mrf.mxu0
        %v5010 = vadd.f32 0.0, %v5009
        %v5011 = vpop.f32.mrf.mxu0
        %5012 = vdwg.mxu0
        %v5014 = vsel %vm4931, %v4836, 0
        %v5017 = vsel %vm4931, %v4841, 0
        %5019 = vmatprep.subr.mxu0 0.0
        %5020 = vmatpush1.msra.mxu0 0.0
        %5021 = vmatprep.subr.mxu0 0.0
        %5022 = vmatpush1.msra.mxu0 0.0
        %5023 = vmatprep.subr.mxu0 0.0
        %5024 = vmatpush1.msra.mxu0 0.0
        %5025 = vmatprep.subr.mxu0 0.0
        %5026 = vmatpush1.msra.mxu0 0.0
        %5027 = vmatprep.subr.mxu0 0.0
        %5028 = vmatpush1.msra.mxu0 0.0
        %5029 = vmatprep.subr.mxu0 0.0
        %5030 = vmatpush1.msra.mxu0 0.0
        %5031 = vmatprep.subr.mxu0 0.0
        %5032 = vmatpush1.msra.mxu0 0.0
        %5033 = vmatprep.subr.mxu0 0.0
        %5034 = vmatpush1.msra.mxu0 0.0
        %5035 = vmatprep.subr.mxu0 0.0
        %5036 = vmatpush1.msra.mxu0 0.0
        %5037 = vmatprep.subr.mxu0 0.0
        %5038 = vmatpush1.msra.mxu0 0.0
        %5039 = vmatprep.subr.mxu0 0.0
        %5040 = vmatpush1.msra.mxu0 0.0
        %5041 = vmatprep.subr.mxu0 0.0
        %5042 = vmatpush1.msra.mxu0 0.0
        %5043 = vmatprep.subr.mxu0 0.0
        %5044 = vmatpush1.msra.mxu0 0.0
        %5045 = vmatprep.subr.mxu0 0.0
        %5046 = vmatpush1.msra.mxu0 0.0
        %5047 = vmatprep.subr.mxu0 0.0
        %5048 = vmatpush1.msra.mxu0 0.0
        %5049 = vmatprep.subr.mxu0 0.0
        %5050 = vmatpush1.msra.mxu0 %v4844
        %5051 = vmatprep.subr.mxu0 0.0
        %5052 = vmatpush2.msra.mxu0 0.0
        %5053 = vmatprep.subr.mxu0 0.0
        %5054 = vmatpush2.msra.mxu0 0.0
        %5055 = vmatprep.subr.mxu0 0.0
        %5056 = vmatpush2.msra.mxu0 0.0
        %5057 = vmatprep.subr.mxu0 0.0
        %5058 = vmatpush2.msra.mxu0 0.0
        %5059 = vmatprep.subr.mxu0 0.0
        %5060 = vmatpush2.msra.mxu0 0.0
        %5061 = vmatprep.subr.mxu0 0.0
        %5062 = vmatpush2.msra.mxu0 0.0
        %5063 = vmatprep.subr.mxu0 0.0
        %5064 = vmatpush2.msra.mxu0 0.0
        %5065 = vmatprep.subr.mxu0 0.0
        %5066 = vmatpush2.msra.mxu0 0.0
        %5067 = vmatprep.subr.mxu0 0.0
        %5068 = vmatpush2.msra.mxu0 0.0
        %5069 = vmatprep.subr.mxu0 0.0
        %5070 = vmatpush2.msra.mxu0 0.0
        %5071 = vmatprep.subr.mxu0 0.0
        %5072 = vmatpush2.msra.mxu0 0.0
        %5073 = vmatprep.subr.mxu0 0.0
        %5074 = vmatpush2.msra.mxu0 0.0
        %5075 = vmatprep.subr.mxu0 0.0
        %5076 = vmatpush2.msra.mxu0 0.0
        %5077 = vmatprep.subr.mxu0 0.0
        %5078 = vmatpush2.msra.mxu0 0.0
        %5079 = vmatprep.subr.mxu0 0.0
        %5080 = vmatpush2.msra.mxu0 0.0
        %5081 = vmatprep.subr.mxu0 0.0
        %5082 = vmatpush2.msra.mxu0 0.0
        %5083 = vmatprep.mubr.f32.mxu0 0.0
        %5084 = vmatmul.mubr.f32.gmra.mxu0 %v5014
        %v5085 = vpop.f32.mrf.mxu0
        %v5086 = vadd.f32 %v5005, %v5085
        %v5087 = vpop.f32.mrf.mxu0
        %5088 = vmatprep.mubr.f32.mxu0 0.0
        %5089 = vmatmul.mubr.f32.gmra.mxu0 %v5017
        %v5090 = vpop.f32.mrf.mxu0
        %v5091 = vadd.f32 %v5010, %v5090
        %v5092 = vpop.f32.mrf.mxu0
        %5093 = vdwg.mxu0
        %s5094 = scalar_lea.vmem %s4, 32
        %v5095 = vld [vmem:[%s5094] sm:$0xff]
        %v5096 = vld [vmem:[%s5094 + $0x8] sm:$0xff]
        %v5098 = vsel %vm4762, %v5095, 0
        %v5101 = vsel %vm4762, %v5096, 0
        %5103 = vmatprep.subr.mxu0 0.0
        %5104 = vmatpush1.msra.mxu0 0.0
        %5105 = vmatprep.subr.mxu0 0.0
        %5106 = vmatpush1.msra.mxu0 0.0
        %5107 = vmatprep.subr.mxu0 0.0
        %5108 = vmatpush1.msra.mxu0 0.0
        %5109 = vmatprep.subr.mxu0 0.0
        %5110 = vmatpush1.msra.mxu0 0.0
        %5111 = vmatprep.subr.mxu0 0.0
        %5112 = vmatpush1.msra.mxu0 0.0
        %5113 = vmatprep.subr.mxu0 0.0
        %5114 = vmatpush1.msra.mxu0 0.0
        %5115 = vmatprep.subr.mxu0 0.0
        %5116 = vmatpush1.msra.mxu0 0.0
        %5117 = vmatprep.subr.mxu0 0.0
        %5118 = vmatpush1.msra.mxu0 0.0
        %5119 = vmatprep.subr.mxu0 0.0
        %5120 = vmatpush1.msra.mxu0 %v4759
        %5121 = vmatprep.subr.mxu0 0.0
        %5122 = vmatpush1.msra.mxu0 %v4758
        %5123 = vmatprep.subr.mxu0 0.0
        %5124 = vmatpush1.msra.mxu0 %v4757
        %5125 = vmatprep.subr.mxu0 0.0
        %5126 = vmatpush1.msra.mxu0 %v4756
        %5127 = vmatprep.subr.mxu0 0.0
        %5128 = vmatpush1.msra.mxu0 %v4755
        %5129 = vmatprep.subr.mxu0 0.0
        %5130 = vmatpush1.msra.mxu0 %v4754
        %5131 = vmatprep.subr.mxu0 0.0
        %5132 = vmatpush1.msra.mxu0 %v4753
        %5133 = vmatprep.subr.mxu0 0.0
        %5134 = vmatpush1.msra.mxu0 %v4752
        %5135 = vmatprep.subr.mxu0 0.0
        %5136 = vmatpush2.msra.mxu0 0.0
        %5137 = vmatprep.subr.mxu0 0.0
        %5138 = vmatpush2.msra.mxu0 0.0
        %5139 = vmatprep.subr.mxu0 0.0
        %5140 = vmatpush2.msra.mxu0 0.0
        %5141 = vmatprep.subr.mxu0 0.0
        %5142 = vmatpush2.msra.mxu0 0.0
        %5143 = vmatprep.subr.mxu0 0.0
        %5144 = vmatpush2.msra.mxu0 0.0
        %5145 = vmatprep.subr.mxu0 0.0
        %5146 = vmatpush2.msra.mxu0 0.0
        %5147 = vmatprep.subr.mxu0 0.0
        %5148 = vmatpush2.msra.mxu0 0.0
        %5149 = vmatprep.subr.mxu0 0.0
        %5150 = vmatpush2.msra.mxu0 0.0
        %5151 = vmatprep.subr.mxu0 0.0
        %5152 = vmatpush2.msra.mxu0 0.0
        %5153 = vmatprep.subr.mxu0 0.0
        %5154 = vmatpush2.msra.mxu0 0.0
        %5155 = vmatprep.subr.mxu0 0.0
        %5156 = vmatpush2.msra.mxu0 0.0
        %5157 = vmatprep.subr.mxu0 0.0
        %5158 = vmatpush2.msra.mxu0 0.0
        %5159 = vmatprep.subr.mxu0 0.0
        %5160 = vmatpush2.msra.mxu0 0.0
        %5161 = vmatprep.subr.mxu0 0.0
        %5162 = vmatpush2.msra.mxu0 0.0
        %5163 = vmatprep.subr.mxu0 0.0
        %5164 = vmatpush2.msra.mxu0 0.0
        %5165 = vmatprep.subr.mxu0 0.0
        %5166 = vmatpush2.msra.mxu0 0.0
        %5167 = vmatprep.mubr.f32.mxu0 0.0
        %5168 = vmatmul.mubr.f32.gmra.mxu0 %v5098
        %v5169 = vpop.f32.mrf.mxu0
        %v5170 = vadd.f32 0.0, %v5169
        %v5171 = vpop.f32.mrf.mxu0
        %5172 = vmatprep.mubr.f32.mxu0 0.0
        %5173 = vmatmul.mubr.f32.gmra.mxu0 %v5101
        %v5174 = vpop.f32.mrf.mxu0
        %v5175 = vadd.f32 0.0, %v5174
        %v5176 = vpop.f32.mrf.mxu0
        %5177 = vdwg.mxu0
        %s5178 = scalar_lea.vmem %s5, 16
        %v5179 = vld [vmem:[%s5178] sm:$0xff]
        %v5181 = vsel %vm4931, %v5170, 0
        %v5184 = vsel %vm4931, %v5175, 0
        %5186 = vmatprep.subr.mxu0 0.0
        %5187 = vmatpush1.msra.mxu0 0.0
        %5188 = vmatprep.subr.mxu0 0.0
        %5189 = vmatpush1.msra.mxu0 0.0
        %5190 = vmatprep.subr.mxu0 0.0
        %5191 = vmatpush1.msra.mxu0 0.0
        %5192 = vmatprep.subr.mxu0 0.0
        %5193 = vmatpush1.msra.mxu0 0.0
        %5194 = vmatprep.subr.mxu0 0.0
        %5195 = vmatpush1.msra.mxu0 0.0
        %5196 = vmatprep.subr.mxu0 0.0
        %5197 = vmatpush1.msra.mxu0 0.0
        %5198 = vmatprep.subr.mxu0 0.0
        %5199 = vmatpush1.msra.mxu0 0.0
        %5200 = vmatprep.subr.mxu0 0.0
        %5201 = vmatpush1.msra.mxu0 0.0
        %5202 = vmatprep.subr.mxu0 0.0
        %5203 = vmatpush1.msra.mxu0 0.0
        %5204 = vmatprep.subr.mxu0 0.0
        %5205 = vmatpush1.msra.mxu0 0.0
        %5206 = vmatprep.subr.mxu0 0.0
        %5207 = vmatpush1.msra.mxu0 0.0
        %5208 = vmatprep.subr.mxu0 0.0
        %5209 = vmatpush1.msra.mxu0 0.0
        %5210 = vmatprep.subr.mxu0 0.0
        %5211 = vmatpush1.msra.mxu0 0.0
        %5212 = vmatprep.subr.mxu0 0.0
        %5213 = vmatpush1.msra.mxu0 0.0
        %5214 = vmatprep.subr.mxu0 0.0
        %5215 = vmatpush1.msra.mxu0 0.0
        %5216 = vmatprep.subr.mxu0 0.0
        %5217 = vmatpush1.msra.mxu0 %v5179
        %5218 = vmatprep.subr.mxu0 0.0
        %5219 = vmatpush2.msra.mxu0 0.0
        %5220 = vmatprep.subr.mxu0 0.0
        %5221 = vmatpush2.msra.mxu0 0.0
        %5222 = vmatprep.subr.mxu0 0.0
        %5223 = vmatpush2.msra.mxu0 0.0
        %5224 = vmatprep.subr.mxu0 0.0
        %5225 = vmatpush2.msra.mxu0 0.0
        %5226 = vmatprep.subr.mxu0 0.0
        %5227 = vmatpush2.msra.mxu0 0.0
        %5228 = vmatprep.subr.mxu0 0.0
        %5229 = vmatpush2.msra.mxu0 0.0
        %5230 = vmatprep.subr.mxu0 0.0
        %5231 = vmatpush2.msra.mxu0 0.0
        %5232 = vmatprep.subr.mxu0 0.0
        %5233 = vmatpush2.msra.mxu0 0.0
        %5234 = vmatprep.subr.mxu0 0.0
        %5235 = vmatpush2.msra.mxu0 0.0
        %5236 = vmatprep.subr.mxu0 0.0
        %5237 = vmatpush2.msra.mxu0 0.0
        %5238 = vmatprep.subr.mxu0 0.0
        %5239 = vmatpush2.msra.mxu0 0.0
        %5240 = vmatprep.subr.mxu0 0.0
        %5241 = vmatpush2.msra.mxu0 0.0
        %5242 = vmatprep.subr.mxu0 0.0
        %5243 = vmatpush2.msra.mxu0 0.0
        %5244 = vmatprep.subr.mxu0 0.0
        %5245 = vmatpush2.msra.mxu0 0.0
        %5246 = vmatprep.subr.mxu0 0.0
        %5247 = vmatpush2.msra.mxu0 0.0
        %5248 = vmatprep.subr.mxu0 0.0
        %5249 = vmatpush2.msra.mxu0 0.0
        %5250 = vmatprep.mubr.f32.mxu0 0.0
        %5251 = vmatmul.mubr.f32.gmra.mxu0 %v5181
        %v5252 = vpop.f32.mrf.mxu0
        %v5253 = vadd.f32 0.0, %v5252
        %v5254 = vpop.f32.mrf.mxu0
        %5255 = vmatprep.mubr.f32.mxu0 0.0
        %5256 = vmatmul.mubr.f32.gmra.mxu0 %v5184
        %v5257 = vpop.f32.mrf.mxu0
        %v5258 = vadd.f32 0.0, %v5257
        %v5259 = vpop.f32.mrf.mxu0
        %5260 = vdwg.mxu0
        %v5261 = vadd.f32 %v5086, %v5253
        %v5262 = vadd.f32 %v5091, %v5258
        %s5263 = scalar_lea.vmem %s4, 48
        %v5264 = vld [vmem:[%s5263] sm:$0xff]
        %v5265 = vld [vmem:[%s5263 + $0x8] sm:$0xff]
        %v5267 = vsel %vm4762, %v5264, 0
        %v5270 = vsel %vm4762, %v5265, 0
        %5272 = vmatprep.subr.mxu0 0.0
        %5273 = vmatpush1.msra.mxu0 0.0
        %5274 = vmatprep.subr.mxu0 0.0
        %5275 = vmatpush1.msra.mxu0 0.0
        %5276 = vmatprep.subr.mxu0 0.0
        %5277 = vmatpush1.msra.mxu0 0.0
        %5278 = vmatprep.subr.mxu0 0.0
        %5279 = vmatpush1.msra.mxu0 0.0
        %5280 = vmatprep.subr.mxu0 0.0
        %5281 = vmatpush1.msra.mxu0 0.0
        %5282 = vmatprep.subr.mxu0 0.0
        %5283 = vmatpush1.msra.mxu0 0.0
        %5284 = vmatprep.subr.mxu0 0.0
        %5285 = vmatpush1.msra.mxu0 0.0
        %5286 = vmatprep.subr.mxu0 0.0
        %5287 = vmatpush1.msra.mxu0 0.0
        %5288 = vmatprep.subr.mxu0 0.0
        %5289 = vmatpush1.msra.mxu0 %v4759
        %5290 = vmatprep.subr.mxu0 0.0
        %5291 = vmatpush1.msra.mxu0 %v4758
        %5292 = vmatprep.subr.mxu0 0.0
        %5293 = vmatpush1.msra.mxu0 %v4757
        %5294 = vmatprep.subr.mxu0 0.0
        %5295 = vmatpush1.msra.mxu0 %v4756
        %5296 = vmatprep.subr.mxu0 0.0
        %5297 = vmatpush1.msra.mxu0 %v4755
        %5298 = vmatprep.subr.mxu0 0.0
        %5299 = vmatpush1.msra.mxu0 %v4754
        %5300 = vmatprep.subr.mxu0 0.0
        %5301 = vmatpush1.msra.mxu0 %v4753
        %5302 = vmatprep.subr.mxu0 0.0
        %5303 = vmatpush1.msra.mxu0 %v4752
        %5304 = vmatprep.subr.mxu0 0.0
        %5305 = vmatpush2.msra.mxu0 0.0
        %5306 = vmatprep.subr.mxu0 0.0
        %5307 = vmatpush2.msra.mxu0 0.0
        %5308 = vmatprep.subr.mxu0 0.0
        %5309 = vmatpush2.msra.mxu0 0.0
        %5310 = vmatprep.subr.mxu0 0.0
        %5311 = vmatpush2.msra.mxu0 0.0
        %5312 = vmatprep.subr.mxu0 0.0
        %5313 = vmatpush2.msra.mxu0 0.0
        %5314 = vmatprep.subr.mxu0 0.0
        %5315 = vmatpush2.msra.mxu0 0.0
        %5316 = vmatprep.subr.mxu0 0.0
        %5317 = vmatpush2.msra.mxu0 0.0
        %5318 = vmatprep.subr.mxu0 0.0
        %5319 = vmatpush2.msra.mxu0 0.0
        %5320 = vmatprep.subr.mxu0 0.0
        %5321 = vmatpush2.msra.mxu0 0.0
        %5322 = vmatprep.subr.mxu0 0.0
        %5323 = vmatpush2.msra.mxu0 0.0
        %5324 = vmatprep.subr.mxu0 0.0
        %5325 = vmatpush2.msra.mxu0 0.0
        %5326 = vmatprep.subr.mxu0 0.0
        %5327 = vmatpush2.msra.mxu0 0.0
        %5328 = vmatprep.subr.mxu0 0.0
        %5329 = vmatpush2.msra.mxu0 0.0
        %5330 = vmatprep.subr.mxu0 0.0
        %5331 = vmatpush2.msra.mxu0 0.0
        %5332 = vmatprep.subr.mxu0 0.0
        %5333 = vmatpush2.msra.mxu0 0.0
        %5334 = vmatprep.subr.mxu0 0.0
        %5335 = vmatpush2.msra.mxu0 0.0
        %5336 = vmatprep.mubr.f32.mxu0 0.0
        %5337 = vmatmul.mubr.f32.gmra.mxu0 %v5267
        %v5338 = vpop.f32.mrf.mxu0
        %v5339 = vadd.f32 0.0, %v5338
        %v5340 = vpop.f32.mrf.mxu0
        %5341 = vmatprep.mubr.f32.mxu0 0.0
        %5342 = vmatmul.mubr.f32.gmra.mxu0 %v5270
        %v5343 = vpop.f32.mrf.mxu0
        %v5344 = vadd.f32 0.0, %v5343
        %v5345 = vpop.f32.mrf.mxu0
        %5346 = vdwg.mxu0
        %s5347 = scalar_lea.vmem %s5, 24
        %v5348 = vld [vmem:[%s5347] sm:$0xff]
        %v5350 = vsel %vm4931, %v5339, 0
        %v5353 = vsel %vm4931, %v5344, 0
        %5355 = vmatprep.subr.mxu0 0.0
        %5356 = vmatpush1.msra.mxu0 0.0
        %5357 = vmatprep.subr.mxu0 0.0
        %5358 = vmatpush1.msra.mxu0 0.0
        %5359 = vmatprep.subr.mxu0 0.0
        %5360 = vmatpush1.msra.mxu0 0.0
        %5361 = vmatprep.subr.mxu0 0.0
        %5362 = vmatpush1.msra.mxu0 0.0
        %5363 = vmatprep.subr.mxu0 0.0
        %5364 = vmatpush1.msra.mxu0 0.0
        %5365 = vmatprep.subr.mxu0 0.0
        %5366 = vmatpush1.msra.mxu0 0.0
        %5367 = vmatprep.subr.mxu0 0.0
        %5368 = vmatpush1.msra.mxu0 0.0
        %5369 = vmatprep.subr.mxu0 0.0
        %5370 = vmatpush1.msra.mxu0 0.0
        %5371 = vmatprep.subr.mxu0 0.0
        %5372 = vmatpush1.msra.mxu0 0.0
        %5373 = vmatprep.subr.mxu0 0.0
        %5374 = vmatpush1.msra.mxu0 0.0
        %5375 = vmatprep.subr.mxu0 0.0
        %5376 = vmatpush1.msra.mxu0 0.0
        %5377 = vmatprep.subr.mxu0 0.0
        %5378 = vmatpush1.msra.mxu0 0.0
        %5379 = vmatprep.subr.mxu0 0.0
        %5380 = vmatpush1.msra.mxu0 0.0
        %5381 = vmatprep.subr.mxu0 0.0
        %5382 = vmatpush1.msra.mxu0 0.0
        %5383 = vmatprep.subr.mxu0 0.0
        %5384 = vmatpush1.msra.mxu0 0.0
        %5385 = vmatprep.subr.mxu0 0.0
        %5386 = vmatpush1.msra.mxu0 %v5348
        %5387 = vmatprep.subr.mxu0 0.0
        %5388 = vmatpush2.msra.mxu0 0.0
        %5389 = vmatprep.subr.mxu0 0.0
        %5390 = vmatpush2.msra.mxu0 0.0
        %5391 = vmatprep.subr.mxu0 0.0
        %5392 = vmatpush2.msra.mxu0 0.0
        %5393 = vmatprep.subr.mxu0 0.0
        %5394 = vmatpush2.msra.mxu0 0.0
        %5395 = vmatprep.subr.mxu0 0.0
        %5396 = vmatpush2.msra.mxu0 0.0
        %5397 = vmatprep.subr.mxu0 0.0
        %5398 = vmatpush2.msra.mxu0 0.0
        %5399 = vmatprep.subr.mxu0 0.0
        %5400 = vmatpush2.msra.mxu0 0.0
        %5401 = vmatprep.subr.mxu0 0.0
        %5402 = vmatpush2.msra.mxu0 0.0
        %5403 = vmatprep.subr.mxu0 0.0
        %5404 = vmatpush2.msra.mxu0 0.0
        %5405 = vmatprep.subr.mxu0 0.0
        %5406 = vmatpush2.msra.mxu0 0.0
        %5407 = vmatprep.subr.mxu0 0.0
        %5408 = vmatpush2.msra.mxu0 0.0
        %5409 = vmatprep.subr.mxu0 0.0
        %5410 = vmatpush2.msra.mxu0 0.0
        %5411 = vmatprep.subr.mxu0 0.0
        %5412 = vmatpush2.msra.mxu0 0.0
        %5413 = vmatprep.subr.mxu0 0.0
        %5414 = vmatpush2.msra.mxu0 0.0
        %5415 = vmatprep.subr.mxu0 0.0
        %5416 = vmatpush2.msra.mxu0 0.0
        %5417 = vmatprep.subr.mxu0 0.0
        %5418 = vmatpush2.msra.mxu0 0.0
        %5419 = vmatprep.mubr.f32.mxu0 0.0
        %5420 = vmatmul.mubr.f32.gmra.mxu0 %v5350
        %v5421 = vpop.f32.mrf.mxu0
        %v5422 = vadd.f32 0.0, %v5421
        %v5423 = vpop.f32.mrf.mxu0
        %5424 = vmatprep.mubr.f32.mxu0 0.0
        %5425 = vmatmul.mubr.f32.gmra.mxu0 %v5353
        %v5426 = vpop.f32.mrf.mxu0
        %v5427 = vadd.f32 0.0, %v5426
        %v5428 = vpop.f32.mrf.mxu0
        %5429 = vdwg.mxu0
        %v5430 = vadd.f32 %v5261, %v5422
        %v5431 = vadd.f32 %v5262, %v5427
        %s5432 = scalar_lea.vmem %s4, 64
        %v5433 = vld [vmem:[%s5432] sm:$0xff]
        %v5434 = vld [vmem:[%s5432 + $0x8] sm:$0xff]
        %v5436 = vsel %vm4762, %v5433, 0
        %v5439 = vsel %vm4762, %v5434, 0
        %5441 = vmatprep.subr.mxu0 0.0
        %5442 = vmatpush1.msra.mxu0 0.0
        %5443 = vmatprep.subr.mxu0 0.0
        %5444 = vmatpush1.msra.mxu0 0.0
        %5445 = vmatprep.subr.mxu0 0.0
        %5446 = vmatpush1.msra.mxu0 0.0
        %5447 = vmatprep.subr.mxu0 0.0
        %5448 = vmatpush1.msra.mxu0 0.0
        %5449 = vmatprep.subr.mxu0 0.0
        %5450 = vmatpush1.msra.mxu0 0.0
        %5451 = vmatprep.subr.mxu0 0.0
        %5452 = vmatpush1.msra.mxu0 0.0
        %5453 = vmatprep.subr.mxu0 0.0
        %5454 = vmatpush1.msra.mxu0 0.0
        %5455 = vmatprep.subr.mxu0 0.0
        %5456 = vmatpush1.msra.mxu0 0.0
        %5457 = vmatprep.subr.mxu0 0.0
        %5458 = vmatpush1.msra.mxu0 %v4759
        %5459 = vmatprep.subr.mxu0 0.0
        %5460 = vmatpush1.msra.mxu0 %v4758
        %5461 = vmatprep.subr.mxu0 0.0
        %5462 = vmatpush1.msra.mxu0 %v4757
        %5463 = vmatprep.subr.mxu0 0.0
        %5464 = vmatpush1.msra.mxu0 %v4756
        %5465 = vmatprep.subr.mxu0 0.0
        %5466 = vmatpush1.msra.mxu0 %v4755
        %5467 = vmatprep.subr.mxu0 0.0
        %5468 = vmatpush1.msra.mxu0 %v4754
        %5469 = vmatprep.subr.mxu0 0.0
        %5470 = vmatpush1.msra.mxu0 %v4753
        %5471 = vmatprep.subr.mxu0 0.0
        %5472 = vmatpush1.msra.mxu0 %v4752
        %5473 = vmatprep.subr.mxu0 0.0
        %5474 = vmatpush2.msra.mxu0 0.0
        %5475 = vmatprep.subr.mxu0 0.0
        %5476 = vmatpush2.msra.mxu0 0.0
        %5477 = vmatprep.subr.mxu0 0.0
        %5478 = vmatpush2.msra.mxu0 0.0
        %5479 = vmatprep.subr.mxu0 0.0
        %5480 = vmatpush2.msra.mxu0 0.0
        %5481 = vmatprep.subr.mxu0 0.0
        %5482 = vmatpush2.msra.mxu0 0.0
        %5483 = vmatprep.subr.mxu0 0.0
        %5484 = vmatpush2.msra.mxu0 0.0
        %5485 = vmatprep.subr.mxu0 0.0
        %5486 = vmatpush2.msra.mxu0 0.0
        %5487 = vmatprep.subr.mxu0 0.0
        %5488 = vmatpush2.msra.mxu0 0.0
        %5489 = vmatprep.subr.mxu0 0.0
        %5490 = vmatpush2.msra.mxu0 0.0
        %5491 = vmatprep.subr.mxu0 0.0
        %5492 = vmatpush2.msra.mxu0 0.0
        %5493 = vmatprep.subr.mxu0 0.0
        %5494 = vmatpush2.msra.mxu0 0.0
        %5495 = vmatprep.subr.mxu0 0.0
        %5496 = vmatpush2.msra.mxu0 0.0
        %5497 = vmatprep.subr.mxu0 0.0
        %5498 = vmatpush2.msra.mxu0 0.0
        %5499 = vmatprep.subr.mxu0 0.0
        %5500 = vmatpush2.msra.mxu0 0.0
        %5501 = vmatprep.subr.mxu0 0.0
        %5502 = vmatpush2.msra.mxu0 0.0
        %5503 = vmatprep.subr.mxu0 0.0
        %5504 = vmatpush2.msra.mxu0 0.0
        %5505 = vmatprep.mubr.f32.mxu0 0.0
        %5506 = vmatmul.mubr.f32.gmra.mxu0 %v5436
        %v5507 = vpop.f32.mrf.mxu0
        %v5508 = vadd.f32 0.0, %v5507
        %v5509 = vpop.f32.mrf.mxu0
        %5510 = vmatprep.mubr.f32.mxu0 0.0
        %5511 = vmatmul.mubr.f32.gmra.mxu0 %v5439
        %v5512 = vpop.f32.mrf.mxu0
        %v5513 = vadd.f32 0.0, %v5512
        %v5514 = vpop.f32.mrf.mxu0
        %5515 = vdwg.mxu0
        %s5516 = scalar_lea.vmem %s5, 32
        %v5517 = vld [vmem:[%s5516] sm:$0xff]
        %v5519 = vsel %vm4931, %v5508, 0
        %v5522 = vsel %vm4931, %v5513, 0
        %5524 = vmatprep.subr.mxu0 0.0
        %5525 = vmatpush1.msra.mxu0 0.0
        %5526 = vmatprep.subr.mxu0 0.0
        %5527 = vmatpush1.msra.mxu0 0.0
        %5528 = vmatprep.subr.mxu0 0.0
        %5529 = vmatpush1.msra.mxu0 0.0
        %5530 = vmatprep.subr.mxu0 0.0
        %5531 = vmatpush1.msra.mxu0 0.0
        %5532 = vmatprep.subr.mxu0 0.0
        %5533 = vmatpush1.msra.mxu0 0.0
        %5534 = vmatprep.subr.mxu0 0.0
        %5535 = vmatpush1.msra.mxu0 0.0
        %5536 = vmatprep.subr.mxu0 0.0
        %5537 = vmatpush1.msra.mxu0 0.0
        %5538 = vmatprep.subr.mxu0 0.0
        %5539 = vmatpush1.msra.mxu0 0.0
        %5540 = vmatprep.subr.mxu0 0.0
        %5541 = vmatpush1.msra.mxu0 0.0
        %5542 = vmatprep.subr.mxu0 0.0
        %5543 = vmatpush1.msra.mxu0 0.0
        %5544 = vmatprep.subr.mxu0 0.0
        %5545 = vmatpush1.msra.mxu0 0.0
        %5546 = vmatprep.subr.mxu0 0.0
        %5547 = vmatpush1.msra.mxu0 0.0
        %5548 = vmatprep.subr.mxu0 0.0
        %5549 = vmatpush1.msra.mxu0 0.0
        %5550 = vmatprep.subr.mxu0 0.0
        %5551 = vmatpush1.msra.mxu0 0.0
        %5552 = vmatprep.subr.mxu0 0.0
        %5553 = vmatpush1.msra.mxu0 0.0
        %5554 = vmatprep.subr.mxu0 0.0
        %5555 = vmatpush1.msra.mxu0 %v5517
        %5556 = vmatprep.subr.mxu0 0.0
        %5557 = vmatpush2.msra.mxu0 0.0
        %5558 = vmatprep.subr.mxu0 0.0
        %5559 = vmatpush2.msra.mxu0 0.0
        %5560 = vmatprep.subr.mxu0 0.0
        %5561 = vmatpush2.msra.mxu0 0.0
        %5562 = vmatprep.subr.mxu0 0.0
        %5563 = vmatpush2.msra.mxu0 0.0
        %5564 = vmatprep.subr.mxu0 0.0
        %5565 = vmatpush2.msra.mxu0 0.0
        %5566 = vmatprep.subr.mxu0 0.0
        %5567 = vmatpush2.msra.mxu0 0.0
        %5568 = vmatprep.subr.mxu0 0.0
        %5569 = vmatpush2.msra.mxu0 0.0
        %5570 = vmatprep.subr.mxu0 0.0
        %5571 = vmatpush2.msra.mxu0 0.0
        %5572 = vmatprep.subr.mxu0 0.0
        %5573 = vmatpush2.msra.mxu0 0.0
        %5574 = vmatprep.subr.mxu0 0.0
        %5575 = vmatpush2.msra.mxu0 0.0
        %5576 = vmatprep.subr.mxu0 0.0
        %5577 = vmatpush2.msra.mxu0 0.0
        %5578 = vmatprep.subr.mxu0 0.0
        %5579 = vmatpush2.msra.mxu0 0.0
        %5580 = vmatprep.subr.mxu0 0.0
        %5581 = vmatpush2.msra.mxu0 0.0
        %5582 = vmatprep.subr.mxu0 0.0
        %5583 = vmatpush2.msra.mxu0 0.0
        %5584 = vmatprep.subr.mxu0 0.0
        %5585 = vmatpush2.msra.mxu0 0.0
        %5586 = vmatprep.subr.mxu0 0.0
        %5587 = vmatpush2.msra.mxu0 0.0
        %5588 = vmatprep.mubr.f32.mxu0 0.0
        %5589 = vmatmul.mubr.f32.gmra.mxu0 %v5519
        %v5590 = vpop.f32.mrf.mxu0
        %v5591 = vadd.f32 0.0, %v5590
        %v5592 = vpop.f32.mrf.mxu0
        %5593 = vmatprep.mubr.f32.mxu0 0.0
        %5594 = vmatmul.mubr.f32.gmra.mxu0 %v5522
        %v5595 = vpop.f32.mrf.mxu0
        %v5596 = vadd.f32 0.0, %v5595
        %v5597 = vpop.f32.mrf.mxu0
        %5598 = vdwg.mxu0
        %v5599 = vadd.f32 %v5430, %v5591
        %v5600 = vadd.f32 %v5431, %v5596
        %s5601 = scalar_lea.vmem %s4, 80
        %v5602 = vld [vmem:[%s5601] sm:$0xff]
        %v5603 = vld [vmem:[%s5601 + $0x8] sm:$0xff]
        %v5605 = vsel %vm4762, %v5602, 0
        %v5608 = vsel %vm4762, %v5603, 0
        %5610 = vmatprep.subr.mxu0 0.0
        %5611 = vmatpush1.msra.mxu0 0.0
        %5612 = vmatprep.subr.mxu0 0.0
        %5613 = vmatpush1.msra.mxu0 0.0
        %5614 = vmatprep.subr.mxu0 0.0
        %5615 = vmatpush1.msra.mxu0 0.0
        %5616 = vmatprep.subr.mxu0 0.0
        %5617 = vmatpush1.msra.mxu0 0.0
        %5618 = vmatprep.subr.mxu0 0.0
        %5619 = vmatpush1.msra.mxu0 0.0
        %5620 = vmatprep.subr.mxu0 0.0
        %5621 = vmatpush1.msra.mxu0 0.0
        %5622 = vmatprep.subr.mxu0 0.0
        %5623 = vmatpush1.msra.mxu0 0.0
        %5624 = vmatprep.subr.mxu0 0.0
        %5625 = vmatpush1.msra.mxu0 0.0
        %5626 = vmatprep.subr.mxu0 0.0
        %5627 = vmatpush1.msra.mxu0 %v4759
        %5628 = vmatprep.subr.mxu0 0.0
        %5629 = vmatpush1.msra.mxu0 %v4758
        %5630 = vmatprep.subr.mxu0 0.0
        %5631 = vmatpush1.msra.mxu0 %v4757
        %5632 = vmatprep.subr.mxu0 0.0
        %5633 = vmatpush1.msra.mxu0 %v4756
        %5634 = vmatprep.subr.mxu0 0.0
        %5635 = vmatpush1.msra.mxu0 %v4755
        %5636 = vmatprep.subr.mxu0 0.0
        %5637 = vmatpush1.msra.mxu0 %v4754
        %5638 = vmatprep.subr.mxu0 0.0
        %5639 = vmatpush1.msra.mxu0 %v4753
        %5640 = vmatprep.subr.mxu0 0.0
        %5641 = vmatpush1.msra.mxu0 %v4752
        %5642 = vmatprep.subr.mxu0 0.0
        %5643 = vmatpush2.msra.mxu0 0.0
        %5644 = vmatprep.subr.mxu0 0.0
        %5645 = vmatpush2.msra.mxu0 0.0
        %5646 = vmatprep.subr.mxu0 0.0
        %5647 = vmatpush2.msra.mxu0 0.0
        %5648 = vmatprep.subr.mxu0 0.0
        %5649 = vmatpush2.msra.mxu0 0.0
        %5650 = vmatprep.subr.mxu0 0.0
        %5651 = vmatpush2.msra.mxu0 0.0
        %5652 = vmatprep.subr.mxu0 0.0
        %5653 = vmatpush2.msra.mxu0 0.0
        %5654 = vmatprep.subr.mxu0 0.0
        %5655 = vmatpush2.msra.mxu0 0.0
        %5656 = vmatprep.subr.mxu0 0.0
        %5657 = vmatpush2.msra.mxu0 0.0
        %5658 = vmatprep.subr.mxu0 0.0
        %5659 = vmatpush2.msra.mxu0 0.0
        %5660 = vmatprep.subr.mxu0 0.0
        %5661 = vmatpush2.msra.mxu0 0.0
        %5662 = vmatprep.subr.mxu0 0.0
        %5663 = vmatpush2.msra.mxu0 0.0
        %5664 = vmatprep.subr.mxu0 0.0
        %5665 = vmatpush2.msra.mxu0 0.0
        %5666 = vmatprep.subr.mxu0 0.0
        %5667 = vmatpush2.msra.mxu0 0.0
        %5668 = vmatprep.subr.mxu0 0.0
        %5669 = vmatpush2.msra.mxu0 0.0
        %5670 = vmatprep.subr.mxu0 0.0
        %5671 = vmatpush2.msra.mxu0 0.0
        %5672 = vmatprep.subr.mxu0 0.0
        %5673 = vmatpush2.msra.mxu0 0.0
        %5674 = vmatprep.mubr.f32.mxu0 0.0
        %5675 = vmatmul.mubr.f32.gmra.mxu0 %v5605
        %v5676 = vpop.f32.mrf.mxu0
        %v5677 = vadd.f32 0.0, %v5676
        %v5678 = vpop.f32.mrf.mxu0
        %5679 = vmatprep.mubr.f32.mxu0 0.0
        %5680 = vmatmul.mubr.f32.gmra.mxu0 %v5608
        %v5681 = vpop.f32.mrf.mxu0
        %v5682 = vadd.f32 0.0, %v5681
        %v5683 = vpop.f32.mrf.mxu0
        %5684 = vdwg.mxu0
        %s5685 = scalar_lea.vmem %s5, 40
        %v5686 = vld [vmem:[%s5685] sm:$0xff]
        %v5688 = vsel %vm4931, %v5677, 0
        %v5691 = vsel %vm4931, %v5682, 0
        %5693 = vmatprep.subr.mxu0 0.0
        %5694 = vmatpush1.msra.mxu0 0.0
        %5695 = vmatprep.subr.mxu0 0.0
        %5696 = vmatpush1.msra.mxu0 0.0
        %5697 = vmatprep.subr.mxu0 0.0
        %5698 = vmatpush1.msra.mxu0 0.0
        %5699 = vmatprep.subr.mxu0 0.0
        %5700 = vmatpush1.msra.mxu0 0.0
        %5701 = vmatprep.subr.mxu0 0.0
        %5702 = vmatpush1.msra.mxu0 0.0
        %5703 = vmatprep.subr.mxu0 0.0
        %5704 = vmatpush1.msra.mxu0 0.0
        %5705 = vmatprep.subr.mxu0 0.0
        %5706 = vmatpush1.msra.mxu0 0.0
        %5707 = vmatprep.subr.mxu0 0.0
        %5708 = vmatpush1.msra.mxu0 0.0
        %5709 = vmatprep.subr.mxu0 0.0
        %5710 = vmatpush1.msra.mxu0 0.0
        %5711 = vmatprep.subr.mxu0 0.0
        %5712 = vmatpush1.msra.mxu0 0.0
        %5713 = vmatprep.subr.mxu0 0.0
        %5714 = vmatpush1.msra.mxu0 0.0
        %5715 = vmatprep.subr.mxu0 0.0
        %5716 = vmatpush1.msra.mxu0 0.0
        %5717 = vmatprep.subr.mxu0 0.0
        %5718 = vmatpush1.msra.mxu0 0.0
        %5719 = vmatprep.subr.mxu0 0.0
        %5720 = vmatpush1.msra.mxu0 0.0
        %5721 = vmatprep.subr.mxu0 0.0
        %5722 = vmatpush1.msra.mxu0 0.0
        %5723 = vmatprep.subr.mxu0 0.0
        %5724 = vmatpush1.msra.mxu0 %v5686
        %5725 = vmatprep.subr.mxu0 0.0
        %5726 = vmatpush2.msra.mxu0 0.0
        %5727 = vmatprep.subr.mxu0 0.0
        %5728 = vmatpush2.msra.mxu0 0.0
        %5729 = vmatprep.subr.mxu0 0.0
        %5730 = vmatpush2.msra.mxu0 0.0
        %5731 = vmatprep.subr.mxu0 0.0
        %5732 = vmatpush2.msra.mxu0 0.0
        %5733 = vmatprep.subr.mxu0 0.0
        %5734 = vmatpush2.msra.mxu0 0.0
        %5735 = vmatprep.subr.mxu0 0.0
        %5736 = vmatpush2.msra.mxu0 0.0
        %5737 = vmatprep.subr.mxu0 0.0
        %5738 = vmatpush2.msra.mxu0 0.0
        %5739 = vmatprep.subr.mxu0 0.0
        %5740 = vmatpush2.msra.mxu0 0.0
        %5741 = vmatprep.subr.mxu0 0.0
        %5742 = vmatpush2.msra.mxu0 0.0
        %5743 = vmatprep.subr.mxu0 0.0
        %5744 = vmatpush2.msra.mxu0 0.0
        %5745 = vmatprep.subr.mxu0 0.0
        %5746 = vmatpush2.msra.mxu0 0.0
        %5747 = vmatprep.subr.mxu0 0.0
        %5748 = vmatpush2.msra.mxu0 0.0
        %5749 = vmatprep.subr.mxu0 0.0
        %5750 = vmatpush2.msra.mxu0 0.0
        %5751 = vmatprep.subr.mxu0 0.0
        %5752 = vmatpush2.msra.mxu0 0.0
        %5753 = vmatprep.subr.mxu0 0.0
        %5754 = vmatpush2.msra.mxu0 0.0
        %5755 = vmatprep.subr.mxu0 0.0
        %5756 = vmatpush2.msra.mxu0 0.0
        %5757 = vmatprep.mubr.f32.mxu0 0.0
        %5758 = vmatmul.mubr.f32.gmra.mxu0 %v5688
        %v5759 = vpop.f32.mrf.mxu0
        %v5760 = vadd.f32 0.0, %v5759
        %v5761 = vpop.f32.mrf.mxu0
        %5762 = vmatprep.mubr.f32.mxu0 0.0
        %5763 = vmatmul.mubr.f32.gmra.mxu0 %v5691
        %v5764 = vpop.f32.mrf.mxu0
        %v5765 = vadd.f32 0.0, %v5764
        %v5766 = vpop.f32.mrf.mxu0
        %5767 = vdwg.mxu0
        %v5768 = vadd.f32 %v5599, %v5760
        %v5769 = vadd.f32 %v5600, %v5765
        %s5770 = scalar_lea.vmem %s4, 96
        %v5771 = vld [vmem:[%s5770] sm:$0xff]
        %v5772 = vld [vmem:[%s5770 + $0x8] sm:$0xff]
        %v5774 = vsel %vm4762, %v5771, 0
        %v5777 = vsel %vm4762, %v5772, 0
        %5779 = vmatprep.subr.mxu0 0.0
        %5780 = vmatpush1.msra.mxu0 0.0
        %5781 = vmatprep.subr.mxu0 0.0
        %5782 = vmatpush1.msra.mxu0 0.0
        %5783 = vmatprep.subr.mxu0 0.0
        %5784 = vmatpush1.msra.mxu0 0.0
        %5785 = vmatprep.subr.mxu0 0.0
        %5786 = vmatpush1.msra.mxu0 0.0
        %5787 = vmatprep.subr.mxu0 0.0
        %5788 = vmatpush1.msra.mxu0 0.0
        %5789 = vmatprep.subr.mxu0 0.0
        %5790 = vmatpush1.msra.mxu0 0.0
        %5791 = vmatprep.subr.mxu0 0.0
        %5792 = vmatpush1.msra.mxu0 0.0
        %5793 = vmatprep.subr.mxu0 0.0
        %5794 = vmatpush1.msra.mxu0 0.0
        %5795 = vmatprep.subr.mxu0 0.0
        %5796 = vmatpush1.msra.mxu0 %v4759
        %5797 = vmatprep.subr.mxu0 0.0
        %5798 = vmatpush1.msra.mxu0 %v4758
        %5799 = vmatprep.subr.mxu0 0.0
        %5800 = vmatpush1.msra.mxu0 %v4757
        %5801 = vmatprep.subr.mxu0 0.0
        %5802 = vmatpush1.msra.mxu0 %v4756
        %5803 = vmatprep.subr.mxu0 0.0
        %5804 = vmatpush1.msra.mxu0 %v4755
        %5805 = vmatprep.subr.mxu0 0.0
        %5806 = vmatpush1.msra.mxu0 %v4754
        %5807 = vmatprep.subr.mxu0 0.0
        %5808 = vmatpush1.msra.mxu0 %v4753
        %5809 = vmatprep.subr.mxu0 0.0
        %5810 = vmatpush1.msra.mxu0 %v4752
        %5811 = vmatprep.subr.mxu0 0.0
        %5812 = vmatpush2.msra.mxu0 0.0
        %5813 = vmatprep.subr.mxu0 0.0
        %5814 = vmatpush2.msra.mxu0 0.0
        %5815 = vmatprep.subr.mxu0 0.0
        %5816 = vmatpush2.msra.mxu0 0.0
        %5817 = vmatprep.subr.mxu0 0.0
        %5818 = vmatpush2.msra.mxu0 0.0
        %5819 = vmatprep.subr.mxu0 0.0
        %5820 = vmatpush2.msra.mxu0 0.0
        %5821 = vmatprep.subr.mxu0 0.0
        %5822 = vmatpush2.msra.mxu0 0.0
        %5823 = vmatprep.subr.mxu0 0.0
        %5824 = vmatpush2.msra.mxu0 0.0
        %5825 = vmatprep.subr.mxu0 0.0
        %5826 = vmatpush2.msra.mxu0 0.0
        %5827 = vmatprep.subr.mxu0 0.0
        %5828 = vmatpush2.msra.mxu0 0.0
        %5829 = vmatprep.subr.mxu0 0.0
        %5830 = vmatpush2.msra.mxu0 0.0
        %5831 = vmatprep.subr.mxu0 0.0
        %5832 = vmatpush2.msra.mxu0 0.0
        %5833 = vmatprep.subr.mxu0 0.0
        %5834 = vmatpush2.msra.mxu0 0.0
        %5835 = vmatprep.subr.mxu0 0.0
        %5836 = vmatpush2.msra.mxu0 0.0
        %5837 = vmatprep.subr.mxu0 0.0
        %5838 = vmatpush2.msra.mxu0 0.0
        %5839 = vmatprep.subr.mxu0 0.0
        %5840 = vmatpush2.msra.mxu0 0.0
        %5841 = vmatprep.subr.mxu0 0.0
        %5842 = vmatpush2.msra.mxu0 0.0
        %5843 = vmatprep.mubr.f32.mxu0 0.0
        %5844 = vmatmul.mubr.f32.gmra.mxu0 %v5774
        %v5845 = vpop.f32.mrf.mxu0
        %v5846 = vadd.f32 0.0, %v5845
        %v5847 = vpop.f32.mrf.mxu0
        %5848 = vmatprep.mubr.f32.mxu0 0.0
        %5849 = vmatmul.mubr.f32.gmra.mxu0 %v5777
        %v5850 = vpop.f32.mrf.mxu0
        %v5851 = vadd.f32 0.0, %v5850
        %v5852 = vpop.f32.mrf.mxu0
        %5853 = vdwg.mxu0
        %s5854 = scalar_lea.vmem %s5, 48
        %v5855 = vld [vmem:[%s5854] sm:$0xff]
        %v5857 = vsel %vm4931, %v5846, 0
        %v5860 = vsel %vm4931, %v5851, 0
        %5862 = vmatprep.subr.mxu0 0.0
        %5863 = vmatpush1.msra.mxu0 0.0
        %5864 = vmatprep.subr.mxu0 0.0
        %5865 = vmatpush1.msra.mxu0 0.0
        %5866 = vmatprep.subr.mxu0 0.0
        %5867 = vmatpush1.msra.mxu0 0.0
        %5868 = vmatprep.subr.mxu0 0.0
        %5869 = vmatpush1.msra.mxu0 0.0
        %5870 = vmatprep.subr.mxu0 0.0
        %5871 = vmatpush1.msra.mxu0 0.0
        %5872 = vmatprep.subr.mxu0 0.0
        %5873 = vmatpush1.msra.mxu0 0.0
        %5874 = vmatprep.subr.mxu0 0.0
        %5875 = vmatpush1.msra.mxu0 0.0
        %5876 = vmatprep.subr.mxu0 0.0
        %5877 = vmatpush1.msra.mxu0 0.0
        %5878 = vmatprep.subr.mxu0 0.0
        %5879 = vmatpush1.msra.mxu0 0.0
        %5880 = vmatprep.subr.mxu0 0.0
        %5881 = vmatpush1.msra.mxu0 0.0
        %5882 = vmatprep.subr.mxu0 0.0
        %5883 = vmatpush1.msra.mxu0 0.0
        %5884 = vmatprep.subr.mxu0 0.0
        %5885 = vmatpush1.msra.mxu0 0.0
        %5886 = vmatprep.subr.mxu0 0.0
        %5887 = vmatpush1.msra.mxu0 0.0
        %5888 = vmatprep.subr.mxu0 0.0
        %5889 = vmatpush1.msra.mxu0 0.0
        %5890 = vmatprep.subr.mxu0 0.0
        %5891 = vmatpush1.msra.mxu0 0.0
        %5892 = vmatprep.subr.mxu0 0.0
        %5893 = vmatpush1.msra.mxu0 %v5855
        %5894 = vmatprep.subr.mxu0 0.0
        %5895 = vmatpush2.msra.mxu0 0.0
        %5896 = vmatprep.subr.mxu0 0.0
        %5897 = vmatpush2.msra.mxu0 0.0
        %5898 = vmatprep.subr.mxu0 0.0
        %5899 = vmatpush2.msra.mxu0 0.0
        %5900 = vmatprep.subr.mxu0 0.0
        %5901 = vmatpush2.msra.mxu0 0.0
        %5902 = vmatprep.subr.mxu0 0.0
        %5903 = vmatpush2.msra.mxu0 0.0
        %5904 = vmatprep.subr.mxu0 0.0
        %5905 = vmatpush2.msra.mxu0 0.0
        %5906 = vmatprep.subr.mxu0 0.0
        %5907 = vmatpush2.msra.mxu0 0.0
        %5908 = vmatprep.subr.mxu0 0.0
        %5909 = vmatpush2.msra.mxu0 0.0
        %5910 = vmatprep.subr.mxu0 0.0
        %5911 = vmatpush2.msra.mxu0 0.0
        %5912 = vmatprep.subr.mxu0 0.0
        %5913 = vmatpush2.msra.mxu0 0.0
        %5914 = vmatprep.subr.mxu0 0.0
        %5915 = vmatpush2.msra.mxu0 0.0
        %5916 = vmatprep.subr.mxu0 0.0
        %5917 = vmatpush2.msra.mxu0 0.0
        %5918 = vmatprep.subr.mxu0 0.0
        %5919 = vmatpush2.msra.mxu0 0.0
        %5920 = vmatprep.subr.mxu0 0.0
        %5921 = vmatpush2.msra.mxu0 0.0
        %5922 = vmatprep.subr.mxu0 0.0
        %5923 = vmatpush2.msra.mxu0 0.0
        %5924 = vmatprep.subr.mxu0 0.0
        %5925 = vmatpush2.msra.mxu0 0.0
        %5926 = vmatprep.mubr.f32.mxu0 0.0
        %5927 = vmatmul.mubr.f32.gmra.mxu0 %v5857
        %v5928 = vpop.f32.mrf.mxu0
        %v5929 = vadd.f32 0.0, %v5928
        %v5930 = vpop.f32.mrf.mxu0
        %5931 = vmatprep.mubr.f32.mxu0 0.0
        %5932 = vmatmul.mubr.f32.gmra.mxu0 %v5860
        %v5933 = vpop.f32.mrf.mxu0
        %v5934 = vadd.f32 0.0, %v5933
        %v5935 = vpop.f32.mrf.mxu0
        %5936 = vdwg.mxu0
        %v5937 = vadd.f32 %v5768, %v5929
        %v5938 = vadd.f32 %v5769, %v5934
        %s5939 = scalar_lea.vmem %s4, 112
        %v5940 = vld [vmem:[%s5939] sm:$0xff]
        %v5941 = vld [vmem:[%s5939 + $0x8] sm:$0xff]
        %v5943 = vsel %vm4762, %v5940, 0
        %v5946 = vsel %vm4762, %v5941, 0
        %5948 = vmatprep.subr.mxu0 0.0
        %5949 = vmatpush1.msra.mxu0 0.0
        %5950 = vmatprep.subr.mxu0 0.0
        %5951 = vmatpush1.msra.mxu0 0.0
        %5952 = vmatprep.subr.mxu0 0.0
        %5953 = vmatpush1.msra.mxu0 0.0
        %5954 = vmatprep.subr.mxu0 0.0
        %5955 = vmatpush1.msra.mxu0 0.0
        %5956 = vmatprep.subr.mxu0 0.0
        %5957 = vmatpush1.msra.mxu0 0.0
        %5958 = vmatprep.subr.mxu0 0.0
        %5959 = vmatpush1.msra.mxu0 0.0
        %5960 = vmatprep.subr.mxu0 0.0
        %5961 = vmatpush1.msra.mxu0 0.0
        %5962 = vmatprep.subr.mxu0 0.0
        %5963 = vmatpush1.msra.mxu0 0.0
        %5964 = vmatprep.subr.mxu0 0.0
        %5965 = vmatpush1.msra.mxu0 %v4759
        %5966 = vmatprep.subr.mxu0 0.0
        %5967 = vmatpush1.msra.mxu0 %v4758
        %5968 = vmatprep.subr.mxu0 0.0
        %5969 = vmatpush1.msra.mxu0 %v4757
        %5970 = vmatprep.subr.mxu0 0.0
        %5971 = vmatpush1.msra.mxu0 %v4756
        %5972 = vmatprep.subr.mxu0 0.0
        %5973 = vmatpush1.msra.mxu0 %v4755
        %5974 = vmatprep.subr.mxu0 0.0
        %5975 = vmatpush1.msra.mxu0 %v4754
        %5976 = vmatprep.subr.mxu0 0.0
        %5977 = vmatpush1.msra.mxu0 %v4753
        %5978 = vmatprep.subr.mxu0 0.0
        %5979 = vmatpush1.msra.mxu0 %v4752
        %5980 = vmatprep.subr.mxu0 0.0
        %5981 = vmatpush2.msra.mxu0 0.0
        %5982 = vmatprep.subr.mxu0 0.0
        %5983 = vmatpush2.msra.mxu0 0.0
        %5984 = vmatprep.subr.mxu0 0.0
        %5985 = vmatpush2.msra.mxu0 0.0
        %5986 = vmatprep.subr.mxu0 0.0
        %5987 = vmatpush2.msra.mxu0 0.0
        %5988 = vmatprep.subr.mxu0 0.0
        %5989 = vmatpush2.msra.mxu0 0.0
        %5990 = vmatprep.subr.mxu0 0.0
        %5991 = vmatpush2.msra.mxu0 0.0
        %5992 = vmatprep.subr.mxu0 0.0
        %5993 = vmatpush2.msra.mxu0 0.0
        %5994 = vmatprep.subr.mxu0 0.0
        %5995 = vmatpush2.msra.mxu0 0.0
        %5996 = vmatprep.subr.mxu0 0.0
        %5997 = vmatpush2.msra.mxu0 0.0
        %5998 = vmatprep.subr.mxu0 0.0
        %5999 = vmatpush2.msra.mxu0 0.0
        %6000 = vmatprep.subr.mxu0 0.0
        %6001 = vmatpush2.msra.mxu0 0.0
        %6002 = vmatprep.subr.mxu0 0.0
        %6003 = vmatpush2.msra.mxu0 0.0
        %6004 = vmatprep.subr.mxu0 0.0
        %6005 = vmatpush2.msra.mxu0 0.0
        %6006 = vmatprep.subr.mxu0 0.0
        %6007 = vmatpush2.msra.mxu0 0.0
        %6008 = vmatprep.subr.mxu0 0.0
        %6009 = vmatpush2.msra.mxu0 0.0
        %6010 = vmatprep.subr.mxu0 0.0
        %6011 = vmatpush2.msra.mxu0 0.0
        %6012 = vmatprep.mubr.f32.mxu0 0.0
        %6013 = vmatmul.mubr.f32.gmra.mxu0 %v5943
        %v6014 = vpop.f32.mrf.mxu0
        %v6015 = vadd.f32 0.0, %v6014
        %v6016 = vpop.f32.mrf.mxu0
        %6017 = vmatprep.mubr.f32.mxu0 0.0
        %6018 = vmatmul.mubr.f32.gmra.mxu0 %v5946
        %v6019 = vpop.f32.mrf.mxu0
        %v6020 = vadd.f32 0.0, %v6019
        %v6021 = vpop.f32.mrf.mxu0
        %6022 = vdwg.mxu0
        %s6023 = scalar_lea.vmem %s5, 56
        %v6024 = vld [vmem:[%s6023] sm:$0xff]
        %v6026 = vsel %vm4931, %v6015, 0
        %v6029 = vsel %vm4931, %v6020, 0
        %6031 = vmatprep.subr.mxu0 0.0
        %6032 = vmatpush1.msra.mxu0 0.0
        %6033 = vmatprep.subr.mxu0 0.0
        %6034 = vmatpush1.msra.mxu0 0.0
        %6035 = vmatprep.subr.mxu0 0.0
        %6036 = vmatpush1.msra.mxu0 0.0
        %6037 = vmatprep.subr.mxu0 0.0
        %6038 = vmatpush1.msra.mxu0 0.0
        %6039 = vmatprep.subr.mxu0 0.0
        %6040 = vmatpush1.msra.mxu0 0.0
        %6041 = vmatprep.subr.mxu0 0.0
        %6042 = vmatpush1.msra.mxu0 0.0
        %6043 = vmatprep.subr.mxu0 0.0
        %6044 = vmatpush1.msra.mxu0 0.0
        %6045 = vmatprep.subr.mxu0 0.0
        %6046 = vmatpush1.msra.mxu0 0.0
        %6047 = vmatprep.subr.mxu0 0.0
        %6048 = vmatpush1.msra.mxu0 0.0
        %6049 = vmatprep.subr.mxu0 0.0
        %6050 = vmatpush1.msra.mxu0 0.0
        %6051 = vmatprep.subr.mxu0 0.0
        %6052 = vmatpush1.msra.mxu0 0.0
        %6053 = vmatprep.subr.mxu0 0.0
        %6054 = vmatpush1.msra.mxu0 0.0
        %6055 = vmatprep.subr.mxu0 0.0
        %6056 = vmatpush1.msra.mxu0 0.0
        %6057 = vmatprep.subr.mxu0 0.0
        %6058 = vmatpush1.msra.mxu0 0.0
        %6059 = vmatprep.subr.mxu0 0.0
        %6060 = vmatpush1.msra.mxu0 0.0
        %6061 = vmatprep.subr.mxu0 0.0
        %6062 = vmatpush1.msra.mxu0 %v6024
        %6063 = vmatprep.subr.mxu0 0.0
        %6064 = vmatpush2.msra.mxu0 0.0
        %6065 = vmatprep.subr.mxu0 0.0
        %6066 = vmatpush2.msra.mxu0 0.0
        %6067 = vmatprep.subr.mxu0 0.0
        %6068 = vmatpush2.msra.mxu0 0.0
        %6069 = vmatprep.subr.mxu0 0.0
        %6070 = vmatpush2.msra.mxu0 0.0
        %6071 = vmatprep.subr.mxu0 0.0
        %6072 = vmatpush2.msra.mxu0 0.0
        %6073 = vmatprep.subr.mxu0 0.0
        %6074 = vmatpush2.msra.mxu0 0.0
        %6075 = vmatprep.subr.mxu0 0.0
        %6076 = vmatpush2.msra.mxu0 0.0
        %6077 = vmatprep.subr.mxu0 0.0
        %6078 = vmatpush2.msra.mxu0 0.0
        %6079 = vmatprep.subr.mxu0 0.0
        %6080 = vmatpush2.msra.mxu0 0.0
        %6081 = vmatprep.subr.mxu0 0.0
        %6082 = vmatpush2.msra.mxu0 0.0
        %6083 = vmatprep.subr.mxu0 0.0
        %6084 = vmatpush2.msra.mxu0 0.0
        %6085 = vmatprep.subr.mxu0 0.0
        %6086 = vmatpush2.msra.mxu0 0.0
        %6087 = vmatprep.subr.mxu0 0.0
        %6088 = vmatpush2.msra.mxu0 0.0
        %6089 = vmatprep.subr.mxu0 0.0
        %6090 = vmatpush2.msra.mxu0 0.0
        %6091 = vmatprep.subr.mxu0 0.0
        %6092 = vmatpush2.msra.mxu0 0.0
        %6093 = vmatprep.subr.mxu0 0.0
        %6094 = vmatpush2.msra.mxu0 0.0
        %6095 = vmatprep.mubr.f32.mxu0 0.0
        %6096 = vmatmul.mubr.f32.gmra.mxu0 %v6026
        %v6097 = vpop.f32.mrf.mxu0
        %v6098 = vadd.f32 0.0, %v6097
        %v6099 = vpop.f32.mrf.mxu0
        %6100 = vmatprep.mubr.f32.mxu0 0.0
        %6101 = vmatmul.mubr.f32.gmra.mxu0 %v6029
        %v6102 = vpop.f32.mrf.mxu0
        %v6103 = vadd.f32 0.0, %v6102
        %v6104 = vpop.f32.mrf.mxu0
        %6105 = vdwg.mxu0
        %v6106 = vadd.f32 %v5937, %v6098
        %v6107 = vadd.f32 %v5938, %v6103
        %s6108 = scalar_lea.vmem %s4, 128
        %v6109 = vld [vmem:[%s6108] sm:$0xff]
        %v6110 = vld [vmem:[%s6108 + $0x8] sm:$0xff]
        %v6112 = vsel %vm4762, %v6109, 0
        %v6115 = vsel %vm4762, %v6110, 0
        %6117 = vmatprep.subr.mxu0 0.0
        %6118 = vmatpush1.msra.mxu0 0.0
        %6119 = vmatprep.subr.mxu0 0.0
        %6120 = vmatpush1.msra.mxu0 0.0
        %6121 = vmatprep.subr.mxu0 0.0
        %6122 = vmatpush1.msra.mxu0 0.0
        %6123 = vmatprep.subr.mxu0 0.0
        %6124 = vmatpush1.msra.mxu0 0.0
        %6125 = vmatprep.subr.mxu0 0.0
        %6126 = vmatpush1.msra.mxu0 0.0
        %6127 = vmatprep.subr.mxu0 0.0
        %6128 = vmatpush1.msra.mxu0 0.0
        %6129 = vmatprep.subr.mxu0 0.0
        %6130 = vmatpush1.msra.mxu0 0.0
        %6131 = vmatprep.subr.mxu0 0.0
        %6132 = vmatpush1.msra.mxu0 0.0
        %6133 = vmatprep.subr.mxu0 0.0
        %6134 = vmatpush1.msra.mxu0 %v4759
        %6135 = vmatprep.subr.mxu0 0.0
        %6136 = vmatpush1.msra.mxu0 %v4758
        %6137 = vmatprep.subr.mxu0 0.0
        %6138 = vmatpush1.msra.mxu0 %v4757
        %6139 = vmatprep.subr.mxu0 0.0
        %6140 = vmatpush1.msra.mxu0 %v4756
        %6141 = vmatprep.subr.mxu0 0.0
        %6142 = vmatpush1.msra.mxu0 %v4755
        %6143 = vmatprep.subr.mxu0 0.0
        %6144 = vmatpush1.msra.mxu0 %v4754
        %6145 = vmatprep.subr.mxu0 0.0
        %6146 = vmatpush1.msra.mxu0 %v4753
        %6147 = vmatprep.subr.mxu0 0.0
        %6148 = vmatpush1.msra.mxu0 %v4752
        %6149 = vmatprep.subr.mxu0 0.0
        %6150 = vmatpush2.msra.mxu0 0.0
        %6151 = vmatprep.subr.mxu0 0.0
        %6152 = vmatpush2.msra.mxu0 0.0
        %6153 = vmatprep.subr.mxu0 0.0
        %6154 = vmatpush2.msra.mxu0 0.0
        %6155 = vmatprep.subr.mxu0 0.0
        %6156 = vmatpush2.msra.mxu0 0.0
        %6157 = vmatprep.subr.mxu0 0.0
        %6158 = vmatpush2.msra.mxu0 0.0
        %6159 = vmatprep.subr.mxu0 0.0
        %6160 = vmatpush2.msra.mxu0 0.0
        %6161 = vmatprep.subr.mxu0 0.0
        %6162 = vmatpush2.msra.mxu0 0.0
        %6163 = vmatprep.subr.mxu0 0.0
        %6164 = vmatpush2.msra.mxu0 0.0
        %6165 = vmatprep.subr.mxu0 0.0
        %6166 = vmatpush2.msra.mxu0 0.0
        %6167 = vmatprep.subr.mxu0 0.0
        %6168 = vmatpush2.msra.mxu0 0.0
        %6169 = vmatprep.subr.mxu0 0.0
        %6170 = vmatpush2.msra.mxu0 0.0
        %6171 = vmatprep.subr.mxu0 0.0
        %6172 = vmatpush2.msra.mxu0 0.0
        %6173 = vmatprep.subr.mxu0 0.0
        %6174 = vmatpush2.msra.mxu0 0.0
        %6175 = vmatprep.subr.mxu0 0.0
        %6176 = vmatpush2.msra.mxu0 0.0
        %6177 = vmatprep.subr.mxu0 0.0
        %6178 = vmatpush2.msra.mxu0 0.0
        %6179 = vmatprep.subr.mxu0 0.0
        %6180 = vmatpush2.msra.mxu0 0.0
        %6181 = vmatprep.mubr.f32.mxu0 0.0
        %6182 = vmatmul.mubr.f32.gmra.mxu0 %v6112
        %v6183 = vpop.f32.mrf.mxu0
        %v6184 = vadd.f32 0.0, %v6183
        %v6185 = vpop.f32.mrf.mxu0
        %6186 = vmatprep.mubr.f32.mxu0 0.0
        %6187 = vmatmul.mubr.f32.gmra.mxu0 %v6115
        %v6188 = vpop.f32.mrf.mxu0
        %v6189 = vadd.f32 0.0, %v6188
        %v6190 = vpop.f32.mrf.mxu0
        %6191 = vdwg.mxu0
        %s6192 = scalar_lea.vmem %s5, 64
        %v6193 = vld [vmem:[%s6192] sm:$0xff]
        %v6195 = vsel %vm4931, %v6184, 0
        %v6198 = vsel %vm4931, %v6189, 0
        %6200 = vmatprep.subr.mxu0 0.0
        %6201 = vmatpush1.msra.mxu0 0.0
        %6202 = vmatprep.subr.mxu0 0.0
        %6203 = vmatpush1.msra.mxu0 0.0
        %6204 = vmatprep.subr.mxu0 0.0
        %6205 = vmatpush1.msra.mxu0 0.0
        %6206 = vmatprep.subr.mxu0 0.0
        %6207 = vmatpush1.msra.mxu0 0.0
        %6208 = vmatprep.subr.mxu0 0.0
        %6209 = vmatpush1.msra.mxu0 0.0
        %6210 = vmatprep.subr.mxu0 0.0
        %6211 = vmatpush1.msra.mxu0 0.0
        %6212 = vmatprep.subr.mxu0 0.0
        %6213 = vmatpush1.msra.mxu0 0.0
        %6214 = vmatprep.subr.mxu0 0.0
        %6215 = vmatpush1.msra.mxu0 0.0
        %6216 = vmatprep.subr.mxu0 0.0
        %6217 = vmatpush1.msra.mxu0 0.0
        %6218 = vmatprep.subr.mxu0 0.0
        %6219 = vmatpush1.msra.mxu0 0.0
        %6220 = vmatprep.subr.mxu0 0.0
        %6221 = vmatpush1.msra.mxu0 0.0
        %6222 = vmatprep.subr.mxu0 0.0
        %6223 = vmatpush1.msra.mxu0 0.0
        %6224 = vmatprep.subr.mxu0 0.0
        %6225 = vmatpush1.msra.mxu0 0.0
        %6226 = vmatprep.subr.mxu0 0.0
        %6227 = vmatpush1.msra.mxu0 0.0
        %6228 = vmatprep.subr.mxu0 0.0
        %6229 = vmatpush1.msra.mxu0 0.0
        %6230 = vmatprep.subr.mxu0 0.0
        %6231 = vmatpush1.msra.mxu0 %v6193
        %6232 = vmatprep.subr.mxu0 0.0
        %6233 = vmatpush2.msra.mxu0 0.0
        %6234 = vmatprep.subr.mxu0 0.0
        %6235 = vmatpush2.msra.mxu0 0.0
        %6236 = vmatprep.subr.mxu0 0.0
        %6237 = vmatpush2.msra.mxu0 0.0
        %6238 = vmatprep.subr.mxu0 0.0
        %6239 = vmatpush2.msra.mxu0 0.0
        %6240 = vmatprep.subr.mxu0 0.0
        %6241 = vmatpush2.msra.mxu0 0.0
        %6242 = vmatprep.subr.mxu0 0.0
        %6243 = vmatpush2.msra.mxu0 0.0
        %6244 = vmatprep.subr.mxu0 0.0
        %6245 = vmatpush2.msra.mxu0 0.0
        %6246 = vmatprep.subr.mxu0 0.0
        %6247 = vmatpush2.msra.mxu0 0.0
        %6248 = vmatprep.subr.mxu0 0.0
        %6249 = vmatpush2.msra.mxu0 0.0
        %6250 = vmatprep.subr.mxu0 0.0
        %6251 = vmatpush2.msra.mxu0 0.0
        %6252 = vmatprep.subr.mxu0 0.0
        %6253 = vmatpush2.msra.mxu0 0.0
        %6254 = vmatprep.subr.mxu0 0.0
        %6255 = vmatpush2.msra.mxu0 0.0
        %6256 = vmatprep.subr.mxu0 0.0
        %6257 = vmatpush2.msra.mxu0 0.0
        %6258 = vmatprep.subr.mxu0 0.0
        %6259 = vmatpush2.msra.mxu0 0.0
        %6260 = vmatprep.subr.mxu0 0.0
        %6261 = vmatpush2.msra.mxu0 0.0
        %6262 = vmatprep.subr.mxu0 0.0
        %6263 = vmatpush2.msra.mxu0 0.0
        %6264 = vmatprep.mubr.f32.mxu0 0.0
        %6265 = vmatmul.mubr.f32.gmra.mxu0 %v6195
        %v6266 = vpop.f32.mrf.mxu0
        %v6267 = vadd.f32 0.0, %v6266
        %v6268 = vpop.f32.mrf.mxu0
        %6269 = vmatprep.mubr.f32.mxu0 0.0
        %6270 = vmatmul.mubr.f32.gmra.mxu0 %v6198
        %v6271 = vpop.f32.mrf.mxu0
        %v6272 = vadd.f32 0.0, %v6271
        %v6273 = vpop.f32.mrf.mxu0
        %6274 = vdwg.mxu0
        %v6275 = vadd.f32 %v6106, %v6267
        %v6276 = vadd.f32 %v6107, %v6272
        %s6277 = scalar_lea.vmem %s4, 144
        %v6278 = vld [vmem:[%s6277] sm:$0xff]
        %v6279 = vld [vmem:[%s6277 + $0x8] sm:$0xff]
        %v6281 = vsel %vm4762, %v6278, 0
        %v6284 = vsel %vm4762, %v6279, 0
        %6286 = vmatprep.subr.mxu0 0.0
        %6287 = vmatpush1.msra.mxu0 0.0
        %6288 = vmatprep.subr.mxu0 0.0
        %6289 = vmatpush1.msra.mxu0 0.0
        %6290 = vmatprep.subr.mxu0 0.0
        %6291 = vmatpush1.msra.mxu0 0.0
        %6292 = vmatprep.subr.mxu0 0.0
        %6293 = vmatpush1.msra.mxu0 0.0
        %6294 = vmatprep.subr.mxu0 0.0
        %6295 = vmatpush1.msra.mxu0 0.0
        %6296 = vmatprep.subr.mxu0 0.0
        %6297 = vmatpush1.msra.mxu0 0.0
        %6298 = vmatprep.subr.mxu0 0.0
        %6299 = vmatpush1.msra.mxu0 0.0
        %6300 = vmatprep.subr.mxu0 0.0
        %6301 = vmatpush1.msra.mxu0 0.0
        %6302 = vmatprep.subr.mxu0 0.0
        %6303 = vmatpush1.msra.mxu0 %v4759
        %6304 = vmatprep.subr.mxu0 0.0
        %6305 = vmatpush1.msra.mxu0 %v4758
        %6306 = vmatprep.subr.mxu0 0.0
        %6307 = vmatpush1.msra.mxu0 %v4757
        %6308 = vmatprep.subr.mxu0 0.0
        %6309 = vmatpush1.msra.mxu0 %v4756
        %6310 = vmatprep.subr.mxu0 0.0
        %6311 = vmatpush1.msra.mxu0 %v4755
        %6312 = vmatprep.subr.mxu0 0.0
        %6313 = vmatpush1.msra.mxu0 %v4754
        %6314 = vmatprep.subr.mxu0 0.0
        %6315 = vmatpush1.msra.mxu0 %v4753
        %6316 = vmatprep.subr.mxu0 0.0
        %6317 = vmatpush1.msra.mxu0 %v4752
        %6318 = vmatprep.subr.mxu0 0.0
        %6319 = vmatpush2.msra.mxu0 0.0
        %6320 = vmatprep.subr.mxu0 0.0
        %6321 = vmatpush2.msra.mxu0 0.0
        %6322 = vmatprep.subr.mxu0 0.0
        %6323 = vmatpush2.msra.mxu0 0.0
        %6324 = vmatprep.subr.mxu0 0.0
        %6325 = vmatpush2.msra.mxu0 0.0
        %6326 = vmatprep.subr.mxu0 0.0
        %6327 = vmatpush2.msra.mxu0 0.0
        %6328 = vmatprep.subr.mxu0 0.0
        %6329 = vmatpush2.msra.mxu0 0.0
        %6330 = vmatprep.subr.mxu0 0.0
        %6331 = vmatpush2.msra.mxu0 0.0
        %6332 = vmatprep.subr.mxu0 0.0
        %6333 = vmatpush2.msra.mxu0 0.0
        %6334 = vmatprep.subr.mxu0 0.0
        %6335 = vmatpush2.msra.mxu0 0.0
        %6336 = vmatprep.subr.mxu0 0.0
        %6337 = vmatpush2.msra.mxu0 0.0
        %6338 = vmatprep.subr.mxu0 0.0
        %6339 = vmatpush2.msra.mxu0 0.0
        %6340 = vmatprep.subr.mxu0 0.0
        %6341 = vmatpush2.msra.mxu0 0.0
        %6342 = vmatprep.subr.mxu0 0.0
        %6343 = vmatpush2.msra.mxu0 0.0
        %6344 = vmatprep.subr.mxu0 0.0
        %6345 = vmatpush2.msra.mxu0 0.0
        %6346 = vmatprep.subr.mxu0 0.0
        %6347 = vmatpush2.msra.mxu0 0.0
        %6348 = vmatprep.subr.mxu0 0.0
        %6349 = vmatpush2.msra.mxu0 0.0
        %6350 = vmatprep.mubr.f32.mxu0 0.0
        %6351 = vmatmul.mubr.f32.gmra.mxu0 %v6281
        %v6352 = vpop.f32.mrf.mxu0
        %v6353 = vadd.f32 0.0, %v6352
        %v6354 = vpop.f32.mrf.mxu0
        %6355 = vmatprep.mubr.f32.mxu0 0.0
        %6356 = vmatmul.mubr.f32.gmra.mxu0 %v6284
        %v6357 = vpop.f32.mrf.mxu0
        %v6358 = vadd.f32 0.0, %v6357
        %v6359 = vpop.f32.mrf.mxu0
        %6360 = vdwg.mxu0
        %s6361 = scalar_lea.vmem %s5, 72
        %v6362 = vld [vmem:[%s6361] sm:$0xff]
        %v6364 = vsel %vm4931, %v6353, 0
        %v6367 = vsel %vm4931, %v6358, 0
        %6369 = vmatprep.subr.mxu0 0.0
        %6370 = vmatpush1.msra.mxu0 0.0
        %6371 = vmatprep.subr.mxu0 0.0
        %6372 = vmatpush1.msra.mxu0 0.0
        %6373 = vmatprep.subr.mxu0 0.0
        %6374 = vmatpush1.msra.mxu0 0.0
        %6375 = vmatprep.subr.mxu0 0.0
        %6376 = vmatpush1.msra.mxu0 0.0
        %6377 = vmatprep.subr.mxu0 0.0
        %6378 = vmatpush1.msra.mxu0 0.0
        %6379 = vmatprep.subr.mxu0 0.0
        %6380 = vmatpush1.msra.mxu0 0.0
        %6381 = vmatprep.subr.mxu0 0.0
        %6382 = vmatpush1.msra.mxu0 0.0
        %6383 = vmatprep.subr.mxu0 0.0
        %6384 = vmatpush1.msra.mxu0 0.0
        %6385 = vmatprep.subr.mxu0 0.0
        %6386 = vmatpush1.msra.mxu0 0.0
        %6387 = vmatprep.subr.mxu0 0.0
        %6388 = vmatpush1.msra.mxu0 0.0
        %6389 = vmatprep.subr.mxu0 0.0
        %6390 = vmatpush1.msra.mxu0 0.0
        %6391 = vmatprep.subr.mxu0 0.0
        %6392 = vmatpush1.msra.mxu0 0.0
        %6393 = vmatprep.subr.mxu0 0.0
        %6394 = vmatpush1.msra.mxu0 0.0
        %6395 = vmatprep.subr.mxu0 0.0
        %6396 = vmatpush1.msra.mxu0 0.0
        %6397 = vmatprep.subr.mxu0 0.0
        %6398 = vmatpush1.msra.mxu0 0.0
        %6399 = vmatprep.subr.mxu0 0.0
        %6400 = vmatpush1.msra.mxu0 %v6362
        %6401 = vmatprep.subr.mxu0 0.0
        %6402 = vmatpush2.msra.mxu0 0.0
        %6403 = vmatprep.subr.mxu0 0.0
        %6404 = vmatpush2.msra.mxu0 0.0
        %6405 = vmatprep.subr.mxu0 0.0
        %6406 = vmatpush2.msra.mxu0 0.0
        %6407 = vmatprep.subr.mxu0 0.0
        %6408 = vmatpush2.msra.mxu0 0.0
        %6409 = vmatprep.subr.mxu0 0.0
        %6410 = vmatpush2.msra.mxu0 0.0
        %6411 = vmatprep.subr.mxu0 0.0
        %6412 = vmatpush2.msra.mxu0 0.0
        %6413 = vmatprep.subr.mxu0 0.0
        %6414 = vmatpush2.msra.mxu0 0.0
        %6415 = vmatprep.subr.mxu0 0.0
        %6416 = vmatpush2.msra.mxu0 0.0
        %6417 = vmatprep.subr.mxu0 0.0
        %6418 = vmatpush2.msra.mxu0 0.0
        %6419 = vmatprep.subr.mxu0 0.0
        %6420 = vmatpush2.msra.mxu0 0.0
        %6421 = vmatprep.subr.mxu0 0.0
        %6422 = vmatpush2.msra.mxu0 0.0
        %6423 = vmatprep.subr.mxu0 0.0
        %6424 = vmatpush2.msra.mxu0 0.0
        %6425 = vmatprep.subr.mxu0 0.0
        %6426 = vmatpush2.msra.mxu0 0.0
        %6427 = vmatprep.subr.mxu0 0.0
        %6428 = vmatpush2.msra.mxu0 0.0
        %6429 = vmatprep.subr.mxu0 0.0
        %6430 = vmatpush2.msra.mxu0 0.0
        %6431 = vmatprep.subr.mxu0 0.0
        %6432 = vmatpush2.msra.mxu0 0.0
        %6433 = vmatprep.mubr.f32.mxu0 0.0
        %6434 = vmatmul.mubr.f32.gmra.mxu0 %v6364
        %v6435 = vpop.f32.mrf.mxu0
        %v6436 = vadd.f32 0.0, %v6435
        %v6437 = vpop.f32.mrf.mxu0
        %6438 = vmatprep.mubr.f32.mxu0 0.0
        %6439 = vmatmul.mubr.f32.gmra.mxu0 %v6367
        %v6440 = vpop.f32.mrf.mxu0
        %v6441 = vadd.f32 0.0, %v6440
        %v6442 = vpop.f32.mrf.mxu0
        %6443 = vdwg.mxu0
        %v6444 = vadd.f32 %v6275, %v6436
        %v6445 = vadd.f32 %v6276, %v6441
        %s6446 = scalar_lea.vmem %s4, 160
        %v6447 = vld [vmem:[%s6446] sm:$0xff]
        %v6448 = vld [vmem:[%s6446 + $0x8] sm:$0xff]
        %v6450 = vsel %vm4762, %v6447, 0
        %v6453 = vsel %vm4762, %v6448, 0
        %6455 = vmatprep.subr.mxu0 0.0
        %6456 = vmatpush1.msra.mxu0 0.0
        %6457 = vmatprep.subr.mxu0 0.0
        %6458 = vmatpush1.msra.mxu0 0.0
        %6459 = vmatprep.subr.mxu0 0.0
        %6460 = vmatpush1.msra.mxu0 0.0
        %6461 = vmatprep.subr.mxu0 0.0
        %6462 = vmatpush1.msra.mxu0 0.0
        %6463 = vmatprep.subr.mxu0 0.0
        %6464 = vmatpush1.msra.mxu0 0.0
        %6465 = vmatprep.subr.mxu0 0.0
        %6466 = vmatpush1.msra.mxu0 0.0
        %6467 = vmatprep.subr.mxu0 0.0
        %6468 = vmatpush1.msra.mxu0 0.0
        %6469 = vmatprep.subr.mxu0 0.0
        %6470 = vmatpush1.msra.mxu0 0.0
        %6471 = vmatprep.subr.mxu0 0.0
        %6472 = vmatpush1.msra.mxu0 %v4759
        %6473 = vmatprep.subr.mxu0 0.0
        %6474 = vmatpush1.msra.mxu0 %v4758
        %6475 = vmatprep.subr.mxu0 0.0
        %6476 = vmatpush1.msra.mxu0 %v4757
        %6477 = vmatprep.subr.mxu0 0.0
        %6478 = vmatpush1.msra.mxu0 %v4756
        %6479 = vmatprep.subr.mxu0 0.0
        %6480 = vmatpush1.msra.mxu0 %v4755
        %6481 = vmatprep.subr.mxu0 0.0
        %6482 = vmatpush1.msra.mxu0 %v4754
        %6483 = vmatprep.subr.mxu0 0.0
        %6484 = vmatpush1.msra.mxu0 %v4753
        %6485 = vmatprep.subr.mxu0 0.0
        %6486 = vmatpush1.msra.mxu0 %v4752
        %6487 = vmatprep.subr.mxu0 0.0
        %6488 = vmatpush2.msra.mxu0 0.0
        %6489 = vmatprep.subr.mxu0 0.0
        %6490 = vmatpush2.msra.mxu0 0.0
        %6491 = vmatprep.subr.mxu0 0.0
        %6492 = vmatpush2.msra.mxu0 0.0
        %6493 = vmatprep.subr.mxu0 0.0
        %6494 = vmatpush2.msra.mxu0 0.0
        %6495 = vmatprep.subr.mxu0 0.0
        %6496 = vmatpush2.msra.mxu0 0.0
        %6497 = vmatprep.subr.mxu0 0.0
        %6498 = vmatpush2.msra.mxu0 0.0
        %6499 = vmatprep.subr.mxu0 0.0
        %6500 = vmatpush2.msra.mxu0 0.0
        %6501 = vmatprep.subr.mxu0 0.0
        %6502 = vmatpush2.msra.mxu0 0.0
        %6503 = vmatprep.subr.mxu0 0.0
        %6504 = vmatpush2.msra.mxu0 0.0
        %6505 = vmatprep.subr.mxu0 0.0
        %6506 = vmatpush2.msra.mxu0 0.0
        %6507 = vmatprep.subr.mxu0 0.0
        %6508 = vmatpush2.msra.mxu0 0.0
        %6509 = vmatprep.subr.mxu0 0.0
        %6510 = vmatpush2.msra.mxu0 0.0
        %6511 = vmatprep.subr.mxu0 0.0
        %6512 = vmatpush2.msra.mxu0 0.0
        %6513 = vmatprep.subr.mxu0 0.0
        %6514 = vmatpush2.msra.mxu0 0.0
        %6515 = vmatprep.subr.mxu0 0.0
        %6516 = vmatpush2.msra.mxu0 0.0
        %6517 = vmatprep.subr.mxu0 0.0
        %6518 = vmatpush2.msra.mxu0 0.0
        %6519 = vmatprep.mubr.f32.mxu0 0.0
        %6520 = vmatmul.mubr.f32.gmra.mxu0 %v6450
        %v6521 = vpop.f32.mrf.mxu0
        %v6522 = vadd.f32 0.0, %v6521
        %v6523 = vpop.f32.mrf.mxu0
        %6524 = vmatprep.mubr.f32.mxu0 0.0
        %6525 = vmatmul.mubr.f32.gmra.mxu0 %v6453
        %v6526 = vpop.f32.mrf.mxu0
        %v6527 = vadd.f32 0.0, %v6526
        %v6528 = vpop.f32.mrf.mxu0
        %6529 = vdwg.mxu0
        %s6530 = scalar_lea.vmem %s5, 80
        %v6531 = vld [vmem:[%s6530] sm:$0xff]
        %v6533 = vsel %vm4931, %v6522, 0
        %v6536 = vsel %vm4931, %v6527, 0
        %6538 = vmatprep.subr.mxu0 0.0
        %6539 = vmatpush1.msra.mxu0 0.0
        %6540 = vmatprep.subr.mxu0 0.0
        %6541 = vmatpush1.msra.mxu0 0.0
        %6542 = vmatprep.subr.mxu0 0.0
        %6543 = vmatpush1.msra.mxu0 0.0
        %6544 = vmatprep.subr.mxu0 0.0
        %6545 = vmatpush1.msra.mxu0 0.0
        %6546 = vmatprep.subr.mxu0 0.0
        %6547 = vmatpush1.msra.mxu0 0.0
        %6548 = vmatprep.subr.mxu0 0.0
        %6549 = vmatpush1.msra.mxu0 0.0
        %6550 = vmatprep.subr.mxu0 0.0
        %6551 = vmatpush1.msra.mxu0 0.0
        %6552 = vmatprep.subr.mxu0 0.0
        %6553 = vmatpush1.msra.mxu0 0.0
        %6554 = vmatprep.subr.mxu0 0.0
        %6555 = vmatpush1.msra.mxu0 0.0
        %6556 = vmatprep.subr.mxu0 0.0
        %6557 = vmatpush1.msra.mxu0 0.0
        %6558 = vmatprep.subr.mxu0 0.0
        %6559 = vmatpush1.msra.mxu0 0.0
        %6560 = vmatprep.subr.mxu0 0.0
        %6561 = vmatpush1.msra.mxu0 0.0
        %6562 = vmatprep.subr.mxu0 0.0
        %6563 = vmatpush1.msra.mxu0 0.0
        %6564 = vmatprep.subr.mxu0 0.0
        %6565 = vmatpush1.msra.mxu0 0.0
        %6566 = vmatprep.subr.mxu0 0.0
        %6567 = vmatpush1.msra.mxu0 0.0
        %6568 = vmatprep.subr.mxu0 0.0
        %6569 = vmatpush1.msra.mxu0 %v6531
        %6570 = vmatprep.subr.mxu0 0.0
        %6571 = vmatpush2.msra.mxu0 0.0
        %6572 = vmatprep.subr.mxu0 0.0
        %6573 = vmatpush2.msra.mxu0 0.0
        %6574 = vmatprep.subr.mxu0 0.0
        %6575 = vmatpush2.msra.mxu0 0.0
        %6576 = vmatprep.subr.mxu0 0.0
        %6577 = vmatpush2.msra.mxu0 0.0
        %6578 = vmatprep.subr.mxu0 0.0
        %6579 = vmatpush2.msra.mxu0 0.0
        %6580 = vmatprep.subr.mxu0 0.0
        %6581 = vmatpush2.msra.mxu0 0.0
        %6582 = vmatprep.subr.mxu0 0.0
        %6583 = vmatpush2.msra.mxu0 0.0
        %6584 = vmatprep.subr.mxu0 0.0
        %6585 = vmatpush2.msra.mxu0 0.0
        %6586 = vmatprep.subr.mxu0 0.0
        %6587 = vmatpush2.msra.mxu0 0.0
        %6588 = vmatprep.subr.mxu0 0.0
        %6589 = vmatpush2.msra.mxu0 0.0
        %6590 = vmatprep.subr.mxu0 0.0
        %6591 = vmatpush2.msra.mxu0 0.0
        %6592 = vmatprep.subr.mxu0 0.0
        %6593 = vmatpush2.msra.mxu0 0.0
        %6594 = vmatprep.subr.mxu0 0.0
        %6595 = vmatpush2.msra.mxu0 0.0
        %6596 = vmatprep.subr.mxu0 0.0
        %6597 = vmatpush2.msra.mxu0 0.0
        %6598 = vmatprep.subr.mxu0 0.0
        %6599 = vmatpush2.msra.mxu0 0.0
        %6600 = vmatprep.subr.mxu0 0.0
        %6601 = vmatpush2.msra.mxu0 0.0
        %6602 = vmatprep.mubr.f32.mxu0 0.0
        %6603 = vmatmul.mubr.f32.gmra.mxu0 %v6533
        %v6604 = vpop.f32.mrf.mxu0
        %v6605 = vadd.f32 0.0, %v6604
        %v6606 = vpop.f32.mrf.mxu0
        %6607 = vmatprep.mubr.f32.mxu0 0.0
        %6608 = vmatmul.mubr.f32.gmra.mxu0 %v6536
        %v6609 = vpop.f32.mrf.mxu0
        %v6610 = vadd.f32 0.0, %v6609
        %v6611 = vpop.f32.mrf.mxu0
        %6612 = vdwg.mxu0
        %v6613 = vadd.f32 %v6444, %v6605
        %v6614 = vadd.f32 %v6445, %v6610
        %s6615 = scalar_lea.vmem %s4, 176
        %v6616 = vld [vmem:[%s6615] sm:$0xff]
        %v6617 = vld [vmem:[%s6615 + $0x8] sm:$0xff]
        %v6619 = vsel %vm4762, %v6616, 0
        %v6622 = vsel %vm4762, %v6617, 0
        %6624 = vmatprep.subr.mxu0 0.0
        %6625 = vmatpush1.msra.mxu0 0.0
        %6626 = vmatprep.subr.mxu0 0.0
        %6627 = vmatpush1.msra.mxu0 0.0
        %6628 = vmatprep.subr.mxu0 0.0
        %6629 = vmatpush1.msra.mxu0 0.0
        %6630 = vmatprep.subr.mxu0 0.0
        %6631 = vmatpush1.msra.mxu0 0.0
        %6632 = vmatprep.subr.mxu0 0.0
        %6633 = vmatpush1.msra.mxu0 0.0
        %6634 = vmatprep.subr.mxu0 0.0
        %6635 = vmatpush1.msra.mxu0 0.0
        %6636 = vmatprep.subr.mxu0 0.0
        %6637 = vmatpush1.msra.mxu0 0.0
        %6638 = vmatprep.subr.mxu0 0.0
        %6639 = vmatpush1.msra.mxu0 0.0
        %6640 = vmatprep.subr.mxu0 0.0
        %6641 = vmatpush1.msra.mxu0 %v4759
        %6642 = vmatprep.subr.mxu0 0.0
        %6643 = vmatpush1.msra.mxu0 %v4758
        %6644 = vmatprep.subr.mxu0 0.0
        %6645 = vmatpush1.msra.mxu0 %v4757
        %6646 = vmatprep.subr.mxu0 0.0
        %6647 = vmatpush1.msra.mxu0 %v4756
        %6648 = vmatprep.subr.mxu0 0.0
        %6649 = vmatpush1.msra.mxu0 %v4755
        %6650 = vmatprep.subr.mxu0 0.0
        %6651 = vmatpush1.msra.mxu0 %v4754
        %6652 = vmatprep.subr.mxu0 0.0
        %6653 = vmatpush1.msra.mxu0 %v4753
        %6654 = vmatprep.subr.mxu0 0.0
        %6655 = vmatpush1.msra.mxu0 %v4752
        %6656 = vmatprep.subr.mxu0 0.0
        %6657 = vmatpush2.msra.mxu0 0.0
        %6658 = vmatprep.subr.mxu0 0.0
        %6659 = vmatpush2.msra.mxu0 0.0
        %6660 = vmatprep.subr.mxu0 0.0
        %6661 = vmatpush2.msra.mxu0 0.0
        %6662 = vmatprep.subr.mxu0 0.0
        %6663 = vmatpush2.msra.mxu0 0.0
        %6664 = vmatprep.subr.mxu0 0.0
        %6665 = vmatpush2.msra.mxu0 0.0
        %6666 = vmatprep.subr.mxu0 0.0
        %6667 = vmatpush2.msra.mxu0 0.0
        %6668 = vmatprep.subr.mxu0 0.0
        %6669 = vmatpush2.msra.mxu0 0.0
        %6670 = vmatprep.subr.mxu0 0.0
        %6671 = vmatpush2.msra.mxu0 0.0
        %6672 = vmatprep.subr.mxu0 0.0
        %6673 = vmatpush2.msra.mxu0 0.0
        %6674 = vmatprep.subr.mxu0 0.0
        %6675 = vmatpush2.msra.mxu0 0.0
        %6676 = vmatprep.subr.mxu0 0.0
        %6677 = vmatpush2.msra.mxu0 0.0
        %6678 = vmatprep.subr.mxu0 0.0
        %6679 = vmatpush2.msra.mxu0 0.0
        %6680 = vmatprep.subr.mxu0 0.0
        %6681 = vmatpush2.msra.mxu0 0.0
        %6682 = vmatprep.subr.mxu0 0.0
        %6683 = vmatpush2.msra.mxu0 0.0
        %6684 = vmatprep.subr.mxu0 0.0
        %6685 = vmatpush2.msra.mxu0 0.0
        %6686 = vmatprep.subr.mxu0 0.0
        %6687 = vmatpush2.msra.mxu0 0.0
        %6688 = vmatprep.mubr.f32.mxu0 0.0
        %6689 = vmatmul.mubr.f32.gmra.mxu0 %v6619
        %v6690 = vpop.f32.mrf.mxu0
        %v6691 = vadd.f32 0.0, %v6690
        %v6692 = vpop.f32.mrf.mxu0
        %6693 = vmatprep.mubr.f32.mxu0 0.0
        %6694 = vmatmul.mubr.f32.gmra.mxu0 %v6622
        %v6695 = vpop.f32.mrf.mxu0
        %v6696 = vadd.f32 0.0, %v6695
        %v6697 = vpop.f32.mrf.mxu0
        %6698 = vdwg.mxu0
        %s6699 = scalar_lea.vmem %s5, 88
        %v6700 = vld [vmem:[%s6699] sm:$0xff]
        %v6702 = vsel %vm4931, %v6691, 0
        %v6705 = vsel %vm4931, %v6696, 0
        %6707 = vmatprep.subr.mxu0 0.0
        %6708 = vmatpush1.msra.mxu0 0.0
        %6709 = vmatprep.subr.mxu0 0.0
        %6710 = vmatpush1.msra.mxu0 0.0
        %6711 = vmatprep.subr.mxu0 0.0
        %6712 = vmatpush1.msra.mxu0 0.0
        %6713 = vmatprep.subr.mxu0 0.0
        %6714 = vmatpush1.msra.mxu0 0.0
        %6715 = vmatprep.subr.mxu0 0.0
        %6716 = vmatpush1.msra.mxu0 0.0
        %6717 = vmatprep.subr.mxu0 0.0
        %6718 = vmatpush1.msra.mxu0 0.0
        %6719 = vmatprep.subr.mxu0 0.0
        %6720 = vmatpush1.msra.mxu0 0.0
        %6721 = vmatprep.subr.mxu0 0.0
        %6722 = vmatpush1.msra.mxu0 0.0
        %6723 = vmatprep.subr.mxu0 0.0
        %6724 = vmatpush1.msra.mxu0 0.0
        %6725 = vmatprep.subr.mxu0 0.0
        %6726 = vmatpush1.msra.mxu0 0.0
        %6727 = vmatprep.subr.mxu0 0.0
        %6728 = vmatpush1.msra.mxu0 0.0
        %6729 = vmatprep.subr.mxu0 0.0
        %6730 = vmatpush1.msra.mxu0 0.0
        %6731 = vmatprep.subr.mxu0 0.0
        %6732 = vmatpush1.msra.mxu0 0.0
        %6733 = vmatprep.subr.mxu0 0.0
        %6734 = vmatpush1.msra.mxu0 0.0
        %6735 = vmatprep.subr.mxu0 0.0
        %6736 = vmatpush1.msra.mxu0 0.0
        %6737 = vmatprep.subr.mxu0 0.0
        %6738 = vmatpush1.msra.mxu0 %v6700
        %6739 = vmatprep.subr.mxu0 0.0
        %6740 = vmatpush2.msra.mxu0 0.0
        %6741 = vmatprep.subr.mxu0 0.0
        %6742 = vmatpush2.msra.mxu0 0.0
        %6743 = vmatprep.subr.mxu0 0.0
        %6744 = vmatpush2.msra.mxu0 0.0
        %6745 = vmatprep.subr.mxu0 0.0
        %6746 = vmatpush2.msra.mxu0 0.0
        %6747 = vmatprep.subr.mxu0 0.0
        %6748 = vmatpush2.msra.mxu0 0.0
        %6749 = vmatprep.subr.mxu0 0.0
        %6750 = vmatpush2.msra.mxu0 0.0
        %6751 = vmatprep.subr.mxu0 0.0
        %6752 = vmatpush2.msra.mxu0 0.0
        %6753 = vmatprep.subr.mxu0 0.0
        %6754 = vmatpush2.msra.mxu0 0.0
        %6755 = vmatprep.subr.mxu0 0.0
        %6756 = vmatpush2.msra.mxu0 0.0
        %6757 = vmatprep.subr.mxu0 0.0
        %6758 = vmatpush2.msra.mxu0 0.0
        %6759 = vmatprep.subr.mxu0 0.0
        %6760 = vmatpush2.msra.mxu0 0.0
        %6761 = vmatprep.subr.mxu0 0.0
        %6762 = vmatpush2.msra.mxu0 0.0
        %6763 = vmatprep.subr.mxu0 0.0
        %6764 = vmatpush2.msra.mxu0 0.0
        %6765 = vmatprep.subr.mxu0 0.0
        %6766 = vmatpush2.msra.mxu0 0.0
        %6767 = vmatprep.subr.mxu0 0.0
        %6768 = vmatpush2.msra.mxu0 0.0
        %6769 = vmatprep.subr.mxu0 0.0
        %6770 = vmatpush2.msra.mxu0 0.0
        %6771 = vmatprep.mubr.f32.mxu0 0.0
        %6772 = vmatmul.mubr.f32.gmra.mxu0 %v6702
        %v6773 = vpop.f32.mrf.mxu0
        %v6774 = vadd.f32 0.0, %v6773
        %v6775 = vpop.f32.mrf.mxu0
        %6776 = vmatprep.mubr.f32.mxu0 0.0
        %6777 = vmatmul.mubr.f32.gmra.mxu0 %v6705
        %v6778 = vpop.f32.mrf.mxu0
        %v6779 = vadd.f32 0.0, %v6778
        %v6780 = vpop.f32.mrf.mxu0
        %6781 = vdwg.mxu0
        %v6782 = vadd.f32 %v6613, %v6774
        %v6783 = vadd.f32 %v6614, %v6779
        %s6784 = scalar_lea.vmem %s4, 192
        %v6785 = vld [vmem:[%s6784] sm:$0xff]
        %v6786 = vld [vmem:[%s6784 + $0x8] sm:$0xff]
        %v6788 = vsel %vm4762, %v6785, 0
        %v6791 = vsel %vm4762, %v6786, 0
        %6793 = vmatprep.subr.mxu0 0.0
        %6794 = vmatpush1.msra.mxu0 0.0
        %6795 = vmatprep.subr.mxu0 0.0
        %6796 = vmatpush1.msra.mxu0 0.0
        %6797 = vmatprep.subr.mxu0 0.0
        %6798 = vmatpush1.msra.mxu0 0.0
        %6799 = vmatprep.subr.mxu0 0.0
        %6800 = vmatpush1.msra.mxu0 0.0
        %6801 = vmatprep.subr.mxu0 0.0
        %6802 = vmatpush1.msra.mxu0 0.0
        %6803 = vmatprep.subr.mxu0 0.0
        %6804 = vmatpush1.msra.mxu0 0.0
        %6805 = vmatprep.subr.mxu0 0.0
        %6806 = vmatpush1.msra.mxu0 0.0
        %6807 = vmatprep.subr.mxu0 0.0
        %6808 = vmatpush1.msra.mxu0 0.0
        %6809 = vmatprep.subr.mxu0 0.0
        %6810 = vmatpush1.msra.mxu0 %v4759
        %6811 = vmatprep.subr.mxu0 0.0
        %6812 = vmatpush1.msra.mxu0 %v4758
        %6813 = vmatprep.subr.mxu0 0.0
        %6814 = vmatpush1.msra.mxu0 %v4757
        %6815 = vmatprep.subr.mxu0 0.0
        %6816 = vmatpush1.msra.mxu0 %v4756
        %6817 = vmatprep.subr.mxu0 0.0
        %6818 = vmatpush1.msra.mxu0 %v4755
        %6819 = vmatprep.subr.mxu0 0.0
        %6820 = vmatpush1.msra.mxu0 %v4754
        %6821 = vmatprep.subr.mxu0 0.0
        %6822 = vmatpush1.msra.mxu0 %v4753
        %6823 = vmatprep.subr.mxu0 0.0
        %6824 = vmatpush1.msra.mxu0 %v4752
        %6825 = vmatprep.subr.mxu0 0.0
        %6826 = vmatpush2.msra.mxu0 0.0
        %6827 = vmatprep.subr.mxu0 0.0
        %6828 = vmatpush2.msra.mxu0 0.0
        %6829 = vmatprep.subr.mxu0 0.0
        %6830 = vmatpush2.msra.mxu0 0.0
        %6831 = vmatprep.subr.mxu0 0.0
        %6832 = vmatpush2.msra.mxu0 0.0
        %6833 = vmatprep.subr.mxu0 0.0
        %6834 = vmatpush2.msra.mxu0 0.0
        %6835 = vmatprep.subr.mxu0 0.0
        %6836 = vmatpush2.msra.mxu0 0.0
        %6837 = vmatprep.subr.mxu0 0.0
        %6838 = vmatpush2.msra.mxu0 0.0
        %6839 = vmatprep.subr.mxu0 0.0
        %6840 = vmatpush2.msra.mxu0 0.0
        %6841 = vmatprep.subr.mxu0 0.0
        %6842 = vmatpush2.msra.mxu0 0.0
        %6843 = vmatprep.subr.mxu0 0.0
        %6844 = vmatpush2.msra.mxu0 0.0
        %6845 = vmatprep.subr.mxu0 0.0
        %6846 = vmatpush2.msra.mxu0 0.0
        %6847 = vmatprep.subr.mxu0 0.0
        %6848 = vmatpush2.msra.mxu0 0.0
        %6849 = vmatprep.subr.mxu0 0.0
        %6850 = vmatpush2.msra.mxu0 0.0
        %6851 = vmatprep.subr.mxu0 0.0
        %6852 = vmatpush2.msra.mxu0 0.0
        %6853 = vmatprep.subr.mxu0 0.0
        %6854 = vmatpush2.msra.mxu0 0.0
        %6855 = vmatprep.subr.mxu0 0.0
        %6856 = vmatpush2.msra.mxu0 0.0
        %6857 = vmatprep.mubr.f32.mxu0 0.0
        %6858 = vmatmul.mubr.f32.gmra.mxu0 %v6788
        %v6859 = vpop.f32.mrf.mxu0
        %v6860 = vadd.f32 0.0, %v6859
        %v6861 = vpop.f32.mrf.mxu0
        %6862 = vmatprep.mubr.f32.mxu0 0.0
        %6863 = vmatmul.mubr.f32.gmra.mxu0 %v6791
        %v6864 = vpop.f32.mrf.mxu0
        %v6865 = vadd.f32 0.0, %v6864
        %v6866 = vpop.f32.mrf.mxu0
        %6867 = vdwg.mxu0
        %s6868 = scalar_lea.vmem %s5, 96
        %v6869 = vld [vmem:[%s6868] sm:$0xff]
        %v6871 = vsel %vm4931, %v6860, 0
        %v6874 = vsel %vm4931, %v6865, 0
        %6876 = vmatprep.subr.mxu0 0.0
        %6877 = vmatpush1.msra.mxu0 0.0
        %6878 = vmatprep.subr.mxu0 0.0
        %6879 = vmatpush1.msra.mxu0 0.0
        %6880 = vmatprep.subr.mxu0 0.0
        %6881 = vmatpush1.msra.mxu0 0.0
        %6882 = vmatprep.subr.mxu0 0.0
        %6883 = vmatpush1.msra.mxu0 0.0
        %6884 = vmatprep.subr.mxu0 0.0
        %6885 = vmatpush1.msra.mxu0 0.0
        %6886 = vmatprep.subr.mxu0 0.0
        %6887 = vmatpush1.msra.mxu0 0.0
        %6888 = vmatprep.subr.mxu0 0.0
        %6889 = vmatpush1.msra.mxu0 0.0
        %6890 = vmatprep.subr.mxu0 0.0
        %6891 = vmatpush1.msra.mxu0 0.0
        %6892 = vmatprep.subr.mxu0 0.0
        %6893 = vmatpush1.msra.mxu0 0.0
        %6894 = vmatprep.subr.mxu0 0.0
        %6895 = vmatpush1.msra.mxu0 0.0
        %6896 = vmatprep.subr.mxu0 0.0
        %6897 = vmatpush1.msra.mxu0 0.0
        %6898 = vmatprep.subr.mxu0 0.0
        %6899 = vmatpush1.msra.mxu0 0.0
        %6900 = vmatprep.subr.mxu0 0.0
        %6901 = vmatpush1.msra.mxu0 0.0
        %6902 = vmatprep.subr.mxu0 0.0
        %6903 = vmatpush1.msra.mxu0 0.0
        %6904 = vmatprep.subr.mxu0 0.0
        %6905 = vmatpush1.msra.mxu0 0.0
        %6906 = vmatprep.subr.mxu0 0.0
        %6907 = vmatpush1.msra.mxu0 %v6869
        %6908 = vmatprep.subr.mxu0 0.0
        %6909 = vmatpush2.msra.mxu0 0.0
        %6910 = vmatprep.subr.mxu0 0.0
        %6911 = vmatpush2.msra.mxu0 0.0
        %6912 = vmatprep.subr.mxu0 0.0
        %6913 = vmatpush2.msra.mxu0 0.0
        %6914 = vmatprep.subr.mxu0 0.0
        %6915 = vmatpush2.msra.mxu0 0.0
        %6916 = vmatprep.subr.mxu0 0.0
        %6917 = vmatpush2.msra.mxu0 0.0
        %6918 = vmatprep.subr.mxu0 0.0
        %6919 = vmatpush2.msra.mxu0 0.0
        %6920 = vmatprep.subr.mxu0 0.0
        %6921 = vmatpush2.msra.mxu0 0.0
        %6922 = vmatprep.subr.mxu0 0.0
        %6923 = vmatpush2.msra.mxu0 0.0
        %6924 = vmatprep.subr.mxu0 0.0
        %6925 = vmatpush2.msra.mxu0 0.0
        %6926 = vmatprep.subr.mxu0 0.0
        %6927 = vmatpush2.msra.mxu0 0.0
        %6928 = vmatprep.subr.mxu0 0.0
        %6929 = vmatpush2.msra.mxu0 0.0
        %6930 = vmatprep.subr.mxu0 0.0
        %6931 = vmatpush2.msra.mxu0 0.0
        %6932 = vmatprep.subr.mxu0 0.0
        %6933 = vmatpush2.msra.mxu0 0.0
        %6934 = vmatprep.subr.mxu0 0.0
        %6935 = vmatpush2.msra.mxu0 0.0
        %6936 = vmatprep.subr.mxu0 0.0
        %6937 = vmatpush2.msra.mxu0 0.0
        %6938 = vmatprep.subr.mxu0 0.0
        %6939 = vmatpush2.msra.mxu0 0.0
        %6940 = vmatprep.mubr.f32.mxu0 0.0
        %6941 = vmatmul.mubr.f32.gmra.mxu0 %v6871
        %v6942 = vpop.f32.mrf.mxu0
        %v6943 = vadd.f32 0.0, %v6942
        %v6944 = vpop.f32.mrf.mxu0
        %6945 = vmatprep.mubr.f32.mxu0 0.0
        %6946 = vmatmul.mubr.f32.gmra.mxu0 %v6874
        %v6947 = vpop.f32.mrf.mxu0
        %v6948 = vadd.f32 0.0, %v6947
        %v6949 = vpop.f32.mrf.mxu0
        %6950 = vdwg.mxu0
        %v6951 = vadd.f32 %v6782, %v6943
        %v6952 = vadd.f32 %v6783, %v6948
        %s6953 = scalar_lea.vmem %s4, 208
        %v6954 = vld [vmem:[%s6953] sm:$0xff]
        %v6955 = vld [vmem:[%s6953 + $0x8] sm:$0xff]
        %v6957 = vsel %vm4762, %v6954, 0
        %v6960 = vsel %vm4762, %v6955, 0
        %6962 = vmatprep.subr.mxu0 0.0
        %6963 = vmatpush1.msra.mxu0 0.0
        %6964 = vmatprep.subr.mxu0 0.0
        %6965 = vmatpush1.msra.mxu0 0.0
        %6966 = vmatprep.subr.mxu0 0.0
        %6967 = vmatpush1.msra.mxu0 0.0
        %6968 = vmatprep.subr.mxu0 0.0
        %6969 = vmatpush1.msra.mxu0 0.0
        %6970 = vmatprep.subr.mxu0 0.0
        %6971 = vmatpush1.msra.mxu0 0.0
        %6972 = vmatprep.subr.mxu0 0.0
        %6973 = vmatpush1.msra.mxu0 0.0
        %6974 = vmatprep.subr.mxu0 0.0
        %6975 = vmatpush1.msra.mxu0 0.0
        %6976 = vmatprep.subr.mxu0 0.0
        %6977 = vmatpush1.msra.mxu0 0.0
        %6978 = vmatprep.subr.mxu0 0.0
        %6979 = vmatpush1.msra.mxu0 %v4759
        %6980 = vmatprep.subr.mxu0 0.0
        %6981 = vmatpush1.msra.mxu0 %v4758
        %6982 = vmatprep.subr.mxu0 0.0
        %6983 = vmatpush1.msra.mxu0 %v4757
        %6984 = vmatprep.subr.mxu0 0.0
        %6985 = vmatpush1.msra.mxu0 %v4756
        %6986 = vmatprep.subr.mxu0 0.0
        %6987 = vmatpush1.msra.mxu0 %v4755
        %6988 = vmatprep.subr.mxu0 0.0
        %6989 = vmatpush1.msra.mxu0 %v4754
        %6990 = vmatprep.subr.mxu0 0.0
        %6991 = vmatpush1.msra.mxu0 %v4753
        %6992 = vmatprep.subr.mxu0 0.0
        %6993 = vmatpush1.msra.mxu0 %v4752
        %6994 = vmatprep.subr.mxu0 0.0
        %6995 = vmatpush2.msra.mxu0 0.0
        %6996 = vmatprep.subr.mxu0 0.0
        %6997 = vmatpush2.msra.mxu0 0.0
        %6998 = vmatprep.subr.mxu0 0.0
        %6999 = vmatpush2.msra.mxu0 0.0
        %7000 = vmatprep.subr.mxu0 0.0
        %7001 = vmatpush2.msra.mxu0 0.0
        %7002 = vmatprep.subr.mxu0 0.0
        %7003 = vmatpush2.msra.mxu0 0.0
        %7004 = vmatprep.subr.mxu0 0.0
        %7005 = vmatpush2.msra.mxu0 0.0
        %7006 = vmatprep.subr.mxu0 0.0
        %7007 = vmatpush2.msra.mxu0 0.0
        %7008 = vmatprep.subr.mxu0 0.0
        %7009 = vmatpush2.msra.mxu0 0.0
        %7010 = vmatprep.subr.mxu0 0.0
        %7011 = vmatpush2.msra.mxu0 0.0
        %7012 = vmatprep.subr.mxu0 0.0
        %7013 = vmatpush2.msra.mxu0 0.0
        %7014 = vmatprep.subr.mxu0 0.0
        %7015 = vmatpush2.msra.mxu0 0.0
        %7016 = vmatprep.subr.mxu0 0.0
        %7017 = vmatpush2.msra.mxu0 0.0
        %7018 = vmatprep.subr.mxu0 0.0
        %7019 = vmatpush2.msra.mxu0 0.0
        %7020 = vmatprep.subr.mxu0 0.0
        %7021 = vmatpush2.msra.mxu0 0.0
        %7022 = vmatprep.subr.mxu0 0.0
        %7023 = vmatpush2.msra.mxu0 0.0
        %7024 = vmatprep.subr.mxu0 0.0
        %7025 = vmatpush2.msra.mxu0 0.0
        %7026 = vmatprep.mubr.f32.mxu0 0.0
        %7027 = vmatmul.mubr.f32.gmra.mxu0 %v6957
        %v7028 = vpop.f32.mrf.mxu0
        %v7029 = vadd.f32 0.0, %v7028
        %v7030 = vpop.f32.mrf.mxu0
        %7031 = vmatprep.mubr.f32.mxu0 0.0
        %7032 = vmatmul.mubr.f32.gmra.mxu0 %v6960
        %v7033 = vpop.f32.mrf.mxu0
        %v7034 = vadd.f32 0.0, %v7033
        %v7035 = vpop.f32.mrf.mxu0
        %7036 = vdwg.mxu0
        %s7037 = scalar_lea.vmem %s5, 104
        %v7038 = vld [vmem:[%s7037] sm:$0xff]
        %v7040 = vsel %vm4931, %v7029, 0
        %v7043 = vsel %vm4931, %v7034, 0
        %7045 = vmatprep.subr.mxu0 0.0
        %7046 = vmatpush1.msra.mxu0 0.0
        %7047 = vmatprep.subr.mxu0 0.0
        %7048 = vmatpush1.msra.mxu0 0.0
        %7049 = vmatprep.subr.mxu0 0.0
        %7050 = vmatpush1.msra.mxu0 0.0
        %7051 = vmatprep.subr.mxu0 0.0
        %7052 = vmatpush1.msra.mxu0 0.0
        %7053 = vmatprep.subr.mxu0 0.0
        %7054 = vmatpush1.msra.mxu0 0.0
        %7055 = vmatprep.subr.mxu0 0.0
        %7056 = vmatpush1.msra.mxu0 0.0
        %7057 = vmatprep.subr.mxu0 0.0
        %7058 = vmatpush1.msra.mxu0 0.0
        %7059 = vmatprep.subr.mxu0 0.0
        %7060 = vmatpush1.msra.mxu0 0.0
        %7061 = vmatprep.subr.mxu0 0.0
        %7062 = vmatpush1.msra.mxu0 0.0
        %7063 = vmatprep.subr.mxu0 0.0
        %7064 = vmatpush1.msra.mxu0 0.0
        %7065 = vmatprep.subr.mxu0 0.0
        %7066 = vmatpush1.msra.mxu0 0.0
        %7067 = vmatprep.subr.mxu0 0.0
        %7068 = vmatpush1.msra.mxu0 0.0
        %7069 = vmatprep.subr.mxu0 0.0
        %7070 = vmatpush1.msra.mxu0 0.0
        %7071 = vmatprep.subr.mxu0 0.0
        %7072 = vmatpush1.msra.mxu0 0.0
        %7073 = vmatprep.subr.mxu0 0.0
        %7074 = vmatpush1.msra.mxu0 0.0
        %7075 = vmatprep.subr.mxu0 0.0
        %7076 = vmatpush1.msra.mxu0 %v7038
        %7077 = vmatprep.subr.mxu0 0.0
        %7078 = vmatpush2.msra.mxu0 0.0
        %7079 = vmatprep.subr.mxu0 0.0
        %7080 = vmatpush2.msra.mxu0 0.0
        %7081 = vmatprep.subr.mxu0 0.0
        %7082 = vmatpush2.msra.mxu0 0.0
        %7083 = vmatprep.subr.mxu0 0.0
        %7084 = vmatpush2.msra.mxu0 0.0
        %7085 = vmatprep.subr.mxu0 0.0
        %7086 = vmatpush2.msra.mxu0 0.0
        %7087 = vmatprep.subr.mxu0 0.0
        %7088 = vmatpush2.msra.mxu0 0.0
        %7089 = vmatprep.subr.mxu0 0.0
        %7090 = vmatpush2.msra.mxu0 0.0
        %7091 = vmatprep.subr.mxu0 0.0
        %7092 = vmatpush2.msra.mxu0 0.0
        %7093 = vmatprep.subr.mxu0 0.0
        %7094 = vmatpush2.msra.mxu0 0.0
        %7095 = vmatprep.subr.mxu0 0.0
        %7096 = vmatpush2.msra.mxu0 0.0
        %7097 = vmatprep.subr.mxu0 0.0
        %7098 = vmatpush2.msra.mxu0 0.0
        %7099 = vmatprep.subr.mxu0 0.0
        %7100 = vmatpush2.msra.mxu0 0.0
        %7101 = vmatprep.subr.mxu0 0.0
        %7102 = vmatpush2.msra.mxu0 0.0
        %7103 = vmatprep.subr.mxu0 0.0
        %7104 = vmatpush2.msra.mxu0 0.0
        %7105 = vmatprep.subr.mxu0 0.0
        %7106 = vmatpush2.msra.mxu0 0.0
        %7107 = vmatprep.subr.mxu0 0.0
        %7108 = vmatpush2.msra.mxu0 0.0
        %7109 = vmatprep.mubr.f32.mxu0 0.0
        %7110 = vmatmul.mubr.f32.gmra.mxu0 %v7040
        %v7111 = vpop.f32.mrf.mxu0
        %v7112 = vadd.f32 0.0, %v7111
        %v7113 = vpop.f32.mrf.mxu0
        %7114 = vmatprep.mubr.f32.mxu0 0.0
        %7115 = vmatmul.mubr.f32.gmra.mxu0 %v7043
        %v7116 = vpop.f32.mrf.mxu0
        %v7117 = vadd.f32 0.0, %v7116
        %v7118 = vpop.f32.mrf.mxu0
        %7119 = vdwg.mxu0
        %v7120 = vadd.f32 %v6951, %v7112
        %v7121 = vadd.f32 %v6952, %v7117
        %s7122 = scalar_lea.vmem %s4, 224
        %v7123 = vld [vmem:[%s7122] sm:$0xff]
        %v7124 = vld [vmem:[%s7122 + $0x8] sm:$0xff]
        %v7126 = vsel %vm4762, %v7123, 0
        %v7129 = vsel %vm4762, %v7124, 0
        %7131 = vmatprep.subr.mxu0 0.0
        %7132 = vmatpush1.msra.mxu0 0.0
        %7133 = vmatprep.subr.mxu0 0.0
        %7134 = vmatpush1.msra.mxu0 0.0
        %7135 = vmatprep.subr.mxu0 0.0
        %7136 = vmatpush1.msra.mxu0 0.0
        %7137 = vmatprep.subr.mxu0 0.0
        %7138 = vmatpush1.msra.mxu0 0.0
        %7139 = vmatprep.subr.mxu0 0.0
        %7140 = vmatpush1.msra.mxu0 0.0
        %7141 = vmatprep.subr.mxu0 0.0
        %7142 = vmatpush1.msra.mxu0 0.0
        %7143 = vmatprep.subr.mxu0 0.0
        %7144 = vmatpush1.msra.mxu0 0.0
        %7145 = vmatprep.subr.mxu0 0.0
        %7146 = vmatpush1.msra.mxu0 0.0
        %7147 = vmatprep.subr.mxu0 0.0
        %7148 = vmatpush1.msra.mxu0 %v4759
        %7149 = vmatprep.subr.mxu0 0.0
        %7150 = vmatpush1.msra.mxu0 %v4758
        %7151 = vmatprep.subr.mxu0 0.0
        %7152 = vmatpush1.msra.mxu0 %v4757
        %7153 = vmatprep.subr.mxu0 0.0
        %7154 = vmatpush1.msra.mxu0 %v4756
        %7155 = vmatprep.subr.mxu0 0.0
        %7156 = vmatpush1.msra.mxu0 %v4755
        %7157 = vmatprep.subr.mxu0 0.0
        %7158 = vmatpush1.msra.mxu0 %v4754
        %7159 = vmatprep.subr.mxu0 0.0
        %7160 = vmatpush1.msra.mxu0 %v4753
        %7161 = vmatprep.subr.mxu0 0.0
        %7162 = vmatpush1.msra.mxu0 %v4752
        %7163 = vmatprep.subr.mxu0 0.0
        %7164 = vmatpush2.msra.mxu0 0.0
        %7165 = vmatprep.subr.mxu0 0.0
        %7166 = vmatpush2.msra.mxu0 0.0
        %7167 = vmatprep.subr.mxu0 0.0
        %7168 = vmatpush2.msra.mxu0 0.0
        %7169 = vmatprep.subr.mxu0 0.0
        %7170 = vmatpush2.msra.mxu0 0.0
        %7171 = vmatprep.subr.mxu0 0.0
        %7172 = vmatpush2.msra.mxu0 0.0
        %7173 = vmatprep.subr.mxu0 0.0
        %7174 = vmatpush2.msra.mxu0 0.0
        %7175 = vmatprep.subr.mxu0 0.0
        %7176 = vmatpush2.msra.mxu0 0.0
        %7177 = vmatprep.subr.mxu0 0.0
        %7178 = vmatpush2.msra.mxu0 0.0
        %7179 = vmatprep.subr.mxu0 0.0
        %7180 = vmatpush2.msra.mxu0 0.0
        %7181 = vmatprep.subr.mxu0 0.0
        %7182 = vmatpush2.msra.mxu0 0.0
        %7183 = vmatprep.subr.mxu0 0.0
        %7184 = vmatpush2.msra.mxu0 0.0
        %7185 = vmatprep.subr.mxu0 0.0
        %7186 = vmatpush2.msra.mxu0 0.0
        %7187 = vmatprep.subr.mxu0 0.0
        %7188 = vmatpush2.msra.mxu0 0.0
        %7189 = vmatprep.subr.mxu0 0.0
        %7190 = vmatpush2.msra.mxu0 0.0
        %7191 = vmatprep.subr.mxu0 0.0
        %7192 = vmatpush2.msra.mxu0 0.0
        %7193 = vmatprep.subr.mxu0 0.0
        %7194 = vmatpush2.msra.mxu0 0.0
        %7195 = vmatprep.mubr.f32.mxu0 0.0
        %7196 = vmatmul.mubr.f32.gmra.mxu0 %v7126
        %v7197 = vpop.f32.mrf.mxu0
        %v7198 = vadd.f32 0.0, %v7197
        %v7199 = vpop.f32.mrf.mxu0
        %7200 = vmatprep.mubr.f32.mxu0 0.0
        %7201 = vmatmul.mubr.f32.gmra.mxu0 %v7129
        %v7202 = vpop.f32.mrf.mxu0
        %v7203 = vadd.f32 0.0, %v7202
        %v7204 = vpop.f32.mrf.mxu0
        %7205 = vdwg.mxu0
        %s7206 = scalar_lea.vmem %s5, 112
        %v7207 = vld [vmem:[%s7206] sm:$0xff]
        %v7209 = vsel %vm4931, %v7198, 0
        %v7212 = vsel %vm4931, %v7203, 0
        %7214 = vmatprep.subr.mxu0 0.0
        %7215 = vmatpush1.msra.mxu0 0.0
        %7216 = vmatprep.subr.mxu0 0.0
        %7217 = vmatpush1.msra.mxu0 0.0
        %7218 = vmatprep.subr.mxu0 0.0
        %7219 = vmatpush1.msra.mxu0 0.0
        %7220 = vmatprep.subr.mxu0 0.0
        %7221 = vmatpush1.msra.mxu0 0.0
        %7222 = vmatprep.subr.mxu0 0.0
        %7223 = vmatpush1.msra.mxu0 0.0
        %7224 = vmatprep.subr.mxu0 0.0
        %7225 = vmatpush1.msra.mxu0 0.0
        %7226 = vmatprep.subr.mxu0 0.0
        %7227 = vmatpush1.msra.mxu0 0.0
        %7228 = vmatprep.subr.mxu0 0.0
        %7229 = vmatpush1.msra.mxu0 0.0
        %7230 = vmatprep.subr.mxu0 0.0
        %7231 = vmatpush1.msra.mxu0 0.0
        %7232 = vmatprep.subr.mxu0 0.0
        %7233 = vmatpush1.msra.mxu0 0.0
        %7234 = vmatprep.subr.mxu0 0.0
        %7235 = vmatpush1.msra.mxu0 0.0
        %7236 = vmatprep.subr.mxu0 0.0
        %7237 = vmatpush1.msra.mxu0 0.0
        %7238 = vmatprep.subr.mxu0 0.0
        %7239 = vmatpush1.msra.mxu0 0.0
        %7240 = vmatprep.subr.mxu0 0.0
        %7241 = vmatpush1.msra.mxu0 0.0
        %7242 = vmatprep.subr.mxu0 0.0
        %7243 = vmatpush1.msra.mxu0 0.0
        %7244 = vmatprep.subr.mxu0 0.0
        %7245 = vmatpush1.msra.mxu0 %v7207
        %7246 = vmatprep.subr.mxu0 0.0
        %7247 = vmatpush2.msra.mxu0 0.0
        %7248 = vmatprep.subr.mxu0 0.0
        %7249 = vmatpush2.msra.mxu0 0.0
        %7250 = vmatprep.subr.mxu0 0.0
        %7251 = vmatpush2.msra.mxu0 0.0
        %7252 = vmatprep.subr.mxu0 0.0
        %7253 = vmatpush2.msra.mxu0 0.0
        %7254 = vmatprep.subr.mxu0 0.0
        %7255 = vmatpush2.msra.mxu0 0.0
        %7256 = vmatprep.subr.mxu0 0.0
        %7257 = vmatpush2.msra.mxu0 0.0
        %7258 = vmatprep.subr.mxu0 0.0
        %7259 = vmatpush2.msra.mxu0 0.0
        %7260 = vmatprep.subr.mxu0 0.0
        %7261 = vmatpush2.msra.mxu0 0.0
        %7262 = vmatprep.subr.mxu0 0.0
        %7263 = vmatpush2.msra.mxu0 0.0
        %7264 = vmatprep.subr.mxu0 0.0
        %7265 = vmatpush2.msra.mxu0 0.0
        %7266 = vmatprep.subr.mxu0 0.0
        %7267 = vmatpush2.msra.mxu0 0.0
        %7268 = vmatprep.subr.mxu0 0.0
        %7269 = vmatpush2.msra.mxu0 0.0
        %7270 = vmatprep.subr.mxu0 0.0
        %7271 = vmatpush2.msra.mxu0 0.0
        %7272 = vmatprep.subr.mxu0 0.0
        %7273 = vmatpush2.msra.mxu0 0.0
        %7274 = vmatprep.subr.mxu0 0.0
        %7275 = vmatpush2.msra.mxu0 0.0
        %7276 = vmatprep.subr.mxu0 0.0
        %7277 = vmatpush2.msra.mxu0 0.0
        %7278 = vmatprep.mubr.f32.mxu0 0.0
        %7279 = vmatmul.mubr.f32.gmra.mxu0 %v7209
        %v7280 = vpop.f32.mrf.mxu0
        %v7281 = vadd.f32 0.0, %v7280
        %v7282 = vpop.f32.mrf.mxu0
        %7283 = vmatprep.mubr.f32.mxu0 0.0
        %7284 = vmatmul.mubr.f32.gmra.mxu0 %v7212
        %v7285 = vpop.f32.mrf.mxu0
        %v7286 = vadd.f32 0.0, %v7285
        %v7287 = vpop.f32.mrf.mxu0
        %7288 = vdwg.mxu0
        %v7289 = vadd.f32 %v7120, %v7281
        %v7290 = vadd.f32 %v7121, %v7286
        %s7291 = scalar_lea.vmem %s4, 240
        %v7292 = vld [vmem:[%s7291] sm:$0xff]
        %v7293 = vld [vmem:[%s7291 + $0x8] sm:$0xff]
        %v7295 = vsel %vm4762, %v7292, 0
        %v7298 = vsel %vm4762, %v7293, 0
        %7300 = vmatprep.subr.mxu0 0.0
        %7301 = vmatpush1.msra.mxu0 0.0
        %7302 = vmatprep.subr.mxu0 0.0
        %7303 = vmatpush1.msra.mxu0 0.0
        %7304 = vmatprep.subr.mxu0 0.0
        %7305 = vmatpush1.msra.mxu0 0.0
        %7306 = vmatprep.subr.mxu0 0.0
        %7307 = vmatpush1.msra.mxu0 0.0
        %7308 = vmatprep.subr.mxu0 0.0
        %7309 = vmatpush1.msra.mxu0 0.0
        %7310 = vmatprep.subr.mxu0 0.0
        %7311 = vmatpush1.msra.mxu0 0.0
        %7312 = vmatprep.subr.mxu0 0.0
        %7313 = vmatpush1.msra.mxu0 0.0
        %7314 = vmatprep.subr.mxu0 0.0
        %7315 = vmatpush1.msra.mxu0 0.0
        %7316 = vmatprep.subr.mxu0 0.0
        %7317 = vmatpush1.msra.mxu0 %v4759
        %7318 = vmatprep.subr.mxu0 0.0
        %7319 = vmatpush1.msra.mxu0 %v4758
        %7320 = vmatprep.subr.mxu0 0.0
        %7321 = vmatpush1.msra.mxu0 %v4757
        %7322 = vmatprep.subr.mxu0 0.0
        %7323 = vmatpush1.msra.mxu0 %v4756
        %7324 = vmatprep.subr.mxu0 0.0
        %7325 = vmatpush1.msra.mxu0 %v4755
        %7326 = vmatprep.subr.mxu0 0.0
        %7327 = vmatpush1.msra.mxu0 %v4754
        %7328 = vmatprep.subr.mxu0 0.0
        %7329 = vmatpush1.msra.mxu0 %v4753
        %7330 = vmatprep.subr.mxu0 0.0
        %7331 = vmatpush1.msra.mxu0 %v4752
        %7332 = vmatprep.subr.mxu0 0.0
        %7333 = vmatpush2.msra.mxu0 0.0
        %7334 = vmatprep.subr.mxu0 0.0
        %7335 = vmatpush2.msra.mxu0 0.0
        %7336 = vmatprep.subr.mxu0 0.0
        %7337 = vmatpush2.msra.mxu0 0.0
        %7338 = vmatprep.subr.mxu0 0.0
        %7339 = vmatpush2.msra.mxu0 0.0
        %7340 = vmatprep.subr.mxu0 0.0
        %7341 = vmatpush2.msra.mxu0 0.0
        %7342 = vmatprep.subr.mxu0 0.0
        %7343 = vmatpush2.msra.mxu0 0.0
        %7344 = vmatprep.subr.mxu0 0.0
        %7345 = vmatpush2.msra.mxu0 0.0
        %7346 = vmatprep.subr.mxu0 0.0
        %7347 = vmatpush2.msra.mxu0 0.0
        %7348 = vmatprep.subr.mxu0 0.0
        %7349 = vmatpush2.msra.mxu0 0.0
        %7350 = vmatprep.subr.mxu0 0.0
        %7351 = vmatpush2.msra.mxu0 0.0
        %7352 = vmatprep.subr.mxu0 0.0
        %7353 = vmatpush2.msra.mxu0 0.0
        %7354 = vmatprep.subr.mxu0 0.0
        %7355 = vmatpush2.msra.mxu0 0.0
        %7356 = vmatprep.subr.mxu0 0.0
        %7357 = vmatpush2.msra.mxu0 0.0
        %7358 = vmatprep.subr.mxu0 0.0
        %7359 = vmatpush2.msra.mxu0 0.0
        %7360 = vmatprep.subr.mxu0 0.0
        %7361 = vmatpush2.msra.mxu0 0.0
        %7362 = vmatprep.subr.mxu0 0.0
        %7363 = vmatpush2.msra.mxu0 0.0
        %7364 = vmatprep.mubr.f32.mxu0 0.0
        %7365 = vmatmul.mubr.f32.gmra.mxu0 %v7295
        %v7366 = vpop.f32.mrf.mxu0
        %v7367 = vadd.f32 0.0, %v7366
        %v7368 = vpop.f32.mrf.mxu0
        %7369 = vmatprep.mubr.f32.mxu0 0.0
        %7370 = vmatmul.mubr.f32.gmra.mxu0 %v7298
        %v7371 = vpop.f32.mrf.mxu0
        %v7372 = vadd.f32 0.0, %v7371
        %v7373 = vpop.f32.mrf.mxu0
        %7374 = vdwg.mxu0
        %s7375 = scalar_lea.vmem %s5, 120
        %v7376 = vld [vmem:[%s7375] sm:$0xff]
        %v7378 = vsel %vm4931, %v7367, 0
        %v7381 = vsel %vm4931, %v7372, 0
        %7383 = vmatprep.subr.mxu0 0.0
        %7384 = vmatpush1.msra.mxu0 0.0
        %7385 = vmatprep.subr.mxu0 0.0
        %7386 = vmatpush1.msra.mxu0 0.0
        %7387 = vmatprep.subr.mxu0 0.0
        %7388 = vmatpush1.msra.mxu0 0.0
        %7389 = vmatprep.subr.mxu0 0.0
        %7390 = vmatpush1.msra.mxu0 0.0
        %7391 = vmatprep.subr.mxu0 0.0
        %7392 = vmatpush1.msra.mxu0 0.0
        %7393 = vmatprep.subr.mxu0 0.0
        %7394 = vmatpush1.msra.mxu0 0.0
        %7395 = vmatprep.subr.mxu0 0.0
        %7396 = vmatpush1.msra.mxu0 0.0
        %7397 = vmatprep.subr.mxu0 0.0
        %7398 = vmatpush1.msra.mxu0 0.0
        %7399 = vmatprep.subr.mxu0 0.0
        %7400 = vmatpush1.msra.mxu0 0.0
        %7401 = vmatprep.subr.mxu0 0.0
        %7402 = vmatpush1.msra.mxu0 0.0
        %7403 = vmatprep.subr.mxu0 0.0
        %7404 = vmatpush1.msra.mxu0 0.0
        %7405 = vmatprep.subr.mxu0 0.0
        %7406 = vmatpush1.msra.mxu0 0.0
        %7407 = vmatprep.subr.mxu0 0.0
        %7408 = vmatpush1.msra.mxu0 0.0
        %7409 = vmatprep.subr.mxu0 0.0
        %7410 = vmatpush1.msra.mxu0 0.0
        %7411 = vmatprep.subr.mxu0 0.0
        %7412 = vmatpush1.msra.mxu0 0.0
        %7413 = vmatprep.subr.mxu0 0.0
        %7414 = vmatpush1.msra.mxu0 %v7376
        %7415 = vmatprep.subr.mxu0 0.0
        %7416 = vmatpush2.msra.mxu0 0.0
        %7417 = vmatprep.subr.mxu0 0.0
        %7418 = vmatpush2.msra.mxu0 0.0
        %7419 = vmatprep.subr.mxu0 0.0
        %7420 = vmatpush2.msra.mxu0 0.0
        %7421 = vmatprep.subr.mxu0 0.0
        %7422 = vmatpush2.msra.mxu0 0.0
        %7423 = vmatprep.subr.mxu0 0.0
        %7424 = vmatpush2.msra.mxu0 0.0
        %7425 = vmatprep.subr.mxu0 0.0
        %7426 = vmatpush2.msra.mxu0 0.0
        %7427 = vmatprep.subr.mxu0 0.0
        %7428 = vmatpush2.msra.mxu0 0.0
        %7429 = vmatprep.subr.mxu0 0.0
        %7430 = vmatpush2.msra.mxu0 0.0
        %7431 = vmatprep.subr.mxu0 0.0
        %7432 = vmatpush2.msra.mxu0 0.0
        %7433 = vmatprep.subr.mxu0 0.0
        %7434 = vmatpush2.msra.mxu0 0.0
        %7435 = vmatprep.subr.mxu0 0.0
        %7436 = vmatpush2.msra.mxu0 0.0
        %7437 = vmatprep.subr.mxu0 0.0
        %7438 = vmatpush2.msra.mxu0 0.0
        %7439 = vmatprep.subr.mxu0 0.0
        %7440 = vmatpush2.msra.mxu0 0.0
        %7441 = vmatprep.subr.mxu0 0.0
        %7442 = vmatpush2.msra.mxu0 0.0
        %7443 = vmatprep.subr.mxu0 0.0
        %7444 = vmatpush2.msra.mxu0 0.0
        %7445 = vmatprep.subr.mxu0 0.0
        %7446 = vmatpush2.msra.mxu0 0.0
        %7447 = vmatprep.mubr.f32.mxu0 0.0
        %7448 = vmatmul.mubr.f32.gmra.mxu0 %v7378
        %v7449 = vpop.f32.mrf.mxu0
        %v7450 = vadd.f32 0.0, %v7449
        %v7451 = vpop.f32.mrf.mxu0
        %7452 = vmatprep.mubr.f32.mxu0 0.0
        %7453 = vmatmul.mubr.f32.gmra.mxu0 %v7381
        %v7454 = vpop.f32.mrf.mxu0
        %v7455 = vadd.f32 0.0, %v7454
        %v7456 = vpop.f32.mrf.mxu0
        %7457 = vdwg.mxu0
        %v7458 = vadd.f32 %v7289, %v7450
        %v7459 = vadd.f32 %v7290, %v7455
        %v7460 = vld [vmem:[%s6] sm:$0x1]
        %v7461 = vld [vmem:[%s7] sm:$0x1]
        %vm7462 = vcmask 130048
        %v7463 = vsel %vm7462, %v7458, 0.0
        %v7464 = vsel %vm7462, %v7459, 0.0
        %v7465 = vadd.f32 %v7463, %v7464
        %v7466 = vrot.slane %v7465, 4
        %v7467 = vadd.f32 %v7465, %v7466
        %v7468 = vrot.slane %v7467, 2
        %v7469 = vadd.f32 %v7467, %v7468
        %v7470 = vrot.slane %v7469, 1
        %v7471 = vadd.f32 %v7469, %v7470
        %v7472 = vrcp.pop 16.0
        %v7473 = vmul.f32 %v7471, %v7472
        %v7474 = vsub.f32 %v7458, %v7473
        %v7475 = vsub.f32 %v7459, %v7473
        %v7476 = vmul.f32 %v7474, %v7474
        %v7477 = vmul.f32 %v7475, %v7475
        %v7478 = vsel %vm7462, %v7476, 0.0
        %v7479 = vsel %vm7462, %v7477, 0.0
        %v7480 = vadd.f32 %v7478, %v7479
        %v7481 = vrot.slane %v7480, 4
        %v7482 = vadd.f32 %v7480, %v7481
        %v7483 = vrot.slane %v7482, 2
        %v7484 = vadd.f32 %v7482, %v7483
        %v7485 = vrot.slane %v7484, 1
        %v7486 = vadd.f32 %v7484, %v7485
        %v7487 = vmul.f32 %v7486, %v7472
        %v7488 = vadd.f32 %v7487, 1e-05
        %v7489 = vrsqrt.pop %v7488
        %v7490 = vmul.f32 %v7474, %v7489
        %v7491 = vmul.f32 %v7475, %v7489
        %v7493 = vlaneseq
        %v7494 = vshrl.u32 %v7493, 7
        %v7495 = vsub.s32 0, %v7494
        %v7496 = vrot.slane %v7460, %v7495
        %v7498 = vmul.f32 %v7490, %v7496
        %v7499 = vmul.f32 %v7491, %v7496
        %v7501 = vlaneseq
        %v7502 = vshrl.u32 %v7501, 7
        %v7503 = vsub.s32 0, %v7502
        %v7504 = vrot.slane %v7461, %v7503
        %v7506 = vadd.f32 %v7498, %v7504
        %v7507 = vadd.f32 %v7499, %v7504
        %vm7508 = vcmp.gt.f32.partialorder %v7506, 0.0
        %vm7509 = vcmp.gt.f32.partialorder %v7507, 0.0
        %v7510 = vmul.f32 %v7506, 0.2
        %v7511 = vmul.f32 %v7507, 0.2
        %v7512 = vsel %vm7508, %v7506, %v7510
        %v7513 = vsel %vm7509, %v7507, %v7511
        %v7514 = vld [vmem:[%s8] sm:$0xf]
        %v7516 = vsel %vm7462, %v7514, 0
        %7518 = vmatprep.subr.mxu0 0.0
        %7519 = vmatpush1.msra.mxu0 0.0
        %7520 = vmatprep.subr.mxu0 0.0
        %7521 = vmatpush1.msra.mxu0 0.0
        %7522 = vmatprep.subr.mxu0 0.0
        %7523 = vmatpush1.msra.mxu0 0.0
        %7524 = vmatprep.subr.mxu0 0.0
        %7525 = vmatpush1.msra.mxu0 0.0
        %7526 = vmatprep.subr.mxu0 0.0
        %7527 = vmatpush1.msra.mxu0 0.0
        %7528 = vmatprep.subr.mxu0 0.0
        %7529 = vmatpush1.msra.mxu0 0.0
        %7530 = vmatprep.subr.mxu0 0.0
        %7531 = vmatpush1.msra.mxu0 0.0
        %7532 = vmatprep.subr.mxu0 0.0
        %7533 = vmatpush1.msra.mxu0 0.0
        %7534 = vmatprep.subr.mxu0 0.0
        %7535 = vmatpush1.msra.mxu0 0.0
        %7536 = vmatprep.subr.mxu0 0.0
        %7537 = vmatpush1.msra.mxu0 0.0
        %7538 = vmatprep.subr.mxu0 0.0
        %7539 = vmatpush1.msra.mxu0 0.0
        %7540 = vmatprep.subr.mxu0 0.0
        %7541 = vmatpush1.msra.mxu0 0.0
        %7542 = vmatprep.subr.mxu0 0.0
        %7543 = vmatpush1.msra.mxu0 0.0
        %7544 = vmatprep.subr.mxu0 0.0
        %7545 = vmatpush1.msra.mxu0 0.0
        %7546 = vmatprep.subr.mxu0 0.0
        %7547 = vmatpush1.msra.mxu0 %v7513
        %7548 = vmatprep.subr.mxu0 0.0
        %7549 = vmatpush1.msra.mxu0 %v7512
        %7550 = vmatprep.subr.mxu0 0.0
        %7551 = vmatpush2.msra.mxu0 0.0
        %7552 = vmatprep.subr.mxu0 0.0
        %7553 = vmatpush2.msra.mxu0 0.0
        %7554 = vmatprep.subr.mxu0 0.0
        %7555 = vmatpush2.msra.mxu0 0.0
        %7556 = vmatprep.subr.mxu0 0.0
        %7557 = vmatpush2.msra.mxu0 0.0
        %7558 = vmatprep.subr.mxu0 0.0
        %7559 = vmatpush2.msra.mxu0 0.0
        %7560 = vmatprep.subr.mxu0 0.0
        %7561 = vmatpush2.msra.mxu0 0.0
        %7562 = vmatprep.subr.mxu0 0.0
        %7563 = vmatpush2.msra.mxu0 0.0
        %7564 = vmatprep.subr.mxu0 0.0
        %7565 = vmatpush2.msra.mxu0 0.0
        %7566 = vmatprep.subr.mxu0 0.0
        %7567 = vmatpush2.msra.mxu0 0.0
        %7568 = vmatprep.subr.mxu0 0.0
        %7569 = vmatpush2.msra.mxu0 0.0
        %7570 = vmatprep.subr.mxu0 0.0
        %7571 = vmatpush2.msra.mxu0 0.0
        %7572 = vmatprep.subr.mxu0 0.0
        %7573 = vmatpush2.msra.mxu0 0.0
        %7574 = vmatprep.subr.mxu0 0.0
        %7575 = vmatpush2.msra.mxu0 0.0
        %7576 = vmatprep.subr.mxu0 0.0
        %7577 = vmatpush2.msra.mxu0 0.0
        %7578 = vmatprep.subr.mxu0 0.0
        %7579 = vmatpush2.msra.mxu0 0.0
        %7580 = vmatprep.subr.mxu0 0.0
        %7581 = vmatpush2.msra.mxu0 0.0
        %7582 = vmatprep.mubr.f32.mxu0 0.0
        %7583 = vmatmul.mubr.f32.gmra.mxu0 %v7516
        %v7584 = vpop.f32.mrf.mxu0
        %v7585 = vadd.f32 0.0, %v7584
        %v7586 = vpop.f32.mrf.mxu0
        %7587 = vdwg.mxu0
        %v7588 = vld [vmem:[%s9] sm:$0xff]
        %v7589 = vld [vmem:[%s9 + $0x8] sm:$0xff]
        %s7590 = scalar_lea.vmem %s8, 4
        %v7591 = vld [vmem:[%s7590] sm:$0xf]
        %v7593 = vsel %vm7462, %v7591, 0
        %7595 = vmatprep.subr.mxu0 0.0
        %7596 = vmatpush1.msra.mxu0 0.0
        %7597 = vmatprep.subr.mxu0 0.0
        %7598 = vmatpush1.msra.mxu0 0.0
        %7599 = vmatprep.subr.mxu0 0.0
        %7600 = vmatpush1.msra.mxu0 0.0
        %7601 = vmatprep.subr.mxu0 0.0
        %7602 = vmatpush1.msra.mxu0 0.0
        %7603 = vmatprep.subr.mxu0 0.0
        %7604 = vmatpush1.msra.mxu0 0.0
        %7605 = vmatprep.subr.mxu0 0.0
        %7606 = vmatpush1.msra.mxu0 0.0
        %7607 = vmatprep.subr.mxu0 0.0
        %7608 = vmatpush1.msra.mxu0 0.0
        %7609 = vmatprep.subr.mxu0 0.0
        %7610 = vmatpush1.msra.mxu0 0.0
        %7611 = vmatprep.subr.mxu0 0.0
        %7612 = vmatpush1.msra.mxu0 0.0
        %7613 = vmatprep.subr.mxu0 0.0
        %7614 = vmatpush1.msra.mxu0 0.0
        %7615 = vmatprep.subr.mxu0 0.0
        %7616 = vmatpush1.msra.mxu0 0.0
        %7617 = vmatprep.subr.mxu0 0.0
        %7618 = vmatpush1.msra.mxu0 0.0
        %7619 = vmatprep.subr.mxu0 0.0
        %7620 = vmatpush1.msra.mxu0 0.0
        %7621 = vmatprep.subr.mxu0 0.0
        %7622 = vmatpush1.msra.mxu0 0.0
        %7623 = vmatprep.subr.mxu0 0.0
        %7624 = vmatpush1.msra.mxu0 %v7513
        %7625 = vmatprep.subr.mxu0 0.0
        %7626 = vmatpush1.msra.mxu0 %v7512
        %7627 = vmatprep.subr.mxu0 0.0
        %7628 = vmatpush2.msra.mxu0 0.0
        %7629 = vmatprep.subr.mxu0 0.0
        %7630 = vmatpush2.msra.mxu0 0.0
        %7631 = vmatprep.subr.mxu0 0.0
        %7632 = vmatpush2.msra.mxu0 0.0
        %7633 = vmatprep.subr.mxu0 0.0
        %7634 = vmatpush2.msra.mxu0 0.0
        %7635 = vmatprep.subr.mxu0 0.0
        %7636 = vmatpush2.msra.mxu0 0.0
        %7637 = vmatprep.subr.mxu0 0.0
        %7638 = vmatpush2.msra.mxu0 0.0
        %7639 = vmatprep.subr.mxu0 0.0
        %7640 = vmatpush2.msra.mxu0 0.0
        %7641 = vmatprep.subr.mxu0 0.0
        %7642 = vmatpush2.msra.mxu0 0.0
        %7643 = vmatprep.subr.mxu0 0.0
        %7644 = vmatpush2.msra.mxu0 0.0
        %7645 = vmatprep.subr.mxu0 0.0
        %7646 = vmatpush2.msra.mxu0 0.0
        %7647 = vmatprep.subr.mxu0 0.0
        %7648 = vmatpush2.msra.mxu0 0.0
        %7649 = vmatprep.subr.mxu0 0.0
        %7650 = vmatpush2.msra.mxu0 0.0
        %7651 = vmatprep.subr.mxu0 0.0
        %7652 = vmatpush2.msra.mxu0 0.0
        %7653 = vmatprep.subr.mxu0 0.0
        %7654 = vmatpush2.msra.mxu0 0.0
        %7655 = vmatprep.subr.mxu0 0.0
        %7656 = vmatpush2.msra.mxu0 0.0
        %7657 = vmatprep.subr.mxu0 0.0
        %7658 = vmatpush2.msra.mxu0 0.0
        %7659 = vmatprep.mubr.f32.mxu0 0.0
        %7660 = vmatmul.mubr.f32.gmra.mxu0 %v7593
        %v7661 = vpop.f32.mrf.mxu0
        %v7662 = vadd.f32 0.0, %v7661
        %v7663 = vpop.f32.mrf.mxu0
        %7664 = vdwg.mxu0
        %s7665 = scalar_lea.vmem %s9, 16
        %v7666 = vld [vmem:[%s7665] sm:$0xff]
        %v7667 = vld [vmem:[%s7665 + $0x8] sm:$0xff]
        %v7669 = vsel %vm7462, %v7662, 0
        %7671 = vmatprep.subr.mxu0 0.0
        %7672 = vmatpush1.msra.mxu0 0.0
        %7673 = vmatprep.subr.mxu0 0.0
        %7674 = vmatpush1.msra.mxu0 0.0
        %7675 = vmatprep.subr.mxu0 0.0
        %7676 = vmatpush1.msra.mxu0 0.0
        %7677 = vmatprep.subr.mxu0 0.0
        %7678 = vmatpush1.msra.mxu0 0.0
        %7679 = vmatprep.subr.mxu0 0.0
        %7680 = vmatpush1.msra.mxu0 0.0
        %7681 = vmatprep.subr.mxu0 0.0
        %7682 = vmatpush1.msra.mxu0 0.0
        %7683 = vmatprep.subr.mxu0 0.0
        %7684 = vmatpush1.msra.mxu0 0.0
        %7685 = vmatprep.subr.mxu0 0.0
        %7686 = vmatpush1.msra.mxu0 0.0
        %7687 = vmatprep.subr.mxu0 0.0
        %7688 = vmatpush1.msra.mxu0 0.0
        %7689 = vmatprep.subr.mxu0 0.0
        %7690 = vmatpush1.msra.mxu0 0.0
        %7691 = vmatprep.subr.mxu0 0.0
        %7692 = vmatpush1.msra.mxu0 0.0
        %7693 = vmatprep.subr.mxu0 0.0
        %7694 = vmatpush1.msra.mxu0 0.0
        %7695 = vmatprep.subr.mxu0 0.0
        %7696 = vmatpush1.msra.mxu0 0.0
        %7697 = vmatprep.subr.mxu0 0.0
        %7698 = vmatpush1.msra.mxu0 0.0
        %7699 = vmatprep.subr.mxu0 0.0
        %7700 = vmatpush1.msra.mxu0 %v7667
        %7701 = vmatprep.subr.mxu0 0.0
        %7702 = vmatpush1.msra.mxu0 %v7666
        %7703 = vmatprep.subr.mxu0 0.0
        %7704 = vmatpush2.msra.mxu0 0.0
        %7705 = vmatprep.subr.mxu0 0.0
        %7706 = vmatpush2.msra.mxu0 0.0
        %7707 = vmatprep.subr.mxu0 0.0
        %7708 = vmatpush2.msra.mxu0 0.0
        %7709 = vmatprep.subr.mxu0 0.0
        %7710 = vmatpush2.msra.mxu0 0.0
        %7711 = vmatprep.subr.mxu0 0.0
        %7712 = vmatpush2.msra.mxu0 0.0
        %7713 = vmatprep.subr.mxu0 0.0
        %7714 = vmatpush2.msra.mxu0 0.0
        %7715 = vmatprep.subr.mxu0 0.0
        %7716 = vmatpush2.msra.mxu0 0.0
        %7717 = vmatprep.subr.mxu0 0.0
        %7718 = vmatpush2.msra.mxu0 0.0
        %7719 = vmatprep.subr.mxu0 0.0
        %7720 = vmatpush2.msra.mxu0 0.0
        %7721 = vmatprep.subr.mxu0 0.0
        %7722 = vmatpush2.msra.mxu0 0.0
        %7723 = vmatprep.subr.mxu0 0.0
        %7724 = vmatpush2.msra.mxu0 0.0
        %7725 = vmatprep.subr.mxu0 0.0
        %7726 = vmatpush2.msra.mxu0 0.0
        %7727 = vmatprep.subr.mxu0 0.0
        %7728 = vmatpush2.msra.mxu0 0.0
        %7729 = vmatprep.subr.mxu0 0.0
        %7730 = vmatpush2.msra.mxu0 0.0
        %7731 = vmatprep.subr.mxu0 0.0
        %7732 = vmatpush2.msra.mxu0 0.0
        %7733 = vmatprep.subr.mxu0 0.0
        %7734 = vmatpush2.msra.mxu0 0.0
        %7735 = vmatprep.mubr.f32.mxu0 0.0
        %7736 = vmatmul.mubr.f32.gmra.mxu0 %v7669
        %v7737 = vpop.f32.mrf.mxu0
        %v7738 = vadd.f32 0.0, %v7737
        %v7739 = vpop.f32.mrf.mxu0
        %7740 = vdwg.mxu0
        %v7742 = vsel %vm7462, %v7585, 0
        %7744 = vmatprep.subr.mxu0 0.0
        %7745 = vmatpush1.msra.mxu0 0.0
        %7746 = vmatprep.subr.mxu0 0.0
        %7747 = vmatpush1.msra.mxu0 0.0
        %7748 = vmatprep.subr.mxu0 0.0
        %7749 = vmatpush1.msra.mxu0 0.0
        %7750 = vmatprep.subr.mxu0 0.0
        %7751 = vmatpush1.msra.mxu0 0.0
        %7752 = vmatprep.subr.mxu0 0.0
        %7753 = vmatpush1.msra.mxu0 0.0
        %7754 = vmatprep.subr.mxu0 0.0
        %7755 = vmatpush1.msra.mxu0 0.0
        %7756 = vmatprep.subr.mxu0 0.0
        %7757 = vmatpush1.msra.mxu0 0.0
        %7758 = vmatprep.subr.mxu0 0.0
        %7759 = vmatpush1.msra.mxu0 0.0
        %7760 = vmatprep.subr.mxu0 0.0
        %7761 = vmatpush1.msra.mxu0 0.0
        %7762 = vmatprep.subr.mxu0 0.0
        %7763 = vmatpush1.msra.mxu0 0.0
        %7764 = vmatprep.subr.mxu0 0.0
        %7765 = vmatpush1.msra.mxu0 0.0
        %7766 = vmatprep.subr.mxu0 0.0
        %7767 = vmatpush1.msra.mxu0 0.0
        %7768 = vmatprep.subr.mxu0 0.0
        %7769 = vmatpush1.msra.mxu0 0.0
        %7770 = vmatprep.subr.mxu0 0.0
        %7771 = vmatpush1.msra.mxu0 0.0
        %7772 = vmatprep.subr.mxu0 0.0
        %7773 = vmatpush1.msra.mxu0 %v7589
        %7774 = vmatprep.subr.mxu0 0.0
        %7775 = vmatpush1.msra.mxu0 %v7588
        %7776 = vmatprep.subr.mxu0 0.0
        %7777 = vmatpush2.msra.mxu0 0.0
        %7778 = vmatprep.subr.mxu0 0.0
        %7779 = vmatpush2.msra.mxu0 0.0
        %7780 = vmatprep.subr.mxu0 0.0
        %7781 = vmatpush2.msra.mxu0 0.0
        %7782 = vmatprep.subr.mxu0 0.0
        %7783 = vmatpush2.msra.mxu0 0.0
        %7784 = vmatprep.subr.mxu0 0.0
        %7785 = vmatpush2.msra.mxu0 0.0
        %7786 = vmatprep.subr.mxu0 0.0
        %7787 = vmatpush2.msra.mxu0 0.0
        %7788 = vmatprep.subr.mxu0 0.0
        %7789 = vmatpush2.msra.mxu0 0.0
        %7790 = vmatprep.subr.mxu0 0.0
        %7791 = vmatpush2.msra.mxu0 0.0
        %7792 = vmatprep.subr.mxu0 0.0
        %7793 = vmatpush2.msra.mxu0 0.0
        %7794 = vmatprep.subr.mxu0 0.0
        %7795 = vmatpush2.msra.mxu0 0.0
        %7796 = vmatprep.subr.mxu0 0.0
        %7797 = vmatpush2.msra.mxu0 0.0
        %7798 = vmatprep.subr.mxu0 0.0
        %7799 = vmatpush2.msra.mxu0 0.0
        %7800 = vmatprep.subr.mxu0 0.0
        %7801 = vmatpush2.msra.mxu0 0.0
        %7802 = vmatprep.subr.mxu0 0.0
        %7803 = vmatpush2.msra.mxu0 0.0
        %7804 = vmatprep.subr.mxu0 0.0
        %7805 = vmatpush2.msra.mxu0 0.0
        %7806 = vmatprep.subr.mxu0 0.0
        %7807 = vmatpush2.msra.mxu0 0.0
        %7808 = vmatprep.mubr.f32.mxu0 0.0
        %7809 = vmatmul.mubr.f32.gmra.mxu0 %v7742
        %v7810 = vpop.f32.mrf.mxu0
        %v7811 = vadd.f32 %v7738, %v7810
        %v7812 = vpop.f32.mrf.mxu0
        %7813 = vdwg.mxu0
        %s7814 = scalar_lea.vmem %s8, 8
        %v7815 = vld [vmem:[%s7814] sm:$0xf]
        %v7817 = vsel %vm7462, %v7815, 0
        %7819 = vmatprep.subr.mxu0 0.0
        %7820 = vmatpush1.msra.mxu0 0.0
        %7821 = vmatprep.subr.mxu0 0.0
        %7822 = vmatpush1.msra.mxu0 0.0
        %7823 = vmatprep.subr.mxu0 0.0
        %7824 = vmatpush1.msra.mxu0 0.0
        %7825 = vmatprep.subr.mxu0 0.0
        %7826 = vmatpush1.msra.mxu0 0.0
        %7827 = vmatprep.subr.mxu0 0.0
        %7828 = vmatpush1.msra.mxu0 0.0
        %7829 = vmatprep.subr.mxu0 0.0
        %7830 = vmatpush1.msra.mxu0 0.0
        %7831 = vmatprep.subr.mxu0 0.0
        %7832 = vmatpush1.msra.mxu0 0.0
        %7833 = vmatprep.subr.mxu0 0.0
        %7834 = vmatpush1.msra.mxu0 0.0
        %7835 = vmatprep.subr.mxu0 0.0
        %7836 = vmatpush1.msra.mxu0 0.0
        %7837 = vmatprep.subr.mxu0 0.0
        %7838 = vmatpush1.msra.mxu0 0.0
        %7839 = vmatprep.subr.mxu0 0.0
        %7840 = vmatpush1.msra.mxu0 0.0
        %7841 = vmatprep.subr.mxu0 0.0
        %7842 = vmatpush1.msra.mxu0 0.0
        %7843 = vmatprep.subr.mxu0 0.0
        %7844 = vmatpush1.msra.mxu0 0.0
        %7845 = vmatprep.subr.mxu0 0.0
        %7846 = vmatpush1.msra.mxu0 0.0
        %7847 = vmatprep.subr.mxu0 0.0
        %7848 = vmatpush1.msra.mxu0 %v7513
        %7849 = vmatprep.subr.mxu0 0.0
        %7850 = vmatpush1.msra.mxu0 %v7512
        %7851 = vmatprep.subr.mxu0 0.0
        %7852 = vmatpush2.msra.mxu0 0.0
        %7853 = vmatprep.subr.mxu0 0.0
        %7854 = vmatpush2.msra.mxu0 0.0
        %7855 = vmatprep.subr.mxu0 0.0
        %7856 = vmatpush2.msra.mxu0 0.0
        %7857 = vmatprep.subr.mxu0 0.0
        %7858 = vmatpush2.msra.mxu0 0.0
        %7859 = vmatprep.subr.mxu0 0.0
        %7860 = vmatpush2.msra.mxu0 0.0
        %7861 = vmatprep.subr.mxu0 0.0
        %7862 = vmatpush2.msra.mxu0 0.0
        %7863 = vmatprep.subr.mxu0 0.0
        %7864 = vmatpush2.msra.mxu0 0.0
        %7865 = vmatprep.subr.mxu0 0.0
        %7866 = vmatpush2.msra.mxu0 0.0
        %7867 = vmatprep.subr.mxu0 0.0
        %7868 = vmatpush2.msra.mxu0 0.0
        %7869 = vmatprep.subr.mxu0 0.0
        %7870 = vmatpush2.msra.mxu0 0.0
        %7871 = vmatprep.subr.mxu0 0.0
        %7872 = vmatpush2.msra.mxu0 0.0
        %7873 = vmatprep.subr.mxu0 0.0
        %7874 = vmatpush2.msra.mxu0 0.0
        %7875 = vmatprep.subr.mxu0 0.0
        %7876 = vmatpush2.msra.mxu0 0.0
        %7877 = vmatprep.subr.mxu0 0.0
        %7878 = vmatpush2.msra.mxu0 0.0
        %7879 = vmatprep.subr.mxu0 0.0
        %7880 = vmatpush2.msra.mxu0 0.0
        %7881 = vmatprep.subr.mxu0 0.0
        %7882 = vmatpush2.msra.mxu0 0.0
        %7883 = vmatprep.mubr.f32.mxu0 0.0
        %7884 = vmatmul.mubr.f32.gmra.mxu0 %v7817
        %v7885 = vpop.f32.mrf.mxu0
        %v7886 = vadd.f32 0.0, %v7885
        %v7887 = vpop.f32.mrf.mxu0
        %7888 = vdwg.mxu0
        %s7889 = scalar_lea.vmem %s9, 32
        %v7890 = vld [vmem:[%s7889] sm:$0xff]
        %v7891 = vld [vmem:[%s7889 + $0x8] sm:$0xff]
        %v7893 = vsel %vm7462, %v7886, 0
        %7895 = vmatprep.subr.mxu0 0.0
        %7896 = vmatpush1.msra.mxu0 0.0
        %7897 = vmatprep.subr.mxu0 0.0
        %7898 = vmatpush1.msra.mxu0 0.0
        %7899 = vmatprep.subr.mxu0 0.0
        %7900 = vmatpush1.msra.mxu0 0.0
        %7901 = vmatprep.subr.mxu0 0.0
        %7902 = vmatpush1.msra.mxu0 0.0
        %7903 = vmatprep.subr.mxu0 0.0
        %7904 = vmatpush1.msra.mxu0 0.0
        %7905 = vmatprep.subr.mxu0 0.0
        %7906 = vmatpush1.msra.mxu0 0.0
        %7907 = vmatprep.subr.mxu0 0.0
        %7908 = vmatpush1.msra.mxu0 0.0
        %7909 = vmatprep.subr.mxu0 0.0
        %7910 = vmatpush1.msra.mxu0 0.0
        %7911 = vmatprep.subr.mxu0 0.0
        %7912 = vmatpush1.msra.mxu0 0.0
        %7913 = vmatprep.subr.mxu0 0.0
        %7914 = vmatpush1.msra.mxu0 0.0
        %7915 = vmatprep.subr.mxu0 0.0
        %7916 = vmatpush1.msra.mxu0 0.0
        %7917 = vmatprep.subr.mxu0 0.0
        %7918 = vmatpush1.msra.mxu0 0.0
        %7919 = vmatprep.subr.mxu0 0.0
        %7920 = vmatpush1.msra.mxu0 0.0
        %7921 = vmatprep.subr.mxu0 0.0
        %7922 = vmatpush1.msra.mxu0 0.0
        %7923 = vmatprep.subr.mxu0 0.0
        %7924 = vmatpush1.msra.mxu0 %v7891
        %7925 = vmatprep.subr.mxu0 0.0
        %7926 = vmatpush1.msra.mxu0 %v7890
        %7927 = vmatprep.subr.mxu0 0.0
        %7928 = vmatpush2.msra.mxu0 0.0
        %7929 = vmatprep.subr.mxu0 0.0
        %7930 = vmatpush2.msra.mxu0 0.0
        %7931 = vmatprep.subr.mxu0 0.0
        %7932 = vmatpush2.msra.mxu0 0.0
        %7933 = vmatprep.subr.mxu0 0.0
        %7934 = vmatpush2.msra.mxu0 0.0
        %7935 = vmatprep.subr.mxu0 0.0
        %7936 = vmatpush2.msra.mxu0 0.0
        %7937 = vmatprep.subr.mxu0 0.0
        %7938 = vmatpush2.msra.mxu0 0.0
        %7939 = vmatprep.subr.mxu0 0.0
        %7940 = vmatpush2.msra.mxu0 0.0
        %7941 = vmatprep.subr.mxu0 0.0
        %7942 = vmatpush2.msra.mxu0 0.0
        %7943 = vmatprep.subr.mxu0 0.0
        %7944 = vmatpush2.msra.mxu0 0.0
        %7945 = vmatprep.subr.mxu0 0.0
        %7946 = vmatpush2.msra.mxu0 0.0
        %7947 = vmatprep.subr.mxu0 0.0
        %7948 = vmatpush2.msra.mxu0 0.0
        %7949 = vmatprep.subr.mxu0 0.0
        %7950 = vmatpush2.msra.mxu0 0.0
        %7951 = vmatprep.subr.mxu0 0.0
        %7952 = vmatpush2.msra.mxu0 0.0
        %7953 = vmatprep.subr.mxu0 0.0
        %7954 = vmatpush2.msra.mxu0 0.0
        %7955 = vmatprep.subr.mxu0 0.0
        %7956 = vmatpush2.msra.mxu0 0.0
        %7957 = vmatprep.subr.mxu0 0.0
        %7958 = vmatpush2.msra.mxu0 0.0
        %7959 = vmatprep.mubr.f32.mxu0 0.0
        %7960 = vmatmul.mubr.f32.gmra.mxu0 %v7893
        %v7961 = vpop.f32.mrf.mxu0
        %v7962 = vadd.f32 0.0, %v7961
        %v7963 = vpop.f32.mrf.mxu0
        %7964 = vdwg.mxu0
        %v7965 = vadd.f32 %v7811, %v7962
        %s7966 = scalar_lea.vmem %s8, 12
        %v7967 = vld [vmem:[%s7966] sm:$0xf]
        %v7969 = vsel %vm7462, %v7967, 0
        %7971 = vmatprep.subr.mxu0 0.0
        %7972 = vmatpush1.msra.mxu0 0.0
        %7973 = vmatprep.subr.mxu0 0.0
        %7974 = vmatpush1.msra.mxu0 0.0
        %7975 = vmatprep.subr.mxu0 0.0
        %7976 = vmatpush1.msra.mxu0 0.0
        %7977 = vmatprep.subr.mxu0 0.0
        %7978 = vmatpush1.msra.mxu0 0.0
        %7979 = vmatprep.subr.mxu0 0.0
        %7980 = vmatpush1.msra.mxu0 0.0
        %7981 = vmatprep.subr.mxu0 0.0
        %7982 = vmatpush1.msra.mxu0 0.0
        %7983 = vmatprep.subr.mxu0 0.0
        %7984 = vmatpush1.msra.mxu0 0.0
        %7985 = vmatprep.subr.mxu0 0.0
        %7986 = vmatpush1.msra.mxu0 0.0
        %7987 = vmatprep.subr.mxu0 0.0
        %7988 = vmatpush1.msra.mxu0 0.0
        %7989 = vmatprep.subr.mxu0 0.0
        %7990 = vmatpush1.msra.mxu0 0.0
        %7991 = vmatprep.subr.mxu0 0.0
        %7992 = vmatpush1.msra.mxu0 0.0
        %7993 = vmatprep.subr.mxu0 0.0
        %7994 = vmatpush1.msra.mxu0 0.0
        %7995 = vmatprep.subr.mxu0 0.0
        %7996 = vmatpush1.msra.mxu0 0.0
        %7997 = vmatprep.subr.mxu0 0.0
        %7998 = vmatpush1.msra.mxu0 0.0
        %7999 = vmatprep.subr.mxu0 0.0
        %8000 = vmatpush1.msra.mxu0 %v7513
        %8001 = vmatprep.subr.mxu0 0.0
        %8002 = vmatpush1.msra.mxu0 %v7512
        %8003 = vmatprep.subr.mxu0 0.0
        %8004 = vmatpush2.msra.mxu0 0.0
        %8005 = vmatprep.subr.mxu0 0.0
        %8006 = vmatpush2.msra.mxu0 0.0
        %8007 = vmatprep.subr.mxu0 0.0
        %8008 = vmatpush2.msra.mxu0 0.0
        %8009 = vmatprep.subr.mxu0 0.0
        %8010 = vmatpush2.msra.mxu0 0.0
        %8011 = vmatprep.subr.mxu0 0.0
        %8012 = vmatpush2.msra.mxu0 0.0
        %8013 = vmatprep.subr.mxu0 0.0
        %8014 = vmatpush2.msra.mxu0 0.0
        %8015 = vmatprep.subr.mxu0 0.0
        %8016 = vmatpush2.msra.mxu0 0.0
        %8017 = vmatprep.subr.mxu0 0.0
        %8018 = vmatpush2.msra.mxu0 0.0
        %8019 = vmatprep.subr.mxu0 0.0
        %8020 = vmatpush2.msra.mxu0 0.0
        %8021 = vmatprep.subr.mxu0 0.0
        %8022 = vmatpush2.msra.mxu0 0.0
        %8023 = vmatprep.subr.mxu0 0.0
        %8024 = vmatpush2.msra.mxu0 0.0
        %8025 = vmatprep.subr.mxu0 0.0
        %8026 = vmatpush2.msra.mxu0 0.0
        %8027 = vmatprep.subr.mxu0 0.0
        %8028 = vmatpush2.msra.mxu0 0.0
        %8029 = vmatprep.subr.mxu0 0.0
        %8030 = vmatpush2.msra.mxu0 0.0
        %8031 = vmatprep.subr.mxu0 0.0
        %8032 = vmatpush2.msra.mxu0 0.0
        %8033 = vmatprep.subr.mxu0 0.0
        %8034 = vmatpush2.msra.mxu0 0.0
        %8035 = vmatprep.mubr.f32.mxu0 0.0
        %8036 = vmatmul.mubr.f32.gmra.mxu0 %v7969
        %v8037 = vpop.f32.mrf.mxu0
        %v8038 = vadd.f32 0.0, %v8037
        %v8039 = vpop.f32.mrf.mxu0
        %8040 = vdwg.mxu0
        %s8041 = scalar_lea.vmem %s9, 48
        %v8042 = vld [vmem:[%s8041] sm:$0xff]
        %v8043 = vld [vmem:[%s8041 + $0x8] sm:$0xff]
        %v8045 = vsel %vm7462, %v8038, 0
        %8047 = vmatprep.subr.mxu0 0.0
        %8048 = vmatpush1.msra.mxu0 0.0
        %8049 = vmatprep.subr.mxu0 0.0
        %8050 = vmatpush1.msra.mxu0 0.0
        %8051 = vmatprep.subr.mxu0 0.0
        %8052 = vmatpush1.msra.mxu0 0.0
        %8053 = vmatprep.subr.mxu0 0.0
        %8054 = vmatpush1.msra.mxu0 0.0
        %8055 = vmatprep.subr.mxu0 0.0
        %8056 = vmatpush1.msra.mxu0 0.0
        %8057 = vmatprep.subr.mxu0 0.0
        %8058 = vmatpush1.msra.mxu0 0.0
        %8059 = vmatprep.subr.mxu0 0.0
        %8060 = vmatpush1.msra.mxu0 0.0
        %8061 = vmatprep.subr.mxu0 0.0
        %8062 = vmatpush1.msra.mxu0 0.0
        %8063 = vmatprep.subr.mxu0 0.0
        %8064 = vmatpush1.msra.mxu0 0.0
        %8065 = vmatprep.subr.mxu0 0.0
        %8066 = vmatpush1.msra.mxu0 0.0
        %8067 = vmatprep.subr.mxu0 0.0
        %8068 = vmatpush1.msra.mxu0 0.0
        %8069 = vmatprep.subr.mxu0 0.0
        %8070 = vmatpush1.msra.mxu0 0.0
        %8071 = vmatprep.subr.mxu0 0.0
        %8072 = vmatpush1.msra.mxu0 0.0
        %8073 = vmatprep.subr.mxu0 0.0
        %8074 = vmatpush1.msra.mxu0 0.0
        %8075 = vmatprep.subr.mxu0 0.0
        %8076 = vmatpush1.msra.mxu0 %v8043
        %8077 = vmatprep.subr.mxu0 0.0
        %8078 = vmatpush1.msra.mxu0 %v8042
        %8079 = vmatprep.subr.mxu0 0.0
        %8080 = vmatpush2.msra.mxu0 0.0
        %8081 = vmatprep.subr.mxu0 0.0
        %8082 = vmatpush2.msra.mxu0 0.0
        %8083 = vmatprep.subr.mxu0 0.0
        %8084 = vmatpush2.msra.mxu0 0.0
        %8085 = vmatprep.subr.mxu0 0.0
        %8086 = vmatpush2.msra.mxu0 0.0
        %8087 = vmatprep.subr.mxu0 0.0
        %8088 = vmatpush2.msra.mxu0 0.0
        %8089 = vmatprep.subr.mxu0 0.0
        %8090 = vmatpush2.msra.mxu0 0.0
        %8091 = vmatprep.subr.mxu0 0.0
        %8092 = vmatpush2.msra.mxu0 0.0
        %8093 = vmatprep.subr.mxu0 0.0
        %8094 = vmatpush2.msra.mxu0 0.0
        %8095 = vmatprep.subr.mxu0 0.0
        %8096 = vmatpush2.msra.mxu0 0.0
        %8097 = vmatprep.subr.mxu0 0.0
        %8098 = vmatpush2.msra.mxu0 0.0
        %8099 = vmatprep.subr.mxu0 0.0
        %8100 = vmatpush2.msra.mxu0 0.0
        %8101 = vmatprep.subr.mxu0 0.0
        %8102 = vmatpush2.msra.mxu0 0.0
        %8103 = vmatprep.subr.mxu0 0.0
        %8104 = vmatpush2.msra.mxu0 0.0
        %8105 = vmatprep.subr.mxu0 0.0
        %8106 = vmatpush2.msra.mxu0 0.0
        %8107 = vmatprep.subr.mxu0 0.0
        %8108 = vmatpush2.msra.mxu0 0.0
        %8109 = vmatprep.subr.mxu0 0.0
        %8110 = vmatpush2.msra.mxu0 0.0
        %8111 = vmatprep.mubr.f32.mxu0 0.0
        %8112 = vmatmul.mubr.f32.gmra.mxu0 %v8045
        %v8113 = vpop.f32.mrf.mxu0
        %v8114 = vadd.f32 0.0, %v8113
        %v8115 = vpop.f32.mrf.mxu0
        %8116 = vdwg.mxu0
        %v8117 = vadd.f32 %v7965, %v8114
        %s8118 = scalar_lea.vmem %s8, 16
        %v8119 = vld [vmem:[%s8118] sm:$0xf]
        %v8121 = vsel %vm7462, %v8119, 0
        %8123 = vmatprep.subr.mxu0 0.0
        %8124 = vmatpush1.msra.mxu0 0.0
        %8125 = vmatprep.subr.mxu0 0.0
        %8126 = vmatpush1.msra.mxu0 0.0
        %8127 = vmatprep.subr.mxu0 0.0
        %8128 = vmatpush1.msra.mxu0 0.0
        %8129 = vmatprep.subr.mxu0 0.0
        %8130 = vmatpush1.msra.mxu0 0.0
        %8131 = vmatprep.subr.mxu0 0.0
        %8132 = vmatpush1.msra.mxu0 0.0
        %8133 = vmatprep.subr.mxu0 0.0
        %8134 = vmatpush1.msra.mxu0 0.0
        %8135 = vmatprep.subr.mxu0 0.0
        %8136 = vmatpush1.msra.mxu0 0.0
        %8137 = vmatprep.subr.mxu0 0.0
        %8138 = vmatpush1.msra.mxu0 0.0
        %8139 = vmatprep.subr.mxu0 0.0
        %8140 = vmatpush1.msra.mxu0 0.0
        %8141 = vmatprep.subr.mxu0 0.0
        %8142 = vmatpush1.msra.mxu0 0.0
        %8143 = vmatprep.subr.mxu0 0.0
        %8144 = vmatpush1.msra.mxu0 0.0
        %8145 = vmatprep.subr.mxu0 0.0
        %8146 = vmatpush1.msra.mxu0 0.0
        %8147 = vmatprep.subr.mxu0 0.0
        %8148 = vmatpush1.msra.mxu0 0.0
        %8149 = vmatprep.subr.mxu0 0.0
        %8150 = vmatpush1.msra.mxu0 0.0
        %8151 = vmatprep.subr.mxu0 0.0
        %8152 = vmatpush1.msra.mxu0 %v7513
        %8153 = vmatprep.subr.mxu0 0.0
        %8154 = vmatpush1.msra.mxu0 %v7512
        %8155 = vmatprep.subr.mxu0 0.0
        %8156 = vmatpush2.msra.mxu0 0.0
        %8157 = vmatprep.subr.mxu0 0.0
        %8158 = vmatpush2.msra.mxu0 0.0
        %8159 = vmatprep.subr.mxu0 0.0
        %8160 = vmatpush2.msra.mxu0 0.0
        %8161 = vmatprep.subr.mxu0 0.0
        %8162 = vmatpush2.msra.mxu0 0.0
        %8163 = vmatprep.subr.mxu0 0.0
        %8164 = vmatpush2.msra.mxu0 0.0
        %8165 = vmatprep.subr.mxu0 0.0
        %8166 = vmatpush2.msra.mxu0 0.0
        %8167 = vmatprep.subr.mxu0 0.0
        %8168 = vmatpush2.msra.mxu0 0.0
        %8169 = vmatprep.subr.mxu0 0.0
        %8170 = vmatpush2.msra.mxu0 0.0
        %8171 = vmatprep.subr.mxu0 0.0
        %8172 = vmatpush2.msra.mxu0 0.0
        %8173 = vmatprep.subr.mxu0 0.0
        %8174 = vmatpush2.msra.mxu0 0.0
        %8175 = vmatprep.subr.mxu0 0.0
        %8176 = vmatpush2.msra.mxu0 0.0
        %8177 = vmatprep.subr.mxu0 0.0
        %8178 = vmatpush2.msra.mxu0 0.0
        %8179 = vmatprep.subr.mxu0 0.0
        %8180 = vmatpush2.msra.mxu0 0.0
        %8181 = vmatprep.subr.mxu0 0.0
        %8182 = vmatpush2.msra.mxu0 0.0
        %8183 = vmatprep.subr.mxu0 0.0
        %8184 = vmatpush2.msra.mxu0 0.0
        %8185 = vmatprep.subr.mxu0 0.0
        %8186 = vmatpush2.msra.mxu0 0.0
        %8187 = vmatprep.mubr.f32.mxu0 0.0
        %8188 = vmatmul.mubr.f32.gmra.mxu0 %v8121
        %v8189 = vpop.f32.mrf.mxu0
        %v8190 = vadd.f32 0.0, %v8189
        %v8191 = vpop.f32.mrf.mxu0
        %8192 = vdwg.mxu0
        %s8193 = scalar_lea.vmem %s9, 64
        %v8194 = vld [vmem:[%s8193] sm:$0xff]
        %v8195 = vld [vmem:[%s8193 + $0x8] sm:$0xff]
        %v8197 = vsel %vm7462, %v8190, 0
        %8199 = vmatprep.subr.mxu0 0.0
        %8200 = vmatpush1.msra.mxu0 0.0
        %8201 = vmatprep.subr.mxu0 0.0
        %8202 = vmatpush1.msra.mxu0 0.0
        %8203 = vmatprep.subr.mxu0 0.0
        %8204 = vmatpush1.msra.mxu0 0.0
        %8205 = vmatprep.subr.mxu0 0.0
        %8206 = vmatpush1.msra.mxu0 0.0
        %8207 = vmatprep.subr.mxu0 0.0
        %8208 = vmatpush1.msra.mxu0 0.0
        %8209 = vmatprep.subr.mxu0 0.0
        %8210 = vmatpush1.msra.mxu0 0.0
        %8211 = vmatprep.subr.mxu0 0.0
        %8212 = vmatpush1.msra.mxu0 0.0
        %8213 = vmatprep.subr.mxu0 0.0
        %8214 = vmatpush1.msra.mxu0 0.0
        %8215 = vmatprep.subr.mxu0 0.0
        %8216 = vmatpush1.msra.mxu0 0.0
        %8217 = vmatprep.subr.mxu0 0.0
        %8218 = vmatpush1.msra.mxu0 0.0
        %8219 = vmatprep.subr.mxu0 0.0
        %8220 = vmatpush1.msra.mxu0 0.0
        %8221 = vmatprep.subr.mxu0 0.0
        %8222 = vmatpush1.msra.mxu0 0.0
        %8223 = vmatprep.subr.mxu0 0.0
        %8224 = vmatpush1.msra.mxu0 0.0
        %8225 = vmatprep.subr.mxu0 0.0
        %8226 = vmatpush1.msra.mxu0 0.0
        %8227 = vmatprep.subr.mxu0 0.0
        %8228 = vmatpush1.msra.mxu0 %v8195
        %8229 = vmatprep.subr.mxu0 0.0
        %8230 = vmatpush1.msra.mxu0 %v8194
        %8231 = vmatprep.subr.mxu0 0.0
        %8232 = vmatpush2.msra.mxu0 0.0
        %8233 = vmatprep.subr.mxu0 0.0
        %8234 = vmatpush2.msra.mxu0 0.0
        %8235 = vmatprep.subr.mxu0 0.0
        %8236 = vmatpush2.msra.mxu0 0.0
        %8237 = vmatprep.subr.mxu0 0.0
        %8238 = vmatpush2.msra.mxu0 0.0
        %8239 = vmatprep.subr.mxu0 0.0
        %8240 = vmatpush2.msra.mxu0 0.0
        %8241 = vmatprep.subr.mxu0 0.0
        %8242 = vmatpush2.msra.mxu0 0.0
        %8243 = vmatprep.subr.mxu0 0.0
        %8244 = vmatpush2.msra.mxu0 0.0
        %8245 = vmatprep.subr.mxu0 0.0
        %8246 = vmatpush2.msra.mxu0 0.0
        %8247 = vmatprep.subr.mxu0 0.0
        %8248 = vmatpush2.msra.mxu0 0.0
        %8249 = vmatprep.subr.mxu0 0.0
        %8250 = vmatpush2.msra.mxu0 0.0
        %8251 = vmatprep.subr.mxu0 0.0
        %8252 = vmatpush2.msra.mxu0 0.0
        %8253 = vmatprep.subr.mxu0 0.0
        %8254 = vmatpush2.msra.mxu0 0.0
        %8255 = vmatprep.subr.mxu0 0.0
        %8256 = vmatpush2.msra.mxu0 0.0
        %8257 = vmatprep.subr.mxu0 0.0
        %8258 = vmatpush2.msra.mxu0 0.0
        %8259 = vmatprep.subr.mxu0 0.0
        %8260 = vmatpush2.msra.mxu0 0.0
        %8261 = vmatprep.subr.mxu0 0.0
        %8262 = vmatpush2.msra.mxu0 0.0
        %8263 = vmatprep.mubr.f32.mxu0 0.0
        %8264 = vmatmul.mubr.f32.gmra.mxu0 %v8197
        %v8265 = vpop.f32.mrf.mxu0
        %v8266 = vadd.f32 0.0, %v8265
        %v8267 = vpop.f32.mrf.mxu0
        %8268 = vdwg.mxu0
        %v8269 = vadd.f32 %v8117, %v8266
        %s8270 = scalar_lea.vmem %s8, 20
        %v8271 = vld [vmem:[%s8270] sm:$0xf]
        %v8273 = vsel %vm7462, %v8271, 0
        %8275 = vmatprep.subr.mxu0 0.0
        %8276 = vmatpush1.msra.mxu0 0.0
        %8277 = vmatprep.subr.mxu0 0.0
        %8278 = vmatpush1.msra.mxu0 0.0
        %8279 = vmatprep.subr.mxu0 0.0
        %8280 = vmatpush1.msra.mxu0 0.0
        %8281 = vmatprep.subr.mxu0 0.0
        %8282 = vmatpush1.msra.mxu0 0.0
        %8283 = vmatprep.subr.mxu0 0.0
        %8284 = vmatpush1.msra.mxu0 0.0
        %8285 = vmatprep.subr.mxu0 0.0
        %8286 = vmatpush1.msra.mxu0 0.0
        %8287 = vmatprep.subr.mxu0 0.0
        %8288 = vmatpush1.msra.mxu0 0.0
        %8289 = vmatprep.subr.mxu0 0.0
        %8290 = vmatpush1.msra.mxu0 0.0
        %8291 = vmatprep.subr.mxu0 0.0
        %8292 = vmatpush1.msra.mxu0 0.0
        %8293 = vmatprep.subr.mxu0 0.0
        %8294 = vmatpush1.msra.mxu0 0.0
        %8295 = vmatprep.subr.mxu0 0.0
        %8296 = vmatpush1.msra.mxu0 0.0
        %8297 = vmatprep.subr.mxu0 0.0
        %8298 = vmatpush1.msra.mxu0 0.0
        %8299 = vmatprep.subr.mxu0 0.0
        %8300 = vmatpush1.msra.mxu0 0.0
        %8301 = vmatprep.subr.mxu0 0.0
        %8302 = vmatpush1.msra.mxu0 0.0
        %8303 = vmatprep.subr.mxu0 0.0
        %8304 = vmatpush1.msra.mxu0 %v7513
        %8305 = vmatprep.subr.mxu0 0.0
        %8306 = vmatpush1.msra.mxu0 %v7512
        %8307 = vmatprep.subr.mxu0 0.0
        %8308 = vmatpush2.msra.mxu0 0.0
        %8309 = vmatprep.subr.mxu0 0.0
        %8310 = vmatpush2.msra.mxu0 0.0
        %8311 = vmatprep.subr.mxu0 0.0
        %8312 = vmatpush2.msra.mxu0 0.0
        %8313 = vmatprep.subr.mxu0 0.0
        %8314 = vmatpush2.msra.mxu0 0.0
        %8315 = vmatprep.subr.mxu0 0.0
        %8316 = vmatpush2.msra.mxu0 0.0
        %8317 = vmatprep.subr.mxu0 0.0
        %8318 = vmatpush2.msra.mxu0 0.0
        %8319 = vmatprep.subr.mxu0 0.0
        %8320 = vmatpush2.msra.mxu0 0.0
        %8321 = vmatprep.subr.mxu0 0.0
        %8322 = vmatpush2.msra.mxu0 0.0
        %8323 = vmatprep.subr.mxu0 0.0
        %8324 = vmatpush2.msra.mxu0 0.0
        %8325 = vmatprep.subr.mxu0 0.0
        %8326 = vmatpush2.msra.mxu0 0.0
        %8327 = vmatprep.subr.mxu0 0.0
        %8328 = vmatpush2.msra.mxu0 0.0
        %8329 = vmatprep.subr.mxu0 0.0
        %8330 = vmatpush2.msra.mxu0 0.0
        %8331 = vmatprep.subr.mxu0 0.0
        %8332 = vmatpush2.msra.mxu0 0.0
        %8333 = vmatprep.subr.mxu0 0.0
        %8334 = vmatpush2.msra.mxu0 0.0
        %8335 = vmatprep.subr.mxu0 0.0
        %8336 = vmatpush2.msra.mxu0 0.0
        %8337 = vmatprep.subr.mxu0 0.0
        %8338 = vmatpush2.msra.mxu0 0.0
        %8339 = vmatprep.mubr.f32.mxu0 0.0
        %8340 = vmatmul.mubr.f32.gmra.mxu0 %v8273
        %v8341 = vpop.f32.mrf.mxu0
        %v8342 = vadd.f32 0.0, %v8341
        %v8343 = vpop.f32.mrf.mxu0
        %8344 = vdwg.mxu0
        %s8345 = scalar_lea.vmem %s9, 80
        %v8346 = vld [vmem:[%s8345] sm:$0xff]
        %v8347 = vld [vmem:[%s8345 + $0x8] sm:$0xff]
        %v8349 = vsel %vm7462, %v8342, 0
        %8351 = vmatprep.subr.mxu0 0.0
        %8352 = vmatpush1.msra.mxu0 0.0
        %8353 = vmatprep.subr.mxu0 0.0
        %8354 = vmatpush1.msra.mxu0 0.0
        %8355 = vmatprep.subr.mxu0 0.0
        %8356 = vmatpush1.msra.mxu0 0.0
        %8357 = vmatprep.subr.mxu0 0.0
        %8358 = vmatpush1.msra.mxu0 0.0
        %8359 = vmatprep.subr.mxu0 0.0
        %8360 = vmatpush1.msra.mxu0 0.0
        %8361 = vmatprep.subr.mxu0 0.0
        %8362 = vmatpush1.msra.mxu0 0.0
        %8363 = vmatprep.subr.mxu0 0.0
        %8364 = vmatpush1.msra.mxu0 0.0
        %8365 = vmatprep.subr.mxu0 0.0
        %8366 = vmatpush1.msra.mxu0 0.0
        %8367 = vmatprep.subr.mxu0 0.0
        %8368 = vmatpush1.msra.mxu0 0.0
        %8369 = vmatprep.subr.mxu0 0.0
        %8370 = vmatpush1.msra.mxu0 0.0
        %8371 = vmatprep.subr.mxu0 0.0
        %8372 = vmatpush1.msra.mxu0 0.0
        %8373 = vmatprep.subr.mxu0 0.0
        %8374 = vmatpush1.msra.mxu0 0.0
        %8375 = vmatprep.subr.mxu0 0.0
        %8376 = vmatpush1.msra.mxu0 0.0
        %8377 = vmatprep.subr.mxu0 0.0
        %8378 = vmatpush1.msra.mxu0 0.0
        %8379 = vmatprep.subr.mxu0 0.0
        %8380 = vmatpush1.msra.mxu0 %v8347
        %8381 = vmatprep.subr.mxu0 0.0
        %8382 = vmatpush1.msra.mxu0 %v8346
        %8383 = vmatprep.subr.mxu0 0.0
        %8384 = vmatpush2.msra.mxu0 0.0
        %8385 = vmatprep.subr.mxu0 0.0
        %8386 = vmatpush2.msra.mxu0 0.0
        %8387 = vmatprep.subr.mxu0 0.0
        %8388 = vmatpush2.msra.mxu0 0.0
        %8389 = vmatprep.subr.mxu0 0.0
        %8390 = vmatpush2.msra.mxu0 0.0
        %8391 = vmatprep.subr.mxu0 0.0
        %8392 = vmatpush2.msra.mxu0 0.0
        %8393 = vmatprep.subr.mxu0 0.0
        %8394 = vmatpush2.msra.mxu0 0.0
        %8395 = vmatprep.subr.mxu0 0.0
        %8396 = vmatpush2.msra.mxu0 0.0
        %8397 = vmatprep.subr.mxu0 0.0
        %8398 = vmatpush2.msra.mxu0 0.0
        %8399 = vmatprep.subr.mxu0 0.0
        %8400 = vmatpush2.msra.mxu0 0.0
        %8401 = vmatprep.subr.mxu0 0.0
        %8402 = vmatpush2.msra.mxu0 0.0
        %8403 = vmatprep.subr.mxu0 0.0
        %8404 = vmatpush2.msra.mxu0 0.0
        %8405 = vmatprep.subr.mxu0 0.0
        %8406 = vmatpush2.msra.mxu0 0.0
        %8407 = vmatprep.subr.mxu0 0.0
        %8408 = vmatpush2.msra.mxu0 0.0
        %8409 = vmatprep.subr.mxu0 0.0
        %8410 = vmatpush2.msra.mxu0 0.0
        %8411 = vmatprep.subr.mxu0 0.0
        %8412 = vmatpush2.msra.mxu0 0.0
        %8413 = vmatprep.subr.mxu0 0.0
        %8414 = vmatpush2.msra.mxu0 0.0
        %8415 = vmatprep.mubr.f32.mxu0 0.0
        %8416 = vmatmul.mubr.f32.gmra.mxu0 %v8349
        %v8417 = vpop.f32.mrf.mxu0
        %v8418 = vadd.f32 0.0, %v8417
        %v8419 = vpop.f32.mrf.mxu0
        %8420 = vdwg.mxu0
        %v8421 = vadd.f32 %v8269, %v8418
        %s8422 = scalar_lea.vmem %s8, 24
        %v8423 = vld [vmem:[%s8422] sm:$0xf]
        %v8425 = vsel %vm7462, %v8423, 0
        %8427 = vmatprep.subr.mxu0 0.0
        %8428 = vmatpush1.msra.mxu0 0.0
        %8429 = vmatprep.subr.mxu0 0.0
        %8430 = vmatpush1.msra.mxu0 0.0
        %8431 = vmatprep.subr.mxu0 0.0
        %8432 = vmatpush1.msra.mxu0 0.0
        %8433 = vmatprep.subr.mxu0 0.0
        %8434 = vmatpush1.msra.mxu0 0.0
        %8435 = vmatprep.subr.mxu0 0.0
        %8436 = vmatpush1.msra.mxu0 0.0
        %8437 = vmatprep.subr.mxu0 0.0
        %8438 = vmatpush1.msra.mxu0 0.0
        %8439 = vmatprep.subr.mxu0 0.0
        %8440 = vmatpush1.msra.mxu0 0.0
        %8441 = vmatprep.subr.mxu0 0.0
        %8442 = vmatpush1.msra.mxu0 0.0
        %8443 = vmatprep.subr.mxu0 0.0
        %8444 = vmatpush1.msra.mxu0 0.0
        %8445 = vmatprep.subr.mxu0 0.0
        %8446 = vmatpush1.msra.mxu0 0.0
        %8447 = vmatprep.subr.mxu0 0.0
        %8448 = vmatpush1.msra.mxu0 0.0
        %8449 = vmatprep.subr.mxu0 0.0
        %8450 = vmatpush1.msra.mxu0 0.0
        %8451 = vmatprep.subr.mxu0 0.0
        %8452 = vmatpush1.msra.mxu0 0.0
        %8453 = vmatprep.subr.mxu0 0.0
        %8454 = vmatpush1.msra.mxu0 0.0
        %8455 = vmatprep.subr.mxu0 0.0
        %8456 = vmatpush1.msra.mxu0 %v7513
        %8457 = vmatprep.subr.mxu0 0.0
        %8458 = vmatpush1.msra.mxu0 %v7512
        %8459 = vmatprep.subr.mxu0 0.0
        %8460 = vmatpush2.msra.mxu0 0.0
        %8461 = vmatprep.subr.mxu0 0.0
        %8462 = vmatpush2.msra.mxu0 0.0
        %8463 = vmatprep.subr.mxu0 0.0
        %8464 = vmatpush2.msra.mxu0 0.0
        %8465 = vmatprep.subr.mxu0 0.0
        %8466 = vmatpush2.msra.mxu0 0.0
        %8467 = vmatprep.subr.mxu0 0.0
        %8468 = vmatpush2.msra.mxu0 0.0
        %8469 = vmatprep.subr.mxu0 0.0
        %8470 = vmatpush2.msra.mxu0 0.0
        %8471 = vmatprep.subr.mxu0 0.0
        %8472 = vmatpush2.msra.mxu0 0.0
        %8473 = vmatprep.subr.mxu0 0.0
        %8474 = vmatpush2.msra.mxu0 0.0
        %8475 = vmatprep.subr.mxu0 0.0
        %8476 = vmatpush2.msra.mxu0 0.0
        %8477 = vmatprep.subr.mxu0 0.0
        %8478 = vmatpush2.msra.mxu0 0.0
        %8479 = vmatprep.subr.mxu0 0.0
        %8480 = vmatpush2.msra.mxu0 0.0
        %8481 = vmatprep.subr.mxu0 0.0
        %8482 = vmatpush2.msra.mxu0 0.0
        %8483 = vmatprep.subr.mxu0 0.0
        %8484 = vmatpush2.msra.mxu0 0.0
        %8485 = vmatprep.subr.mxu0 0.0
        %8486 = vmatpush2.msra.mxu0 0.0
        %8487 = vmatprep.subr.mxu0 0.0
        %8488 = vmatpush2.msra.mxu0 0.0
        %8489 = vmatprep.subr.mxu0 0.0
        %8490 = vmatpush2.msra.mxu0 0.0
        %8491 = vmatprep.mubr.f32.mxu0 0.0
        %8492 = vmatmul.mubr.f32.gmra.mxu0 %v8425
        %v8493 = vpop.f32.mrf.mxu0
        %v8494 = vadd.f32 0.0, %v8493
        %v8495 = vpop.f32.mrf.mxu0
        %8496 = vdwg.mxu0
        %s8497 = scalar_lea.vmem %s9, 96
        %v8498 = vld [vmem:[%s8497] sm:$0xff]
        %v8499 = vld [vmem:[%s8497 + $0x8] sm:$0xff]
        %v8501 = vsel %vm7462, %v8494, 0
        %8503 = vmatprep.subr.mxu0 0.0
        %8504 = vmatpush1.msra.mxu0 0.0
        %8505 = vmatprep.subr.mxu0 0.0
        %8506 = vmatpush1.msra.mxu0 0.0
        %8507 = vmatprep.subr.mxu0 0.0
        %8508 = vmatpush1.msra.mxu0 0.0
        %8509 = vmatprep.subr.mxu0 0.0
        %8510 = vmatpush1.msra.mxu0 0.0
        %8511 = vmatprep.subr.mxu0 0.0
        %8512 = vmatpush1.msra.mxu0 0.0
        %8513 = vmatprep.subr.mxu0 0.0
        %8514 = vmatpush1.msra.mxu0 0.0
        %8515 = vmatprep.subr.mxu0 0.0
        %8516 = vmatpush1.msra.mxu0 0.0
        %8517 = vmatprep.subr.mxu0 0.0
        %8518 = vmatpush1.msra.mxu0 0.0
        %8519 = vmatprep.subr.mxu0 0.0
        %8520 = vmatpush1.msra.mxu0 0.0
        %8521 = vmatprep.subr.mxu0 0.0
        %8522 = vmatpush1.msra.mxu0 0.0
        %8523 = vmatprep.subr.mxu0 0.0
        %8524 = vmatpush1.msra.mxu0 0.0
        %8525 = vmatprep.subr.mxu0 0.0
        %8526 = vmatpush1.msra.mxu0 0.0
        %8527 = vmatprep.subr.mxu0 0.0
        %8528 = vmatpush1.msra.mxu0 0.0
        %8529 = vmatprep.subr.mxu0 0.0
        %8530 = vmatpush1.msra.mxu0 0.0
        %8531 = vmatprep.subr.mxu0 0.0
        %8532 = vmatpush1.msra.mxu0 %v8499
        %8533 = vmatprep.subr.mxu0 0.0
        %8534 = vmatpush1.msra.mxu0 %v8498
        %8535 = vmatprep.subr.mxu0 0.0
        %8536 = vmatpush2.msra.mxu0 0.0
        %8537 = vmatprep.subr.mxu0 0.0
        %8538 = vmatpush2.msra.mxu0 0.0
        %8539 = vmatprep.subr.mxu0 0.0
        %8540 = vmatpush2.msra.mxu0 0.0
        %8541 = vmatprep.subr.mxu0 0.0
        %8542 = vmatpush2.msra.mxu0 0.0
        %8543 = vmatprep.subr.mxu0 0.0
        %8544 = vmatpush2.msra.mxu0 0.0
        %8545 = vmatprep.subr.mxu0 0.0
        %8546 = vmatpush2.msra.mxu0 0.0
        %8547 = vmatprep.subr.mxu0 0.0
        %8548 = vmatpush2.msra.mxu0 0.0
        %8549 = vmatprep.subr.mxu0 0.0
        %8550 = vmatpush2.msra.mxu0 0.0
        %8551 = vmatprep.subr.mxu0 0.0
        %8552 = vmatpush2.msra.mxu0 0.0
        %8553 = vmatprep.subr.mxu0 0.0
        %8554 = vmatpush2.msra.mxu0 0.0
        %8555 = vmatprep.subr.mxu0 0.0
        %8556 = vmatpush2.msra.mxu0 0.0
        %8557 = vmatprep.subr.mxu0 0.0
        %8558 = vmatpush2.msra.mxu0 0.0
        %8559 = vmatprep.subr.mxu0 0.0
        %8560 = vmatpush2.msra.mxu0 0.0
        %8561 = vmatprep.subr.mxu0 0.0
        %8562 = vmatpush2.msra.mxu0 0.0
        %8563 = vmatprep.subr.mxu0 0.0
        %8564 = vmatpush2.msra.mxu0 0.0
        %8565 = vmatprep.subr.mxu0 0.0
        %8566 = vmatpush2.msra.mxu0 0.0
        %8567 = vmatprep.mubr.f32.mxu0 0.0
        %8568 = vmatmul.mubr.f32.gmra.mxu0 %v8501
        %v8569 = vpop.f32.mrf.mxu0
        %v8570 = vadd.f32 0.0, %v8569
        %v8571 = vpop.f32.mrf.mxu0
        %8572 = vdwg.mxu0
        %v8573 = vadd.f32 %v8421, %v8570
        %s8574 = scalar_lea.vmem %s8, 28
        %v8575 = vld [vmem:[%s8574] sm:$0xf]
        %v8577 = vsel %vm7462, %v8575, 0
        %8579 = vmatprep.subr.mxu0 0.0
        %8580 = vmatpush1.msra.mxu0 0.0
        %8581 = vmatprep.subr.mxu0 0.0
        %8582 = vmatpush1.msra.mxu0 0.0
        %8583 = vmatprep.subr.mxu0 0.0
        %8584 = vmatpush1.msra.mxu0 0.0
        %8585 = vmatprep.subr.mxu0 0.0
        %8586 = vmatpush1.msra.mxu0 0.0
        %8587 = vmatprep.subr.mxu0 0.0
        %8588 = vmatpush1.msra.mxu0 0.0
        %8589 = vmatprep.subr.mxu0 0.0
        %8590 = vmatpush1.msra.mxu0 0.0
        %8591 = vmatprep.subr.mxu0 0.0
        %8592 = vmatpush1.msra.mxu0 0.0
        %8593 = vmatprep.subr.mxu0 0.0
        %8594 = vmatpush1.msra.mxu0 0.0
        %8595 = vmatprep.subr.mxu0 0.0
        %8596 = vmatpush1.msra.mxu0 0.0
        %8597 = vmatprep.subr.mxu0 0.0
        %8598 = vmatpush1.msra.mxu0 0.0
        %8599 = vmatprep.subr.mxu0 0.0
        %8600 = vmatpush1.msra.mxu0 0.0
        %8601 = vmatprep.subr.mxu0 0.0
        %8602 = vmatpush1.msra.mxu0 0.0
        %8603 = vmatprep.subr.mxu0 0.0
        %8604 = vmatpush1.msra.mxu0 0.0
        %8605 = vmatprep.subr.mxu0 0.0
        %8606 = vmatpush1.msra.mxu0 0.0
        %8607 = vmatprep.subr.mxu0 0.0
        %8608 = vmatpush1.msra.mxu0 %v7513
        %8609 = vmatprep.subr.mxu0 0.0
        %8610 = vmatpush1.msra.mxu0 %v7512
        %8611 = vmatprep.subr.mxu0 0.0
        %8612 = vmatpush2.msra.mxu0 0.0
        %8613 = vmatprep.subr.mxu0 0.0
        %8614 = vmatpush2.msra.mxu0 0.0
        %8615 = vmatprep.subr.mxu0 0.0
        %8616 = vmatpush2.msra.mxu0 0.0
        %8617 = vmatprep.subr.mxu0 0.0
        %8618 = vmatpush2.msra.mxu0 0.0
        %8619 = vmatprep.subr.mxu0 0.0
        %8620 = vmatpush2.msra.mxu0 0.0
        %8621 = vmatprep.subr.mxu0 0.0
        %8622 = vmatpush2.msra.mxu0 0.0
        %8623 = vmatprep.subr.mxu0 0.0
        %8624 = vmatpush2.msra.mxu0 0.0
        %8625 = vmatprep.subr.mxu0 0.0
        %8626 = vmatpush2.msra.mxu0 0.0
        %8627 = vmatprep.subr.mxu0 0.0
        %8628 = vmatpush2.msra.mxu0 0.0
        %8629 = vmatprep.subr.mxu0 0.0
        %8630 = vmatpush2.msra.mxu0 0.0
        %8631 = vmatprep.subr.mxu0 0.0
        %8632 = vmatpush2.msra.mxu0 0.0
        %8633 = vmatprep.subr.mxu0 0.0
        %8634 = vmatpush2.msra.mxu0 0.0
        %8635 = vmatprep.subr.mxu0 0.0
        %8636 = vmatpush2.msra.mxu0 0.0
        %8637 = vmatprep.subr.mxu0 0.0
        %8638 = vmatpush2.msra.mxu0 0.0
        %8639 = vmatprep.subr.mxu0 0.0
        %8640 = vmatpush2.msra.mxu0 0.0
        %8641 = vmatprep.subr.mxu0 0.0
        %8642 = vmatpush2.msra.mxu0 0.0
        %8643 = vmatprep.mubr.f32.mxu0 0.0
        %8644 = vmatmul.mubr.f32.gmra.mxu0 %v8577
        %v8645 = vpop.f32.mrf.mxu0
        %v8646 = vadd.f32 0.0, %v8645
        %v8647 = vpop.f32.mrf.mxu0
        %8648 = vdwg.mxu0
        %s8649 = scalar_lea.vmem %s9, 112
        %v8650 = vld [vmem:[%s8649] sm:$0xff]
        %v8651 = vld [vmem:[%s8649 + $0x8] sm:$0xff]
        %v8653 = vsel %vm7462, %v8646, 0
        %8655 = vmatprep.subr.mxu0 0.0
        %8656 = vmatpush1.msra.mxu0 0.0
        %8657 = vmatprep.subr.mxu0 0.0
        %8658 = vmatpush1.msra.mxu0 0.0
        %8659 = vmatprep.subr.mxu0 0.0
        %8660 = vmatpush1.msra.mxu0 0.0
        %8661 = vmatprep.subr.mxu0 0.0
        %8662 = vmatpush1.msra.mxu0 0.0
        %8663 = vmatprep.subr.mxu0 0.0
        %8664 = vmatpush1.msra.mxu0 0.0
        %8665 = vmatprep.subr.mxu0 0.0
        %8666 = vmatpush1.msra.mxu0 0.0
        %8667 = vmatprep.subr.mxu0 0.0
        %8668 = vmatpush1.msra.mxu0 0.0
        %8669 = vmatprep.subr.mxu0 0.0
        %8670 = vmatpush1.msra.mxu0 0.0
        %8671 = vmatprep.subr.mxu0 0.0
        %8672 = vmatpush1.msra.mxu0 0.0
        %8673 = vmatprep.subr.mxu0 0.0
        %8674 = vmatpush1.msra.mxu0 0.0
        %8675 = vmatprep.subr.mxu0 0.0
        %8676 = vmatpush1.msra.mxu0 0.0
        %8677 = vmatprep.subr.mxu0 0.0
        %8678 = vmatpush1.msra.mxu0 0.0
        %8679 = vmatprep.subr.mxu0 0.0
        %8680 = vmatpush1.msra.mxu0 0.0
        %8681 = vmatprep.subr.mxu0 0.0
        %8682 = vmatpush1.msra.mxu0 0.0
        %8683 = vmatprep.subr.mxu0 0.0
        %8684 = vmatpush1.msra.mxu0 %v8651
        %8685 = vmatprep.subr.mxu0 0.0
        %8686 = vmatpush1.msra.mxu0 %v8650
        %8687 = vmatprep.subr.mxu0 0.0
        %8688 = vmatpush2.msra.mxu0 0.0
        %8689 = vmatprep.subr.mxu0 0.0
        %8690 = vmatpush2.msra.mxu0 0.0
        %8691 = vmatprep.subr.mxu0 0.0
        %8692 = vmatpush2.msra.mxu0 0.0
        %8693 = vmatprep.subr.mxu0 0.0
        %8694 = vmatpush2.msra.mxu0 0.0
        %8695 = vmatprep.subr.mxu0 0.0
        %8696 = vmatpush2.msra.mxu0 0.0
        %8697 = vmatprep.subr.mxu0 0.0
        %8698 = vmatpush2.msra.mxu0 0.0
        %8699 = vmatprep.subr.mxu0 0.0
        %8700 = vmatpush2.msra.mxu0 0.0
        %8701 = vmatprep.subr.mxu0 0.0
        %8702 = vmatpush2.msra.mxu0 0.0
        %8703 = vmatprep.subr.mxu0 0.0
        %8704 = vmatpush2.msra.mxu0 0.0
        %8705 = vmatprep.subr.mxu0 0.0
        %8706 = vmatpush2.msra.mxu0 0.0
        %8707 = vmatprep.subr.mxu0 0.0
        %8708 = vmatpush2.msra.mxu0 0.0
        %8709 = vmatprep.subr.mxu0 0.0
        %8710 = vmatpush2.msra.mxu0 0.0
        %8711 = vmatprep.subr.mxu0 0.0
        %8712 = vmatpush2.msra.mxu0 0.0
        %8713 = vmatprep.subr.mxu0 0.0
        %8714 = vmatpush2.msra.mxu0 0.0
        %8715 = vmatprep.subr.mxu0 0.0
        %8716 = vmatpush2.msra.mxu0 0.0
        %8717 = vmatprep.subr.mxu0 0.0
        %8718 = vmatpush2.msra.mxu0 0.0
        %8719 = vmatprep.mubr.f32.mxu0 0.0
        %8720 = vmatmul.mubr.f32.gmra.mxu0 %v8653
        %v8721 = vpop.f32.mrf.mxu0
        %v8722 = vadd.f32 0.0, %v8721
        %v8723 = vpop.f32.mrf.mxu0
        %8724 = vdwg.mxu0
        %v8725 = vadd.f32 %v8573, %v8722
        %s8726 = scalar_lea.vmem %s8, 32
        %v8727 = vld [vmem:[%s8726] sm:$0xf]
        %v8729 = vsel %vm7462, %v8727, 0
        %8731 = vmatprep.subr.mxu0 0.0
        %8732 = vmatpush1.msra.mxu0 0.0
        %8733 = vmatprep.subr.mxu0 0.0
        %8734 = vmatpush1.msra.mxu0 0.0
        %8735 = vmatprep.subr.mxu0 0.0
        %8736 = vmatpush1.msra.mxu0 0.0
        %8737 = vmatprep.subr.mxu0 0.0
        %8738 = vmatpush1.msra.mxu0 0.0
        %8739 = vmatprep.subr.mxu0 0.0
        %8740 = vmatpush1.msra.mxu0 0.0
        %8741 = vmatprep.subr.mxu0 0.0
        %8742 = vmatpush1.msra.mxu0 0.0
        %8743 = vmatprep.subr.mxu0 0.0
        %8744 = vmatpush1.msra.mxu0 0.0
        %8745 = vmatprep.subr.mxu0 0.0
        %8746 = vmatpush1.msra.mxu0 0.0
        %8747 = vmatprep.subr.mxu0 0.0
        %8748 = vmatpush1.msra.mxu0 0.0
        %8749 = vmatprep.subr.mxu0 0.0
        %8750 = vmatpush1.msra.mxu0 0.0
        %8751 = vmatprep.subr.mxu0 0.0
        %8752 = vmatpush1.msra.mxu0 0.0
        %8753 = vmatprep.subr.mxu0 0.0
        %8754 = vmatpush1.msra.mxu0 0.0
        %8755 = vmatprep.subr.mxu0 0.0
        %8756 = vmatpush1.msra.mxu0 0.0
        %8757 = vmatprep.subr.mxu0 0.0
        %8758 = vmatpush1.msra.mxu0 0.0
        %8759 = vmatprep.subr.mxu0 0.0
        %8760 = vmatpush1.msra.mxu0 %v7513
        %8761 = vmatprep.subr.mxu0 0.0
        %8762 = vmatpush1.msra.mxu0 %v7512
        %8763 = vmatprep.subr.mxu0 0.0
        %8764 = vmatpush2.msra.mxu0 0.0
        %8765 = vmatprep.subr.mxu0 0.0
        %8766 = vmatpush2.msra.mxu0 0.0
        %8767 = vmatprep.subr.mxu0 0.0
        %8768 = vmatpush2.msra.mxu0 0.0
        %8769 = vmatprep.subr.mxu0 0.0
        %8770 = vmatpush2.msra.mxu0 0.0
        %8771 = vmatprep.subr.mxu0 0.0
        %8772 = vmatpush2.msra.mxu0 0.0
        %8773 = vmatprep.subr.mxu0 0.0
        %8774 = vmatpush2.msra.mxu0 0.0
        %8775 = vmatprep.subr.mxu0 0.0
        %8776 = vmatpush2.msra.mxu0 0.0
        %8777 = vmatprep.subr.mxu0 0.0
        %8778 = vmatpush2.msra.mxu0 0.0
        %8779 = vmatprep.subr.mxu0 0.0
        %8780 = vmatpush2.msra.mxu0 0.0
        %8781 = vmatprep.subr.mxu0 0.0
        %8782 = vmatpush2.msra.mxu0 0.0
        %8783 = vmatprep.subr.mxu0 0.0
        %8784 = vmatpush2.msra.mxu0 0.0
        %8785 = vmatprep.subr.mxu0 0.0
        %8786 = vmatpush2.msra.mxu0 0.0
        %8787 = vmatprep.subr.mxu0 0.0
        %8788 = vmatpush2.msra.mxu0 0.0
        %8789 = vmatprep.subr.mxu0 0.0
        %8790 = vmatpush2.msra.mxu0 0.0
        %8791 = vmatprep.subr.mxu0 0.0
        %8792 = vmatpush2.msra.mxu0 0.0
        %8793 = vmatprep.subr.mxu0 0.0
        %8794 = vmatpush2.msra.mxu0 0.0
        %8795 = vmatprep.mubr.f32.mxu0 0.0
        %8796 = vmatmul.mubr.f32.gmra.mxu0 %v8729
        %v8797 = vpop.f32.mrf.mxu0
        %v8798 = vadd.f32 0.0, %v8797
        %v8799 = vpop.f32.mrf.mxu0
        %8800 = vdwg.mxu0
        %s8801 = scalar_lea.vmem %s9, 128
        %v8802 = vld [vmem:[%s8801] sm:$0xff]
        %v8803 = vld [vmem:[%s8801 + $0x8] sm:$0xff]
        %v8805 = vsel %vm7462, %v8798, 0
        %8807 = vmatprep.subr.mxu0 0.0
        %8808 = vmatpush1.msra.mxu0 0.0
        %8809 = vmatprep.subr.mxu0 0.0
        %8810 = vmatpush1.msra.mxu0 0.0
        %8811 = vmatprep.subr.mxu0 0.0
        %8812 = vmatpush1.msra.mxu0 0.0
        %8813 = vmatprep.subr.mxu0 0.0
        %8814 = vmatpush1.msra.mxu0 0.0
        %8815 = vmatprep.subr.mxu0 0.0
        %8816 = vmatpush1.msra.mxu0 0.0
        %8817 = vmatprep.subr.mxu0 0.0
        %8818 = vmatpush1.msra.mxu0 0.0
        %8819 = vmatprep.subr.mxu0 0.0
        %8820 = vmatpush1.msra.mxu0 0.0
        %8821 = vmatprep.subr.mxu0 0.0
        %8822 = vmatpush1.msra.mxu0 0.0
        %8823 = vmatprep.subr.mxu0 0.0
        %8824 = vmatpush1.msra.mxu0 0.0
        %8825 = vmatprep.subr.mxu0 0.0
        %8826 = vmatpush1.msra.mxu0 0.0
        %8827 = vmatprep.subr.mxu0 0.0
        %8828 = vmatpush1.msra.mxu0 0.0
        %8829 = vmatprep.subr.mxu0 0.0
        %8830 = vmatpush1.msra.mxu0 0.0
        %8831 = vmatprep.subr.mxu0 0.0
        %8832 = vmatpush1.msra.mxu0 0.0
        %8833 = vmatprep.subr.mxu0 0.0
        %8834 = vmatpush1.msra.mxu0 0.0
        %8835 = vmatprep.subr.mxu0 0.0
        %8836 = vmatpush1.msra.mxu0 %v8803
        %8837 = vmatprep.subr.mxu0 0.0
        %8838 = vmatpush1.msra.mxu0 %v8802
        %8839 = vmatprep.subr.mxu0 0.0
        %8840 = vmatpush2.msra.mxu0 0.0
        %8841 = vmatprep.subr.mxu0 0.0
        %8842 = vmatpush2.msra.mxu0 0.0
        %8843 = vmatprep.subr.mxu0 0.0
        %8844 = vmatpush2.msra.mxu0 0.0
        %8845 = vmatprep.subr.mxu0 0.0
        %8846 = vmatpush2.msra.mxu0 0.0
        %8847 = vmatprep.subr.mxu0 0.0
        %8848 = vmatpush2.msra.mxu0 0.0
        %8849 = vmatprep.subr.mxu0 0.0
        %8850 = vmatpush2.msra.mxu0 0.0
        %8851 = vmatprep.subr.mxu0 0.0
        %8852 = vmatpush2.msra.mxu0 0.0
        %8853 = vmatprep.subr.mxu0 0.0
        %8854 = vmatpush2.msra.mxu0 0.0
        %8855 = vmatprep.subr.mxu0 0.0
        %8856 = vmatpush2.msra.mxu0 0.0
        %8857 = vmatprep.subr.mxu0 0.0
        %8858 = vmatpush2.msra.mxu0 0.0
        %8859 = vmatprep.subr.mxu0 0.0
        %8860 = vmatpush2.msra.mxu0 0.0
        %8861 = vmatprep.subr.mxu0 0.0
        %8862 = vmatpush2.msra.mxu0 0.0
        %8863 = vmatprep.subr.mxu0 0.0
        %8864 = vmatpush2.msra.mxu0 0.0
        %8865 = vmatprep.subr.mxu0 0.0
        %8866 = vmatpush2.msra.mxu0 0.0
        %8867 = vmatprep.subr.mxu0 0.0
        %8868 = vmatpush2.msra.mxu0 0.0
        %8869 = vmatprep.subr.mxu0 0.0
        %8870 = vmatpush2.msra.mxu0 0.0
        %8871 = vmatprep.mubr.f32.mxu0 0.0
        %8872 = vmatmul.mubr.f32.gmra.mxu0 %v8805
        %v8873 = vpop.f32.mrf.mxu0
        %v8874 = vadd.f32 0.0, %v8873
        %v8875 = vpop.f32.mrf.mxu0
        %8876 = vdwg.mxu0
        %v8877 = vadd.f32 %v8725, %v8874
        %s8878 = scalar_lea.vmem %s8, 36
        %v8879 = vld [vmem:[%s8878] sm:$0xf]
        %v8881 = vsel %vm7462, %v8879, 0
        %8883 = vmatprep.subr.mxu0 0.0
        %8884 = vmatpush1.msra.mxu0 0.0
        %8885 = vmatprep.subr.mxu0 0.0
        %8886 = vmatpush1.msra.mxu0 0.0
        %8887 = vmatprep.subr.mxu0 0.0
        %8888 = vmatpush1.msra.mxu0 0.0
        %8889 = vmatprep.subr.mxu0 0.0
        %8890 = vmatpush1.msra.mxu0 0.0
        %8891 = vmatprep.subr.mxu0 0.0
        %8892 = vmatpush1.msra.mxu0 0.0
        %8893 = vmatprep.subr.mxu0 0.0
        %8894 = vmatpush1.msra.mxu0 0.0
        %8895 = vmatprep.subr.mxu0 0.0
        %8896 = vmatpush1.msra.mxu0 0.0
        %8897 = vmatprep.subr.mxu0 0.0
        %8898 = vmatpush1.msra.mxu0 0.0
        %8899 = vmatprep.subr.mxu0 0.0
        %8900 = vmatpush1.msra.mxu0 0.0
        %8901 = vmatprep.subr.mxu0 0.0
        %8902 = vmatpush1.msra.mxu0 0.0
        %8903 = vmatprep.subr.mxu0 0.0
        %8904 = vmatpush1.msra.mxu0 0.0
        %8905 = vmatprep.subr.mxu0 0.0
        %8906 = vmatpush1.msra.mxu0 0.0
        %8907 = vmatprep.subr.mxu0 0.0
        %8908 = vmatpush1.msra.mxu0 0.0
        %8909 = vmatprep.subr.mxu0 0.0
        %8910 = vmatpush1.msra.mxu0 0.0
        %8911 = vmatprep.subr.mxu0 0.0
        %8912 = vmatpush1.msra.mxu0 %v7513
        %8913 = vmatprep.subr.mxu0 0.0
        %8914 = vmatpush1.msra.mxu0 %v7512
        %8915 = vmatprep.subr.mxu0 0.0
        %8916 = vmatpush2.msra.mxu0 0.0
        %8917 = vmatprep.subr.mxu0 0.0
        %8918 = vmatpush2.msra.mxu0 0.0
        %8919 = vmatprep.subr.mxu0 0.0
        %8920 = vmatpush2.msra.mxu0 0.0
        %8921 = vmatprep.subr.mxu0 0.0
        %8922 = vmatpush2.msra.mxu0 0.0
        %8923 = vmatprep.subr.mxu0 0.0
        %8924 = vmatpush2.msra.mxu0 0.0
        %8925 = vmatprep.subr.mxu0 0.0
        %8926 = vmatpush2.msra.mxu0 0.0
        %8927 = vmatprep.subr.mxu0 0.0
        %8928 = vmatpush2.msra.mxu0 0.0
        %8929 = vmatprep.subr.mxu0 0.0
        %8930 = vmatpush2.msra.mxu0 0.0
        %8931 = vmatprep.subr.mxu0 0.0
        %8932 = vmatpush2.msra.mxu0 0.0
        %8933 = vmatprep.subr.mxu0 0.0
        %8934 = vmatpush2.msra.mxu0 0.0
        %8935 = vmatprep.subr.mxu0 0.0
        %8936 = vmatpush2.msra.mxu0 0.0
        %8937 = vmatprep.subr.mxu0 0.0
        %8938 = vmatpush2.msra.mxu0 0.0
        %8939 = vmatprep.subr.mxu0 0.0
        %8940 = vmatpush2.msra.mxu0 0.0
        %8941 = vmatprep.subr.mxu0 0.0
        %8942 = vmatpush2.msra.mxu0 0.0
        %8943 = vmatprep.subr.mxu0 0.0
        %8944 = vmatpush2.msra.mxu0 0.0
        %8945 = vmatprep.subr.mxu0 0.0
        %8946 = vmatpush2.msra.mxu0 0.0
        %8947 = vmatprep.mubr.f32.mxu0 0.0
        %8948 = vmatmul.mubr.f32.gmra.mxu0 %v8881
        %v8949 = vpop.f32.mrf.mxu0
        %v8950 = vadd.f32 0.0, %v8949
        %v8951 = vpop.f32.mrf.mxu0
        %8952 = vdwg.mxu0
        %s8953 = scalar_lea.vmem %s9, 144
        %v8954 = vld [vmem:[%s8953] sm:$0xff]
        %v8955 = vld [vmem:[%s8953 + $0x8] sm:$0xff]
        %v8957 = vsel %vm7462, %v8950, 0
        %8959 = vmatprep.subr.mxu0 0.0
        %8960 = vmatpush1.msra.mxu0 0.0
        %8961 = vmatprep.subr.mxu0 0.0
        %8962 = vmatpush1.msra.mxu0 0.0
        %8963 = vmatprep.subr.mxu0 0.0
        %8964 = vmatpush1.msra.mxu0 0.0
        %8965 = vmatprep.subr.mxu0 0.0
        %8966 = vmatpush1.msra.mxu0 0.0
        %8967 = vmatprep.subr.mxu0 0.0
        %8968 = vmatpush1.msra.mxu0 0.0
        %8969 = vmatprep.subr.mxu0 0.0
        %8970 = vmatpush1.msra.mxu0 0.0
        %8971 = vmatprep.subr.mxu0 0.0
        %8972 = vmatpush1.msra.mxu0 0.0
        %8973 = vmatprep.subr.mxu0 0.0
        %8974 = vmatpush1.msra.mxu0 0.0
        %8975 = vmatprep.subr.mxu0 0.0
        %8976 = vmatpush1.msra.mxu0 0.0
        %8977 = vmatprep.subr.mxu0 0.0
        %8978 = vmatpush1.msra.mxu0 0.0
        %8979 = vmatprep.subr.mxu0 0.0
        %8980 = vmatpush1.msra.mxu0 0.0
        %8981 = vmatprep.subr.mxu0 0.0
        %8982 = vmatpush1.msra.mxu0 0.0
        %8983 = vmatprep.subr.mxu0 0.0
        %8984 = vmatpush1.msra.mxu0 0.0
        %8985 = vmatprep.subr.mxu0 0.0
        %8986 = vmatpush1.msra.mxu0 0.0
        %8987 = vmatprep.subr.mxu0 0.0
        %8988 = vmatpush1.msra.mxu0 %v8955
        %8989 = vmatprep.subr.mxu0 0.0
        %8990 = vmatpush1.msra.mxu0 %v8954
        %8991 = vmatprep.subr.mxu0 0.0
        %8992 = vmatpush2.msra.mxu0 0.0
        %8993 = vmatprep.subr.mxu0 0.0
        %8994 = vmatpush2.msra.mxu0 0.0
        %8995 = vmatprep.subr.mxu0 0.0
        %8996 = vmatpush2.msra.mxu0 0.0
        %8997 = vmatprep.subr.mxu0 0.0
        %8998 = vmatpush2.msra.mxu0 0.0
        %8999 = vmatprep.subr.mxu0 0.0
        %9000 = vmatpush2.msra.mxu0 0.0
        %9001 = vmatprep.subr.mxu0 0.0
        %9002 = vmatpush2.msra.mxu0 0.0
        %9003 = vmatprep.subr.mxu0 0.0
        %9004 = vmatpush2.msra.mxu0 0.0
        %9005 = vmatprep.subr.mxu0 0.0
        %9006 = vmatpush2.msra.mxu0 0.0
        %9007 = vmatprep.subr.mxu0 0.0
        %9008 = vmatpush2.msra.mxu0 0.0
        %9009 = vmatprep.subr.mxu0 0.0
        %9010 = vmatpush2.msra.mxu0 0.0
        %9011 = vmatprep.subr.mxu0 0.0
        %9012 = vmatpush2.msra.mxu0 0.0
        %9013 = vmatprep.subr.mxu0 0.0
        %9014 = vmatpush2.msra.mxu0 0.0
        %9015 = vmatprep.subr.mxu0 0.0
        %9016 = vmatpush2.msra.mxu0 0.0
        %9017 = vmatprep.subr.mxu0 0.0
        %9018 = vmatpush2.msra.mxu0 0.0
        %9019 = vmatprep.subr.mxu0 0.0
        %9020 = vmatpush2.msra.mxu0 0.0
        %9021 = vmatprep.subr.mxu0 0.0
        %9022 = vmatpush2.msra.mxu0 0.0
        %9023 = vmatprep.mubr.f32.mxu0 0.0
        %9024 = vmatmul.mubr.f32.gmra.mxu0 %v8957
        %v9025 = vpop.f32.mrf.mxu0
        %v9026 = vadd.f32 0.0, %v9025
        %v9027 = vpop.f32.mrf.mxu0
        %9028 = vdwg.mxu0
        %v9029 = vadd.f32 %v8877, %v9026
        %s9030 = scalar_lea.vmem %s8, 40
        %v9031 = vld [vmem:[%s9030] sm:$0xf]
        %v9033 = vsel %vm7462, %v9031, 0
        %9035 = vmatprep.subr.mxu0 0.0
        %9036 = vmatpush1.msra.mxu0 0.0
        %9037 = vmatprep.subr.mxu0 0.0
        %9038 = vmatpush1.msra.mxu0 0.0
        %9039 = vmatprep.subr.mxu0 0.0
        %9040 = vmatpush1.msra.mxu0 0.0
        %9041 = vmatprep.subr.mxu0 0.0
        %9042 = vmatpush1.msra.mxu0 0.0
        %9043 = vmatprep.subr.mxu0 0.0
        %9044 = vmatpush1.msra.mxu0 0.0
        %9045 = vmatprep.subr.mxu0 0.0
        %9046 = vmatpush1.msra.mxu0 0.0
        %9047 = vmatprep.subr.mxu0 0.0
        %9048 = vmatpush1.msra.mxu0 0.0
        %9049 = vmatprep.subr.mxu0 0.0
        %9050 = vmatpush1.msra.mxu0 0.0
        %9051 = vmatprep.subr.mxu0 0.0
        %9052 = vmatpush1.msra.mxu0 0.0
        %9053 = vmatprep.subr.mxu0 0.0
        %9054 = vmatpush1.msra.mxu0 0.0
        %9055 = vmatprep.subr.mxu0 0.0
        %9056 = vmatpush1.msra.mxu0 0.0
        %9057 = vmatprep.subr.mxu0 0.0
        %9058 = vmatpush1.msra.mxu0 0.0
        %9059 = vmatprep.subr.mxu0 0.0
        %9060 = vmatpush1.msra.mxu0 0.0
        %9061 = vmatprep.subr.mxu0 0.0
        %9062 = vmatpush1.msra.mxu0 0.0
        %9063 = vmatprep.subr.mxu0 0.0
        %9064 = vmatpush1.msra.mxu0 %v7513
        %9065 = vmatprep.subr.mxu0 0.0
        %9066 = vmatpush1.msra.mxu0 %v7512
        %9067 = vmatprep.subr.mxu0 0.0
        %9068 = vmatpush2.msra.mxu0 0.0
        %9069 = vmatprep.subr.mxu0 0.0
        %9070 = vmatpush2.msra.mxu0 0.0
        %9071 = vmatprep.subr.mxu0 0.0
        %9072 = vmatpush2.msra.mxu0 0.0
        %9073 = vmatprep.subr.mxu0 0.0
        %9074 = vmatpush2.msra.mxu0 0.0
        %9075 = vmatprep.subr.mxu0 0.0
        %9076 = vmatpush2.msra.mxu0 0.0
        %9077 = vmatprep.subr.mxu0 0.0
        %9078 = vmatpush2.msra.mxu0 0.0
        %9079 = vmatprep.subr.mxu0 0.0
        %9080 = vmatpush2.msra.mxu0 0.0
        %9081 = vmatprep.subr.mxu0 0.0
        %9082 = vmatpush2.msra.mxu0 0.0
        %9083 = vmatprep.subr.mxu0 0.0
        %9084 = vmatpush2.msra.mxu0 0.0
        %9085 = vmatprep.subr.mxu0 0.0
        %9086 = vmatpush2.msra.mxu0 0.0
        %9087 = vmatprep.subr.mxu0 0.0
        %9088 = vmatpush2.msra.mxu0 0.0
        %9089 = vmatprep.subr.mxu0 0.0
        %9090 = vmatpush2.msra.mxu0 0.0
        %9091 = vmatprep.subr.mxu0 0.0
        %9092 = vmatpush2.msra.mxu0 0.0
        %9093 = vmatprep.subr.mxu0 0.0
        %9094 = vmatpush2.msra.mxu0 0.0
        %9095 = vmatprep.subr.mxu0 0.0
        %9096 = vmatpush2.msra.mxu0 0.0
        %9097 = vmatprep.subr.mxu0 0.0
        %9098 = vmatpush2.msra.mxu0 0.0
        %9099 = vmatprep.mubr.f32.mxu0 0.0
        %9100 = vmatmul.mubr.f32.gmra.mxu0 %v9033
        %v9101 = vpop.f32.mrf.mxu0
        %v9102 = vadd.f32 0.0, %v9101
        %v9103 = vpop.f32.mrf.mxu0
        %9104 = vdwg.mxu0
        %s9105 = scalar_lea.vmem %s9, 160
        %v9106 = vld [vmem:[%s9105] sm:$0xff]
        %v9107 = vld [vmem:[%s9105 + $0x8] sm:$0xff]
        %v9109 = vsel %vm7462, %v9102, 0
        %9111 = vmatprep.subr.mxu0 0.0
        %9112 = vmatpush1.msra.mxu0 0.0
        %9113 = vmatprep.subr.mxu0 0.0
        %9114 = vmatpush1.msra.mxu0 0.0
        %9115 = vmatprep.subr.mxu0 0.0
        %9116 = vmatpush1.msra.mxu0 0.0
        %9117 = vmatprep.subr.mxu0 0.0
        %9118 = vmatpush1.msra.mxu0 0.0
        %9119 = vmatprep.subr.mxu0 0.0
        %9120 = vmatpush1.msra.mxu0 0.0
        %9121 = vmatprep.subr.mxu0 0.0
        %9122 = vmatpush1.msra.mxu0 0.0
        %9123 = vmatprep.subr.mxu0 0.0
        %9124 = vmatpush1.msra.mxu0 0.0
        %9125 = vmatprep.subr.mxu0 0.0
        %9126 = vmatpush1.msra.mxu0 0.0
        %9127 = vmatprep.subr.mxu0 0.0
        %9128 = vmatpush1.msra.mxu0 0.0
        %9129 = vmatprep.subr.mxu0 0.0
        %9130 = vmatpush1.msra.mxu0 0.0
        %9131 = vmatprep.subr.mxu0 0.0
        %9132 = vmatpush1.msra.mxu0 0.0
        %9133 = vmatprep.subr.mxu0 0.0
        %9134 = vmatpush1.msra.mxu0 0.0
        %9135 = vmatprep.subr.mxu0 0.0
        %9136 = vmatpush1.msra.mxu0 0.0
        %9137 = vmatprep.subr.mxu0 0.0
        %9138 = vmatpush1.msra.mxu0 0.0
        %9139 = vmatprep.subr.mxu0 0.0
        %9140 = vmatpush1.msra.mxu0 %v9107
        %9141 = vmatprep.subr.mxu0 0.0
        %9142 = vmatpush1.msra.mxu0 %v9106
        %9143 = vmatprep.subr.mxu0 0.0
        %9144 = vmatpush2.msra.mxu0 0.0
        %9145 = vmatprep.subr.mxu0 0.0
        %9146 = vmatpush2.msra.mxu0 0.0
        %9147 = vmatprep.subr.mxu0 0.0
        %9148 = vmatpush2.msra.mxu0 0.0
        %9149 = vmatprep.subr.mxu0 0.0
        %9150 = vmatpush2.msra.mxu0 0.0
        %9151 = vmatprep.subr.mxu0 0.0
        %9152 = vmatpush2.msra.mxu0 0.0
        %9153 = vmatprep.subr.mxu0 0.0
        %9154 = vmatpush2.msra.mxu0 0.0
        %9155 = vmatprep.subr.mxu0 0.0
        %9156 = vmatpush2.msra.mxu0 0.0
        %9157 = vmatprep.subr.mxu0 0.0
        %9158 = vmatpush2.msra.mxu0 0.0
        %9159 = vmatprep.subr.mxu0 0.0
        %9160 = vmatpush2.msra.mxu0 0.0
        %9161 = vmatprep.subr.mxu0 0.0
        %9162 = vmatpush2.msra.mxu0 0.0
        %9163 = vmatprep.subr.mxu0 0.0
        %9164 = vmatpush2.msra.mxu0 0.0
        %9165 = vmatprep.subr.mxu0 0.0
        %9166 = vmatpush2.msra.mxu0 0.0
        %9167 = vmatprep.subr.mxu0 0.0
        %9168 = vmatpush2.msra.mxu0 0.0
        %9169 = vmatprep.subr.mxu0 0.0
        %9170 = vmatpush2.msra.mxu0 0.0
        %9171 = vmatprep.subr.mxu0 0.0
        %9172 = vmatpush2.msra.mxu0 0.0
        %9173 = vmatprep.subr.mxu0 0.0
        %9174 = vmatpush2.msra.mxu0 0.0
        %9175 = vmatprep.mubr.f32.mxu0 0.0
        %9176 = vmatmul.mubr.f32.gmra.mxu0 %v9109
        %v9177 = vpop.f32.mrf.mxu0
        %v9178 = vadd.f32 0.0, %v9177
        %v9179 = vpop.f32.mrf.mxu0
        %9180 = vdwg.mxu0
        %v9181 = vadd.f32 %v9029, %v9178
        %s9182 = scalar_lea.vmem %s8, 44
        %v9183 = vld [vmem:[%s9182] sm:$0xf]
        %v9185 = vsel %vm7462, %v9183, 0
        %9187 = vmatprep.subr.mxu0 0.0
        %9188 = vmatpush1.msra.mxu0 0.0
        %9189 = vmatprep.subr.mxu0 0.0
        %9190 = vmatpush1.msra.mxu0 0.0
        %9191 = vmatprep.subr.mxu0 0.0
        %9192 = vmatpush1.msra.mxu0 0.0
        %9193 = vmatprep.subr.mxu0 0.0
        %9194 = vmatpush1.msra.mxu0 0.0
        %9195 = vmatprep.subr.mxu0 0.0
        %9196 = vmatpush1.msra.mxu0 0.0
        %9197 = vmatprep.subr.mxu0 0.0
        %9198 = vmatpush1.msra.mxu0 0.0
        %9199 = vmatprep.subr.mxu0 0.0
        %9200 = vmatpush1.msra.mxu0 0.0
        %9201 = vmatprep.subr.mxu0 0.0
        %9202 = vmatpush1.msra.mxu0 0.0
        %9203 = vmatprep.subr.mxu0 0.0
        %9204 = vmatpush1.msra.mxu0 0.0
        %9205 = vmatprep.subr.mxu0 0.0
        %9206 = vmatpush1.msra.mxu0 0.0
        %9207 = vmatprep.subr.mxu0 0.0
        %9208 = vmatpush1.msra.mxu0 0.0
        %9209 = vmatprep.subr.mxu0 0.0
        %9210 = vmatpush1.msra.mxu0 0.0
        %9211 = vmatprep.subr.mxu0 0.0
        %9212 = vmatpush1.msra.mxu0 0.0
        %9213 = vmatprep.subr.mxu0 0.0
        %9214 = vmatpush1.msra.mxu0 0.0
        %9215 = vmatprep.subr.mxu0 0.0
        %9216 = vmatpush1.msra.mxu0 %v7513
        %9217 = vmatprep.subr.mxu0 0.0
        %9218 = vmatpush1.msra.mxu0 %v7512
        %9219 = vmatprep.subr.mxu0 0.0
        %9220 = vmatpush2.msra.mxu0 0.0
        %9221 = vmatprep.subr.mxu0 0.0
        %9222 = vmatpush2.msra.mxu0 0.0
        %9223 = vmatprep.subr.mxu0 0.0
        %9224 = vmatpush2.msra.mxu0 0.0
        %9225 = vmatprep.subr.mxu0 0.0
        %9226 = vmatpush2.msra.mxu0 0.0
        %9227 = vmatprep.subr.mxu0 0.0
        %9228 = vmatpush2.msra.mxu0 0.0
        %9229 = vmatprep.subr.mxu0 0.0
        %9230 = vmatpush2.msra.mxu0 0.0
        %9231 = vmatprep.subr.mxu0 0.0
        %9232 = vmatpush2.msra.mxu0 0.0
        %9233 = vmatprep.subr.mxu0 0.0
        %9234 = vmatpush2.msra.mxu0 0.0
        %9235 = vmatprep.subr.mxu0 0.0
        %9236 = vmatpush2.msra.mxu0 0.0
        %9237 = vmatprep.subr.mxu0 0.0
        %9238 = vmatpush2.msra.mxu0 0.0
        %9239 = vmatprep.subr.mxu0 0.0
        %9240 = vmatpush2.msra.mxu0 0.0
        %9241 = vmatprep.subr.mxu0 0.0
        %9242 = vmatpush2.msra.mxu0 0.0
        %9243 = vmatprep.subr.mxu0 0.0
        %9244 = vmatpush2.msra.mxu0 0.0
        %9245 = vmatprep.subr.mxu0 0.0
        %9246 = vmatpush2.msra.mxu0 0.0
        %9247 = vmatprep.subr.mxu0 0.0
        %9248 = vmatpush2.msra.mxu0 0.0
        %9249 = vmatprep.subr.mxu0 0.0
        %9250 = vmatpush2.msra.mxu0 0.0
        %9251 = vmatprep.mubr.f32.mxu0 0.0
        %9252 = vmatmul.mubr.f32.gmra.mxu0 %v9185
        %v9253 = vpop.f32.mrf.mxu0
        %v9254 = vadd.f32 0.0, %v9253
        %v9255 = vpop.f32.mrf.mxu0
        %9256 = vdwg.mxu0
        %s9257 = scalar_lea.vmem %s9, 176
        %v9258 = vld [vmem:[%s9257] sm:$0xff]
        %v9259 = vld [vmem:[%s9257 + $0x8] sm:$0xff]
        %v9261 = vsel %vm7462, %v9254, 0
        %9263 = vmatprep.subr.mxu0 0.0
        %9264 = vmatpush1.msra.mxu0 0.0
        %9265 = vmatprep.subr.mxu0 0.0
        %9266 = vmatpush1.msra.mxu0 0.0
        %9267 = vmatprep.subr.mxu0 0.0
        %9268 = vmatpush1.msra.mxu0 0.0
        %9269 = vmatprep.subr.mxu0 0.0
        %9270 = vmatpush1.msra.mxu0 0.0
        %9271 = vmatprep.subr.mxu0 0.0
        %9272 = vmatpush1.msra.mxu0 0.0
        %9273 = vmatprep.subr.mxu0 0.0
        %9274 = vmatpush1.msra.mxu0 0.0
        %9275 = vmatprep.subr.mxu0 0.0
        %9276 = vmatpush1.msra.mxu0 0.0
        %9277 = vmatprep.subr.mxu0 0.0
        %9278 = vmatpush1.msra.mxu0 0.0
        %9279 = vmatprep.subr.mxu0 0.0
        %9280 = vmatpush1.msra.mxu0 0.0
        %9281 = vmatprep.subr.mxu0 0.0
        %9282 = vmatpush1.msra.mxu0 0.0
        %9283 = vmatprep.subr.mxu0 0.0
        %9284 = vmatpush1.msra.mxu0 0.0
        %9285 = vmatprep.subr.mxu0 0.0
        %9286 = vmatpush1.msra.mxu0 0.0
        %9287 = vmatprep.subr.mxu0 0.0
        %9288 = vmatpush1.msra.mxu0 0.0
        %9289 = vmatprep.subr.mxu0 0.0
        %9290 = vmatpush1.msra.mxu0 0.0
        %9291 = vmatprep.subr.mxu0 0.0
        %9292 = vmatpush1.msra.mxu0 %v9259
        %9293 = vmatprep.subr.mxu0 0.0
        %9294 = vmatpush1.msra.mxu0 %v9258
        %9295 = vmatprep.subr.mxu0 0.0
        %9296 = vmatpush2.msra.mxu0 0.0
        %9297 = vmatprep.subr.mxu0 0.0
        %9298 = vmatpush2.msra.mxu0 0.0
        %9299 = vmatprep.subr.mxu0 0.0
        %9300 = vmatpush2.msra.mxu0 0.0
        %9301 = vmatprep.subr.mxu0 0.0
        %9302 = vmatpush2.msra.mxu0 0.0
        %9303 = vmatprep.subr.mxu0 0.0
        %9304 = vmatpush2.msra.mxu0 0.0
        %9305 = vmatprep.subr.mxu0 0.0
        %9306 = vmatpush2.msra.mxu0 0.0
        %9307 = vmatprep.subr.mxu0 0.0
        %9308 = vmatpush2.msra.mxu0 0.0
        %9309 = vmatprep.subr.mxu0 0.0
        %9310 = vmatpush2.msra.mxu0 0.0
        %9311 = vmatprep.subr.mxu0 0.0
        %9312 = vmatpush2.msra.mxu0 0.0
        %9313 = vmatprep.subr.mxu0 0.0
        %9314 = vmatpush2.msra.mxu0 0.0
        %9315 = vmatprep.subr.mxu0 0.0
        %9316 = vmatpush2.msra.mxu0 0.0
        %9317 = vmatprep.subr.mxu0 0.0
        %9318 = vmatpush2.msra.mxu0 0.0
        %9319 = vmatprep.subr.mxu0 0.0
        %9320 = vmatpush2.msra.mxu0 0.0
        %9321 = vmatprep.subr.mxu0 0.0
        %9322 = vmatpush2.msra.mxu0 0.0
        %9323 = vmatprep.subr.mxu0 0.0
        %9324 = vmatpush2.msra.mxu0 0.0
        %9325 = vmatprep.subr.mxu0 0.0
        %9326 = vmatpush2.msra.mxu0 0.0
        %9327 = vmatprep.mubr.f32.mxu0 0.0
        %9328 = vmatmul.mubr.f32.gmra.mxu0 %v9261
        %v9329 = vpop.f32.mrf.mxu0
        %v9330 = vadd.f32 0.0, %v9329
        %v9331 = vpop.f32.mrf.mxu0
        %9332 = vdwg.mxu0
        %v9333 = vadd.f32 %v9181, %v9330
        %s9334 = scalar_lea.vmem %s8, 48
        %v9335 = vld [vmem:[%s9334] sm:$0xf]
        %v9337 = vsel %vm7462, %v9335, 0
        %9339 = vmatprep.subr.mxu0 0.0
        %9340 = vmatpush1.msra.mxu0 0.0
        %9341 = vmatprep.subr.mxu0 0.0
        %9342 = vmatpush1.msra.mxu0 0.0
        %9343 = vmatprep.subr.mxu0 0.0
        %9344 = vmatpush1.msra.mxu0 0.0
        %9345 = vmatprep.subr.mxu0 0.0
        %9346 = vmatpush1.msra.mxu0 0.0
        %9347 = vmatprep.subr.mxu0 0.0
        %9348 = vmatpush1.msra.mxu0 0.0
        %9349 = vmatprep.subr.mxu0 0.0
        %9350 = vmatpush1.msra.mxu0 0.0
        %9351 = vmatprep.subr.mxu0 0.0
        %9352 = vmatpush1.msra.mxu0 0.0
        %9353 = vmatprep.subr.mxu0 0.0
        %9354 = vmatpush1.msra.mxu0 0.0
        %9355 = vmatprep.subr.mxu0 0.0
        %9356 = vmatpush1.msra.mxu0 0.0
        %9357 = vmatprep.subr.mxu0 0.0
        %9358 = vmatpush1.msra.mxu0 0.0
        %9359 = vmatprep.subr.mxu0 0.0
        %9360 = vmatpush1.msra.mxu0 0.0
        %9361 = vmatprep.subr.mxu0 0.0
        %9362 = vmatpush1.msra.mxu0 0.0
        %9363 = vmatprep.subr.mxu0 0.0
        %9364 = vmatpush1.msra.mxu0 0.0
        %9365 = vmatprep.subr.mxu0 0.0
        %9366 = vmatpush1.msra.mxu0 0.0
        %9367 = vmatprep.subr.mxu0 0.0
        %9368 = vmatpush1.msra.mxu0 %v7513
        %9369 = vmatprep.subr.mxu0 0.0
        %9370 = vmatpush1.msra.mxu0 %v7512
        %9371 = vmatprep.subr.mxu0 0.0
        %9372 = vmatpush2.msra.mxu0 0.0
        %9373 = vmatprep.subr.mxu0 0.0
        %9374 = vmatpush2.msra.mxu0 0.0
        %9375 = vmatprep.subr.mxu0 0.0
        %9376 = vmatpush2.msra.mxu0 0.0
        %9377 = vmatprep.subr.mxu0 0.0
        %9378 = vmatpush2.msra.mxu0 0.0
        %9379 = vmatprep.subr.mxu0 0.0
        %9380 = vmatpush2.msra.mxu0 0.0
        %9381 = vmatprep.subr.mxu0 0.0
        %9382 = vmatpush2.msra.mxu0 0.0
        %9383 = vmatprep.subr.mxu0 0.0
        %9384 = vmatpush2.msra.mxu0 0.0
        %9385 = vmatprep.subr.mxu0 0.0
        %9386 = vmatpush2.msra.mxu0 0.0
        %9387 = vmatprep.subr.mxu0 0.0
        %9388 = vmatpush2.msra.mxu0 0.0
        %9389 = vmatprep.subr.mxu0 0.0
        %9390 = vmatpush2.msra.mxu0 0.0
        %9391 = vmatprep.subr.mxu0 0.0
        %9392 = vmatpush2.msra.mxu0 0.0
        %9393 = vmatprep.subr.mxu0 0.0
        %9394 = vmatpush2.msra.mxu0 0.0
        %9395 = vmatprep.subr.mxu0 0.0
        %9396 = vmatpush2.msra.mxu0 0.0
        %9397 = vmatprep.subr.mxu0 0.0
        %9398 = vmatpush2.msra.mxu0 0.0
        %9399 = vmatprep.subr.mxu0 0.0
        %9400 = vmatpush2.msra.mxu0 0.0
        %9401 = vmatprep.subr.mxu0 0.0
        %9402 = vmatpush2.msra.mxu0 0.0
        %9403 = vmatprep.mubr.f32.mxu0 0.0
        %9404 = vmatmul.mubr.f32.gmra.mxu0 %v9337
        %v9405 = vpop.f32.mrf.mxu0
        %v9406 = vadd.f32 0.0, %v9405
        %v9407 = vpop.f32.mrf.mxu0
        %9408 = vdwg.mxu0
        %s9409 = scalar_lea.vmem %s9, 192
        %v9410 = vld [vmem:[%s9409] sm:$0xff]
        %v9411 = vld [vmem:[%s9409 + $0x8] sm:$0xff]
        %v9413 = vsel %vm7462, %v9406, 0
        %9415 = vmatprep.subr.mxu0 0.0
        %9416 = vmatpush1.msra.mxu0 0.0
        %9417 = vmatprep.subr.mxu0 0.0
        %9418 = vmatpush1.msra.mxu0 0.0
        %9419 = vmatprep.subr.mxu0 0.0
        %9420 = vmatpush1.msra.mxu0 0.0
        %9421 = vmatprep.subr.mxu0 0.0
        %9422 = vmatpush1.msra.mxu0 0.0
        %9423 = vmatprep.subr.mxu0 0.0
        %9424 = vmatpush1.msra.mxu0 0.0
        %9425 = vmatprep.subr.mxu0 0.0
        %9426 = vmatpush1.msra.mxu0 0.0
        %9427 = vmatprep.subr.mxu0 0.0
        %9428 = vmatpush1.msra.mxu0 0.0
        %9429 = vmatprep.subr.mxu0 0.0
        %9430 = vmatpush1.msra.mxu0 0.0
        %9431 = vmatprep.subr.mxu0 0.0
        %9432 = vmatpush1.msra.mxu0 0.0
        %9433 = vmatprep.subr.mxu0 0.0
        %9434 = vmatpush1.msra.mxu0 0.0
        %9435 = vmatprep.subr.mxu0 0.0
        %9436 = vmatpush1.msra.mxu0 0.0
        %9437 = vmatprep.subr.mxu0 0.0
        %9438 = vmatpush1.msra.mxu0 0.0
        %9439 = vmatprep.subr.mxu0 0.0
        %9440 = vmatpush1.msra.mxu0 0.0
        %9441 = vmatprep.subr.mxu0 0.0
        %9442 = vmatpush1.msra.mxu0 0.0
        %9443 = vmatprep.subr.mxu0 0.0
        %9444 = vmatpush1.msra.mxu0 %v9411
        %9445 = vmatprep.subr.mxu0 0.0
        %9446 = vmatpush1.msra.mxu0 %v9410
        %9447 = vmatprep.subr.mxu0 0.0
        %9448 = vmatpush2.msra.mxu0 0.0
        %9449 = vmatprep.subr.mxu0 0.0
        %9450 = vmatpush2.msra.mxu0 0.0
        %9451 = vmatprep.subr.mxu0 0.0
        %9452 = vmatpush2.msra.mxu0 0.0
        %9453 = vmatprep.subr.mxu0 0.0
        %9454 = vmatpush2.msra.mxu0 0.0
        %9455 = vmatprep.subr.mxu0 0.0
        %9456 = vmatpush2.msra.mxu0 0.0
        %9457 = vmatprep.subr.mxu0 0.0
        %9458 = vmatpush2.msra.mxu0 0.0
        %9459 = vmatprep.subr.mxu0 0.0
        %9460 = vmatpush2.msra.mxu0 0.0
        %9461 = vmatprep.subr.mxu0 0.0
        %9462 = vmatpush2.msra.mxu0 0.0
        %9463 = vmatprep.subr.mxu0 0.0
        %9464 = vmatpush2.msra.mxu0 0.0
        %9465 = vmatprep.subr.mxu0 0.0
        %9466 = vmatpush2.msra.mxu0 0.0
        %9467 = vmatprep.subr.mxu0 0.0
        %9468 = vmatpush2.msra.mxu0 0.0
        %9469 = vmatprep.subr.mxu0 0.0
        %9470 = vmatpush2.msra.mxu0 0.0
        %9471 = vmatprep.subr.mxu0 0.0
        %9472 = vmatpush2.msra.mxu0 0.0
        %9473 = vmatprep.subr.mxu0 0.0
        %9474 = vmatpush2.msra.mxu0 0.0
        %9475 = vmatprep.subr.mxu0 0.0
        %9476 = vmatpush2.msra.mxu0 0.0
        %9477 = vmatprep.subr.mxu0 0.0
        %9478 = vmatpush2.msra.mxu0 0.0
        %9479 = vmatprep.mubr.f32.mxu0 0.0
        %9480 = vmatmul.mubr.f32.gmra.mxu0 %v9413
        %v9481 = vpop.f32.mrf.mxu0
        %v9482 = vadd.f32 0.0, %v9481
        %v9483 = vpop.f32.mrf.mxu0
        %9484 = vdwg.mxu0
        %v9485 = vadd.f32 %v9333, %v9482
        %s9486 = scalar_lea.vmem %s8, 52
        %v9487 = vld [vmem:[%s9486] sm:$0xf]
        %v9489 = vsel %vm7462, %v9487, 0
        %9491 = vmatprep.subr.mxu0 0.0
        %9492 = vmatpush1.msra.mxu0 0.0
        %9493 = vmatprep.subr.mxu0 0.0
        %9494 = vmatpush1.msra.mxu0 0.0
        %9495 = vmatprep.subr.mxu0 0.0
        %9496 = vmatpush1.msra.mxu0 0.0
        %9497 = vmatprep.subr.mxu0 0.0
        %9498 = vmatpush1.msra.mxu0 0.0
        %9499 = vmatprep.subr.mxu0 0.0
        %9500 = vmatpush1.msra.mxu0 0.0
        %9501 = vmatprep.subr.mxu0 0.0
        %9502 = vmatpush1.msra.mxu0 0.0
        %9503 = vmatprep.subr.mxu0 0.0
        %9504 = vmatpush1.msra.mxu0 0.0
        %9505 = vmatprep.subr.mxu0 0.0
        %9506 = vmatpush1.msra.mxu0 0.0
        %9507 = vmatprep.subr.mxu0 0.0
        %9508 = vmatpush1.msra.mxu0 0.0
        %9509 = vmatprep.subr.mxu0 0.0
        %9510 = vmatpush1.msra.mxu0 0.0
        %9511 = vmatprep.subr.mxu0 0.0
        %9512 = vmatpush1.msra.mxu0 0.0
        %9513 = vmatprep.subr.mxu0 0.0
        %9514 = vmatpush1.msra.mxu0 0.0
        %9515 = vmatprep.subr.mxu0 0.0
        %9516 = vmatpush1.msra.mxu0 0.0
        %9517 = vmatprep.subr.mxu0 0.0
        %9518 = vmatpush1.msra.mxu0 0.0
        %9519 = vmatprep.subr.mxu0 0.0
        %9520 = vmatpush1.msra.mxu0 %v7513
        %9521 = vmatprep.subr.mxu0 0.0
        %9522 = vmatpush1.msra.mxu0 %v7512
        %9523 = vmatprep.subr.mxu0 0.0
        %9524 = vmatpush2.msra.mxu0 0.0
        %9525 = vmatprep.subr.mxu0 0.0
        %9526 = vmatpush2.msra.mxu0 0.0
        %9527 = vmatprep.subr.mxu0 0.0
        %9528 = vmatpush2.msra.mxu0 0.0
        %9529 = vmatprep.subr.mxu0 0.0
        %9530 = vmatpush2.msra.mxu0 0.0
        %9531 = vmatprep.subr.mxu0 0.0
        %9532 = vmatpush2.msra.mxu0 0.0
        %9533 = vmatprep.subr.mxu0 0.0
        %9534 = vmatpush2.msra.mxu0 0.0
        %9535 = vmatprep.subr.mxu0 0.0
        %9536 = vmatpush2.msra.mxu0 0.0
        %9537 = vmatprep.subr.mxu0 0.0
        %9538 = vmatpush2.msra.mxu0 0.0
        %9539 = vmatprep.subr.mxu0 0.0
        %9540 = vmatpush2.msra.mxu0 0.0
        %9541 = vmatprep.subr.mxu0 0.0
        %9542 = vmatpush2.msra.mxu0 0.0
        %9543 = vmatprep.subr.mxu0 0.0
        %9544 = vmatpush2.msra.mxu0 0.0
        %9545 = vmatprep.subr.mxu0 0.0
        %9546 = vmatpush2.msra.mxu0 0.0
        %9547 = vmatprep.subr.mxu0 0.0
        %9548 = vmatpush2.msra.mxu0 0.0
        %9549 = vmatprep.subr.mxu0 0.0
        %9550 = vmatpush2.msra.mxu0 0.0
        %9551 = vmatprep.subr.mxu0 0.0
        %9552 = vmatpush2.msra.mxu0 0.0
        %9553 = vmatprep.subr.mxu0 0.0
        %9554 = vmatpush2.msra.mxu0 0.0
        %9555 = vmatprep.mubr.f32.mxu0 0.0
        %9556 = vmatmul.mubr.f32.gmra.mxu0 %v9489
        %v9557 = vpop.f32.mrf.mxu0
        %v9558 = vadd.f32 0.0, %v9557
        %v9559 = vpop.f32.mrf.mxu0
        %9560 = vdwg.mxu0
        %s9561 = scalar_lea.vmem %s9, 208
        %v9562 = vld [vmem:[%s9561] sm:$0xff]
        %v9563 = vld [vmem:[%s9561 + $0x8] sm:$0xff]
        %v9565 = vsel %vm7462, %v9558, 0
        %9567 = vmatprep.subr.mxu0 0.0
        %9568 = vmatpush1.msra.mxu0 0.0
        %9569 = vmatprep.subr.mxu0 0.0
        %9570 = vmatpush1.msra.mxu0 0.0
        %9571 = vmatprep.subr.mxu0 0.0
        %9572 = vmatpush1.msra.mxu0 0.0
        %9573 = vmatprep.subr.mxu0 0.0
        %9574 = vmatpush1.msra.mxu0 0.0
        %9575 = vmatprep.subr.mxu0 0.0
        %9576 = vmatpush1.msra.mxu0 0.0
        %9577 = vmatprep.subr.mxu0 0.0
        %9578 = vmatpush1.msra.mxu0 0.0
        %9579 = vmatprep.subr.mxu0 0.0
        %9580 = vmatpush1.msra.mxu0 0.0
        %9581 = vmatprep.subr.mxu0 0.0
        %9582 = vmatpush1.msra.mxu0 0.0
        %9583 = vmatprep.subr.mxu0 0.0
        %9584 = vmatpush1.msra.mxu0 0.0
        %9585 = vmatprep.subr.mxu0 0.0
        %9586 = vmatpush1.msra.mxu0 0.0
        %9587 = vmatprep.subr.mxu0 0.0
        %9588 = vmatpush1.msra.mxu0 0.0
        %9589 = vmatprep.subr.mxu0 0.0
        %9590 = vmatpush1.msra.mxu0 0.0
        %9591 = vmatprep.subr.mxu0 0.0
        %9592 = vmatpush1.msra.mxu0 0.0
        %9593 = vmatprep.subr.mxu0 0.0
        %9594 = vmatpush1.msra.mxu0 0.0
        %9595 = vmatprep.subr.mxu0 0.0
        %9596 = vmatpush1.msra.mxu0 %v9563
        %9597 = vmatprep.subr.mxu0 0.0
        %9598 = vmatpush1.msra.mxu0 %v9562
        %9599 = vmatprep.subr.mxu0 0.0
        %9600 = vmatpush2.msra.mxu0 0.0
        %9601 = vmatprep.subr.mxu0 0.0
        %9602 = vmatpush2.msra.mxu0 0.0
        %9603 = vmatprep.subr.mxu0 0.0
        %9604 = vmatpush2.msra.mxu0 0.0
        %9605 = vmatprep.subr.mxu0 0.0
        %9606 = vmatpush2.msra.mxu0 0.0
        %9607 = vmatprep.subr.mxu0 0.0
        %9608 = vmatpush2.msra.mxu0 0.0
        %9609 = vmatprep.subr.mxu0 0.0
        %9610 = vmatpush2.msra.mxu0 0.0
        %9611 = vmatprep.subr.mxu0 0.0
        %9612 = vmatpush2.msra.mxu0 0.0
        %9613 = vmatprep.subr.mxu0 0.0
        %9614 = vmatpush2.msra.mxu0 0.0
        %9615 = vmatprep.subr.mxu0 0.0
        %9616 = vmatpush2.msra.mxu0 0.0
        %9617 = vmatprep.subr.mxu0 0.0
        %9618 = vmatpush2.msra.mxu0 0.0
        %9619 = vmatprep.subr.mxu0 0.0
        %9620 = vmatpush2.msra.mxu0 0.0
        %9621 = vmatprep.subr.mxu0 0.0
        %9622 = vmatpush2.msra.mxu0 0.0
        %9623 = vmatprep.subr.mxu0 0.0
        %9624 = vmatpush2.msra.mxu0 0.0
        %9625 = vmatprep.subr.mxu0 0.0
        %9626 = vmatpush2.msra.mxu0 0.0
        %9627 = vmatprep.subr.mxu0 0.0
        %9628 = vmatpush2.msra.mxu0 0.0
        %9629 = vmatprep.subr.mxu0 0.0
        %9630 = vmatpush2.msra.mxu0 0.0
        %9631 = vmatprep.mubr.f32.mxu0 0.0
        %9632 = vmatmul.mubr.f32.gmra.mxu0 %v9565
        %v9633 = vpop.f32.mrf.mxu0
        %v9634 = vadd.f32 0.0, %v9633
        %v9635 = vpop.f32.mrf.mxu0
        %9636 = vdwg.mxu0
        %v9637 = vadd.f32 %v9485, %v9634
        %s9638 = scalar_lea.vmem %s8, 56
        %v9639 = vld [vmem:[%s9638] sm:$0xf]
        %v9641 = vsel %vm7462, %v9639, 0
        %9643 = vmatprep.subr.mxu0 0.0
        %9644 = vmatpush1.msra.mxu0 0.0
        %9645 = vmatprep.subr.mxu0 0.0
        %9646 = vmatpush1.msra.mxu0 0.0
        %9647 = vmatprep.subr.mxu0 0.0
        %9648 = vmatpush1.msra.mxu0 0.0
        %9649 = vmatprep.subr.mxu0 0.0
        %9650 = vmatpush1.msra.mxu0 0.0
        %9651 = vmatprep.subr.mxu0 0.0
        %9652 = vmatpush1.msra.mxu0 0.0
        %9653 = vmatprep.subr.mxu0 0.0
        %9654 = vmatpush1.msra.mxu0 0.0
        %9655 = vmatprep.subr.mxu0 0.0
        %9656 = vmatpush1.msra.mxu0 0.0
        %9657 = vmatprep.subr.mxu0 0.0
        %9658 = vmatpush1.msra.mxu0 0.0
        %9659 = vmatprep.subr.mxu0 0.0
        %9660 = vmatpush1.msra.mxu0 0.0
        %9661 = vmatprep.subr.mxu0 0.0
        %9662 = vmatpush1.msra.mxu0 0.0
        %9663 = vmatprep.subr.mxu0 0.0
        %9664 = vmatpush1.msra.mxu0 0.0
        %9665 = vmatprep.subr.mxu0 0.0
        %9666 = vmatpush1.msra.mxu0 0.0
        %9667 = vmatprep.subr.mxu0 0.0
        %9668 = vmatpush1.msra.mxu0 0.0
        %9669 = vmatprep.subr.mxu0 0.0
        %9670 = vmatpush1.msra.mxu0 0.0
        %9671 = vmatprep.subr.mxu0 0.0
        %9672 = vmatpush1.msra.mxu0 %v7513
        %9673 = vmatprep.subr.mxu0 0.0
        %9674 = vmatpush1.msra.mxu0 %v7512
        %9675 = vmatprep.subr.mxu0 0.0
        %9676 = vmatpush2.msra.mxu0 0.0
        %9677 = vmatprep.subr.mxu0 0.0
        %9678 = vmatpush2.msra.mxu0 0.0
        %9679 = vmatprep.subr.mxu0 0.0
        %9680 = vmatpush2.msra.mxu0 0.0
        %9681 = vmatprep.subr.mxu0 0.0
        %9682 = vmatpush2.msra.mxu0 0.0
        %9683 = vmatprep.subr.mxu0 0.0
        %9684 = vmatpush2.msra.mxu0 0.0
        %9685 = vmatprep.subr.mxu0 0.0
        %9686 = vmatpush2.msra.mxu0 0.0
        %9687 = vmatprep.subr.mxu0 0.0
        %9688 = vmatpush2.msra.mxu0 0.0
        %9689 = vmatprep.subr.mxu0 0.0
        %9690 = vmatpush2.msra.mxu0 0.0
        %9691 = vmatprep.subr.mxu0 0.0
        %9692 = vmatpush2.msra.mxu0 0.0
        %9693 = vmatprep.subr.mxu0 0.0
        %9694 = vmatpush2.msra.mxu0 0.0
        %9695 = vmatprep.subr.mxu0 0.0
        %9696 = vmatpush2.msra.mxu0 0.0
        %9697 = vmatprep.subr.mxu0 0.0
        %9698 = vmatpush2.msra.mxu0 0.0
        %9699 = vmatprep.subr.mxu0 0.0
        %9700 = vmatpush2.msra.mxu0 0.0
        %9701 = vmatprep.subr.mxu0 0.0
        %9702 = vmatpush2.msra.mxu0 0.0
        %9703 = vmatprep.subr.mxu0 0.0
        %9704 = vmatpush2.msra.mxu0 0.0
        %9705 = vmatprep.subr.mxu0 0.0
        %9706 = vmatpush2.msra.mxu0 0.0
        %9707 = vmatprep.mubr.f32.mxu0 0.0
        %9708 = vmatmul.mubr.f32.gmra.mxu0 %v9641
        %v9709 = vpop.f32.mrf.mxu0
        %v9710 = vadd.f32 0.0, %v9709
        %v9711 = vpop.f32.mrf.mxu0
        %9712 = vdwg.mxu0
        %s9713 = scalar_lea.vmem %s9, 224
        %v9714 = vld [vmem:[%s9713] sm:$0xff]
        %v9715 = vld [vmem:[%s9713 + $0x8] sm:$0xff]
        %v9717 = vsel %vm7462, %v9710, 0
        %9719 = vmatprep.subr.mxu0 0.0
        %9720 = vmatpush1.msra.mxu0 0.0
        %9721 = vmatprep.subr.mxu0 0.0
        %9722 = vmatpush1.msra.mxu0 0.0
        %9723 = vmatprep.subr.mxu0 0.0
        %9724 = vmatpush1.msra.mxu0 0.0
        %9725 = vmatprep.subr.mxu0 0.0
        %9726 = vmatpush1.msra.mxu0 0.0
        %9727 = vmatprep.subr.mxu0 0.0
        %9728 = vmatpush1.msra.mxu0 0.0
        %9729 = vmatprep.subr.mxu0 0.0
        %9730 = vmatpush1.msra.mxu0 0.0
        %9731 = vmatprep.subr.mxu0 0.0
        %9732 = vmatpush1.msra.mxu0 0.0
        %9733 = vmatprep.subr.mxu0 0.0
        %9734 = vmatpush1.msra.mxu0 0.0
        %9735 = vmatprep.subr.mxu0 0.0
        %9736 = vmatpush1.msra.mxu0 0.0
        %9737 = vmatprep.subr.mxu0 0.0
        %9738 = vmatpush1.msra.mxu0 0.0
        %9739 = vmatprep.subr.mxu0 0.0
        %9740 = vmatpush1.msra.mxu0 0.0
        %9741 = vmatprep.subr.mxu0 0.0
        %9742 = vmatpush1.msra.mxu0 0.0
        %9743 = vmatprep.subr.mxu0 0.0
        %9744 = vmatpush1.msra.mxu0 0.0
        %9745 = vmatprep.subr.mxu0 0.0
        %9746 = vmatpush1.msra.mxu0 0.0
        %9747 = vmatprep.subr.mxu0 0.0
        %9748 = vmatpush1.msra.mxu0 %v9715
        %9749 = vmatprep.subr.mxu0 0.0
        %9750 = vmatpush1.msra.mxu0 %v9714
        %9751 = vmatprep.subr.mxu0 0.0
        %9752 = vmatpush2.msra.mxu0 0.0
        %9753 = vmatprep.subr.mxu0 0.0
        %9754 = vmatpush2.msra.mxu0 0.0
        %9755 = vmatprep.subr.mxu0 0.0
        %9756 = vmatpush2.msra.mxu0 0.0
        %9757 = vmatprep.subr.mxu0 0.0
        %9758 = vmatpush2.msra.mxu0 0.0
        %9759 = vmatprep.subr.mxu0 0.0
        %9760 = vmatpush2.msra.mxu0 0.0
        %9761 = vmatprep.subr.mxu0 0.0
        %9762 = vmatpush2.msra.mxu0 0.0
        %9763 = vmatprep.subr.mxu0 0.0
        %9764 = vmatpush2.msra.mxu0 0.0
        %9765 = vmatprep.subr.mxu0 0.0
        %9766 = vmatpush2.msra.mxu0 0.0
        %9767 = vmatprep.subr.mxu0 0.0
        %9768 = vmatpush2.msra.mxu0 0.0
        %9769 = vmatprep.subr.mxu0 0.0
        %9770 = vmatpush2.msra.mxu0 0.0
        %9771 = vmatprep.subr.mxu0 0.0
        %9772 = vmatpush2.msra.mxu0 0.0
        %9773 = vmatprep.subr.mxu0 0.0
        %9774 = vmatpush2.msra.mxu0 0.0
        %9775 = vmatprep.subr.mxu0 0.0
        %9776 = vmatpush2.msra.mxu0 0.0
        %9777 = vmatprep.subr.mxu0 0.0
        %9778 = vmatpush2.msra.mxu0 0.0
        %9779 = vmatprep.subr.mxu0 0.0
        %9780 = vmatpush2.msra.mxu0 0.0
        %9781 = vmatprep.subr.mxu0 0.0
        %9782 = vmatpush2.msra.mxu0 0.0
        %9783 = vmatprep.mubr.f32.mxu0 0.0
        %9784 = vmatmul.mubr.f32.gmra.mxu0 %v9717
        %v9785 = vpop.f32.mrf.mxu0
        %v9786 = vadd.f32 0.0, %v9785
        %v9787 = vpop.f32.mrf.mxu0
        %9788 = vdwg.mxu0
        %v9789 = vadd.f32 %v9637, %v9786
        %s9790 = scalar_lea.vmem %s8, 60
        %v9791 = vld [vmem:[%s9790] sm:$0xf]
        %v9793 = vsel %vm7462, %v9791, 0
        %9795 = vmatprep.subr.mxu0 0.0
        %9796 = vmatpush1.msra.mxu0 0.0
        %9797 = vmatprep.subr.mxu0 0.0
        %9798 = vmatpush1.msra.mxu0 0.0
        %9799 = vmatprep.subr.mxu0 0.0
        %9800 = vmatpush1.msra.mxu0 0.0
        %9801 = vmatprep.subr.mxu0 0.0
        %9802 = vmatpush1.msra.mxu0 0.0
        %9803 = vmatprep.subr.mxu0 0.0
        %9804 = vmatpush1.msra.mxu0 0.0
        %9805 = vmatprep.subr.mxu0 0.0
        %9806 = vmatpush1.msra.mxu0 0.0
        %9807 = vmatprep.subr.mxu0 0.0
        %9808 = vmatpush1.msra.mxu0 0.0
        %9809 = vmatprep.subr.mxu0 0.0
        %9810 = vmatpush1.msra.mxu0 0.0
        %9811 = vmatprep.subr.mxu0 0.0
        %9812 = vmatpush1.msra.mxu0 0.0
        %9813 = vmatprep.subr.mxu0 0.0
        %9814 = vmatpush1.msra.mxu0 0.0
        %9815 = vmatprep.subr.mxu0 0.0
        %9816 = vmatpush1.msra.mxu0 0.0
        %9817 = vmatprep.subr.mxu0 0.0
        %9818 = vmatpush1.msra.mxu0 0.0
        %9819 = vmatprep.subr.mxu0 0.0
        %9820 = vmatpush1.msra.mxu0 0.0
        %9821 = vmatprep.subr.mxu0 0.0
        %9822 = vmatpush1.msra.mxu0 0.0
        %9823 = vmatprep.subr.mxu0 0.0
        %9824 = vmatpush1.msra.mxu0 %v7513
        %9825 = vmatprep.subr.mxu0 0.0
        %9826 = vmatpush1.msra.mxu0 %v7512
        %9827 = vmatprep.subr.mxu0 0.0
        %9828 = vmatpush2.msra.mxu0 0.0
        %9829 = vmatprep.subr.mxu0 0.0
        %9830 = vmatpush2.msra.mxu0 0.0
        %9831 = vmatprep.subr.mxu0 0.0
        %9832 = vmatpush2.msra.mxu0 0.0
        %9833 = vmatprep.subr.mxu0 0.0
        %9834 = vmatpush2.msra.mxu0 0.0
        %9835 = vmatprep.subr.mxu0 0.0
        %9836 = vmatpush2.msra.mxu0 0.0
        %9837 = vmatprep.subr.mxu0 0.0
        %9838 = vmatpush2.msra.mxu0 0.0
        %9839 = vmatprep.subr.mxu0 0.0
        %9840 = vmatpush2.msra.mxu0 0.0
        %9841 = vmatprep.subr.mxu0 0.0
        %9842 = vmatpush2.msra.mxu0 0.0
        %9843 = vmatprep.subr.mxu0 0.0
        %9844 = vmatpush2.msra.mxu0 0.0
        %9845 = vmatprep.subr.mxu0 0.0
        %9846 = vmatpush2.msra.mxu0 0.0
        %9847 = vmatprep.subr.mxu0 0.0
        %9848 = vmatpush2.msra.mxu0 0.0
        %9849 = vmatprep.subr.mxu0 0.0
        %9850 = vmatpush2.msra.mxu0 0.0
        %9851 = vmatprep.subr.mxu0 0.0
        %9852 = vmatpush2.msra.mxu0 0.0
        %9853 = vmatprep.subr.mxu0 0.0
        %9854 = vmatpush2.msra.mxu0 0.0
        %9855 = vmatprep.subr.mxu0 0.0
        %9856 = vmatpush2.msra.mxu0 0.0
        %9857 = vmatprep.subr.mxu0 0.0
        %9858 = vmatpush2.msra.mxu0 0.0
        %9859 = vmatprep.mubr.f32.mxu0 0.0
        %9860 = vmatmul.mubr.f32.gmra.mxu0 %v9793
        %v9861 = vpop.f32.mrf.mxu0
        %v9862 = vadd.f32 0.0, %v9861
        %v9863 = vpop.f32.mrf.mxu0
        %9864 = vdwg.mxu0
        %s9865 = scalar_lea.vmem %s9, 240
        %v9866 = vld [vmem:[%s9865] sm:$0xff]
        %v9867 = vld [vmem:[%s9865 + $0x8] sm:$0xff]
        %v9869 = vsel %vm7462, %v9862, 0
        %9871 = vmatprep.subr.mxu0 0.0
        %9872 = vmatpush1.msra.mxu0 0.0
        %9873 = vmatprep.subr.mxu0 0.0
        %9874 = vmatpush1.msra.mxu0 0.0
        %9875 = vmatprep.subr.mxu0 0.0
        %9876 = vmatpush1.msra.mxu0 0.0
        %9877 = vmatprep.subr.mxu0 0.0
        %9878 = vmatpush1.msra.mxu0 0.0
        %9879 = vmatprep.subr.mxu0 0.0
        %9880 = vmatpush1.msra.mxu0 0.0
        %9881 = vmatprep.subr.mxu0 0.0
        %9882 = vmatpush1.msra.mxu0 0.0
        %9883 = vmatprep.subr.mxu0 0.0
        %9884 = vmatpush1.msra.mxu0 0.0
        %9885 = vmatprep.subr.mxu0 0.0
        %9886 = vmatpush1.msra.mxu0 0.0
        %9887 = vmatprep.subr.mxu0 0.0
        %9888 = vmatpush1.msra.mxu0 0.0
        %9889 = vmatprep.subr.mxu0 0.0
        %9890 = vmatpush1.msra.mxu0 0.0
        %9891 = vmatprep.subr.mxu0 0.0
        %9892 = vmatpush1.msra.mxu0 0.0
        %9893 = vmatprep.subr.mxu0 0.0
        %9894 = vmatpush1.msra.mxu0 0.0
        %9895 = vmatprep.subr.mxu0 0.0
        %9896 = vmatpush1.msra.mxu0 0.0
        %9897 = vmatprep.subr.mxu0 0.0
        %9898 = vmatpush1.msra.mxu0 0.0
        %9899 = vmatprep.subr.mxu0 0.0
        %9900 = vmatpush1.msra.mxu0 %v9867
        %9901 = vmatprep.subr.mxu0 0.0
        %9902 = vmatpush1.msra.mxu0 %v9866
        %9903 = vmatprep.subr.mxu0 0.0
        %9904 = vmatpush2.msra.mxu0 0.0
        %9905 = vmatprep.subr.mxu0 0.0
        %9906 = vmatpush2.msra.mxu0 0.0
        %9907 = vmatprep.subr.mxu0 0.0
        %9908 = vmatpush2.msra.mxu0 0.0
        %9909 = vmatprep.subr.mxu0 0.0
        %9910 = vmatpush2.msra.mxu0 0.0
        %9911 = vmatprep.subr.mxu0 0.0
        %9912 = vmatpush2.msra.mxu0 0.0
        %9913 = vmatprep.subr.mxu0 0.0
        %9914 = vmatpush2.msra.mxu0 0.0
        %9915 = vmatprep.subr.mxu0 0.0
        %9916 = vmatpush2.msra.mxu0 0.0
        %9917 = vmatprep.subr.mxu0 0.0
        %9918 = vmatpush2.msra.mxu0 0.0
        %9919 = vmatprep.subr.mxu0 0.0
        %9920 = vmatpush2.msra.mxu0 0.0
        %9921 = vmatprep.subr.mxu0 0.0
        %9922 = vmatpush2.msra.mxu0 0.0
        %9923 = vmatprep.subr.mxu0 0.0
        %9924 = vmatpush2.msra.mxu0 0.0
        %9925 = vmatprep.subr.mxu0 0.0
        %9926 = vmatpush2.msra.mxu0 0.0
        %9927 = vmatprep.subr.mxu0 0.0
        %9928 = vmatpush2.msra.mxu0 0.0
        %9929 = vmatprep.subr.mxu0 0.0
        %9930 = vmatpush2.msra.mxu0 0.0
        %9931 = vmatprep.subr.mxu0 0.0
        %9932 = vmatpush2.msra.mxu0 0.0
        %9933 = vmatprep.subr.mxu0 0.0
        %9934 = vmatpush2.msra.mxu0 0.0
        %9935 = vmatprep.mubr.f32.mxu0 0.0
        %9936 = vmatmul.mubr.f32.gmra.mxu0 %v9869
        %v9937 = vpop.f32.mrf.mxu0
        %v9938 = vadd.f32 0.0, %v9937
        %v9939 = vpop.f32.mrf.mxu0
        %9940 = vdwg.mxu0
        %v9941 = vadd.f32 %v9789, %v9938
        %v9942 = vld [vmem:[%s10] sm:$0x1]
        %v9943 = vld [vmem:[%s11] sm:$0x1]
        %vm9944 = vcmask 257024
        %v9945 = vsel %vm9944, %v9941, 0.0
        %v9946 = vrot.slane %v9945, 4
        %v9947 = vadd.f32 %v9945, %v9946
        %v9948 = vrot.slane %v9947, 2
        %v9949 = vadd.f32 %v9947, %v9948
        %v9950 = vrot.slane %v9949, 1
        %v9951 = vadd.f32 %v9949, %v9950
        %v9952 = vrcp.pop 4.0
        %v9953 = vmul.f32 %v9951, %v9952
        %v9954 = vsub.f32 %v9941, %v9953
        %v9955 = vmul.f32 %v9954, %v9954
        %v9956 = vsel %vm9944, %v9955, 0.0
        %v9957 = vrot.slane %v9956, 4
        %v9958 = vadd.f32 %v9956, %v9957
        %v9959 = vrot.slane %v9958, 2
        %v9960 = vadd.f32 %v9958, %v9959
        %v9961 = vrot.slane %v9960, 1
        %v9962 = vadd.f32 %v9960, %v9961
        %v9963 = vmul.f32 %v9962, %v9952
        %v9964 = vadd.f32 %v9963, 1e-05
        %v9965 = vrsqrt.pop %v9964
        %v9966 = vmul.f32 %v9954, %v9965
        %v9968 = vlaneseq
        %v9969 = vshrl.u32 %v9968, 7
        %v9970 = vsub.s32 0, %v9969
        %v9971 = vrot.slane %v9942, %v9970
        %v9973 = vmul.f32 %v9966, %v9971
        %v9975 = vlaneseq
        %v9976 = vshrl.u32 %v9975, 7
        %v9977 = vsub.s32 0, %v9976
        %v9978 = vrot.slane %v9943, %v9977
        %v9980 = vadd.f32 %v9973, %v9978
        %vm9981 = vcmp.gt.f32.partialorder %v9980, 0.0
        %v9982 = vmul.f32 %v9980, 0.2
        %v9983 = vsel %vm9981, %v9980, %v9982
        %v9984 = vld [vmem:[%s12] sm:$0xf]
        %v9985 = vmul.f32 %v9983, %v9984
        %v9986 = vsel %vm9944, %v9985, 0.0
        %9987 = vadd.xlane.f32.xlu0 %v9986
        %v9988 = vpop.xlane.xlu0 %9987
        %vm9989 = vcmask 1043456
        %v9990 = vsel %vm9989, %v9988, 0.0
        %v9991 = vrot.slane %v9990, 4
        %v9992 = vadd.f32 %v9990, %v9991
        %v9993 = vrot.slane %v9992, 2
        %v9994 = vadd.f32 %v9992, %v9993
        %v9995 = vrot.slane %v9994, 1
        %v9996 = vadd.f32 %v9994, %v9995
        %v9997 = vld [vmem:[#allocation2] sm:$0x1]
        %v9998 = vadd.f32 %v9996, %v9997
        %vm9999 = vcmask 0
        %10000 = vst.msk [vmem:[%s480] sm:$0x1] %vm9999, %v9998
        %p10001 = scmp.lt.s32.totalorder %s28, 1
        %s10002 = scalar_select %p10001, %s28, 1
        %s10003 = scalar_lea.vmem %s14, %s10002
        // Predicated region
        $region81: #{tpu_custom_call.1} parent=75 // pred_check
          %p10004 = pneg %p345
        $region82: #{tpu_custom_call.1} parent=75 // pred_check_branch
          %10006 = sbr.rel (%p10004) target = $region84
        $region83: #{tpu_custom_call.1} parent=75 // pred_region
          _
        $region84: #{tpu_custom_call.1} parent=75 // pred_fallthru
          _
      $region76: #{tpu_custom_call.1} parent=5 // pred_fallthru
        _
      %p10007 = scmp.le.s32.totalorder 2, %s23
      // Predicated region
      $region85: #{tpu_custom_call.1} parent=5 // pred_check
        %p10008 = pneg %p10007
      $region86: #{tpu_custom_call.1} parent=5 // pred_check_branch
        %10010 = sbr.rel (%p10008) target = $region88
      $region87: #{tpu_custom_call.1} parent=5 // pred_region
        %s10011 = ssub.s32 %s23, 2
        // Predicated region
        $region89: #{tpu_custom_call.1} parent=87 // pred_check
          %p10012 = pneg %p351
        $region90: #{tpu_custom_call.1} parent=87 // pred_check_branch
          %10014 = sbr.rel (%p10012) target = $region92
        $region91: #{tpu_custom_call.1} parent=87 // pred_region
          %p10015 = scmp.lt.s32.totalorder %s29, 1
          %s10016 = scalar_select %p10015, %s29, 1
          %s10017 = scalar_lea.vmem %s14, %s10016
        $region92: #{tpu_custom_call.1} parent=87 // pred_fallthru
          _
      $region88: #{tpu_custom_call.1} parent=5 // pred_fallthru
        _
    $region6: #{tpu_custom_call.1} parent=1 // loop_footer
      %s27 = sadd.s32 1, %s23
    $region7: #{tpu_custom_call.1} parent=1 // loop_footer_branch
      %22 = sbr.rel target = $region3
    $region8: #{tpu_custom_call.1} parent=1 // loop_exit
      _
    %10018 = vsyncpa [#allocation4], 1
    %s10019 = scalar_lea.sflag [#allocation4], 1
    %10020 = vsyncpa %s10019, 1

</llo_original>
